<compile_context>
chip_gen: v5e
topology: v5e:2x2
jax: 0.10.0
libtpu: 0.0.40
codegen_flags: <defaults>
</compile_context>

<pallas_src>
import functools

import jax
import jax.numpy as jnp
import numpy as np
from jax.experimental import pallas as pl
from jax.experimental.pallas import tpu as pltpu


# ---------------------------------------------------------------------------
# Fused Inception kernel (batch_block images per grid step)
# ---------------------------------------------------------------------------
def _inception_kernel(
    x_ref,                                    # (B, H, W, Cin)     compute dtype
    w1x1_ref, sc1x1_ref, bi1x1_ref,           # fused [b2r | b3r | b1] 1x1
    w2_ref, sc2_ref, bi2_ref,                 # branch-2 3x3
    w3a_ref, sc3a_ref, bi3a_ref,              # branch-3 first 3x3
    w3b_ref, sc3b_ref, bi3b_ref,              # branch-3 second 3x3
    w4_ref, sc4_ref, bi4_ref,                 # branch-4 pool projection 1x1
    o_ref,                                    # (B, H, W, Ctot)    out dtype
    pad_ref,                                  # (B, H+2, W+2, Cmax) shared halo scratch
    *, n1x1, n3r, n3x3, n5r, n5x5, pool_proj, use_im2col,
):
    B, H, W, Cin = x_ref.shape
    M = B * H * W
    ctot = n1x1 + n3x3 + n5x5 + pool_proj
    cdt = w1x1_ref.dtype                      # MXU operand dtype (f32 or bf16)
    pdt = pad_ref.dtype                       # scratch dtype (== compute dtype)

    x = x_ref[...]                            # (B, H, W, Cin)

    # ---- fused 1x1 convs [b2_reduce | b3_reduce | b1]: one wide matmul ------
    y = jnp.dot(x.reshape(M, Cin), w1x1_ref[...],
                preferred_element_type=jnp.float32)
    y = jnp.maximum(y * sc1x1_ref[...] + bi1x1_ref[...], 0.0)  # f32 BN+ReLU
    t2 = y[:, 0:n3r]                           # starts at column 0 (lane-aligned)
    t3 = y[:, n3r:n3r + n5r]
    b1 = y[:, n3r + n5r:n3r + n5r + n1x1]

    # ---- border ring init (cheap, per-use; safe under megacore grid split) --
    def fill_border(cin, value):
        pad_ref[:, 0:1, :, 0:cin] = jnp.full((B, 1, W + 2, cin), value, pdt)
        pad_ref[:, H + 1:H + 2, :, 0:cin] = jnp.full((B, 1, W + 2, cin), value, pdt)
        pad_ref[:, :, 0:1, 0:cin] = jnp.full((B, H + 2, 1, cin), value, pdt)
        pad_ref[:, :, W + 1:W + 2, 0:cin] = jnp.full((B, H + 2, 1, cin), value, pdt)

    # ---- 3x3 conv: zero border + interior write, then MXU ------------------
    def conv3x3(src_f32, cin, w_ref, s_ref, c_ref):
        fill_border(cin, 0.0)
        pad_ref[:, 1:H + 1, 1:W + 1, 0:cin] = (
            src_f32.reshape(B, H, W, cin).astype(pdt))
        if use_im2col:
            # single big-K dot (K = 9*cin); best on v5e's 4x128 MXU
            cols = jnp.concatenate(
                [pad_ref[:, dy:dy + H, dx:dx + W, 0:cin]
                 for dy in range(3) for dx in range(3)],
                axis=-1,
            ).reshape(M, 9 * cin)
            z = jnp.dot(cols.astype(cdt), w_ref[...],
                        preferred_element_type=jnp.float32)
        else:
            # 9 accumulating dots read straight from the padded scratch:
            # no im2col concat / relayout.  (On v7x the compiler can keep the
            # accumulation in the MXU result buffer.)
            z = None
            for dy in range(3):
                for dx in range(3):
                    win = pad_ref[:, dy:dy + H, dx:dx + W, 0:cin].reshape(M, cin)
                    zz = jnp.dot(win.astype(cdt), w_ref[dy * 3 + dx],
                                 preferred_element_type=jnp.float32)
                    z = zz if z is None else z + zz
        return jnp.maximum(z * s_ref[...] + c_ref[...], 0.0)

    # ---- branch 2: 1x1 reduce -> 3x3 (intermediate stays in VMEM) -----------
    b2 = conv3x3(t2, n3r, w2_ref, sc2_ref, bi2_ref)

    # ---- branch 3: 1x1 reduce -> 3x3 -> 3x3 ---------------------------------
    u = conv3x3(t3, n5r, w3a_ref, sc3a_ref, bi3a_ref)
    b3 = conv3x3(u, n5x5, w3b_ref, sc3b_ref, bi3b_ref)

    # ---- branch 4: 3x3 maxpool (stride 1, pad 1) -> 1x1 projection ----------
    fill_border(Cin, -jnp.inf)
    pad_ref[:, 1:H + 1, 1:W + 1, 0:Cin] = x.astype(pdt)
    rmax = jnp.maximum(
        jnp.maximum(pad_ref[:, 0:H, :, 0:Cin], pad_ref[:, 1:H + 1, :, 0:Cin]),
        pad_ref[:, 2:H + 2, :, 0:Cin])                          # (B, H, W+2, Cin)
    pooled = jnp.maximum(
        jnp.maximum(rmax[:, :, 0:W, :], rmax[:, :, 1:W + 1, :]),
        rmax[:, :, 2:W + 2, :])                                 # (B, H, W, Cin)
    z4 = jnp.dot(pooled.reshape(M, Cin).astype(cdt), w4_ref[...],
                 preferred_element_type=jnp.float32)
    b4 = jnp.maximum(z4 * sc4_ref[...] + bi4_ref[...], 0.0)

    # ---- single lane-dense output store (PyTorch channel order b1|b2|b3|b4) -
    out = jnp.concatenate([b1, b2, b3, b4], axis=-1)            # (M, Ctot)
    o_ref[...] = out.reshape(B, H, W, ctot).astype(o_ref.dtype)


# ---------------------------------------------------------------------------
# Wrapper: parameter packing + single pallas_call
# ---------------------------------------------------------------------------
def inception_forward(x_nchw, p, *, compute_dtype=jnp.float32,
                      out_dtype=jnp.float32, use_im2col=False,
                      batch_block=None, vmem_limit_bytes=48 * 1024 * 1024):
    # NCHW -> NHWC for compute (lane = channels).
    x = jnp.transpose(x_nchw, (0, 2, 3, 1)).astype(compute_dtype)
    N, H, W, Cin = x.shape

    n1x1 = p["b1"]["w"].shape[1]
    n3r = p["b2_reduce"]["w"].shape[1]
    n3x3 = p["b2_conv"]["w"].shape[-1]
    n5r = p["b3_reduce"]["w"].shape[1]
    n5x5 = p["b3_conv_a"]["w"].shape[-1]
    pool_proj = p["b4_proj"]["w"].shape[1]
    ctot = n1x1 + n3x3 + n5x5 + pool_proj

    # Batch blocking: amortize per-step overhead while keeping >=2 grid steps
    # so both v7x TensorCores get work.
    if batch_block is None:
        batch_block = N // 2 if (N >= 4 and N % 2 == 0) else 1
    assert N % batch_block == 0, (N, batch_block)
    grid_n = N // batch_block

    f32 = jnp.float32
    cdt = compute_dtype

    def sb(q, c):
        return (q["scale"].reshape(1, c).astype(f32),
                q["bias"].reshape(1, c).astype(f32))

    # Fused 1x1 ordered [b2_reduce | b3_reduce | b1]: the slices that feed
    # further matmuls (t2, t3) start at lane-friendly column offsets.
    w1x1 = jnp.concatenate(
        [p["b2_reduce"]["w"], p["b3_reduce"]["w"], p["b1"]["w"]], axis=1
    ).astype(cdt)
    sc1x1 = jnp.concatenate(
        [p["b2_reduce"]["scale"], p["b3_reduce"]["scale"], p["b1"]["scale"]]
    ).reshape(1, -1).astype(f32)
    bi1x1 = jnp.concatenate(
        [p["b2_reduce"]["bias"], p["b3_reduce"]["bias"], p["b1"]["bias"]]
    ).reshape(1, -1).astype(f32)

    def pack3x3(q, cin, cout):
        w = q["w"].astype(cdt)                     # (3, 3, cin, cout)
        return w.reshape(9 * cin, cout) if use_im2col else w.reshape(9, cin, cout)

    w2 = pack3x3(p["b2_conv"], n3r, n3x3)
    sc2, bi2 = sb(p["b2_conv"], n3x3)
    w3a = pack3x3(p["b3_conv_a"], n5r, n5x5)
    sc3a, bi3a = sb(p["b3_conv_a"], n5x5)
    w3b = pack3x3(p["b3_conv_b"], n5x5, n5x5)
    sc3b, bi3b = sb(p["b3_conv_b"], n5x5)
    w4 = p["b4_proj"]["w"].astype(cdt)
    sc4, bi4 = sb(p["b4_proj"], pool_proj)

    cmax = max(Cin, n3r, n5r, n5x5)                # one shared halo scratch

    kern = functools.partial(
        _inception_kernel, n1x1=n1x1, n3r=n3r, n3x3=n3x3, n5r=n5r,
        n5x5=n5x5, pool_proj=pool_proj, use_im2col=use_im2col)

    def full(arr):
        nd = arr.ndim
        return pl.BlockSpec(arr.shape, lambda b, _nd=nd: (0,) * _nd)

    out = pl.pallas_call(
        kern,
        out_shape=jax.ShapeDtypeStruct((N, H, W, ctot), out_dtype),
        grid=(grid_n,),
        in_specs=[
            pl.BlockSpec((batch_block, H, W, Cin), lambda b: (b, 0, 0, 0)),
            full(w1x1), full(sc1x1), full(bi1x1),
            full(w2), full(sc2), full(bi2),
            full(w3a), full(sc3a), full(bi3a),
            full(w3b), full(sc3b), full(bi3b),
            full(w4), full(sc4), full(bi4),
        ],
        out_specs=pl.BlockSpec((batch_block, H, W, ctot), lambda b: (b, 0, 0, 0)),
        scratch_shapes=[
            # single shared halo scratch (compute dtype), reused sequentially by
            # branch-2 / branch-3a / branch-3b convs and the maxpool
            pltpu.VMEM((batch_block, H + 2, W + 2, cmax), cdt),
        ],
        compiler_params=pltpu.CompilerParams(
            dimension_semantics=("parallel",),
            vmem_limit_bytes=vmem_limit_bytes,
        ),
    )(x, w1x1, sc1x1, bi1x1, w2, sc2, bi2, w3a, sc3a, bi3a,
      w3b, sc3b, bi3b, w4, sc4, bi4)

    # Back to NCHW to match the PyTorch module's output layout.
    return jnp.transpose(out, (0, 3, 1, 2))


# ---------------------------------------------------------------------------
# Parameter construction (deterministic, BN folded to scale/bias)
# ---------------------------------------------------------------------------
def init_conv_bn(key, cin, cout, ksize):
    k1, k2, k3, k4, k5, k6 = jax.random.split(key, 6)
    if ksize == 1:
        w = jax.random.normal(k1, (cin, cout), jnp.float32) * 0.1
    else:
        w = jax.random.normal(k1, (ksize, ksize, cin, cout), jnp.float32) * 0.1
    conv_b = jax.random.normal(k2, (cout,), jnp.float32) * 0.1
    gamma = 1.0 + 0.1 * jax.random.normal(k3, (cout,), jnp.float32)
    beta = 0.1 * jax.random.normal(k4, (cout,), jnp.float32)
    mean = 0.1 * jax.random.normal(k5, (cout,), jnp.float32)
    var = jax.random.uniform(k6, (cout,), jnp.float32, minval=0.5, maxval=1.5)
    eps = 1e-5
    scale = gamma / jnp.sqrt(var + eps)
    bias = (conv_b - mean) * scale + beta
    return dict(w=w, scale=scale, bias=bias)


def init_inception_params(key, cin, n1x1, n3r, n3x3, n5r, n5x5, pool_proj):
    ks = jax.random.split(key, 8)
    return dict(
        b1=init_conv_bn(ks[0], cin, n1x1, 1),
        b2_reduce=init_conv_bn(ks[1], cin, n3r, 1),
        b2_conv=init_conv_bn(ks[2], n3r, n3x3, 3),
        b3_reduce=init_conv_bn(ks[3], cin, n5r, 1),
        b3_conv_a=init_conv_bn(ks[4], n5r, n5x5, 3),
        b3_conv_b=init_conv_bn(ks[5], n5x5, n5x5, 3),
        b4_proj=init_conv_bn(ks[6], cin, pool_proj, 1),
    )


# ---------------------------------------------------------------------------
# Pure-JAX reference (same folded params) for correctness check
# ---------------------------------------------------------------------------
def _ref_conv_bn_relu(x, w_hwio, scale, bias, padding):
    y = jax.lax.conv_general_dilated(
        x, w_hwio, (1, 1), padding, dimension_numbers=("NHWC", "HWIO", "NHWC")
    )
    return jnp.maximum(y * scale + bias, 0.0)


def inception_reference(x_nchw, p):
    x = jnp.transpose(x_nchw, (0, 2, 3, 1)).astype(jnp.float32)

    def c1(x_, q):
        cin, cout = q["w"].shape
        return _ref_conv_bn_relu(x_, q["w"].reshape(1, 1, cin, cout),
                                 q["scale"], q["bias"], "VALID")

    def c3(x_, q):
        return _ref_conv_bn_relu(x_, q["w"], q["scale"], q["bias"],
                                 [(1, 1), (1, 1)])

    b1 = c1(x, p["b1"])
    b2 = c3(c1(x, p["b2_reduce"]), p["b2_conv"])
    b3 = c3(c3(c1(x, p["b3_reduce"]), p["b3_conv_a"]), p["b3_conv_b"])
    pooled = jax.lax.reduce_window(
        x, -jnp.inf, jax.lax.max, (1, 3, 3, 1), (1, 1, 1, 1), "SAME"
    )
    b4 = c1(pooled, p["b4_proj"])
    out = jnp.concatenate([b1, b2, b3, b4], axis=-1)
    return jnp.transpose(out, (0, 3, 1, 2))


# ---------------------------------------------------------------------------
if __name__ == "__main__":
    # Small shapes consistent with the module.
    N, Cin, H, W = 2, 4, 16, 16
    n1x1, n3r, n3x3, n5r, n5x5, pool_proj = 8, 4, 8, 4, 8, 8

    key = jax.random.PRNGKey(0)
    kx, kp = jax.random.split(key)
    x = jax.random.normal(kx, (N, Cin, H, W), jnp.float32)
    params = init_inception_params(kp, Cin, n1x1, n3r, n3x3, n5r, n5x5, pool_proj)

    expected_c = n1x1 + n3x3 + n5x5 + pool_proj
    ref = jax.block_until_ready(inception_reference(x, params))

    # f32 operands, accumulating-dot conv (default; recommended on v6e/v7x).
    fwd = jax.jit(functools.partial(inception_forward, p=params))
    out = jax.block_until_ready(fwd(x))
    assert out.shape == (N, expected_c, H, W), out.shape
    np.testing.assert_allclose(np.asarray(out), np.asarray(ref),
                               rtol=1e-4, atol=1e-4)

    # f32 operands, single big-K im2col conv (recommended on v5e).
    fwd_im2col = jax.jit(functools.partial(inception_forward, p=params,
                                           use_im2col=True))
    out_i = jax.block_until_ready(fwd_im2col(x))
    np.testing.assert_allclose(np.asarray(out_i), np.asarray(ref),
                               rtol=1e-4, atol=1e-4)

    # bf16 operands + bf16 output (recommended on v6e/v7x); f32 MXU accumulation.
    fwd_bf16 = jax.jit(functools.partial(inception_forward, p=params,
                                         compute_dtype=jnp.bfloat16,
                                         out_dtype=jnp.bfloat16))
    out_bf16 = jax.block_until_ready(fwd_bf16(x))
    assert out_bf16.shape == (N, expected_c, H, W), out_bf16.shape
    np.testing.assert_allclose(np.asarray(out_bf16.astype(jnp.float32)),
                               np.asarray(ref), rtol=2e-2, atol=2e-2)

    print("KERNEL_OK")
</pallas_src>

<mosaic_0001>
module attributes {stable_mosaic.version = 11 : i64} {
  func.func @_inception_kernel(%arg0: i32, %arg1: memref<1x16x16x4xf32, #tpu.memory_space<vmem>>, %arg2: memref<4x16xf32, #tpu.memory_space<vmem>>, %arg3: memref<1x16xf32, #tpu.memory_space<vmem>>, %arg4: memref<1x16xf32, #tpu.memory_space<vmem>>, %arg5: memref<9x4x8xf32, #tpu.memory_space<vmem>>, %arg6: memref<1x8xf32, #tpu.memory_space<vmem>>, %arg7: memref<1x8xf32, #tpu.memory_space<vmem>>, %arg8: memref<9x4x8xf32, #tpu.memory_space<vmem>>, %arg9: memref<1x8xf32, #tpu.memory_space<vmem>>, %arg10: memref<1x8xf32, #tpu.memory_space<vmem>>, %arg11: memref<9x8x8xf32, #tpu.memory_space<vmem>>, %arg12: memref<1x8xf32, #tpu.memory_space<vmem>>, %arg13: memref<1x8xf32, #tpu.memory_space<vmem>>, %arg14: memref<4x8xf32, #tpu.memory_space<vmem>>, %arg15: memref<1x8xf32, #tpu.memory_space<vmem>>, %arg16: memref<1x8xf32, #tpu.memory_space<vmem>>, %arg17: memref<1x16x16x32xf32, #tpu.memory_space<vmem>>, %arg18: memref<1x18x18x8xf32, #tpu.memory_space<vmem>>) attributes {dimension_semantics = [#tpu.dimension_semantics<parallel>], iteration_bounds = array<i64: 2>, scalar_prefetch = 0 : i64, scratch_operands = 1 : i64, tpu.core_type = #tpu.core_type<tc>, window_params = [{transform_indices = @transform_0, window_bounds = array<i64: 1, 16, 16, 4>}, {pipeline_mode = #tpu.pipeline_mode<synchronous>, transform_indices = @transform_1, window_bounds = array<i64: 4, 16>}, {pipeline_mode = #tpu.pipeline_mode<synchronous>, transform_indices = @transform_2, window_bounds = array<i64: 1, 16>}, {pipeline_mode = #tpu.pipeline_mode<synchronous>, transform_indices = @transform_3, window_bounds = array<i64: 1, 16>}, {pipeline_mode = #tpu.pipeline_mode<synchronous>, transform_indices = @transform_4, window_bounds = array<i64: 9, 4, 8>}, {pipeline_mode = #tpu.pipeline_mode<synchronous>, transform_indices = @transform_5, window_bounds = array<i64: 1, 8>}, {pipeline_mode = #tpu.pipeline_mode<synchronous>, transform_indices = @transform_6, window_bounds = array<i64: 1, 8>}, {pipeline_mode = #tpu.pipeline_mode<synchronous>, transform_indices = @transform_7, window_bounds = array<i64: 9, 4, 8>}, {pipeline_mode = #tpu.pipeline_mode<synchronous>, transform_indices = @transform_8, window_bounds = array<i64: 1, 8>}, {pipeline_mode = #tpu.pipeline_mode<synchronous>, transform_indices = @transform_9, window_bounds = array<i64: 1, 8>}, {pipeline_mode = #tpu.pipeline_mode<synchronous>, transform_indices = @transform_10, window_bounds = array<i64: 9, 8, 8>}, {pipeline_mode = #tpu.pipeline_mode<synchronous>, transform_indices = @transform_11, window_bounds = array<i64: 1, 8>}, {pipeline_mode = #tpu.pipeline_mode<synchronous>, transform_indices = @transform_12, window_bounds = array<i64: 1, 8>}, {pipeline_mode = #tpu.pipeline_mode<synchronous>, transform_indices = @transform_13, window_bounds = array<i64: 4, 8>}, {pipeline_mode = #tpu.pipeline_mode<synchronous>, transform_indices = @transform_14, window_bounds = array<i64: 1, 8>}, {pipeline_mode = #tpu.pipeline_mode<synchronous>, transform_indices = @transform_15, window_bounds = array<i64: 1, 8>}, {transform_indices = @transform_16, window_bounds = array<i64: 1, 16, 16, 32>}]} {
    %c0 = arith.constant 0 : index
    %c0_0 = arith.constant 0 : index
    %c0_1 = arith.constant 0 : index
    %c0_2 = arith.constant 0 : index
    %0 = vector.load %arg1[%c0, %c0_0, %c0_1, %c0_2] : memref<1x16x16x4xf32, #tpu.memory_space<vmem>>, vector<1x16x16x4xf32>
    %1 = vector.shape_cast %0 : vector<1x16x16x4xf32> to vector<256x4xf32>
    %c0_3 = arith.constant 0 : index
    %c0_4 = arith.constant 0 : index
    %2 = vector.load %arg2[%c0_3, %c0_4] : memref<4x16xf32, #tpu.memory_space<vmem>>, vector<4x16xf32>
    %cst = arith.constant dense<0.000000e+00> : vector<256x16xf32>
    %3 = tpu.matmul %1, %2, %cst {dimension_numbers = #tpu.dot_dimension_numbers<[1], [0], [0], [1], [0, 0, 1, 1], [], []>} : vector<256x4xf32>, vector<4x16xf32>, vector<256x16xf32> -> vector<256x16xf32>
    %c0_5 = arith.constant 0 : index
    %c0_6 = arith.constant 0 : index
    %4 = vector.load %arg3[%c0_5, %c0_6] : memref<1x16xf32, #tpu.memory_space<vmem>>, vector<1x16xf32>
    %5 = vector.broadcast %4 : vector<1x16xf32> to vector<256x16xf32>
    %6 = arith.mulf %3, %5 : vector<256x16xf32>
    %c0_7 = arith.constant 0 : index
    %c0_8 = arith.constant 0 : index
    %7 = vector.load %arg4[%c0_7, %c0_8] : memref<1x16xf32, #tpu.memory_space<vmem>>, vector<1x16xf32>
    %8 = vector.broadcast %7 : vector<1x16xf32> to vector<256x16xf32>
    %9 = arith.addf %6, %8 : vector<256x16xf32>
    %cst_9 = arith.constant 0.000000e+00 : f32
    %10 = vector.broadcast %cst_9 : f32 to vector<256x16xf32>
    %11 = arith.maximumf %9, %10 : vector<256x16xf32>
    %12 = vector.extract_strided_slice %11 {offsets = [0, 0], sizes = [256, 4], strides = [1, 1]} : vector<256x16xf32> to vector<256x4xf32>
    %13 = vector.extract_strided_slice %11 {offsets = [0, 4], sizes = [256, 4], strides = [1, 1]} : vector<256x16xf32> to vector<256x4xf32>
    %14 = vector.extract_strided_slice %11 {offsets = [0, 8], sizes = [256, 8], strides = [1, 1]} : vector<256x16xf32> to vector<256x8xf32>
    %cst_10 = arith.constant 0.000000e+00 : f32
    %15 = vector.broadcast %cst_10 : f32 to vector<1x1x18x4xf32>
    %c0_11 = arith.constant 0 : index
    %c0_12 = arith.constant 0 : index
    %c0_13 = arith.constant 0 : index
    %c0_14 = arith.constant 0 : index
    %16 = vector.load %arg18[%c0_11, %c0_12, %c0_13, %c0_14] : memref<1x18x18x8xf32, #tpu.memory_space<vmem>>, vector<1x1x18x4xf32>
    tpu.vector_store %arg18[%c0_11, %c0_12, %c0_13, %c0_14], %15 {strides = array<i32>} : memref<1x18x18x8xf32, #tpu.memory_space<vmem>>, vector<1x1x18x4xf32>,
    %cst_15 = arith.constant 0.000000e+00 : f32
    %17 = vector.broadcast %cst_15 : f32 to vector<1x1x18x4xf32>
    %c0_16 = arith.constant 0 : index
    %c17 = arith.constant 17 : index
    %c0_17 = arith.constant 0 : index
    %c0_18 = arith.constant 0 : index
    %18 = vector.load %arg18[%c0_16, %c17, %c0_17, %c0_18] : memref<1x18x18x8xf32, #tpu.memory_space<vmem>>, vector<1x1x18x4xf32>
    tpu.vector_store %arg18[%c0_16, %c17, %c0_17, %c0_18], %17 {strides = array<i32>} : memref<1x18x18x8xf32, #tpu.memory_space<vmem>>, vector<1x1x18x4xf32>,
    %cst_19 = arith.constant 0.000000e+00 : f32
    %19 = vector.broadcast %cst_19 : f32 to vector<1x18x1x4xf32>
    %c0_20 = arith.constant 0 : index
    %c0_21 = arith.constant 0 : index
    %c0_22 = arith.constant 0 : index
    %c0_23 = arith.constant 0 : index
    %20 = vector.load %arg18[%c0_20, %c0_21, %c0_22, %c0_23] : memref<1x18x18x8xf32, #tpu.memory_space<vmem>>, vector<1x18x1x4xf32>
    tpu.vector_store %arg18[%c0_20, %c0_21, %c0_22, %c0_23], %19 {strides = array<i32>} : memref<1x18x18x8xf32, #tpu.memory_space<vmem>>, vector<1x18x1x4xf32>,
    %cst_24 = arith.constant 0.000000e+00 : f32
    %21 = vector.broadcast %cst_24 : f32 to vector<1x18x1x4xf32>
    %c0_25 = arith.constant 0 : index
    %c0_26 = arith.constant 0 : index
    %c17_27 = arith.constant 17 : index
    %c0_28 = arith.constant 0 : index
    %22 = vector.load %arg18[%c0_25, %c0_26, %c17_27, %c0_28] : memref<1x18x18x8xf32, #tpu.memory_space<vmem>>, vector<1x18x1x4xf32>
    tpu.vector_store %arg18[%c0_25, %c0_26, %c17_27, %c0_28], %21 {strides = array<i32>} : memref<1x18x18x8xf32, #tpu.memory_space<vmem>>, vector<1x18x1x4xf32>,
    %23 = vector.shape_cast %12 : vector<256x4xf32> to vector<1x16x16x4xf32>
    %c0_29 = arith.constant 0 : index
    %c1 = arith.constant 1 : index
    %c1_30 = arith.constant 1 : index
    %c0_31 = arith.constant 0 : index
    %24 = vector.load %arg18[%c0_29, %c1, %c1_30, %c0_31] : memref<1x18x18x8xf32, #tpu.memory_space<vmem>>, vector<1x16x16x4xf32>
    tpu.vector_store %arg18[%c0_29, %c1, %c1_30, %c0_31], %23 {strides = array<i32>} : memref<1x18x18x8xf32, #tpu.memory_space<vmem>>, vector<1x16x16x4xf32>,
    %c0_32 = arith.constant 0 : index
    %c0_33 = arith.constant 0 : index
    %c0_34 = arith.constant 0 : index
    %c0_35 = arith.constant 0 : index
    %25 = vector.load %arg18[%c0_32, %c0_33, %c0_34, %c0_35] : memref<1x18x18x8xf32, #tpu.memory_space<vmem>>, vector<1x16x16x4xf32>
    %26 = vector.shape_cast %25 : vector<1x16x16x4xf32> to vector<256x4xf32>
    %c0_36 = arith.constant 0 : index
    %c0_37 = arith.constant 0 : index
    %c0_38 = arith.constant 0 : index
    %27 = vector.load %arg5[%c0_36, %c0_37, %c0_38] : memref<9x4x8xf32, #tpu.memory_space<vmem>>, vector<1x4x8xf32>
    %28 = vector.shape_cast %27 : vector<1x4x8xf32> to vector<4x8xf32>
    %cst_39 = arith.constant dense<0.000000e+00> : vector<256x8xf32>
    %29 = tpu.matmul %26, %28, %cst_39 {dimension_numbers = #tpu.dot_dimension_numbers<[1], [0], [0], [1], [0, 0, 1, 1], [], []>} : vector<256x4xf32>, vector<4x8xf32>, vector<256x8xf32> -> vector<256x8xf32>
    %c0_40 = arith.constant 0 : index
    %c0_41 = arith.constant 0 : index
    %c1_42 = arith.constant 1 : index
    %c0_43 = arith.constant 0 : index
    %30 = vector.load %arg18[%c0_40, %c0_41, %c1_42, %c0_43] : memref<1x18x18x8xf32, #tpu.memory_space<vmem>>, vector<1x16x16x4xf32>
    %31 = vector.shape_cast %30 : vector<1x16x16x4xf32> to vector<256x4xf32>
    %c1_44 = arith.constant 1 : index
    %c0_45 = arith.constant 0 : index
    %c0_46 = arith.constant 0 : index
    %32 = vector.load %arg5[%c1_44, %c0_45, %c0_46] : memref<9x4x8xf32, #tpu.memory_space<vmem>>, vector<1x4x8xf32>
    %33 = vector.shape_cast %32 : vector<1x4x8xf32> to vector<4x8xf32>
    %cst_47 = arith.constant dense<0.000000e+00> : vector<256x8xf32>
    %34 = tpu.matmul %31, %33, %cst_47 {dimension_numbers = #tpu.dot_dimension_numbers<[1], [0], [0], [1], [0, 0, 1, 1], [], []>} : vector<256x4xf32>, vector<4x8xf32>, vector<256x8xf32> -> vector<256x8xf32>
    %35 = arith.addf %29, %34 : vector<256x8xf32>
    %c0_48 = arith.constant 0 : index
    %c0_49 = arith.constant 0 : index
    %c2 = arith.constant 2 : index
    %c0_50 = arith.constant 0 : index
    %36 = vector.load %arg18[%c0_48, %c0_49, %c2, %c0_50] : memref<1x18x18x8xf32, #tpu.memory_space<vmem>>, vector<1x16x16x4xf32>
    %37 = vector.shape_cast %36 : vector<1x16x16x4xf32> to vector<256x4xf32>
    %c2_51 = arith.constant 2 : index
    %c0_52 = arith.constant 0 : index
    %c0_53 = arith.constant 0 : index
    %38 = vector.load %arg5[%c2_51, %c0_52, %c0_53] : memref<9x4x8xf32, #tpu.memory_space<vmem>>, vector<1x4x8xf32>
    %39 = vector.shape_cast %38 : vector<1x4x8xf32> to vector<4x8xf32>
    %cst_54 = arith.constant dense<0.000000e+00> : vector<256x8xf32>
    %40 = tpu.matmul %37, %39, %cst_54 {dimension_numbers = #tpu.dot_dimension_numbers<[1], [0], [0], [1], [0, 0, 1, 1], [], []>} : vector<256x4xf32>, vector<4x8xf32>, vector<256x8xf32> -> vector<256x8xf32>
    %41 = arith.addf %35, %40 : vector<256x8xf32>
    %c0_55 = arith.constant 0 : index
    %c1_56 = arith.constant 1 : index
    %c0_57 = arith.constant 0 : index
    %c0_58 = arith.constant 0 : index
    %42 = vector.load %arg18[%c0_55, %c1_56, %c0_57, %c0_58] : memref<1x18x18x8xf32, #tpu.memory_space<vmem>>, vector<1x16x16x4xf32>
    %43 = vector.shape_cast %42 : vector<1x16x16x4xf32> to vector<256x4xf32>
    %c3 = arith.constant 3 : index
    %c0_59 = arith.constant 0 : index
    %c0_60 = arith.constant 0 : index
    %44 = vector.load %arg5[%c3, %c0_59, %c0_60] : memref<9x4x8xf32, #tpu.memory_space<vmem>>, vector<1x4x8xf32>
    %45 = vector.shape_cast %44 : vector<1x4x8xf32> to vector<4x8xf32>
    %cst_61 = arith.constant dense<0.000000e+00> : vector<256x8xf32>
    %46 = tpu.matmul %43, %45, %cst_61 {dimension_numbers = #tpu.dot_dimension_numbers<[1], [0], [0], [1], [0, 0, 1, 1], [], []>} : vector<256x4xf32>, vector<4x8xf32>, vector<256x8xf32> -> vector<256x8xf32>
    %47 = arith.addf %41, %46 : vector<256x8xf32>
    %c0_62 = arith.constant 0 : index
    %c1_63 = arith.constant 1 : index
    %c1_64 = arith.constant 1 : index
    %c0_65 = arith.constant 0 : index
    %48 = vector.load %arg18[%c0_62, %c1_63, %c1_64, %c0_65] : memref<1x18x18x8xf32, #tpu.memory_space<vmem>>, vector<1x16x16x4xf32>
    %49 = vector.shape_cast %48 : vector<1x16x16x4xf32> to vector<256x4xf32>
    %c4 = arith.constant 4 : index
    %c0_66 = arith.constant 0 : index
    %c0_67 = arith.constant 0 : index
    %50 = vector.load %arg5[%c4, %c0_66, %c0_67] : memref<9x4x8xf32, #tpu.memory_space<vmem>>, vector<1x4x8xf32>
    %51 = vector.shape_cast %50 : vector<1x4x8xf32> to vector<4x8xf32>
    %cst_68 = arith.constant dense<0.000000e+00> : vector<256x8xf32>
    %52 = tpu.matmul %49, %51, %cst_68 {dimension_numbers = #tpu.dot_dimension_numbers<[1], [0], [0], [1], [0, 0, 1, 1], [], []>} : vector<256x4xf32>, vector<4x8xf32>, vector<256x8xf32> -> vector<256x8xf32>
    %53 = arith.addf %47, %52 : vector<256x8xf32>
    %c0_69 = arith.constant 0 : index
    %c1_70 = arith.constant 1 : index
    %c2_71 = arith.constant 2 : index
    %c0_72 = arith.constant 0 : index
    %54 = vector.load %arg18[%c0_69, %c1_70, %c2_71, %c0_72] : memref<1x18x18x8xf32, #tpu.memory_space<vmem>>, vector<1x16x16x4xf32>
    %55 = vector.shape_cast %54 : vector<1x16x16x4xf32> to vector<256x4xf32>
    %c5 = arith.constant 5 : index
    %c0_73 = arith.constant 0 : index
    %c0_74 = arith.constant 0 : index
    %56 = vector.load %arg5[%c5, %c0_73, %c0_74] : memref<9x4x8xf32, #tpu.memory_space<vmem>>, vector<1x4x8xf32>
    %57 = vector.shape_cast %56 : vector<1x4x8xf32> to vector<4x8xf32>
    %cst_75 = arith.constant dense<0.000000e+00> : vector<256x8xf32>
    %58 = tpu.matmul %55, %57, %cst_75 {dimension_numbers = #tpu.dot_dimension_numbers<[1], [0], [0], [1], [0, 0, 1, 1], [], []>} : vector<256x4xf32>, vector<4x8xf32>, vector<256x8xf32> -> vector<256x8xf32>
    %59 = arith.addf %53, %58 : vector<256x8xf32>
    %c0_76 = arith.constant 0 : index
    %c2_77 = arith.constant 2 : index
    %c0_78 = arith.constant 0 : index
    %c0_79 = arith.constant 0 : index
    %60 = vector.load %arg18[%c0_76, %c2_77, %c0_78, %c0_79] : memref<1x18x18x8xf32, #tpu.memory_space<vmem>>, vector<1x16x16x4xf32>
    %61 = vector.shape_cast %60 : vector<1x16x16x4xf32> to vector<256x4xf32>
    %c6 = arith.constant 6 : index
    %c0_80 = arith.constant 0 : index
    %c0_81 = arith.constant 0 : index
    %62 = vector.load %arg5[%c6, %c0_80, %c0_81] : memref<9x4x8xf32, #tpu.memory_space<vmem>>, vector<1x4x8xf32>
    %63 = vector.shape_cast %62 : vector<1x4x8xf32> to vector<4x8xf32>
    %cst_82 = arith.constant dense<0.000000e+00> : vector<256x8xf32>
    %64 = tpu.matmul %61, %63, %cst_82 {dimension_numbers = #tpu.dot_dimension_numbers<[1], [0], [0], [1], [0, 0, 1, 1], [], []>} : vector<256x4xf32>, vector<4x8xf32>, vector<256x8xf32> -> vector<256x8xf32>
    %65 = arith.addf %59, %64 : vector<256x8xf32>
    %c0_83 = arith.constant 0 : index
    %c2_84 = arith.constant 2 : index
    %c1_85 = arith.constant 1 : index
    %c0_86 = arith.constant 0 : index
    %66 = vector.load %arg18[%c0_83, %c2_84, %c1_85, %c0_86] : memref<1x18x18x8xf32, #tpu.memory_space<vmem>>, vector<1x16x16x4xf32>
    %67 = vector.shape_cast %66 : vector<1x16x16x4xf32> to vector<256x4xf32>
    %c7 = arith.constant 7 : index
    %c0_87 = arith.constant 0 : index
    %c0_88 = arith.constant 0 : index
    %68 = vector.load %arg5[%c7, %c0_87, %c0_88] : memref<9x4x8xf32, #tpu.memory_space<vmem>>, vector<1x4x8xf32>
    %69 = vector.shape_cast %68 : vector<1x4x8xf32> to vector<4x8xf32>
    %cst_89 = arith.constant dense<0.000000e+00> : vector<256x8xf32>
    %70 = tpu.matmul %67, %69, %cst_89 {dimension_numbers = #tpu.dot_dimension_numbers<[1], [0], [0], [1], [0, 0, 1, 1], [], []>} : vector<256x4xf32>, vector<4x8xf32>, vector<256x8xf32> -> vector<256x8xf32>
    %71 = arith.addf %65, %70 : vector<256x8xf32>
    %c0_90 = arith.constant 0 : index
    %c2_91 = arith.constant 2 : index
    %c2_92 = arith.constant 2 : index
    %c0_93 = arith.constant 0 : index
    %72 = vector.load %arg18[%c0_90, %c2_91, %c2_92, %c0_93] : memref<1x18x18x8xf32, #tpu.memory_space<vmem>>, vector<1x16x16x4xf32>
    %73 = vector.shape_cast %72 : vector<1x16x16x4xf32> to vector<256x4xf32>
    %c8 = arith.constant 8 : index
    %c0_94 = arith.constant 0 : index
    %c0_95 = arith.constant 0 : index
    %74 = vector.load %arg5[%c8, %c0_94, %c0_95] : memref<9x4x8xf32, #tpu.memory_space<vmem>>, vector<1x4x8xf32>
    %75 = vector.shape_cast %74 : vector<1x4x8xf32> to vector<4x8xf32>
    %cst_96 = arith.constant dense<0.000000e+00> : vector<256x8xf32>
    %76 = tpu.matmul %73, %75, %cst_96 {dimension_numbers = #tpu.dot_dimension_numbers<[1], [0], [0], [1], [0, 0, 1, 1], [], []>} : vector<256x4xf32>, vector<4x8xf32>, vector<256x8xf32> -> vector<256x8xf32>
    %77 = arith.addf %71, %76 : vector<256x8xf32>
    %c0_97 = arith.constant 0 : index
    %c0_98 = arith.constant 0 : index
    %78 = vector.load %arg6[%c0_97, %c0_98] : memref<1x8xf32, #tpu.memory_space<vmem>>, vector<1x8xf32>
    %79 = vector.broadcast %78 : vector<1x8xf32> to vector<256x8xf32>
    %80 = arith.mulf %77, %79 : vector<256x8xf32>
    %c0_99 = arith.constant 0 : index
    %c0_100 = arith.constant 0 : index
    %81 = vector.load %arg7[%c0_99, %c0_100] : memref<1x8xf32, #tpu.memory_space<vmem>>, vector<1x8xf32>
    %82 = vector.broadcast %81 : vector<1x8xf32> to vector<256x8xf32>
    %83 = arith.addf %80, %82 : vector<256x8xf32>
    %cst_101 = arith.constant 0.000000e+00 : f32
    %84 = vector.broadcast %cst_101 : f32 to vector<256x8xf32>
    %85 = arith.maximumf %83, %84 : vector<256x8xf32>
    %cst_102 = arith.constant 0.000000e+00 : f32
    %86 = vector.broadcast %cst_102 : f32 to vector<1x1x18x4xf32>
    %c0_103 = arith.constant 0 : index
    %c0_104 = arith.constant 0 : index
    %c0_105 = arith.constant 0 : index
    %c0_106 = arith.constant 0 : index
    %87 = vector.load %arg18[%c0_103, %c0_104, %c0_105, %c0_106] : memref<1x18x18x8xf32, #tpu.memory_space<vmem>>, vector<1x1x18x4xf32>
    tpu.vector_store %arg18[%c0_103, %c0_104, %c0_105, %c0_106], %86 {strides = array<i32>} : memref<1x18x18x8xf32, #tpu.memory_space<vmem>>, vector<1x1x18x4xf32>,
    %cst_107 = arith.constant 0.000000e+00 : f32
    %88 = vector.broadcast %cst_107 : f32 to vector<1x1x18x4xf32>
    %c0_108 = arith.constant 0 : index
    %c17_109 = arith.constant 17 : index
    %c0_110 = arith.constant 0 : index
    %c0_111 = arith.constant 0 : index
    %89 = vector.load %arg18[%c0_108, %c17_109, %c0_110, %c0_111] : memref<1x18x18x8xf32, #tpu.memory_space<vmem>>, vector<1x1x18x4xf32>
    tpu.vector_store %arg18[%c0_108, %c17_109, %c0_110, %c0_111], %88 {strides = array<i32>} : memref<1x18x18x8xf32, #tpu.memory_space<vmem>>, vector<1x1x18x4xf32>,
    %cst_112 = arith.constant 0.000000e+00 : f32
    %90 = vector.broadcast %cst_112 : f32 to vector<1x18x1x4xf32>
    %c0_113 = arith.constant 0 : index
    %c0_114 = arith.constant 0 : index
    %c0_115 = arith.constant 0 : index
    %c0_116 = arith.constant 0 : index
    %91 = vector.load %arg18[%c0_113, %c0_114, %c0_115, %c0_116] : memref<1x18x18x8xf32, #tpu.memory_space<vmem>>, vector<1x18x1x4xf32>
    tpu.vector_store %arg18[%c0_113, %c0_114, %c0_115, %c0_116], %90 {strides = array<i32>} : memref<1x18x18x8xf32, #tpu.memory_space<vmem>>, vector<1x18x1x4xf32>,
    %cst_117 = arith.constant 0.000000e+00 : f32
    %92 = vector.broadcast %cst_117 : f32 to vector<1x18x1x4xf32>
    %c0_118 = arith.constant 0 : index
    %c0_119 = arith.constant 0 : index
    %c17_120 = arith.constant 17 : index
    %c0_121 = arith.constant 0 : index
    %93 = vector.load %arg18[%c0_118, %c0_119, %c17_120, %c0_121] : memref<1x18x18x8xf32, #tpu.memory_space<vmem>>, vector<1x18x1x4xf32>
    tpu.vector_store %arg18[%c0_118, %c0_119, %c17_120, %c0_121], %92 {strides = array<i32>} : memref<1x18x18x8xf32, #tpu.memory_space<vmem>>, vector<1x18x1x4xf32>,
    %94 = vector.shape_cast %13 : vector<256x4xf32> to vector<1x16x16x4xf32>
    %c0_122 = arith.constant 0 : index
    %c1_123 = arith.constant 1 : index
    %c1_124 = arith.constant 1 : index
    %c0_125 = arith.constant 0 : index
    %95 = vector.load %arg18[%c0_122, %c1_123, %c1_124, %c0_125] : memref<1x18x18x8xf32, #tpu.memory_space<vmem>>, vector<1x16x16x4xf32>
    tpu.vector_store %arg18[%c0_122, %c1_123, %c1_124, %c0_125], %94 {strides = array<i32>} : memref<1x18x18x8xf32, #tpu.memory_space<vmem>>, vector<1x16x16x4xf32>,
    %c0_126 = arith.constant 0 : index
    %c0_127 = arith.constant 0 : index
    %c0_128 = arith.constant 0 : index
    %c0_129 = arith.constant 0 : index
    %96 = vector.load %arg18[%c0_126, %c0_127, %c0_128, %c0_129] : memref<1x18x18x8xf32, #tpu.memory_space<vmem>>, vector<1x16x16x4xf32>
    %97 = vector.shape_cast %96 : vector<1x16x16x4xf32> to vector<256x4xf32>
    %c0_130 = arith.constant 0 : index
    %c0_131 = arith.constant 0 : index
    %c0_132 = arith.constant 0 : index
    %98 = vector.load %arg8[%c0_130, %c0_131, %c0_132] : memref<9x4x8xf32, #tpu.memory_space<vmem>>, vector<1x4x8xf32>
    %99 = vector.shape_cast %98 : vector<1x4x8xf32> to vector<4x8xf32>
    %cst_133 = arith.constant dense<0.000000e+00> : vector<256x8xf32>
    %100 = tpu.matmul %97, %99, %cst_133 {dimension_numbers = #tpu.dot_dimension_numbers<[1], [0], [0], [1], [0, 0, 1, 1], [], []>} : vector<256x4xf32>, vector<4x8xf32>, vector<256x8xf32> -> vector<256x8xf32>
    %c0_134 = arith.constant 0 : index
    %c0_135 = arith.constant 0 : index
    %c1_136 = arith.constant 1 : index
    %c0_137 = arith.constant 0 : index
    %101 = vector.load %arg18[%c0_134, %c0_135, %c1_136, %c0_137] : memref<1x18x18x8xf32, #tpu.memory_space<vmem>>, vector<1x16x16x4xf32>
    %102 = vector.shape_cast %101 : vector<1x16x16x4xf32> to vector<256x4xf32>
    %c1_138 = arith.constant 1 : index
    %c0_139 = arith.constant 0 : index
    %c0_140 = arith.constant 0 : index
    %103 = vector.load %arg8[%c1_138, %c0_139, %c0_140] : memref<9x4x8xf32, #tpu.memory_space<vmem>>, vector<1x4x8xf32>
    %104 = vector.shape_cast %103 : vector<1x4x8xf32> to vector<4x8xf32>
    %cst_141 = arith.constant dense<0.000000e+00> : vector<256x8xf32>
    %105 = tpu.matmul %102, %104, %cst_141 {dimension_numbers = #tpu.dot_dimension_numbers<[1], [0], [0], [1], [0, 0, 1, 1], [], []>} : vector<256x4xf32>, vector<4x8xf32>, vector<256x8xf32> -> vector<256x8xf32>
    %106 = arith.addf %100, %105 : vector<256x8xf32>
    %c0_142 = arith.constant 0 : index
    %c0_143 = arith.constant 0 : index
    %c2_144 = arith.constant 2 : index
    %c0_145 = arith.constant 0 : index
    %107 = vector.load %arg18[%c0_142, %c0_143, %c2_144, %c0_145] : memref<1x18x18x8xf32, #tpu.memory_space<vmem>>, vector<1x16x16x4xf32>
    %108 = vector.shape_cast %107 : vector<1x16x16x4xf32> to vector<256x4xf32>
    %c2_146 = arith.constant 2 : index
    %c0_147 = arith.constant 0 : index
    %c0_148 = arith.constant 0 : index
    %109 = vector.load %arg8[%c2_146, %c0_147, %c0_148] : memref<9x4x8xf32, #tpu.memory_space<vmem>>, vector<1x4x8xf32>
    %110 = vector.shape_cast %109 : vector<1x4x8xf32> to vector<4x8xf32>
    %cst_149 = arith.constant dense<0.000000e+00> : vector<256x8xf32>
    %111 = tpu.matmul %108, %110, %cst_149 {dimension_numbers = #tpu.dot_dimension_numbers<[1], [0], [0], [1], [0, 0, 1, 1], [], []>} : vector<256x4xf32>, vector<4x8xf32>, vector<256x8xf32> -> vector<256x8xf32>
    %112 = arith.addf %106, %111 : vector<256x8xf32>
    %c0_150 = arith.constant 0 : index
    %c1_151 = arith.constant 1 : index
    %c0_152 = arith.constant 0 : index
    %c0_153 = arith.constant 0 : index
    %113 = vector.load %arg18[%c0_150, %c1_151, %c0_152, %c0_153] : memref<1x18x18x8xf32, #tpu.memory_space<vmem>>, vector<1x16x16x4xf32>
    %114 = vector.shape_cast %113 : vector<1x16x16x4xf32> to vector<256x4xf32>
    %c3_154 = arith.constant 3 : index
    %c0_155 = arith.constant 0 : index
    %c0_156 = arith.constant 0 : index
    %115 = vector.load %arg8[%c3_154, %c0_155, %c0_156] : memref<9x4x8xf32, #tpu.memory_space<vmem>>, vector<1x4x8xf32>
    %116 = vector.shape_cast %115 : vector<1x4x8xf32> to vector<4x8xf32>
    %cst_157 = arith.constant dense<0.000000e+00> : vector<256x8xf32>
    %117 = tpu.matmul %114, %116, %cst_157 {dimension_numbers = #tpu.dot_dimension_numbers<[1], [0], [0], [1], [0, 0, 1, 1], [], []>} : vector<256x4xf32>, vector<4x8xf32>, vector<256x8xf32> -> vector<256x8xf32>
    %118 = arith.addf %112, %117 : vector<256x8xf32>
    %c0_158 = arith.constant 0 : index
    %c1_159 = arith.constant 1 : index
    %c1_160 = arith.constant 1 : index
    %c0_161 = arith.constant 0 : index
    %119 = vector.load %arg18[%c0_158, %c1_159, %c1_160, %c0_161] : memref<1x18x18x8xf32, #tpu.memory_space<vmem>>, vector<1x16x16x4xf32>
    %120 = vector.shape_cast %119 : vector<1x16x16x4xf32> to vector<256x4xf32>
    %c4_162 = arith.constant 4 : index
    %c0_163 = arith.constant 0 : index
    %c0_164 = arith.constant 0 : index
    %121 = vector.load %arg8[%c4_162, %c0_163, %c0_164] : memref<9x4x8xf32, #tpu.memory_space<vmem>>, vector<1x4x8xf32>
    %122 = vector.shape_cast %121 : vector<1x4x8xf32> to vector<4x8xf32>
    %cst_165 = arith.constant dense<0.000000e+00> : vector<256x8xf32>
    %123 = tpu.matmul %120, %122, %cst_165 {dimension_numbers = #tpu.dot_dimension_numbers<[1], [0], [0], [1], [0, 0, 1, 1], [], []>} : vector<256x4xf32>, vector<4x8xf32>, vector<256x8xf32> -> vector<256x8xf32>
    %124 = arith.addf %118, %123 : vector<256x8xf32>
    %c0_166 = arith.constant 0 : index
    %c1_167 = arith.constant 1 : index
    %c2_168 = arith.constant 2 : index
    %c0_169 = arith.constant 0 : index
    %125 = vector.load %arg18[%c0_166, %c1_167, %c2_168, %c0_169] : memref<1x18x18x8xf32, #tpu.memory_space<vmem>>, vector<1x16x16x4xf32>
    %126 = vector.shape_cast %125 : vector<1x16x16x4xf32> to vector<256x4xf32>
    %c5_170 = arith.constant 5 : index
    %c0_171 = arith.constant 0 : index
    %c0_172 = arith.constant 0 : index
    %127 = vector.load %arg8[%c5_170, %c0_171, %c0_172] : memref<9x4x8xf32, #tpu.memory_space<vmem>>, vector<1x4x8xf32>
    %128 = vector.shape_cast %127 : vector<1x4x8xf32> to vector<4x8xf32>
    %cst_173 = arith.constant dense<0.000000e+00> : vector<256x8xf32>
    %129 = tpu.matmul %126, %128, %cst_173 {dimension_numbers = #tpu.dot_dimension_numbers<[1], [0], [0], [1], [0, 0, 1, 1], [], []>} : vector<256x4xf32>, vector<4x8xf32>, vector<256x8xf32> -> vector<256x8xf32>
    %130 = arith.addf %124, %129 : vector<256x8xf32>
    %c0_174 = arith.constant 0 : index
    %c2_175 = arith.constant 2 : index
    %c0_176 = arith.constant 0 : index
    %c0_177 = arith.constant 0 : index
    %131 = vector.load %arg18[%c0_174, %c2_175, %c0_176, %c0_177] : memref<1x18x18x8xf32, #tpu.memory_space<vmem>>, vector<1x16x16x4xf32>
    %132 = vector.shape_cast %131 : vector<1x16x16x4xf32> to vector<256x4xf32>
    %c6_178 = arith.constant 6 : index
    %c0_179 = arith.constant 0 : index
    %c0_180 = arith.constant 0 : index
    %133 = vector.load %arg8[%c6_178, %c0_179, %c0_180] : memref<9x4x8xf32, #tpu.memory_space<vmem>>, vector<1x4x8xf32>
    %134 = vector.shape_cast %133 : vector<1x4x8xf32> to vector<4x8xf32>
    %cst_181 = arith.constant dense<0.000000e+00> : vector<256x8xf32>
    %135 = tpu.matmul %132, %134, %cst_181 {dimension_numbers = #tpu.dot_dimension_numbers<[1], [0], [0], [1], [0, 0, 1, 1], [], []>} : vector<256x4xf32>, vector<4x8xf32>, vector<256x8xf32> -> vector<256x8xf32>
    %136 = arith.addf %130, %135 : vector<256x8xf32>
    %c0_182 = arith.constant 0 : index
    %c2_183 = arith.constant 2 : index
    %c1_184 = arith.constant 1 : index
    %c0_185 = arith.constant 0 : index
    %137 = vector.load %arg18[%c0_182, %c2_183, %c1_184, %c0_185] : memref<1x18x18x8xf32, #tpu.memory_space<vmem>>, vector<1x16x16x4xf32>
    %138 = vector.shape_cast %137 : vector<1x16x16x4xf32> to vector<256x4xf32>
    %c7_186 = arith.constant 7 : index
    %c0_187 = arith.constant 0 : index
    %c0_188 = arith.constant 0 : index
    %139 = vector.load %arg8[%c7_186, %c0_187, %c0_188] : memref<9x4x8xf32, #tpu.memory_space<vmem>>, vector<1x4x8xf32>
    %140 = vector.shape_cast %139 : vector<1x4x8xf32> to vector<4x8xf32>
    %cst_189 = arith.constant dense<0.000000e+00> : vector<256x8xf32>
    %141 = tpu.matmul %138, %140, %cst_189 {dimension_numbers = #tpu.dot_dimension_numbers<[1], [0], [0], [1], [0, 0, 1, 1], [], []>} : vector<256x4xf32>, vector<4x8xf32>, vector<256x8xf32> -> vector<256x8xf32>
    %142 = arith.addf %136, %141 : vector<256x8xf32>
    %c0_190 = arith.constant 0 : index
    %c2_191 = arith.constant 2 : index
    %c2_192 = arith.constant 2 : index
    %c0_193 = arith.constant 0 : index
    %143 = vector.load %arg18[%c0_190, %c2_191, %c2_192, %c0_193] : memref<1x18x18x8xf32, #tpu.memory_space<vmem>>, vector<1x16x16x4xf32>
    %144 = vector.shape_cast %143 : vector<1x16x16x4xf32> to vector<256x4xf32>
    %c8_194 = arith.constant 8 : index
    %c0_195 = arith.constant 0 : index
    %c0_196 = arith.constant 0 : index
    %145 = vector.load %arg8[%c8_194, %c0_195, %c0_196] : memref<9x4x8xf32, #tpu.memory_space<vmem>>, vector<1x4x8xf32>
    %146 = vector.shape_cast %145 : vector<1x4x8xf32> to vector<4x8xf32>
    %cst_197 = arith.constant dense<0.000000e+00> : vector<256x8xf32>
    %147 = tpu.matmul %144, %146, %cst_197 {dimension_numbers = #tpu.dot_dimension_numbers<[1], [0], [0], [1], [0, 0, 1, 1], [], []>} : vector<256x4xf32>, vector<4x8xf32>, vector<256x8xf32> -> vector<256x8xf32>
    %148 = arith.addf %142, %147 : vector<256x8xf32>
    %c0_198 = arith.constant 0 : index
    %c0_199 = arith.constant 0 : index
    %149 = vector.load %arg9[%c0_198, %c0_199] : memref<1x8xf32, #tpu.memory_space<vmem>>, vector<1x8xf32>
    %150 = vector.broadcast %149 : vector<1x8xf32> to vector<256x8xf32>
    %151 = arith.mulf %148, %150 : vector<256x8xf32>
    %c0_200 = arith.constant 0 : index
    %c0_201 = arith.constant 0 : index
    %152 = vector.load %arg10[%c0_200, %c0_201] : memref<1x8xf32, #tpu.memory_space<vmem>>, vector<1x8xf32>
    %153 = vector.broadcast %152 : vector<1x8xf32> to vector<256x8xf32>
    %154 = arith.addf %151, %153 : vector<256x8xf32>
    %cst_202 = arith.constant 0.000000e+00 : f32
    %155 = vector.broadcast %cst_202 : f32 to vector<256x8xf32>
    %156 = arith.maximumf %154, %155 : vector<256x8xf32>
    %cst_203 = arith.constant 0.000000e+00 : f32
    %157 = vector.broadcast %cst_203 : f32 to vector<1x1x18x8xf32>
    %c0_204 = arith.constant 0 : index
    %c0_205 = arith.constant 0 : index
    %c0_206 = arith.constant 0 : index
    %c0_207 = arith.constant 0 : index
    %158 = vector.load %arg18[%c0_204, %c0_205, %c0_206, %c0_207] : memref<1x18x18x8xf32, #tpu.memory_space<vmem>>, vector<1x1x18x8xf32>
    tpu.vector_store %arg18[%c0_204, %c0_205, %c0_206, %c0_207], %157 {strides = array<i32>} : memref<1x18x18x8xf32, #tpu.memory_space<vmem>>, vector<1x1x18x8xf32>,
    %cst_208 = arith.constant 0.000000e+00 : f32
    %159 = vector.broadcast %cst_208 : f32 to vector<1x1x18x8xf32>
    %c0_209 = arith.constant 0 : index
    %c17_210 = arith.constant 17 : index
    %c0_211 = arith.constant 0 : index
    %c0_212 = arith.constant 0 : index
    %160 = vector.load %arg18[%c0_209, %c17_210, %c0_211, %c0_212] : memref<1x18x18x8xf32, #tpu.memory_space<vmem>>, vector<1x1x18x8xf32>
    tpu.vector_store %arg18[%c0_209, %c17_210, %c0_211, %c0_212], %159 {strides = array<i32>} : memref<1x18x18x8xf32, #tpu.memory_space<vmem>>, vector<1x1x18x8xf32>,
    %cst_213 = arith.constant 0.000000e+00 : f32
    %161 = vector.broadcast %cst_213 : f32 to vector<1x18x1x8xf32>
    %c0_214 = arith.constant 0 : index
    %c0_215 = arith.constant 0 : index
    %c0_216 = arith.constant 0 : index
    %c0_217 = arith.constant 0 : index
    %162 = vector.load %arg18[%c0_214, %c0_215, %c0_216, %c0_217] : memref<1x18x18x8xf32, #tpu.memory_space<vmem>>, vector<1x18x1x8xf32>
    tpu.vector_store %arg18[%c0_214, %c0_215, %c0_216, %c0_217], %161 {strides = array<i32>} : memref<1x18x18x8xf32, #tpu.memory_space<vmem>>, vector<1x18x1x8xf32>,
    %cst_218 = arith.constant 0.000000e+00 : f32
    %163 = vector.broadcast %cst_218 : f32 to vector<1x18x1x8xf32>
    %c0_219 = arith.constant 0 : index
    %c0_220 = arith.constant 0 : index
    %c17_221 = arith.constant 17 : index
    %c0_222 = arith.constant 0 : index
    %164 = vector.load %arg18[%c0_219, %c0_220, %c17_221, %c0_222] : memref<1x18x18x8xf32, #tpu.memory_space<vmem>>, vector<1x18x1x8xf32>
    tpu.vector_store %arg18[%c0_219, %c0_220, %c17_221, %c0_222], %163 {strides = array<i32>} : memref<1x18x18x8xf32, #tpu.memory_space<vmem>>, vector<1x18x1x8xf32>,
    %165 = vector.shape_cast %156 : vector<256x8xf32> to vector<1x16x16x8xf32>
    %c0_223 = arith.constant 0 : index
    %c1_224 = arith.constant 1 : index
    %c1_225 = arith.constant 1 : index
    %c0_226 = arith.constant 0 : index
    %166 = vector.load %arg18[%c0_223, %c1_224, %c1_225, %c0_226] : memref<1x18x18x8xf32, #tpu.memory_space<vmem>>, vector<1x16x16x8xf32>
    tpu.vector_store %arg18[%c0_223, %c1_224, %c1_225, %c0_226], %165 {strides = array<i32>} : memref<1x18x18x8xf32, #tpu.memory_space<vmem>>, vector<1x16x16x8xf32>,
    %c0_227 = arith.constant 0 : index
    %c0_228 = arith.constant 0 : index
    %c0_229 = arith.constant 0 : index
    %c0_230 = arith.constant 0 : index
    %167 = vector.load %arg18[%c0_227, %c0_228, %c0_229, %c0_230] : memref<1x18x18x8xf32, #tpu.memory_space<vmem>>, vector<1x16x16x8xf32>
    %168 = vector.shape_cast %167 : vector<1x16x16x8xf32> to vector<256x8xf32>
    %c0_231 = arith.constant 0 : index
    %c0_232 = arith.constant 0 : index
    %c0_233 = arith.constant 0 : index
    %169 = vector.load %arg11[%c0_231, %c0_232, %c0_233] : memref<9x8x8xf32, #tpu.memory_space<vmem>>, vector<1x8x8xf32>
    %170 = vector.shape_cast %169 : vector<1x8x8xf32> to vector<8x8xf32>
    %cst_234 = arith.constant dense<0.000000e+00> : vector<256x8xf32>
    %171 = tpu.matmul %168, %170, %cst_234 {dimension_numbers = #tpu.dot_dimension_numbers<[1], [0], [0], [1], [0, 0, 1, 1], [], []>} : vector<256x8xf32>, vector<8x8xf32>, vector<256x8xf32> -> vector<256x8xf32>
    %c0_235 = arith.constant 0 : index
    %c0_236 = arith.constant 0 : index
    %c1_237 = arith.constant 1 : index
    %c0_238 = arith.constant 0 : index
    %172 = vector.load %arg18[%c0_235, %c0_236, %c1_237, %c0_238] : memref<1x18x18x8xf32, #tpu.memory_space<vmem>>, vector<1x16x16x8xf32>
    %173 = vector.shape_cast %172 : vector<1x16x16x8xf32> to vector<256x8xf32>
    %c1_239 = arith.constant 1 : index
    %c0_240 = arith.constant 0 : index
    %c0_241 = arith.constant 0 : index
    %174 = vector.load %arg11[%c1_239, %c0_240, %c0_241] : memref<9x8x8xf32, #tpu.memory_space<vmem>>, vector<1x8x8xf32>
    %175 = vector.shape_cast %174 : vector<1x8x8xf32> to vector<8x8xf32>
    %cst_242 = arith.constant dense<0.000000e+00> : vector<256x8xf32>
    %176 = tpu.matmul %173, %175, %cst_242 {dimension_numbers = #tpu.dot_dimension_numbers<[1], [0], [0], [1], [0, 0, 1, 1], [], []>} : vector<256x8xf32>, vector<8x8xf32>, vector<256x8xf32> -> vector<256x8xf32>
    %177 = arith.addf %171, %176 : vector<256x8xf32>
    %c0_243 = arith.constant 0 : index
    %c0_244 = arith.constant 0 : index
    %c2_245 = arith.constant 2 : index
    %c0_246 = arith.constant 0 : index
    %178 = vector.load %arg18[%c0_243, %c0_244, %c2_245, %c0_246] : memref<1x18x18x8xf32, #tpu.memory_space<vmem>>, vector<1x16x16x8xf32>
    %179 = vector.shape_cast %178 : vector<1x16x16x8xf32> to vector<256x8xf32>
    %c2_247 = arith.constant 2 : index
    %c0_248 = arith.constant 0 : index
    %c0_249 = arith.constant 0 : index
    %180 = vector.load %arg11[%c2_247, %c0_248, %c0_249] : memref<9x8x8xf32, #tpu.memory_space<vmem>>, vector<1x8x8xf32>
    %181 = vector.shape_cast %180 : vector<1x8x8xf32> to vector<8x8xf32>
    %cst_250 = arith.constant dense<0.000000e+00> : vector<256x8xf32>
    %182 = tpu.matmul %179, %181, %cst_250 {dimension_numbers = #tpu.dot_dimension_numbers<[1], [0], [0], [1], [0, 0, 1, 1], [], []>} : vector<256x8xf32>, vector<8x8xf32>, vector<256x8xf32> -> vector<256x8xf32>
    %183 = arith.addf %177, %182 : vector<256x8xf32>
    %c0_251 = arith.constant 0 : index
    %c1_252 = arith.constant 1 : index
    %c0_253 = arith.constant 0 : index
    %c0_254 = arith.constant 0 : index
    %184 = vector.load %arg18[%c0_251, %c1_252, %c0_253, %c0_254] : memref<1x18x18x8xf32, #tpu.memory_space<vmem>>, vector<1x16x16x8xf32>
    %185 = vector.shape_cast %184 : vector<1x16x16x8xf32> to vector<256x8xf32>
    %c3_255 = arith.constant 3 : index
    %c0_256 = arith.constant 0 : index
    %c0_257 = arith.constant 0 : index
    %186 = vector.load %arg11[%c3_255, %c0_256, %c0_257] : memref<9x8x8xf32, #tpu.memory_space<vmem>>, vector<1x8x8xf32>
    %187 = vector.shape_cast %186 : vector<1x8x8xf32> to vector<8x8xf32>
    %cst_258 = arith.constant dense<0.000000e+00> : vector<256x8xf32>
    %188 = tpu.matmul %185, %187, %cst_258 {dimension_numbers = #tpu.dot_dimension_numbers<[1], [0], [0], [1], [0, 0, 1, 1], [], []>} : vector<256x8xf32>, vector<8x8xf32>, vector<256x8xf32> -> vector<256x8xf32>
    %189 = arith.addf %183, %188 : vector<256x8xf32>
    %c0_259 = arith.constant 0 : index
    %c1_260 = arith.constant 1 : index
    %c1_261 = arith.constant 1 : index
    %c0_262 = arith.constant 0 : index
    %190 = vector.load %arg18[%c0_259, %c1_260, %c1_261, %c0_262] : memref<1x18x18x8xf32, #tpu.memory_space<vmem>>, vector<1x16x16x8xf32>
    %191 = vector.shape_cast %190 : vector<1x16x16x8xf32> to vector<256x8xf32>
    %c4_263 = arith.constant 4 : index
    %c0_264 = arith.constant 0 : index
    %c0_265 = arith.constant 0 : index
    %192 = vector.load %arg11[%c4_263, %c0_264, %c0_265] : memref<9x8x8xf32, #tpu.memory_space<vmem>>, vector<1x8x8xf32>
    %193 = vector.shape_cast %192 : vector<1x8x8xf32> to vector<8x8xf32>
    %cst_266 = arith.constant dense<0.000000e+00> : vector<256x8xf32>
    %194 = tpu.matmul %191, %193, %cst_266 {dimension_numbers = #tpu.dot_dimension_numbers<[1], [0], [0], [1], [0, 0, 1, 1], [], []>} : vector<256x8xf32>, vector<8x8xf32>, vector<256x8xf32> -> vector<256x8xf32>
    %195 = arith.addf %189, %194 : vector<256x8xf32>
    %c0_267 = arith.constant 0 : index
    %c1_268 = arith.constant 1 : index
    %c2_269 = arith.constant 2 : index
    %c0_270 = arith.constant 0 : index
    %196 = vector.load %arg18[%c0_267, %c1_268, %c2_269, %c0_270] : memref<1x18x18x8xf32, #tpu.memory_space<vmem>>, vector<1x16x16x8xf32>
    %197 = vector.shape_cast %196 : vector<1x16x16x8xf32> to vector<256x8xf32>
    %c5_271 = arith.constant 5 : index
    %c0_272 = arith.constant 0 : index
    %c0_273 = arith.constant 0 : index
    %198 = vector.load %arg11[%c5_271, %c0_272, %c0_273] : memref<9x8x8xf32, #tpu.memory_space<vmem>>, vector<1x8x8xf32>
    %199 = vector.shape_cast %198 : vector<1x8x8xf32> to vector<8x8xf32>
    %cst_274 = arith.constant dense<0.000000e+00> : vector<256x8xf32>
    %200 = tpu.matmul %197, %199, %cst_274 {dimension_numbers = #tpu.dot_dimension_numbers<[1], [0], [0], [1], [0, 0, 1, 1], [], []>} : vector<256x8xf32>, vector<8x8xf32>, vector<256x8xf32> -> vector<256x8xf32>
    %201 = arith.addf %195, %200 : vector<256x8xf32>
    %c0_275 = arith.constant 0 : index
    %c2_276 = arith.constant 2 : index
    %c0_277 = arith.constant 0 : index
    %c0_278 = arith.constant 0 : index
    %202 = vector.load %arg18[%c0_275, %c2_276, %c0_277, %c0_278] : memref<1x18x18x8xf32, #tpu.memory_space<vmem>>, vector<1x16x16x8xf32>
    %203 = vector.shape_cast %202 : vector<1x16x16x8xf32> to vector<256x8xf32>
    %c6_279 = arith.constant 6 : index
    %c0_280 = arith.constant 0 : index
    %c0_281 = arith.constant 0 : index
    %204 = vector.load %arg11[%c6_279, %c0_280, %c0_281] : memref<9x8x8xf32, #tpu.memory_space<vmem>>, vector<1x8x8xf32>
    %205 = vector.shape_cast %204 : vector<1x8x8xf32> to vector<8x8xf32>
    %cst_282 = arith.constant dense<0.000000e+00> : vector<256x8xf32>
    %206 = tpu.matmul %203, %205, %cst_282 {dimension_numbers = #tpu.dot_dimension_numbers<[1], [0], [0], [1], [0, 0, 1, 1], [], []>} : vector<256x8xf32>, vector<8x8xf32>, vector<256x8xf32> -> vector<256x8xf32>
    %207 = arith.addf %201, %206 : vector<256x8xf32>
    %c0_283 = arith.constant 0 : index
    %c2_284 = arith.constant 2 : index
    %c1_285 = arith.constant 1 : index
    %c0_286 = arith.constant 0 : index
    %208 = vector.load %arg18[%c0_283, %c2_284, %c1_285, %c0_286] : memref<1x18x18x8xf32, #tpu.memory_space<vmem>>, vector<1x16x16x8xf32>
    %209 = vector.shape_cast %208 : vector<1x16x16x8xf32> to vector<256x8xf32>
    %c7_287 = arith.constant 7 : index
    %c0_288 = arith.constant 0 : index
    %c0_289 = arith.constant 0 : index
    %210 = vector.load %arg11[%c7_287, %c0_288, %c0_289] : memref<9x8x8xf32, #tpu.memory_space<vmem>>, vector<1x8x8xf32>
    %211 = vector.shape_cast %210 : vector<1x8x8xf32> to vector<8x8xf32>
    %cst_290 = arith.constant dense<0.000000e+00> : vector<256x8xf32>
    %212 = tpu.matmul %209, %211, %cst_290 {dimension_numbers = #tpu.dot_dimension_numbers<[1], [0], [0], [1], [0, 0, 1, 1], [], []>} : vector<256x8xf32>, vector<8x8xf32>, vector<256x8xf32> -> vector<256x8xf32>
    %213 = arith.addf %207, %212 : vector<256x8xf32>
    %c0_291 = arith.constant 0 : index
    %c2_292 = arith.constant 2 : index
    %c2_293 = arith.constant 2 : index
    %c0_294 = arith.constant 0 : index
    %214 = vector.load %arg18[%c0_291, %c2_292, %c2_293, %c0_294] : memref<1x18x18x8xf32, #tpu.memory_space<vmem>>, vector<1x16x16x8xf32>
    %215 = vector.shape_cast %214 : vector<1x16x16x8xf32> to vector<256x8xf32>
    %c8_295 = arith.constant 8 : index
    %c0_296 = arith.constant 0 : index
    %c0_297 = arith.constant 0 : index
    %216 = vector.load %arg11[%c8_295, %c0_296, %c0_297] : memref<9x8x8xf32, #tpu.memory_space<vmem>>, vector<1x8x8xf32>
    %217 = vector.shape_cast %216 : vector<1x8x8xf32> to vector<8x8xf32>
    %cst_298 = arith.constant dense<0.000000e+00> : vector<256x8xf32>
    %218 = tpu.matmul %215, %217, %cst_298 {dimension_numbers = #tpu.dot_dimension_numbers<[1], [0], [0], [1], [0, 0, 1, 1], [], []>} : vector<256x8xf32>, vector<8x8xf32>, vector<256x8xf32> -> vector<256x8xf32>
    %219 = arith.addf %213, %218 : vector<256x8xf32>
    %c0_299 = arith.constant 0 : index
    %c0_300 = arith.constant 0 : index
    %220 = vector.load %arg12[%c0_299, %c0_300] : memref<1x8xf32, #tpu.memory_space<vmem>>, vector<1x8xf32>
    %221 = vector.broadcast %220 : vector<1x8xf32> to vector<256x8xf32>
    %222 = arith.mulf %219, %221 : vector<256x8xf32>
    %c0_301 = arith.constant 0 : index
    %c0_302 = arith.constant 0 : index
    %223 = vector.load %arg13[%c0_301, %c0_302] : memref<1x8xf32, #tpu.memory_space<vmem>>, vector<1x8xf32>
    %224 = vector.broadcast %223 : vector<1x8xf32> to vector<256x8xf32>
    %225 = arith.addf %222, %224 : vector<256x8xf32>
    %cst_303 = arith.constant 0.000000e+00 : f32
    %226 = vector.broadcast %cst_303 : f32 to vector<256x8xf32>
    %227 = arith.maximumf %225, %226 : vector<256x8xf32>
    %cst_304 = arith.constant 0xFF800000 : f32
    %228 = vector.broadcast %cst_304 : f32 to vector<1x1x18x4xf32>
    %c0_305 = arith.constant 0 : index
    %c0_306 = arith.constant 0 : index
    %c0_307 = arith.constant 0 : index
    %c0_308 = arith.constant 0 : index
    %229 = vector.load %arg18[%c0_305, %c0_306, %c0_307, %c0_308] : memref<1x18x18x8xf32, #tpu.memory_space<vmem>>, vector<1x1x18x4xf32>
    tpu.vector_store %arg18[%c0_305, %c0_306, %c0_307, %c0_308], %228 {strides = array<i32>} : memref<1x18x18x8xf32, #tpu.memory_space<vmem>>, vector<1x1x18x4xf32>,
    %cst_309 = arith.constant 0xFF800000 : f32
    %230 = vector.broadcast %cst_309 : f32 to vector<1x1x18x4xf32>
    %c0_310 = arith.constant 0 : index
    %c17_311 = arith.constant 17 : index
    %c0_312 = arith.constant 0 : index
    %c0_313 = arith.constant 0 : index
    %231 = vector.load %arg18[%c0_310, %c17_311, %c0_312, %c0_313] : memref<1x18x18x8xf32, #tpu.memory_space<vmem>>, vector<1x1x18x4xf32>
    tpu.vector_store %arg18[%c0_310, %c17_311, %c0_312, %c0_313], %230 {strides = array<i32>} : memref<1x18x18x8xf32, #tpu.memory_space<vmem>>, vector<1x1x18x4xf32>,
    %cst_314 = arith.constant 0xFF800000 : f32
    %232 = vector.broadcast %cst_314 : f32 to vector<1x18x1x4xf32>
    %c0_315 = arith.constant 0 : index
    %c0_316 = arith.constant 0 : index
    %c0_317 = arith.constant 0 : index
    %c0_318 = arith.constant 0 : index
    %233 = vector.load %arg18[%c0_315, %c0_316, %c0_317, %c0_318] : memref<1x18x18x8xf32, #tpu.memory_space<vmem>>, vector<1x18x1x4xf32>
    tpu.vector_store %arg18[%c0_315, %c0_316, %c0_317, %c0_318], %232 {strides = array<i32>} : memref<1x18x18x8xf32, #tpu.memory_space<vmem>>, vector<1x18x1x4xf32>,
    %cst_319 = arith.constant 0xFF800000 : f32
    %234 = vector.broadcast %cst_319 : f32 to vector<1x18x1x4xf32>
    %c0_320 = arith.constant 0 : index
    %c0_321 = arith.constant 0 : index
    %c17_322 = arith.constant 17 : index
    %c0_323 = arith.constant 0 : index
    %235 = vector.load %arg18[%c0_320, %c0_321, %c17_322, %c0_323] : memref<1x18x18x8xf32, #tpu.memory_space<vmem>>, vector<1x18x1x4xf32>
    tpu.vector_store %arg18[%c0_320, %c0_321, %c17_322, %c0_323], %234 {strides = array<i32>} : memref<1x18x18x8xf32, #tpu.memory_space<vmem>>, vector<1x18x1x4xf32>,
    %c0_324 = arith.constant 0 : index
    %c1_325 = arith.constant 1 : index
    %c1_326 = arith.constant 1 : index
    %c0_327 = arith.constant 0 : index
    %236 = vector.load %arg18[%c0_324, %c1_325, %c1_326, %c0_327] : memref<1x18x18x8xf32, #tpu.memory_space<vmem>>, vector<1x16x16x4xf32>
    tpu.vector_store %arg18[%c0_324, %c1_325, %c1_326, %c0_327], %0 {strides = array<i32>} : memref<1x18x18x8xf32, #tpu.memory_space<vmem>>, vector<1x16x16x4xf32>,
    %c0_328 = arith.constant 0 : index
    %c0_329 = arith.constant 0 : index
    %c0_330 = arith.constant 0 : index
    %c0_331 = arith.constant 0 : index
    %237 = vector.load %arg18[%c0_328, %c0_329, %c0_330, %c0_331] : memref<1x18x18x8xf32, #tpu.memory_space<vmem>>, vector<1x16x18x4xf32>
    %c0_332 = arith.constant 0 : index
    %c1_333 = arith.constant 1 : index
    %c0_334 = arith.constant 0 : index
    %c0_335 = arith.constant 0 : index
    %238 = vector.load %arg18[%c0_332, %c1_333, %c0_334, %c0_335] : memref<1x18x18x8xf32, #tpu.memory_space<vmem>>, vector<1x16x18x4xf32>
    %239 = arith.maximumf %237, %238 : vector<1x16x18x4xf32>
    %c0_336 = arith.constant 0 : index
    %c2_337 = arith.constant 2 : index
    %c0_338 = arith.constant 0 : index
    %c0_339 = arith.constant 0 : index
    %240 = vector.load %arg18[%c0_336, %c2_337, %c0_338, %c0_339] : memref<1x18x18x8xf32, #tpu.memory_space<vmem>>, vector<1x16x18x4xf32>
    %241 = arith.maximumf %239, %240 : vector<1x16x18x4xf32>
    %242 = vector.extract_strided_slice %241 {offsets = [0, 0, 0, 0], sizes = [1, 16, 16, 4], strides = [1, 1, 1, 1]} : vector<1x16x18x4xf32> to vector<1x16x16x4xf32>
    %243 = vector.extract_strided_slice %241 {offsets = [0, 0, 1, 0], sizes = [1, 16, 16, 4], strides = [1, 1, 1, 1]} : vector<1x16x18x4xf32> to vector<1x16x16x4xf32>
    %244 = arith.maximumf %242, %243 : vector<1x16x16x4xf32>
    %245 = vector.extract_strided_slice %241 {offsets = [0, 0, 2, 0], sizes = [1, 16, 16, 4], strides = [1, 1, 1, 1]} : vector<1x16x18x4xf32> to vector<1x16x16x4xf32>
    %246 = arith.maximumf %244, %245 : vector<1x16x16x4xf32>
    %247 = vector.shape_cast %246 : vector<1x16x16x4xf32> to vector<256x4xf32>
    %c0_340 = arith.constant 0 : index
    %c0_341 = arith.constant 0 : index
    %248 = vector.load %arg14[%c0_340, %c0_341] : memref<4x8xf32, #tpu.memory_space<vmem>>, vector<4x8xf32>
    %cst_342 = arith.constant dense<0.000000e+00> : vector<256x8xf32>
    %249 = tpu.matmul %247, %248, %cst_342 {dimension_numbers = #tpu.dot_dimension_numbers<[1], [0], [0], [1], [0, 0, 1, 1], [], []>} : vector<256x4xf32>, vector<4x8xf32>, vector<256x8xf32> -> vector<256x8xf32>
    %c0_343 = arith.constant 0 : index
    %c0_344 = arith.constant 0 : index
    %250 = vector.load %arg15[%c0_343, %c0_344] : memref<1x8xf32, #tpu.memory_space<vmem>>, vector<1x8xf32>
    %251 = vector.broadcast %250 : vector<1x8xf32> to vector<256x8xf32>
    %252 = arith.mulf %249, %251 : vector<256x8xf32>
    %c0_345 = arith.constant 0 : index
    %c0_346 = arith.constant 0 : index
    %253 = vector.load %arg16[%c0_345, %c0_346] : memref<1x8xf32, #tpu.memory_space<vmem>>, vector<1x8xf32>
    %254 = vector.broadcast %253 : vector<1x8xf32> to vector<256x8xf32>
    %255 = arith.addf %252, %254 : vector<256x8xf32>
    %cst_347 = arith.constant 0.000000e+00 : f32
    %256 = vector.broadcast %cst_347 : f32 to vector<256x8xf32>
    %257 = arith.maximumf %255, %256 : vector<256x8xf32>
    %258 = tpu.concatenate %14, %85, %227, %257 in 1 : vector<256x8xf32>, vector<256x8xf32>, vector<256x8xf32>, vector<256x8xf32> -> vector<256x32xf32>
    %259 = vector.shape_cast %258 : vector<256x32xf32> to vector<1x16x16x32xf32>
    %c0_348 = arith.constant 0 : index
    %c0_349 = arith.constant 0 : index
    %c0_350 = arith.constant 0 : index
    %c0_351 = arith.constant 0 : index
    %260 = vector.load %arg17[%c0_348, %c0_349, %c0_350, %c0_351] : memref<1x16x16x32xf32, #tpu.memory_space<vmem>>, vector<1x16x16x32xf32>
    tpu.vector_store %arg17[%c0_348, %c0_349, %c0_350, %c0_351], %259 {strides = array<i32>} : memref<1x16x16x32xf32, #tpu.memory_space<vmem>>, vector<1x16x16x32xf32>,
    return
  }
  func.func @transform_0(%arg0: i32) -> (i32, i32, i32, i32) {
    %c0_i32 = arith.constant 0 : i32
    %c0_i32_0 = arith.constant 0 : i32
    %c0_i32_1 = arith.constant 0 : i32
    %c0_i32_2 = arith.constant 0 : i32
    return %arg0, %c0_i32, %c0_i32_0, %c0_i32_1 : i32, i32, i32, i32
  }
  func.func @transform_1(%arg0: i32) -> (i32, i32) {
    %c0_i32 = arith.constant 0 : i32
    %c0_i32_0 = arith.constant 0 : i32
    %c0_i32_1 = arith.constant 0 : i32
    return %c0_i32, %c0_i32_0 : i32, i32
  }
  func.func @transform_2(%arg0: i32) -> (i32, i32) {
    %c0_i32 = arith.constant 0 : i32
    %c0_i32_0 = arith.constant 0 : i32
    %c0_i32_1 = arith.constant 0 : i32
    return %c0_i32, %c0_i32_0 : i32, i32
  }
  func.func @transform_3(%arg0: i32) -> (i32, i32) {
    %c0_i32 = arith.constant 0 : i32
    %c0_i32_0 = arith.constant 0 : i32
    %c0_i32_1 = arith.constant 0 : i32
    return %c0_i32, %c0_i32_0 : i32, i32
  }
  func.func @transform_4(%arg0: i32) -> (i32, i32, i32) {
    %c0_i32 = arith.constant 0 : i32
    %c0_i32_0 = arith.constant 0 : i32
    %c0_i32_1 = arith.constant 0 : i32
    %c0_i32_2 = arith.constant 0 : i32
    return %c0_i32, %c0_i32_0, %c0_i32_1 : i32, i32, i32
  }
  func.func @transform_5(%arg0: i32) -> (i32, i32) {
    %c0_i32 = arith.constant 0 : i32
    %c0_i32_0 = arith.constant 0 : i32
    %c0_i32_1 = arith.constant 0 : i32
    return %c0_i32, %c0_i32_0 : i32, i32
  }
  func.func @transform_6(%arg0: i32) -> (i32, i32) {
    %c0_i32 = arith.constant 0 : i32
    %c0_i32_0 = arith.constant 0 : i32
    %c0_i32_1 = arith.constant 0 : i32
    return %c0_i32, %c0_i32_0 : i32, i32
  }
  func.func @transform_7(%arg0: i32) -> (i32, i32, i32) {
    %c0_i32 = arith.constant 0 : i32
    %c0_i32_0 = arith.constant 0 : i32
    %c0_i32_1 = arith.constant 0 : i32
    %c0_i32_2 = arith.constant 0 : i32
    return %c0_i32, %c0_i32_0, %c0_i32_1 : i32, i32, i32
  }
  func.func @transform_8(%arg0: i32) -> (i32, i32) {
    %c0_i32 = arith.constant 0 : i32
    %c0_i32_0 = arith.constant 0 : i32
    %c0_i32_1 = arith.constant 0 : i32
    return %c0_i32, %c0_i32_0 : i32, i32
  }
  func.func @transform_9(%arg0: i32) -> (i32, i32) {
    %c0_i32 = arith.constant 0 : i32
    %c0_i32_0 = arith.constant 0 : i32
    %c0_i32_1 = arith.constant 0 : i32
    return %c0_i32, %c0_i32_0 : i32, i32
  }
  func.func @transform_10(%arg0: i32) -> (i32, i32, i32) {
    %c0_i32 = arith.constant 0 : i32
    %c0_i32_0 = arith.constant 0 : i32
    %c0_i32_1 = arith.constant 0 : i32
    %c0_i32_2 = arith.constant 0 : i32
    return %c0_i32, %c0_i32_0, %c0_i32_1 : i32, i32, i32
  }
  func.func @transform_11(%arg0: i32) -> (i32, i32) {
    %c0_i32 = arith.constant 0 : i32
    %c0_i32_0 = arith.constant 0 : i32
    %c0_i32_1 = arith.constant 0 : i32
    return %c0_i32, %c0_i32_0 : i32, i32
  }
  func.func @transform_12(%arg0: i32) -> (i32, i32) {
    %c0_i32 = arith.constant 0 : i32
    %c0_i32_0 = arith.constant 0 : i32
    %c0_i32_1 = arith.constant 0 : i32
    return %c0_i32, %c0_i32_0 : i32, i32
  }
  func.func @transform_13(%arg0: i32) -> (i32, i32) {
    %c0_i32 = arith.constant 0 : i32
    %c0_i32_0 = arith.constant 0 : i32
    %c0_i32_1 = arith.constant 0 : i32
    return %c0_i32, %c0_i32_0 : i32, i32
  }
  func.func @transform_14(%arg0: i32) -> (i32, i32) {
    %c0_i32 = arith.constant 0 : i32
    %c0_i32_0 = arith.constant 0 : i32
    %c0_i32_1 = arith.constant 0 : i32
    return %c0_i32, %c0_i32_0 : i32, i32
  }
  func.func @transform_15(%arg0: i32) -> (i32, i32) {
    %c0_i32 = arith.constant 0 : i32
    %c0_i32_0 = arith.constant 0 : i32
    %c0_i32_1 = arith.constant 0 : i32
    return %c0_i32, %c0_i32_0 : i32, i32
  }
  func.func @transform_16(%arg0: i32) -> (i32, i32, i32, i32) {
    %c0_i32 = arith.constant 0 : i32
    %c0_i32_0 = arith.constant 0 : i32
    %c0_i32_1 = arith.constant 0 : i32
    %c0_i32_2 = arith.constant 0 : i32
    return %arg0, %c0_i32, %c0_i32_0, %c0_i32_1 : i32, i32, i32, i32
  }
}

</mosaic_0001>

<llo_original>
// kernel: inception_forward.1
$region0: #{inception_forward.1}
  #allocation0 [shape = 'u32[]', space=smem, size = 0x4, offset = 0x4, fixed_abs, tag = 'smem constant byte address 0x4 - core index']
  #allocation1 [shape = 'u32[72,128]{1,0:T(1,128)}', space=vmem, size = 0x9000, scoped, tag = 'internal scratch']
  #allocation2 [shape = 'f32[1,18,18,8]{3,2,1,0:T(8,128)}', space=vmem, size = 0x36000, scoped, tag = 'scratch operand']
  %s0 = inlined_call_operand.vmem [shape: f32[2,16,16,4], index: 0, kind: input, shape index: {}]
  %s1 = inlined_call_operand.vmem [shape: f32[4,16], index: 1, kind: input, shape index: {}]
  %s2 = inlined_call_operand.vmem [shape: f32[1,16], index: 2, kind: input, shape index: {}]
  %s3 = inlined_call_operand.vmem [shape: f32[1,16], index: 3, kind: input, shape index: {}]
  %s4 = inlined_call_operand.vmem [shape: f32[9,4,8], index: 4, kind: input, shape index: {}]
  %s5 = inlined_call_operand.vmem [shape: f32[1,8], index: 5, kind: input, shape index: {}]
  %s6 = inlined_call_operand.vmem [shape: f32[1,8], index: 6, kind: input, shape index: {}]
  %s7 = inlined_call_operand.vmem [shape: f32[9,4,8], index: 7, kind: input, shape index: {}]
  %s8 = inlined_call_operand.vmem [shape: f32[1,8], index: 8, kind: input, shape index: {}]
  %s9 = inlined_call_operand.vmem [shape: f32[1,8], index: 9, kind: input, shape index: {}]
  %s10 = inlined_call_operand.vmem [shape: f32[9,8,8], index: 10, kind: input, shape index: {}]
  %s11 = inlined_call_operand.vmem [shape: f32[1,8], index: 11, kind: input, shape index: {}]
  %s12 = inlined_call_operand.vmem [shape: f32[1,8], index: 12, kind: input, shape index: {}]
  %s13 = inlined_call_operand.vmem [shape: f32[4,8], index: 13, kind: input, shape index: {}]
  %s14 = inlined_call_operand.vmem [shape: f32[1,8], index: 14, kind: input, shape index: {}]
  %s15 = inlined_call_operand.vmem [shape: f32[1,8], index: 15, kind: input, shape index: {}]
  %s16 = inlined_call_operand.hbm [shape: f32[2,16,16,32], index: 16, kind: output, shape index: {}]
  %s17 = sld [smem:[#allocation0]]
  $region97: #{inception_forward.1} parent=0
    _
  %s19 = ssub.s32 1, %s17
  %s20 = scalar_select 0, %s19, %s17
  $region1: #{inception_forward.1} parent=0
    #allocation3 [shape = 'u8[262144]{0}', space=vmem, size = 0x40000, scoped, tag = 'output window, operand 0']
    #allocation4 [shape = 's32[2]{0}', space=sflag, size = 0x8, scoped, tag = 'scoped memory for inception_forward.1']
    %21 = vsyncpa [#allocation4], 0
    %s22 = scalar_lea.sflag [#allocation4], 1
    %23 = vsyncpa %s22, 0
    loop: start=0, step=1, limit=4
    $region2: #{inception_forward.1} parent=1 // loop_pre_header
      _
    $region3: #{inception_forward.1} parent=1 // loop_header
      %s25 = sphi 0, %s29
      %p26 = scmp.ge.s32.totalorder %s25, 4
      %s35 = sphi 0, %s37
      %s38 = sphi 0, %s35
      %s39 = sphi 0, %s38
      %s55 = sphi 0, %s39
      %s59 = sphi 0, %s59
      %s61 = sphi 0, %s59
      %s62 = sphi 0, %s61
      %s76 = sphi 0, %s62
      %s80 = sphi 0, %s80
      %s82 = sphi 0, %s80
      %s83 = sphi 0, %s82
      %s97 = sphi 0, %s83
      %s101 = sphi 0, %s101
      %s103 = sphi 0, %s101
      %s104 = sphi 0, %s103
      %s118 = sphi 0, %s104
      %s122 = sphi 0, %s122
      %s124 = sphi 0, %s122
      %s125 = sphi 0, %s124
      %s139 = sphi 0, %s125
      %s143 = sphi 0, %s143
      %s145 = sphi 0, %s143
      %s146 = sphi 0, %s145
      %s160 = sphi 0, %s146
      %s164 = sphi 0, %s164
      %s166 = sphi 0, %s164
      %s167 = sphi 0, %s166
      %s181 = sphi 0, %s167
      %s185 = sphi 0, %s185
      %s187 = sphi 0, %s185
      %s188 = sphi 0, %s187
      %s202 = sphi 0, %s188
      %s206 = sphi 0, %s206
      %s208 = sphi 0, %s206
      %s209 = sphi 0, %s208
      %s223 = sphi 0, %s209
      %s227 = sphi 0, %s227
      %s229 = sphi 0, %s227
      %s230 = sphi 0, %s229
      %s244 = sphi 0, %s230
      %s248 = sphi 0, %s248
      %s250 = sphi 0, %s248
      %s251 = sphi 0, %s250
      %s265 = sphi 0, %s251
      %s269 = sphi 0, %s269
      %s271 = sphi 0, %s269
      %s272 = sphi 0, %s271
      %s286 = sphi 0, %s272
      %s290 = sphi 0, %s290
      %s292 = sphi 0, %s290
      %s293 = sphi 0, %s292
      %s307 = sphi 0, %s293
      %s311 = sphi 0, %s311
      %s313 = sphi 0, %s311
      %s314 = sphi 0, %s313
      %s328 = sphi 0, %s314
      %s332 = sphi 0, %s332
      %s334 = sphi 0, %s332
      %s335 = sphi 0, %s334
      %s349 = sphi 0, %s335
      %s353 = sphi 0, %s353
      %s355 = sphi 0, %s353
      %s356 = sphi 0, %s355
      %s370 = sphi 0, %s356
      %s376 = sphi 0, %s378
      %s379 = sphi 0, %s376
      %s380 = sphi 0, %s379
      %s396 = sphi 0, %s380
    $region4: #{inception_forward.1} parent=1 // loop_header_branch
      %28 = sbr.rel (%p26) target = $region8
    $region5: #{inception_forward.1} parent=1 // loop_body
      %s30 = ssub.s32 %s25, 1
      %s31 = ssub.s32 %s25, 2
      %s32 = sadd.s32 %s25, 1
      %s33 = ssub.s32 %s25, %s32
      %p34 = scmp.eq.s32.totalorder %s33, 0
      %s36 = sadd.s32 %s35, 1
      %s37 = scalar_select %p34, %s35, %s36
      %p40 = pneg %p34
      %p41 = scmp.eq.s32.totalorder %s25, 1
      %p42 = por %p40, %p41
      %p43 = scmp.ne.s32.totalorder %s35, %s38
      %p44 = scmp.eq.s32.totalorder %s25, 0
      %p45 = por %p43, %p44
      %p46 = scmp.ne.s32.totalorder %s35, %s38
      %p47 = scmp.eq.s32.totalorder %s30, 1
      %p48 = por %p46, %p47
      %p49 = scmp.ne.s32.totalorder %s38, %s39
      %p50 = scmp.eq.s32.totalorder %s30, 0
      %p51 = por %p49, %p50
      %p52 = scmp.ne.s32.totalorder %s38, %s39
      %p53 = scmp.eq.s32.totalorder %s31, 1
      %p54 = por %p52, %p53
      %p56 = scmp.ne.s32.totalorder %s39, %s55
      %p57 = scmp.eq.s32.totalorder %s31, 0
      %p58 = por %p56, %p57
      %s60 = sadd.s32 %s59, 1
      %p63 = scmp.eq.s32.totalorder %s25, 1
      %p64 = scmp.ne.s32.totalorder %s59, %s61
      %p65 = scmp.eq.s32.totalorder %s25, 0
      %p66 = por %p64, %p65
      %p67 = scmp.ne.s32.totalorder %s59, %s61
      %p68 = scmp.eq.s32.totalorder %s30, 1
      %p69 = por %p67, %p68
      %p70 = scmp.ne.s32.totalorder %s61, %s62
      %p71 = scmp.eq.s32.totalorder %s30, 0
      %p72 = por %p70, %p71
      %p73 = scmp.ne.s32.totalorder %s61, %s62
      %p74 = scmp.eq.s32.totalorder %s31, 1
      %p75 = por %p73, %p74
      %p77 = scmp.ne.s32.totalorder %s62, %s76
      %p78 = scmp.eq.s32.totalorder %s31, 0
      %p79 = por %p77, %p78
      %s81 = sadd.s32 %s80, 1
      %p84 = scmp.eq.s32.totalorder %s25, 1
      %p85 = scmp.ne.s32.totalorder %s80, %s82
      %p86 = scmp.eq.s32.totalorder %s25, 0
      %p87 = por %p85, %p86
      %p88 = scmp.ne.s32.totalorder %s80, %s82
      %p89 = scmp.eq.s32.totalorder %s30, 1
      %p90 = por %p88, %p89
      %p91 = scmp.ne.s32.totalorder %s82, %s83
      %p92 = scmp.eq.s32.totalorder %s30, 0
      %p93 = por %p91, %p92
      %p94 = scmp.ne.s32.totalorder %s82, %s83
      %p95 = scmp.eq.s32.totalorder %s31, 1
      %p96 = por %p94, %p95
      %p98 = scmp.ne.s32.totalorder %s83, %s97
      %p99 = scmp.eq.s32.totalorder %s31, 0
      %p100 = por %p98, %p99
      %s102 = sadd.s32 %s101, 1
      %p105 = scmp.eq.s32.totalorder %s25, 1
      %p106 = scmp.ne.s32.totalorder %s101, %s103
      %p107 = scmp.eq.s32.totalorder %s25, 0
      %p108 = por %p106, %p107
      %p109 = scmp.ne.s32.totalorder %s101, %s103
      %p110 = scmp.eq.s32.totalorder %s30, 1
      %p111 = por %p109, %p110
      %p112 = scmp.ne.s32.totalorder %s103, %s104
      %p113 = scmp.eq.s32.totalorder %s30, 0
      %p114 = por %p112, %p113
      %p115 = scmp.ne.s32.totalorder %s103, %s104
      %p116 = scmp.eq.s32.totalorder %s31, 1
      %p117 = por %p115, %p116
      %p119 = scmp.ne.s32.totalorder %s104, %s118
      %p120 = scmp.eq.s32.totalorder %s31, 0
      %p121 = por %p119, %p120
      %s123 = sadd.s32 %s122, 1
      %p126 = scmp.eq.s32.totalorder %s25, 1
      %p127 = scmp.ne.s32.totalorder %s122, %s124
      %p128 = scmp.eq.s32.totalorder %s25, 0
      %p129 = por %p127, %p128
      %p130 = scmp.ne.s32.totalorder %s122, %s124
      %p131 = scmp.eq.s32.totalorder %s30, 1
      %p132 = por %p130, %p131
      %p133 = scmp.ne.s32.totalorder %s124, %s125
      %p134 = scmp.eq.s32.totalorder %s30, 0
      %p135 = por %p133, %p134
      %p136 = scmp.ne.s32.totalorder %s124, %s125
      %p137 = scmp.eq.s32.totalorder %s31, 1
      %p138 = por %p136, %p137
      %p140 = scmp.ne.s32.totalorder %s125, %s139
      %p141 = scmp.eq.s32.totalorder %s31, 0
      %p142 = por %p140, %p141
      %s144 = sadd.s32 %s143, 1
      %p147 = scmp.eq.s32.totalorder %s25, 1
      %p148 = scmp.ne.s32.totalorder %s143, %s145
      %p149 = scmp.eq.s32.totalorder %s25, 0
      %p150 = por %p148, %p149
      %p151 = scmp.ne.s32.totalorder %s143, %s145
      %p152 = scmp.eq.s32.totalorder %s30, 1
      %p153 = por %p151, %p152
      %p154 = scmp.ne.s32.totalorder %s145, %s146
      %p155 = scmp.eq.s32.totalorder %s30, 0
      %p156 = por %p154, %p155
      %p157 = scmp.ne.s32.totalorder %s145, %s146
      %p158 = scmp.eq.s32.totalorder %s31, 1
      %p159 = por %p157, %p158
      %p161 = scmp.ne.s32.totalorder %s146, %s160
      %p162 = scmp.eq.s32.totalorder %s31, 0
      %p163 = por %p161, %p162
      %s165 = sadd.s32 %s164, 1
      %p168 = scmp.eq.s32.totalorder %s25, 1
      %p169 = scmp.ne.s32.totalorder %s164, %s166
      %p170 = scmp.eq.s32.totalorder %s25, 0
      %p171 = por %p169, %p170
      %p172 = scmp.ne.s32.totalorder %s164, %s166
      %p173 = scmp.eq.s32.totalorder %s30, 1
      %p174 = por %p172, %p173
      %p175 = scmp.ne.s32.totalorder %s166, %s167
      %p176 = scmp.eq.s32.totalorder %s30, 0
      %p177 = por %p175, %p176
      %p178 = scmp.ne.s32.totalorder %s166, %s167
      %p179 = scmp.eq.s32.totalorder %s31, 1
      %p180 = por %p178, %p179
      %p182 = scmp.ne.s32.totalorder %s167, %s181
      %p183 = scmp.eq.s32.totalorder %s31, 0
      %p184 = por %p182, %p183
      %s186 = sadd.s32 %s185, 1
      %p189 = scmp.eq.s32.totalorder %s25, 1
      %p190 = scmp.ne.s32.totalorder %s185, %s187
      %p191 = scmp.eq.s32.totalorder %s25, 0
      %p192 = por %p190, %p191
      %p193 = scmp.ne.s32.totalorder %s185, %s187
      %p194 = scmp.eq.s32.totalorder %s30, 1
      %p195 = por %p193, %p194
      %p196 = scmp.ne.s32.totalorder %s187, %s188
      %p197 = scmp.eq.s32.totalorder %s30, 0
      %p198 = por %p196, %p197
      %p199 = scmp.ne.s32.totalorder %s187, %s188
      %p200 = scmp.eq.s32.totalorder %s31, 1
      %p201 = por %p199, %p200
      %p203 = scmp.ne.s32.totalorder %s188, %s202
      %p204 = scmp.eq.s32.totalorder %s31, 0
      %p205 = por %p203, %p204
      %s207 = sadd.s32 %s206, 1
      %p210 = scmp.eq.s32.totalorder %s25, 1
      %p211 = scmp.ne.s32.totalorder %s206, %s208
      %p212 = scmp.eq.s32.totalorder %s25, 0
      %p213 = por %p211, %p212
      %p214 = scmp.ne.s32.totalorder %s206, %s208
      %p215 = scmp.eq.s32.totalorder %s30, 1
      %p216 = por %p214, %p215
      %p217 = scmp.ne.s32.totalorder %s208, %s209
      %p218 = scmp.eq.s32.totalorder %s30, 0
      %p219 = por %p217, %p218
      %p220 = scmp.ne.s32.totalorder %s208, %s209
      %p221 = scmp.eq.s32.totalorder %s31, 1
      %p222 = por %p220, %p221
      %p224 = scmp.ne.s32.totalorder %s209, %s223
      %p225 = scmp.eq.s32.totalorder %s31, 0
      %p226 = por %p224, %p225
      %s228 = sadd.s32 %s227, 1
      %p231 = scmp.eq.s32.totalorder %s25, 1
      %p232 = scmp.ne.s32.totalorder %s227, %s229
      %p233 = scmp.eq.s32.totalorder %s25, 0
      %p234 = por %p232, %p233
      %p235 = scmp.ne.s32.totalorder %s227, %s229
      %p236 = scmp.eq.s32.totalorder %s30, 1
      %p237 = por %p235, %p236
      %p238 = scmp.ne.s32.totalorder %s229, %s230
      %p239 = scmp.eq.s32.totalorder %s30, 0
      %p240 = por %p238, %p239
      %p241 = scmp.ne.s32.totalorder %s229, %s230
      %p242 = scmp.eq.s32.totalorder %s31, 1
      %p243 = por %p241, %p242
      %p245 = scmp.ne.s32.totalorder %s230, %s244
      %p246 = scmp.eq.s32.totalorder %s31, 0
      %p247 = por %p245, %p246
      %s249 = sadd.s32 %s248, 1
      %p252 = scmp.eq.s32.totalorder %s25, 1
      %p253 = scmp.ne.s32.totalorder %s248, %s250
      %p254 = scmp.eq.s32.totalorder %s25, 0
      %p255 = por %p253, %p254
      %p256 = scmp.ne.s32.totalorder %s248, %s250
      %p257 = scmp.eq.s32.totalorder %s30, 1
      %p258 = por %p256, %p257
      %p259 = scmp.ne.s32.totalorder %s250, %s251
      %p260 = scmp.eq.s32.totalorder %s30, 0
      %p261 = por %p259, %p260
      %p262 = scmp.ne.s32.totalorder %s250, %s251
      %p263 = scmp.eq.s32.totalorder %s31, 1
      %p264 = por %p262, %p263
      %p266 = scmp.ne.s32.totalorder %s251, %s265
      %p267 = scmp.eq.s32.totalorder %s31, 0
      %p268 = por %p266, %p267
      %s270 = sadd.s32 %s269, 1
      %p273 = scmp.eq.s32.totalorder %s25, 1
      %p274 = scmp.ne.s32.totalorder %s269, %s271
      %p275 = scmp.eq.s32.totalorder %s25, 0
      %p276 = por %p274, %p275
      %p277 = scmp.ne.s32.totalorder %s269, %s271
      %p278 = scmp.eq.s32.totalorder %s30, 1
      %p279 = por %p277, %p278
      %p280 = scmp.ne.s32.totalorder %s271, %s272
      %p281 = scmp.eq.s32.totalorder %s30, 0
      %p282 = por %p280, %p281
      %p283 = scmp.ne.s32.totalorder %s271, %s272
      %p284 = scmp.eq.s32.totalorder %s31, 1
      %p285 = por %p283, %p284
      %p287 = scmp.ne.s32.totalorder %s272, %s286
      %p288 = scmp.eq.s32.totalorder %s31, 0
      %p289 = por %p287, %p288
      %s291 = sadd.s32 %s290, 1
      %p294 = scmp.eq.s32.totalorder %s25, 1
      %p295 = scmp.ne.s32.totalorder %s290, %s292
      %p296 = scmp.eq.s32.totalorder %s25, 0
      %p297 = por %p295, %p296
      %p298 = scmp.ne.s32.totalorder %s290, %s292
      %p299 = scmp.eq.s32.totalorder %s30, 1
      %p300 = por %p298, %p299
      %p301 = scmp.ne.s32.totalorder %s292, %s293
      %p302 = scmp.eq.s32.totalorder %s30, 0
      %p303 = por %p301, %p302
      %p304 = scmp.ne.s32.totalorder %s292, %s293
      %p305 = scmp.eq.s32.totalorder %s31, 1
      %p306 = por %p304, %p305
      %p308 = scmp.ne.s32.totalorder %s293, %s307
      %p309 = scmp.eq.s32.totalorder %s31, 0
      %p310 = por %p308, %p309
      %s312 = sadd.s32 %s311, 1
      %p315 = scmp.eq.s32.totalorder %s25, 1
      %p316 = scmp.ne.s32.totalorder %s311, %s313
      %p317 = scmp.eq.s32.totalorder %s25, 0
      %p318 = por %p316, %p317
      %p319 = scmp.ne.s32.totalorder %s311, %s313
      %p320 = scmp.eq.s32.totalorder %s30, 1
      %p321 = por %p319, %p320
      %p322 = scmp.ne.s32.totalorder %s313, %s314
      %p323 = scmp.eq.s32.totalorder %s30, 0
      %p324 = por %p322, %p323
      %p325 = scmp.ne.s32.totalorder %s313, %s314
      %p326 = scmp.eq.s32.totalorder %s31, 1
      %p327 = por %p325, %p326
      %p329 = scmp.ne.s32.totalorder %s314, %s328
      %p330 = scmp.eq.s32.totalorder %s31, 0
      %p331 = por %p329, %p330
      %s333 = sadd.s32 %s332, 1
      %p336 = scmp.eq.s32.totalorder %s25, 1
      %p337 = scmp.ne.s32.totalorder %s332, %s334
      %p338 = scmp.eq.s32.totalorder %s25, 0
      %p339 = por %p337, %p338
      %p340 = scmp.ne.s32.totalorder %s332, %s334
      %p341 = scmp.eq.s32.totalorder %s30, 1
      %p342 = por %p340, %p341
      %p343 = scmp.ne.s32.totalorder %s334, %s335
      %p344 = scmp.eq.s32.totalorder %s30, 0
      %p345 = por %p343, %p344
      %p346 = scmp.ne.s32.totalorder %s334, %s335
      %p347 = scmp.eq.s32.totalorder %s31, 1
      %p348 = por %p346, %p347
      %p350 = scmp.ne.s32.totalorder %s335, %s349
      %p351 = scmp.eq.s32.totalorder %s31, 0
      %p352 = por %p350, %p351
      %s354 = sadd.s32 %s353, 1
      %p357 = scmp.eq.s32.totalorder %s25, 1
      %p358 = scmp.ne.s32.totalorder %s353, %s355
      %p359 = scmp.eq.s32.totalorder %s25, 0
      %p360 = por %p358, %p359
      %p361 = scmp.ne.s32.totalorder %s353, %s355
      %p362 = scmp.eq.s32.totalorder %s30, 1
      %p363 = por %p361, %p362
      %p364 = scmp.ne.s32.totalorder %s355, %s356
      %p365 = scmp.eq.s32.totalorder %s30, 0
      %p366 = por %p364, %p365
      %p367 = scmp.ne.s32.totalorder %s355, %s356
      %p368 = scmp.eq.s32.totalorder %s31, 1
      %p369 = por %p367, %p368
      %p371 = scmp.ne.s32.totalorder %s356, %s370
      %p372 = scmp.eq.s32.totalorder %s31, 0
      %p373 = por %p371, %p372
      %s374 = ssub.s32 %s25, %s32
      %p375 = scmp.eq.s32.totalorder %s374, 0
      %s377 = sadd.s32 %s376, 1
      %s378 = scalar_select %p375, %s376, %s377
      %p381 = pneg %p375
      %p382 = scmp.eq.s32.totalorder %s25, 1
      %p383 = por %p381, %p382
      %p384 = scmp.ne.s32.totalorder %s376, %s379
      %p385 = scmp.eq.s32.totalorder %s25, 0
      %p386 = por %p384, %p385
      %p387 = scmp.ne.s32.totalorder %s376, %s379
      %p388 = scmp.eq.s32.totalorder %s30, 1
      %p389 = por %p387, %p388
      %p390 = scmp.ne.s32.totalorder %s379, %s380
      %p391 = scmp.eq.s32.totalorder %s30, 0
      %p392 = por %p390, %p391
      %p393 = scmp.ne.s32.totalorder %s379, %s380
      %p394 = scmp.eq.s32.totalorder %s31, 1
      %p395 = por %p393, %p394
      %p397 = scmp.ne.s32.totalorder %s380, %s396
      %p398 = scmp.eq.s32.totalorder %s31, 0
      %p399 = por %p397, %p398
      %p400 = scmp.le.s32.totalorder 1, %s25
      %p401 = scmp.lt.s32.totalorder %s25, 3
      %p402 = pnand %p400, %p401
      %p403 = pneg %p402
      // Predicated region
      $region9: #{inception_forward.1} parent=5 // pred_check
        _
      $region10: #{inception_forward.1} parent=5 // pred_check_branch
        %405 = sbr.rel (%p402) target = $region12
      $region11: #{inception_forward.1} parent=5 // pred_region
        %s406 = ssub.s32 %s25, 1
        // Predicated region
        $region13: #{inception_forward.1} parent=11 // pred_check
          %p407 = pneg %p72
        $region14: #{inception_forward.1} parent=11 // pred_check_branch
          %409 = sbr.rel (%p407) target = $region16
        $region15: #{inception_forward.1} parent=11 // pred_region
          _
        $region16: #{inception_forward.1} parent=11 // pred_fallthru
          _
        // Predicated region
        $region17: #{inception_forward.1} parent=11 // pred_check
          %p410 = pneg %p93
        $region18: #{inception_forward.1} parent=11 // pred_check_branch
          %412 = sbr.rel (%p410) target = $region20
        $region19: #{inception_forward.1} parent=11 // pred_region
          _
        $region20: #{inception_forward.1} parent=11 // pred_fallthru
          _
        // Predicated region
        $region21: #{inception_forward.1} parent=11 // pred_check
          %p413 = pneg %p114
        $region22: #{inception_forward.1} parent=11 // pred_check_branch
          %415 = sbr.rel (%p413) target = $region24
        $region23: #{inception_forward.1} parent=11 // pred_region
          _
        $region24: #{inception_forward.1} parent=11 // pred_fallthru
          _
        // Predicated region
        $region25: #{inception_forward.1} parent=11 // pred_check
          %p416 = pneg %p135
        $region26: #{inception_forward.1} parent=11 // pred_check_branch
          %418 = sbr.rel (%p416) target = $region28
        $region27: #{inception_forward.1} parent=11 // pred_region
          _
        $region28: #{inception_forward.1} parent=11 // pred_fallthru
          _
        // Predicated region
        $region29: #{inception_forward.1} parent=11 // pred_check
          %p419 = pneg %p156
        $region30: #{inception_forward.1} parent=11 // pred_check_branch
          %421 = sbr.rel (%p419) target = $region32
        $region31: #{inception_forward.1} parent=11 // pred_region
          _
        $region32: #{inception_forward.1} parent=11 // pred_fallthru
          _
        // Predicated region
        $region33: #{inception_forward.1} parent=11 // pred_check
          %p422 = pneg %p177
        $region34: #{inception_forward.1} parent=11 // pred_check_branch
          %424 = sbr.rel (%p422) target = $region36
        $region35: #{inception_forward.1} parent=11 // pred_region
          _
        $region36: #{inception_forward.1} parent=11 // pred_fallthru
          _
        // Predicated region
        $region37: #{inception_forward.1} parent=11 // pred_check
          %p425 = pneg %p198
        $region38: #{inception_forward.1} parent=11 // pred_check_branch
          %427 = sbr.rel (%p425) target = $region40
        $region39: #{inception_forward.1} parent=11 // pred_region
          _
        $region40: #{inception_forward.1} parent=11 // pred_fallthru
          _
        // Predicated region
        $region41: #{inception_forward.1} parent=11 // pred_check
          %p428 = pneg %p219
        $region42: #{inception_forward.1} parent=11 // pred_check_branch
          %430 = sbr.rel (%p428) target = $region44
        $region43: #{inception_forward.1} parent=11 // pred_region
          _
        $region44: #{inception_forward.1} parent=11 // pred_fallthru
          _
        // Predicated region
        $region45: #{inception_forward.1} parent=11 // pred_check
          %p431 = pneg %p240
        $region46: #{inception_forward.1} parent=11 // pred_check_branch
          %433 = sbr.rel (%p431) target = $region48
        $region47: #{inception_forward.1} parent=11 // pred_region
          _
        $region48: #{inception_forward.1} parent=11 // pred_fallthru
          _
        // Predicated region
        $region49: #{inception_forward.1} parent=11 // pred_check
          %p434 = pneg %p261
        $region50: #{inception_forward.1} parent=11 // pred_check_branch
          %436 = sbr.rel (%p434) target = $region52
        $region51: #{inception_forward.1} parent=11 // pred_region
          _
        $region52: #{inception_forward.1} parent=11 // pred_fallthru
          _
        // Predicated region
        $region53: #{inception_forward.1} parent=11 // pred_check
          %p437 = pneg %p282
        $region54: #{inception_forward.1} parent=11 // pred_check_branch
          %439 = sbr.rel (%p437) target = $region56
        $region55: #{inception_forward.1} parent=11 // pred_region
          _
        $region56: #{inception_forward.1} parent=11 // pred_fallthru
          _
        // Predicated region
        $region57: #{inception_forward.1} parent=11 // pred_check
          %p440 = pneg %p303
        $region58: #{inception_forward.1} parent=11 // pred_check_branch
          %442 = sbr.rel (%p440) target = $region60
        $region59: #{inception_forward.1} parent=11 // pred_region
          _
        $region60: #{inception_forward.1} parent=11 // pred_fallthru
          _
        // Predicated region
        $region61: #{inception_forward.1} parent=11 // pred_check
          %p443 = pneg %p324
        $region62: #{inception_forward.1} parent=11 // pred_check_branch
          %445 = sbr.rel (%p443) target = $region64
        $region63: #{inception_forward.1} parent=11 // pred_region
          _
        $region64: #{inception_forward.1} parent=11 // pred_fallthru
          _
        // Predicated region
        $region65: #{inception_forward.1} parent=11 // pred_check
          %p446 = pneg %p345
        $region66: #{inception_forward.1} parent=11 // pred_check_branch
          %448 = sbr.rel (%p446) target = $region68
        $region67: #{inception_forward.1} parent=11 // pred_region
          _
        $region68: #{inception_forward.1} parent=11 // pred_fallthru
          _
        // Predicated region
        $region69: #{inception_forward.1} parent=11 // pred_check
          %p449 = pneg %p366
        $region70: #{inception_forward.1} parent=11 // pred_check_branch
          %451 = sbr.rel (%p449) target = $region72
        $region71: #{inception_forward.1} parent=11 // pred_region
          _
        $region72: #{inception_forward.1} parent=11 // pred_fallthru
          _
      $region12: #{inception_forward.1} parent=5 // pred_fallthru
        _
      %p452 = scmp.lt.s32.totalorder %s25, 2
      // Predicated region
      $region73: #{inception_forward.1} parent=5 // pred_check
        %p453 = pneg %p452
      $region74: #{inception_forward.1} parent=5 // pred_check_branch
        %455 = sbr.rel (%p453) target = $region76
      $region75: #{inception_forward.1} parent=5 // pred_region
        // Predicated region
        $region77: #{inception_forward.1} parent=75 // pred_check
          %p456 = pneg %p45
        $region78: #{inception_forward.1} parent=75 // pred_check_branch
          %458 = sbr.rel (%p456) target = $region80
        $region79: #{inception_forward.1} parent=75 // pred_region
          %p459 = scmp.lt.s32.totalorder %s25, 1
          %s460 = scalar_select %p459, %s25, 1
          %s461 = smul.addr %s460, 32
          %s462 = smul.addr %s461, 8
          %s463 = scalar_lea.vmem %s0, %s462
        $region80: #{inception_forward.1} parent=75 // pred_fallthru
          _
      $region76: #{inception_forward.1} parent=5 // pred_fallthru
        _
      %p464 = scmp.le.s32.totalorder 1, %s25
      %p465 = scmp.lt.s32.totalorder %s25, 3
      %p466 = pnand %p464, %p465
      %p467 = pneg %p466
      // Predicated region
      $region81: #{inception_forward.1} parent=5 // pred_check
        _
      $region82: #{inception_forward.1} parent=5 // pred_check_branch
        %469 = sbr.rel (%p466) target = $region84
      $region83: #{inception_forward.1} parent=5 // pred_region
        %s470 = ssub.s32 %s25, 1
        %p471 = scmp.lt.s32.totalorder %s30, 1
        %s472 = scalar_select %p471, %s30, 1
        %s473 = smul.addr %s472, 32
        %s474 = smul.addr %s473, 8
        %s475 = scalar_lea.vmem %s0, %s474
        %p476 = pneg %p51
        %p477 = pneg %p48
        %p478 = pneg %p72
        %p479 = pneg %p69
        %p480 = pneg %p93
        %p481 = pneg %p90
        %p482 = pneg %p114
        %p483 = pneg %p111
        %p484 = pneg %p135
        %p485 = pneg %p132
        %p486 = pneg %p156
        %p487 = pneg %p153
        %p488 = pneg %p177
        %p489 = pneg %p174
        %p490 = pneg %p198
        %p491 = pneg %p195
        %p492 = pneg %p219
        %p493 = pneg %p216
        %p494 = pneg %p240
        %p495 = pneg %p237
        %p496 = pneg %p261
        %p497 = pneg %p258
        %p498 = pneg %p282
        %p499 = pneg %p279
        %p500 = pneg %p303
        %p501 = pneg %p300
        %p502 = pneg %p324
        %p503 = pneg %p321
        %p504 = pneg %p345
        %p505 = pneg %p342
        %p506 = pneg %p366
        %p507 = pneg %p363
        %p508 = pneg %p392
        %p509 = pneg %p389
        %s510 = sand.u32 %s379, 1
        %s511 = scalar_lea.sflag [#allocation4], %s510
        %s512 = sand.u32 %s379, 1
        %s513 = smul.addr %s512, 256
        %s514 = scalar_lea.vmem [#allocation3], %s513
        %p515 = scmp.lt.s32.totalorder %s30, 1
        %s516 = scalar_select %p515, %s30, 1
        %s517 = smul.addr %s516, 32
        %s518 = smul.addr %s517, 8
        %s519 = scalar_lea.vmem %s0, %s518
        %v520 = vld [vmem:[%s519] sm:$0xff]
        %v521 = vld [vmem:[%s519 + $0x8] sm:$0xff]
        %v522 = vld [vmem:[%s519 + $0x10] sm:$0xff]
        %v523 = vld [vmem:[%s519 + $0x18] sm:$0xff]
        %v524 = vld [vmem:[%s519 + $0x20] sm:$0xff]
        %v525 = vld [vmem:[%s519 + $0x28] sm:$0xff]
        %v526 = vld [vmem:[%s519 + $0x30] sm:$0xff]
        %v527 = vld [vmem:[%s519 + $0x38] sm:$0xff]
        %v528 = vld [vmem:[%s519 + $0x40] sm:$0xff]
        %v529 = vld [vmem:[%s519 + $0x48] sm:$0xff]
        %v530 = vld [vmem:[%s519 + $0x50] sm:$0xff]
        %v531 = vld [vmem:[%s519 + $0x58] sm:$0xff]
        %v532 = vld [vmem:[%s519 + $0x60] sm:$0xff]
        %v533 = vld [vmem:[%s519 + $0x68] sm:$0xff]
        %v534 = vld [vmem:[%s519 + $0x70] sm:$0xff]
        %v535 = vld [vmem:[%s519 + $0x78] sm:$0xff]
        %v536 = vld [vmem:[%s519 + $0x80] sm:$0xff]
        %v537 = vld [vmem:[%s519 + $0x88] sm:$0xff]
        %v538 = vld [vmem:[%s519 + $0x90] sm:$0xff]
        %v539 = vld [vmem:[%s519 + $0x98] sm:$0xff]
        %v540 = vld [vmem:[%s519 + $0xa0] sm:$0xff]
        %v541 = vld [vmem:[%s519 + $0xa8] sm:$0xff]
        %v542 = vld [vmem:[%s519 + $0xb0] sm:$0xff]
        %v543 = vld [vmem:[%s519 + $0xb8] sm:$0xff]
        %v544 = vld [vmem:[%s519 + $0xc0] sm:$0xff]
        %v545 = vld [vmem:[%s519 + $0xc8] sm:$0xff]
        %v546 = vld [vmem:[%s519 + $0xd0] sm:$0xff]
        %v547 = vld [vmem:[%s519 + $0xd8] sm:$0xff]
        %v548 = vld [vmem:[%s519 + $0xe0] sm:$0xff]
        %v549 = vld [vmem:[%s519 + $0xe8] sm:$0xff]
        %v550 = vld [vmem:[%s519 + $0xf0] sm:$0xff]
        %v551 = vld [vmem:[%s519 + $0xf8] sm:$0xff]
        %v552 = vld [vmem:[%s1] sm:$0xf]
        %vm553 = vcmask 31744
        %v555 = vsel %vm553, %v520, 0
        %v558 = vsel %vm553, %v521, 0
        %v561 = vsel %vm553, %v522, 0
        %v564 = vsel %vm553, %v523, 0
        %v567 = vsel %vm553, %v524, 0
        %v570 = vsel %vm553, %v525, 0
        %v573 = vsel %vm553, %v526, 0
        %v576 = vsel %vm553, %v527, 0
        %v579 = vsel %vm553, %v528, 0
        %v582 = vsel %vm553, %v529, 0
        %v585 = vsel %vm553, %v530, 0
        %v588 = vsel %vm553, %v531, 0
        %v591 = vsel %vm553, %v532, 0
        %v594 = vsel %vm553, %v533, 0
        %v597 = vsel %vm553, %v534, 0
        %v600 = vsel %vm553, %v535, 0
        %v603 = vsel %vm553, %v536, 0
        %v606 = vsel %vm553, %v537, 0
        %v609 = vsel %vm553, %v538, 0
        %v612 = vsel %vm553, %v539, 0
        %v615 = vsel %vm553, %v540, 0
        %v618 = vsel %vm553, %v541, 0
        %v621 = vsel %vm553, %v542, 0
        %v624 = vsel %vm553, %v543, 0
        %v627 = vsel %vm553, %v544, 0
        %v630 = vsel %vm553, %v545, 0
        %v633 = vsel %vm553, %v546, 0
        %v636 = vsel %vm553, %v547, 0
        %v639 = vsel %vm553, %v548, 0
        %v642 = vsel %vm553, %v549, 0
        %v645 = vsel %vm553, %v550, 0
        %v648 = vsel %vm553, %v551, 0
        %vm650 = vcmask 1043456
        %v652 = vsel %vm650, %v552, 0
        %654 = vmatpush.msra.mxu0 0.0
        %655 = vmatpush.msra.mxu0 0.0
        %656 = vmatpush.msra.mxu0 0.0
        %657 = vmatpush.msra.mxu0 0.0
        %658 = vmatpush.msra.mxu0 0.0
        %659 = vmatpush.msra.mxu0 0.0
        %660 = vmatpush.msra.mxu0 0.0
        %661 = vmatpush.msra.mxu0 0.0
        %662 = vmatpush.msra.mxu0 0.0
        %663 = vmatpush.msra.mxu0 0.0
        %664 = vmatpush.msra.mxu0 0.0
        %665 = vmatpush.msra.mxu0 0.0
        %666 = vmatpush.msra.mxu0 0.0
        %667 = vmatpush.msra.mxu0 0.0
        %668 = vmatpush.msra.mxu0 0.0
        %669 = vmatpush.msra.mxu0 %v652
        %670 = vmatmul.f32.gmra.mxu0 %v555
        %v671 = vpop.f32.mrf.mxu0
        %v672 = vadd.f32 0.0, %v671
        %673 = vmatmul.f32.gmra.mxu0 %v558
        %v674 = vpop.f32.mrf.mxu0
        %v675 = vadd.f32 0.0, %v674
        %676 = vmatmul.f32.gmra.mxu0 %v561
        %v677 = vpop.f32.mrf.mxu0
        %v678 = vadd.f32 0.0, %v677
        %679 = vmatmul.f32.gmra.mxu0 %v564
        %v680 = vpop.f32.mrf.mxu0
        %v681 = vadd.f32 0.0, %v680
        %682 = vmatmul.f32.gmra.mxu0 %v567
        %v683 = vpop.f32.mrf.mxu0
        %v684 = vadd.f32 0.0, %v683
        %685 = vmatmul.f32.gmra.mxu0 %v570
        %v686 = vpop.f32.mrf.mxu0
        %v687 = vadd.f32 0.0, %v686
        %688 = vmatmul.f32.gmra.mxu0 %v573
        %v689 = vpop.f32.mrf.mxu0
        %v690 = vadd.f32 0.0, %v689
        %691 = vmatmul.f32.gmra.mxu0 %v576
        %v692 = vpop.f32.mrf.mxu0
        %v693 = vadd.f32 0.0, %v692
        %694 = vmatmul.f32.gmra.mxu0 %v579
        %v695 = vpop.f32.mrf.mxu0
        %v696 = vadd.f32 0.0, %v695
        %697 = vmatmul.f32.gmra.mxu0 %v582
        %v698 = vpop.f32.mrf.mxu0
        %v699 = vadd.f32 0.0, %v698
        %700 = vmatmul.f32.gmra.mxu0 %v585
        %v701 = vpop.f32.mrf.mxu0
        %v702 = vadd.f32 0.0, %v701
        %703 = vmatmul.f32.gmra.mxu0 %v588
        %v704 = vpop.f32.mrf.mxu0
        %v705 = vadd.f32 0.0, %v704
        %706 = vmatmul.f32.gmra.mxu0 %v591
        %v707 = vpop.f32.mrf.mxu0
        %v708 = vadd.f32 0.0, %v707
        %709 = vmatmul.f32.gmra.mxu0 %v594
        %v710 = vpop.f32.mrf.mxu0
        %v711 = vadd.f32 0.0, %v710
        %712 = vmatmul.f32.gmra.mxu0 %v597
        %v713 = vpop.f32.mrf.mxu0
        %v714 = vadd.f32 0.0, %v713
        %715 = vmatmul.f32.gmra.mxu0 %v600
        %v716 = vpop.f32.mrf.mxu0
        %v717 = vadd.f32 0.0, %v716
        %718 = vmatmul.f32.gmra.mxu0 %v603
        %v719 = vpop.f32.mrf.mxu0
        %v720 = vadd.f32 0.0, %v719
        %721 = vmatmul.f32.gmra.mxu0 %v606
        %v722 = vpop.f32.mrf.mxu0
        %v723 = vadd.f32 0.0, %v722
        %724 = vmatmul.f32.gmra.mxu0 %v609
        %v725 = vpop.f32.mrf.mxu0
        %v726 = vadd.f32 0.0, %v725
        %727 = vmatmul.f32.gmra.mxu0 %v612
        %v728 = vpop.f32.mrf.mxu0
        %v729 = vadd.f32 0.0, %v728
        %730 = vmatmul.f32.gmra.mxu0 %v615
        %v731 = vpop.f32.mrf.mxu0
        %v732 = vadd.f32 0.0, %v731
        %733 = vmatmul.f32.gmra.mxu0 %v618
        %v734 = vpop.f32.mrf.mxu0
        %v735 = vadd.f32 0.0, %v734
        %736 = vmatmul.f32.gmra.mxu0 %v621
        %v737 = vpop.f32.mrf.mxu0
        %v738 = vadd.f32 0.0, %v737
        %739 = vmatmul.f32.gmra.mxu0 %v624
        %v740 = vpop.f32.mrf.mxu0
        %v741 = vadd.f32 0.0, %v740
        %742 = vmatmul.f32.gmra.mxu0 %v627
        %v743 = vpop.f32.mrf.mxu0
        %v744 = vadd.f32 0.0, %v743
        %745 = vmatmul.f32.gmra.mxu0 %v630
        %v746 = vpop.f32.mrf.mxu0
        %v747 = vadd.f32 0.0, %v746
        %748 = vmatmul.f32.gmra.mxu0 %v633
        %v749 = vpop.f32.mrf.mxu0
        %v750 = vadd.f32 0.0, %v749
        %751 = vmatmul.f32.gmra.mxu0 %v636
        %v752 = vpop.f32.mrf.mxu0
        %v753 = vadd.f32 0.0, %v752
        %754 = vmatmul.f32.gmra.mxu0 %v639
        %v755 = vpop.f32.mrf.mxu0
        %v756 = vadd.f32 0.0, %v755
        %757 = vmatmul.f32.gmra.mxu0 %v642
        %v758 = vpop.f32.mrf.mxu0
        %v759 = vadd.f32 0.0, %v758
        %760 = vmatmul.f32.gmra.mxu0 %v645
        %v761 = vpop.f32.mrf.mxu0
        %v762 = vadd.f32 0.0, %v761
        %763 = vmatmul.f32.gmra.mxu0 %v648
        %v764 = vpop.f32.mrf.mxu0
        %v765 = vadd.f32 0.0, %v764
        %766 = vdwg.mxu0
        %v767 = vld [vmem:[%s2] sm:$0x1]
        %v769 = vperm.slane %v767, 0
        %v771 = vmul.f32 %v672, %v769
        %v772 = vmul.f32 %v675, %v769
        %v773 = vmul.f32 %v678, %v769
        %v774 = vmul.f32 %v681, %v769
        %v775 = vmul.f32 %v684, %v769
        %v776 = vmul.f32 %v687, %v769
        %v777 = vmul.f32 %v690, %v769
        %v778 = vmul.f32 %v693, %v769
        %v779 = vmul.f32 %v696, %v769
        %v780 = vmul.f32 %v699, %v769
        %v781 = vmul.f32 %v702, %v769
        %v782 = vmul.f32 %v705, %v769
        %v783 = vmul.f32 %v708, %v769
        %v784 = vmul.f32 %v711, %v769
        %v785 = vmul.f32 %v714, %v769
        %v786 = vmul.f32 %v717, %v769
        %v787 = vmul.f32 %v720, %v769
        %v788 = vmul.f32 %v723, %v769
        %v789 = vmul.f32 %v726, %v769
        %v790 = vmul.f32 %v729, %v769
        %v791 = vmul.f32 %v732, %v769
        %v792 = vmul.f32 %v735, %v769
        %v793 = vmul.f32 %v738, %v769
        %v794 = vmul.f32 %v741, %v769
        %v795 = vmul.f32 %v744, %v769
        %v796 = vmul.f32 %v747, %v769
        %v797 = vmul.f32 %v750, %v769
        %v798 = vmul.f32 %v753, %v769
        %v799 = vmul.f32 %v756, %v769
        %v800 = vmul.f32 %v759, %v769
        %v801 = vmul.f32 %v762, %v769
        %v802 = vmul.f32 %v765, %v769
        %v803 = vld [vmem:[%s3] sm:$0x1]
        %v805 = vperm.slane %v803, 0
        %v807 = vadd.f32 %v771, %v805
        %v808 = vadd.f32 %v772, %v805
        %v809 = vadd.f32 %v773, %v805
        %v810 = vadd.f32 %v774, %v805
        %v811 = vadd.f32 %v775, %v805
        %v812 = vadd.f32 %v776, %v805
        %v813 = vadd.f32 %v777, %v805
        %v814 = vadd.f32 %v778, %v805
        %v815 = vadd.f32 %v779, %v805
        %v816 = vadd.f32 %v780, %v805
        %v817 = vadd.f32 %v781, %v805
        %v818 = vadd.f32 %v782, %v805
        %v819 = vadd.f32 %v783, %v805
        %v820 = vadd.f32 %v784, %v805
        %v821 = vadd.f32 %v785, %v805
        %v822 = vadd.f32 %v786, %v805
        %v823 = vadd.f32 %v787, %v805
        %v824 = vadd.f32 %v788, %v805
        %v825 = vadd.f32 %v789, %v805
        %v826 = vadd.f32 %v790, %v805
        %v827 = vadd.f32 %v791, %v805
        %v828 = vadd.f32 %v792, %v805
        %v829 = vadd.f32 %v793, %v805
        %v830 = vadd.f32 %v794, %v805
        %v831 = vadd.f32 %v795, %v805
        %v832 = vadd.f32 %v796, %v805
        %v833 = vadd.f32 %v797, %v805
        %v834 = vadd.f32 %v798, %v805
        %v835 = vadd.f32 %v799, %v805
        %v836 = vadd.f32 %v800, %v805
        %v837 = vadd.f32 %v801, %v805
        %v838 = vadd.f32 %v802, %v805
        %v839 = vmax.f32 %v807, 0.0
        %v840 = vmax.f32 %v808, 0.0
        %v841 = vmax.f32 %v809, 0.0
        %v842 = vmax.f32 %v810, 0.0
        %v843 = vmax.f32 %v811, 0.0
        %v844 = vmax.f32 %v812, 0.0
        %v845 = vmax.f32 %v813, 0.0
        %v846 = vmax.f32 %v814, 0.0
        %v847 = vmax.f32 %v815, 0.0
        %v848 = vmax.f32 %v816, 0.0
        %v849 = vmax.f32 %v817, 0.0
        %v850 = vmax.f32 %v818, 0.0
        %v851 = vmax.f32 %v819, 0.0
        %v852 = vmax.f32 %v820, 0.0
        %v853 = vmax.f32 %v821, 0.0
        %v854 = vmax.f32 %v822, 0.0
        %v855 = vmax.f32 %v823, 0.0
        %v856 = vmax.f32 %v824, 0.0
        %v857 = vmax.f32 %v825, 0.0
        %v858 = vmax.f32 %v826, 0.0
        %v859 = vmax.f32 %v827, 0.0
        %v860 = vmax.f32 %v828, 0.0
        %v861 = vmax.f32 %v829, 0.0
        %v862 = vmax.f32 %v830, 0.0
        %v863 = vmax.f32 %v831, 0.0
        %v864 = vmax.f32 %v832, 0.0
        %v865 = vmax.f32 %v833, 0.0
        %v866 = vmax.f32 %v834, 0.0
        %v867 = vmax.f32 %v835, 0.0
        %v868 = vmax.f32 %v836, 0.0
        %v869 = vmax.f32 %v837, 0.0
        %v870 = vmax.f32 %v838, 0.0
        %871 = vst.msk [vmem:[#allocation2] sm:$0xff] %vm553, 0.0
        %872 = vst.msk [vmem:[#allocation2 + $0x8] sm:$0xff] %vm553, 0.0
        %vm873 = vcmask 25600
        %874 = vst.msk [vmem:[#allocation2 + $0x10] sm:$0x3] %vm873, 0.0
        %s875 = scalar_lea.vmem [#allocation2], 408
        %876 = vst.msk [vmem:[%s875] sm:$0xff] %vm553, 0.0
        %877 = vst.msk [vmem:[%s875 + $0x8] sm:$0xff] %vm553, 0.0
        %878 = vst.msk [vmem:[%s875 + $0x10] sm:$0x3] %vm873, 0.0
        %vm879 = vcmask 24576
        %880 = vst.msk [vmem:[#allocation2] sm:$0x1] %vm879, 0.0
        %881 = vst.msk [vmem:[#allocation2 + $0x18] sm:$0x1] %vm879, 0.0
        %882 = vst.msk [vmem:[#allocation2 + $0x30] sm:$0x1] %vm879, 0.0
        %883 = vst.msk [vmem:[#allocation2 + $0x48] sm:$0x1] %vm879, 0.0
        %884 = vst.msk [vmem:[#allocation2 + $0x60] sm:$0x1] %vm879, 0.0
        %885 = vst.msk [vmem:[#allocation2 + $0x78] sm:$0x1] %vm879, 0.0
        %886 = vst.msk [vmem:[#allocation2 + $0x90] sm:$0x1] %vm879, 0.0
        %887 = vst.msk [vmem:[#allocation2 + $0xa8] sm:$0x1] %vm879, 0.0
        %888 = vst.msk [vmem:[#allocation2 + $0xc0] sm:$0x1] %vm879, 0.0
        %889 = vst.msk [vmem:[#allocation2 + $0xd8] sm:$0x1] %vm879, 0.0
        %890 = vst.msk [vmem:[#allocation2 + $0xf0] sm:$0x1] %vm879, 0.0
        %891 = vst.msk [vmem:[#allocation2 + $0x108] sm:$0x1] %vm879, 0.0
        %892 = vst.msk [vmem:[#allocation2 + $0x120] sm:$0x1] %vm879, 0.0
        %893 = vst.msk [vmem:[#allocation2 + $0x138] sm:$0x1] %vm879, 0.0
        %894 = vst.msk [vmem:[#allocation2 + $0x150] sm:$0x1] %vm879, 0.0
        %895 = vst.msk [vmem:[#allocation2 + $0x168] sm:$0x1] %vm879, 0.0
        %896 = vst.msk [vmem:[#allocation2 + $0x180] sm:$0x1] %vm879, 0.0
        %897 = vst.msk [vmem:[#allocation2 + $0x198] sm:$0x1] %vm879, 0.0
        %898 = vst.msk [vmem:[#allocation2 + $0x11] sm:$0x1] %vm879, 0.0
        %899 = vst.msk [vmem:[#allocation2 + $0x29] sm:$0x1] %vm879, 0.0
        %900 = vst.msk [vmem:[#allocation2 + $0x41] sm:$0x1] %vm879, 0.0
        %901 = vst.msk [vmem:[#allocation2 + $0x59] sm:$0x1] %vm879, 0.0
        %902 = vst.msk [vmem:[#allocation2 + $0x71] sm:$0x1] %vm879, 0.0
        %903 = vst.msk [vmem:[#allocation2 + $0x89] sm:$0x1] %vm879, 0.0
        %904 = vst.msk [vmem:[#allocation2 + $0xa1] sm:$0x1] %vm879, 0.0
        %905 = vst.msk [vmem:[#allocation2 + $0xb9] sm:$0x1] %vm879, 0.0
        %906 = vst.msk [vmem:[#allocation2 + $0xd1] sm:$0x1] %vm879, 0.0
        %907 = vst.msk [vmem:[#allocation2 + $0xe9] sm:$0x1] %vm879, 0.0
        %908 = vst.msk [vmem:[#allocation2 + $0x101] sm:$0x1] %vm879, 0.0
        %909 = vst.msk [vmem:[#allocation2 + $0x119] sm:$0x1] %vm879, 0.0
        %910 = vst.msk [vmem:[#allocation2 + $0x131] sm:$0x1] %vm879, 0.0
        %911 = vst.msk [vmem:[#allocation2 + $0x149] sm:$0x1] %vm879, 0.0
        %912 = vst.msk [vmem:[#allocation2 + $0x161] sm:$0x1] %vm879, 0.0
        %913 = vst.msk [vmem:[#allocation2 + $0x179] sm:$0x1] %vm879, 0.0
        %914 = vst.msk [vmem:[#allocation2 + $0x191] sm:$0x1] %vm879, 0.0
        %915 = vst.msk [vmem:[#allocation2 + $0x1a9] sm:$0x1] %vm879, 0.0
        %s916 = scalar_lea.vmem [#allocation2], 24
        %917 = vst.msk [vmem:[%s916 + $0x1] sm:$0xff] %vm553, %v839
        %918 = vst.msk [vmem:[%s916 + $0x9] sm:$0xff] %vm553, %v840
        %919 = vst.msk [vmem:[%s916 + $0x19] sm:$0xff] %vm553, %v841
        %920 = vst.msk [vmem:[%s916 + $0x21] sm:$0xff] %vm553, %v842
        %921 = vst.msk [vmem:[%s916 + $0x31] sm:$0xff] %vm553, %v843
        %922 = vst.msk [vmem:[%s916 + $0x39] sm:$0xff] %vm553, %v844
        %923 = vst.msk [vmem:[%s916 + $0x49] sm:$0xff] %vm553, %v845
        %924 = vst.msk [vmem:[%s916 + $0x51] sm:$0xff] %vm553, %v846
        %925 = vst.msk [vmem:[%s916 + $0x61] sm:$0xff] %vm553, %v847
        %926 = vst.msk [vmem:[%s916 + $0x69] sm:$0xff] %vm553, %v848
        %927 = vst.msk [vmem:[%s916 + $0x79] sm:$0xff] %vm553, %v849
        %928 = vst.msk [vmem:[%s916 + $0x81] sm:$0xff] %vm553, %v850
        %929 = vst.msk [vmem:[%s916 + $0x91] sm:$0xff] %vm553, %v851
        %930 = vst.msk [vmem:[%s916 + $0x99] sm:$0xff] %vm553, %v852
        %931 = vst.msk [vmem:[%s916 + $0xa9] sm:$0xff] %vm553, %v853
        %932 = vst.msk [vmem:[%s916 + $0xb1] sm:$0xff] %vm553, %v854
        %933 = vst.msk [vmem:[%s916 + $0xc1] sm:$0xff] %vm553, %v855
        %934 = vst.msk [vmem:[%s916 + $0xc9] sm:$0xff] %vm553, %v856
        %935 = vst.msk [vmem:[%s916 + $0xd9] sm:$0xff] %vm553, %v857
        %936 = vst.msk [vmem:[%s916 + $0xe1] sm:$0xff] %vm553, %v858
        %937 = vst.msk [vmem:[%s916 + $0xf1] sm:$0xff] %vm553, %v859
        %938 = vst.msk [vmem:[%s916 + $0xf9] sm:$0xff] %vm553, %v860
        %939 = vst.msk [vmem:[%s916 + $0x109] sm:$0xff] %vm553, %v861
        %940 = vst.msk [vmem:[%s916 + $0x111] sm:$0xff] %vm553, %v862
        %941 = vst.msk [vmem:[%s916 + $0x121] sm:$0xff] %vm553, %v863
        %942 = vst.msk [vmem:[%s916 + $0x129] sm:$0xff] %vm553, %v864
        %943 = vst.msk [vmem:[%s916 + $0x139] sm:$0xff] %vm553, %v865
        %944 = vst.msk [vmem:[%s916 + $0x141] sm:$0xff] %vm553, %v866
        %945 = vst.msk [vmem:[%s916 + $0x151] sm:$0xff] %vm553, %v867
        %946 = vst.msk [vmem:[%s916 + $0x159] sm:$0xff] %vm553, %v868
        %947 = vst.msk [vmem:[%s916 + $0x169] sm:$0xff] %vm553, %v869
        %948 = vst.msk [vmem:[%s916 + $0x171] sm:$0xff] %vm553, %v870
        %v949 = vld [vmem:[#allocation2] sm:$0xff]
        %v950 = vld [vmem:[#allocation2 + $0x8] sm:$0xff]
        %v951 = vld [vmem:[#allocation2 + $0x18] sm:$0xff]
        %v952 = vld [vmem:[#allocation2 + $0x20] sm:$0xff]
        %v953 = vld [vmem:[#allocation2 + $0x30] sm:$0xff]
        %v954 = vld [vmem:[#allocation2 + $0x38] sm:$0xff]
        %v955 = vld [vmem:[#allocation2 + $0x48] sm:$0xff]
        %v956 = vld [vmem:[#allocation2 + $0x50] sm:$0xff]
        %v957 = vld [vmem:[#allocation2 + $0x60] sm:$0xff]
        %v958 = vld [vmem:[#allocation2 + $0x68] sm:$0xff]
        %v959 = vld [vmem:[#allocation2 + $0x78] sm:$0xff]
        %v960 = vld [vmem:[#allocation2 + $0x80] sm:$0xff]
        %v961 = vld [vmem:[#allocation2 + $0x90] sm:$0xff]
        %v962 = vld [vmem:[#allocation2 + $0x98] sm:$0xff]
        %v963 = vld [vmem:[#allocation2 + $0xa8] sm:$0xff]
        %v964 = vld [vmem:[#allocation2 + $0xb0] sm:$0xff]
        %v965 = vld [vmem:[#allocation2 + $0xc0] sm:$0xff]
        %v966 = vld [vmem:[#allocation2 + $0xc8] sm:$0xff]
        %v967 = vld [vmem:[#allocation2 + $0xd8] sm:$0xff]
        %v968 = vld [vmem:[#allocation2 + $0xe0] sm:$0xff]
        %v969 = vld [vmem:[#allocation2 + $0xf0] sm:$0xff]
        %v970 = vld [vmem:[#allocation2 + $0xf8] sm:$0xff]
        %v971 = vld [vmem:[#allocation2 + $0x108] sm:$0xff]
        %v972 = vld [vmem:[#allocation2 + $0x110] sm:$0xff]
        %v973 = vld [vmem:[#allocation2 + $0x120] sm:$0xff]
        %v974 = vld [vmem:[#allocation2 + $0x128] sm:$0xff]
        %v975 = vld [vmem:[#allocation2 + $0x138] sm:$0xff]
        %v976 = vld [vmem:[#allocation2 + $0x140] sm:$0xff]
        %v977 = vld [vmem:[#allocation2 + $0x150] sm:$0xff]
        %v978 = vld [vmem:[#allocation2 + $0x158] sm:$0xff]
        %v979 = vld [vmem:[#allocation2 + $0x168] sm:$0xff]
        %v980 = vld [vmem:[#allocation2 + $0x170] sm:$0xff]
        %v981 = vld [vmem:[%s4] sm:$0xf]
        %v982 = vld [vmem:[#allocation2 + $0x1] sm:$0xff]
        %v983 = vld [vmem:[#allocation2 + $0x9] sm:$0xff]
        %v984 = vld [vmem:[#allocation2 + $0x19] sm:$0xff]
        %v985 = vld [vmem:[#allocation2 + $0x21] sm:$0xff]
        %v986 = vld [vmem:[#allocation2 + $0x31] sm:$0xff]
        %v987 = vld [vmem:[#allocation2 + $0x39] sm:$0xff]
        %v988 = vld [vmem:[#allocation2 + $0x49] sm:$0xff]
        %v989 = vld [vmem:[#allocation2 + $0x51] sm:$0xff]
        %v990 = vld [vmem:[#allocation2 + $0x61] sm:$0xff]
        %v991 = vld [vmem:[#allocation2 + $0x69] sm:$0xff]
        %v992 = vld [vmem:[#allocation2 + $0x79] sm:$0xff]
        %v993 = vld [vmem:[#allocation2 + $0x81] sm:$0xff]
        %v994 = vld [vmem:[#allocation2 + $0x91] sm:$0xff]
        %v995 = vld [vmem:[#allocation2 + $0x99] sm:$0xff]
        %v996 = vld [vmem:[#allocation2 + $0xa9] sm:$0xff]
        %v997 = vld [vmem:[#allocation2 + $0xb1] sm:$0xff]
        %v998 = vld [vmem:[#allocation2 + $0xc1] sm:$0xff]
        %v999 = vld [vmem:[#allocation2 + $0xc9] sm:$0xff]
        %v1000 = vld [vmem:[#allocation2 + $0xd9] sm:$0xff]
        %v1001 = vld [vmem:[#allocation2 + $0xe1] sm:$0xff]
        %v1002 = vld [vmem:[#allocation2 + $0xf1] sm:$0xff]
        %v1003 = vld [vmem:[#allocation2 + $0xf9] sm:$0xff]
        %v1004 = vld [vmem:[#allocation2 + $0x109] sm:$0xff]
        %v1005 = vld [vmem:[#allocation2 + $0x111] sm:$0xff]
        %v1006 = vld [vmem:[#allocation2 + $0x121] sm:$0xff]
        %v1007 = vld [vmem:[#allocation2 + $0x129] sm:$0xff]
        %v1008 = vld [vmem:[#allocation2 + $0x139] sm:$0xff]
        %v1009 = vld [vmem:[#allocation2 + $0x141] sm:$0xff]
        %v1010 = vld [vmem:[#allocation2 + $0x151] sm:$0xff]
        %v1011 = vld [vmem:[#allocation2 + $0x159] sm:$0xff]
        %v1012 = vld [vmem:[#allocation2 + $0x169] sm:$0xff]
        %v1013 = vld [vmem:[#allocation2 + $0x171] sm:$0xff]
        %s1014 = scalar_lea.vmem %s4, 4
        %v1015 = vld [vmem:[%s1014] sm:$0xf]
        %v1017 = vsel %vm553, %v982, 0
        %v1020 = vsel %vm553, %v983, 0
        %v1023 = vsel %vm553, %v984, 0
        %v1026 = vsel %vm553, %v985, 0
        %v1029 = vsel %vm553, %v986, 0
        %v1032 = vsel %vm553, %v987, 0
        %v1035 = vsel %vm553, %v988, 0
        %v1038 = vsel %vm553, %v989, 0
        %v1041 = vsel %vm553, %v990, 0
        %v1044 = vsel %vm553, %v991, 0
        %v1047 = vsel %vm553, %v992, 0
        %v1050 = vsel %vm553, %v993, 0
        %v1053 = vsel %vm553, %v994, 0
        %v1056 = vsel %vm553, %v995, 0
        %v1059 = vsel %vm553, %v996, 0
        %v1062 = vsel %vm553, %v997, 0
        %v1065 = vsel %vm553, %v998, 0
        %v1068 = vsel %vm553, %v999, 0
        %v1071 = vsel %vm553, %v1000, 0
        %v1074 = vsel %vm553, %v1001, 0
        %v1077 = vsel %vm553, %v1002, 0
        %v1080 = vsel %vm553, %v1003, 0
        %v1083 = vsel %vm553, %v1004, 0
        %v1086 = vsel %vm553, %v1005, 0
        %v1089 = vsel %vm553, %v1006, 0
        %v1092 = vsel %vm553, %v1007, 0
        %v1095 = vsel %vm553, %v1008, 0
        %v1098 = vsel %vm553, %v1009, 0
        %v1101 = vsel %vm553, %v1010, 0
        %v1104 = vsel %vm553, %v1011, 0
        %v1107 = vsel %vm553, %v1012, 0
        %v1110 = vsel %vm553, %v1013, 0
        %v1113 = vsel %vm650, %v1015, 0
        %1115 = vmatpush.msra.mxu0 0.0
        %1116 = vmatpush.msra.mxu0 0.0
        %1117 = vmatpush.msra.mxu0 0.0
        %1118 = vmatpush.msra.mxu0 0.0
        %1119 = vmatpush.msra.mxu0 0.0
        %1120 = vmatpush.msra.mxu0 0.0
        %1121 = vmatpush.msra.mxu0 0.0
        %1122 = vmatpush.msra.mxu0 0.0
        %1123 = vmatpush.msra.mxu0 0.0
        %1124 = vmatpush.msra.mxu0 0.0
        %1125 = vmatpush.msra.mxu0 0.0
        %1126 = vmatpush.msra.mxu0 0.0
        %1127 = vmatpush.msra.mxu0 0.0
        %1128 = vmatpush.msra.mxu0 0.0
        %1129 = vmatpush.msra.mxu0 0.0
        %1130 = vmatpush.msra.mxu0 %v1113
        %1131 = vmatmul.f32.gmra.mxu0 %v1017
        %v1132 = vpop.f32.mrf.mxu0
        %v1133 = vadd.f32 0.0, %v1132
        %1134 = vmatmul.f32.gmra.mxu0 %v1020
        %v1135 = vpop.f32.mrf.mxu0
        %v1136 = vadd.f32 0.0, %v1135
        %1137 = vmatmul.f32.gmra.mxu0 %v1023
        %v1138 = vpop.f32.mrf.mxu0
        %v1139 = vadd.f32 0.0, %v1138
        %1140 = vmatmul.f32.gmra.mxu0 %v1026
        %v1141 = vpop.f32.mrf.mxu0
        %v1142 = vadd.f32 0.0, %v1141
        %1143 = vmatmul.f32.gmra.mxu0 %v1029
        %v1144 = vpop.f32.mrf.mxu0
        %v1145 = vadd.f32 0.0, %v1144
        %1146 = vmatmul.f32.gmra.mxu0 %v1032
        %v1147 = vpop.f32.mrf.mxu0
        %v1148 = vadd.f32 0.0, %v1147
        %1149 = vmatmul.f32.gmra.mxu0 %v1035
        %v1150 = vpop.f32.mrf.mxu0
        %v1151 = vadd.f32 0.0, %v1150
        %1152 = vmatmul.f32.gmra.mxu0 %v1038
        %v1153 = vpop.f32.mrf.mxu0
        %v1154 = vadd.f32 0.0, %v1153
        %1155 = vmatmul.f32.gmra.mxu0 %v1041
        %v1156 = vpop.f32.mrf.mxu0
        %v1157 = vadd.f32 0.0, %v1156
        %1158 = vmatmul.f32.gmra.mxu0 %v1044
        %v1159 = vpop.f32.mrf.mxu0
        %v1160 = vadd.f32 0.0, %v1159
        %1161 = vmatmul.f32.gmra.mxu0 %v1047
        %v1162 = vpop.f32.mrf.mxu0
        %v1163 = vadd.f32 0.0, %v1162
        %1164 = vmatmul.f32.gmra.mxu0 %v1050
        %v1165 = vpop.f32.mrf.mxu0
        %v1166 = vadd.f32 0.0, %v1165
        %1167 = vmatmul.f32.gmra.mxu0 %v1053
        %v1168 = vpop.f32.mrf.mxu0
        %v1169 = vadd.f32 0.0, %v1168
        %1170 = vmatmul.f32.gmra.mxu0 %v1056
        %v1171 = vpop.f32.mrf.mxu0
        %v1172 = vadd.f32 0.0, %v1171
        %1173 = vmatmul.f32.gmra.mxu0 %v1059
        %v1174 = vpop.f32.mrf.mxu0
        %v1175 = vadd.f32 0.0, %v1174
        %1176 = vmatmul.f32.gmra.mxu0 %v1062
        %v1177 = vpop.f32.mrf.mxu0
        %v1178 = vadd.f32 0.0, %v1177
        %1179 = vmatmul.f32.gmra.mxu0 %v1065
        %v1180 = vpop.f32.mrf.mxu0
        %v1181 = vadd.f32 0.0, %v1180
        %1182 = vmatmul.f32.gmra.mxu0 %v1068
        %v1183 = vpop.f32.mrf.mxu0
        %v1184 = vadd.f32 0.0, %v1183
        %1185 = vmatmul.f32.gmra.mxu0 %v1071
        %v1186 = vpop.f32.mrf.mxu0
        %v1187 = vadd.f32 0.0, %v1186
        %1188 = vmatmul.f32.gmra.mxu0 %v1074
        %v1189 = vpop.f32.mrf.mxu0
        %v1190 = vadd.f32 0.0, %v1189
        %1191 = vmatmul.f32.gmra.mxu0 %v1077
        %v1192 = vpop.f32.mrf.mxu0
        %v1193 = vadd.f32 0.0, %v1192
        %1194 = vmatmul.f32.gmra.mxu0 %v1080
        %v1195 = vpop.f32.mrf.mxu0
        %v1196 = vadd.f32 0.0, %v1195
        %1197 = vmatmul.f32.gmra.mxu0 %v1083
        %v1198 = vpop.f32.mrf.mxu0
        %v1199 = vadd.f32 0.0, %v1198
        %1200 = vmatmul.f32.gmra.mxu0 %v1086
        %v1201 = vpop.f32.mrf.mxu0
        %v1202 = vadd.f32 0.0, %v1201
        %1203 = vmatmul.f32.gmra.mxu0 %v1089
        %v1204 = vpop.f32.mrf.mxu0
        %v1205 = vadd.f32 0.0, %v1204
        %1206 = vmatmul.f32.gmra.mxu0 %v1092
        %v1207 = vpop.f32.mrf.mxu0
        %v1208 = vadd.f32 0.0, %v1207
        %1209 = vmatmul.f32.gmra.mxu0 %v1095
        %v1210 = vpop.f32.mrf.mxu0
        %v1211 = vadd.f32 0.0, %v1210
        %1212 = vmatmul.f32.gmra.mxu0 %v1098
        %v1213 = vpop.f32.mrf.mxu0
        %v1214 = vadd.f32 0.0, %v1213
        %1215 = vmatmul.f32.gmra.mxu0 %v1101
        %v1216 = vpop.f32.mrf.mxu0
        %v1217 = vadd.f32 0.0, %v1216
        %1218 = vmatmul.f32.gmra.mxu0 %v1104
        %v1219 = vpop.f32.mrf.mxu0
        %v1220 = vadd.f32 0.0, %v1219
        %1221 = vmatmul.f32.gmra.mxu0 %v1107
        %v1222 = vpop.f32.mrf.mxu0
        %v1223 = vadd.f32 0.0, %v1222
        %1224 = vmatmul.f32.gmra.mxu0 %v1110
        %v1225 = vpop.f32.mrf.mxu0
        %v1226 = vadd.f32 0.0, %v1225
        %1227 = vdwg.mxu0
        %v1229 = vsel %vm553, %v949, 0
        %v1232 = vsel %vm553, %v950, 0
        %v1235 = vsel %vm553, %v951, 0
        %v1238 = vsel %vm553, %v952, 0
        %v1241 = vsel %vm553, %v953, 0
        %v1244 = vsel %vm553, %v954, 0
        %v1247 = vsel %vm553, %v955, 0
        %v1250 = vsel %vm553, %v956, 0
        %v1253 = vsel %vm553, %v957, 0
        %v1256 = vsel %vm553, %v958, 0
        %v1259 = vsel %vm553, %v959, 0
        %v1262 = vsel %vm553, %v960, 0
        %v1265 = vsel %vm553, %v961, 0
        %v1268 = vsel %vm553, %v962, 0
        %v1271 = vsel %vm553, %v963, 0
        %v1274 = vsel %vm553, %v964, 0
        %v1277 = vsel %vm553, %v965, 0
        %v1280 = vsel %vm553, %v966, 0
        %v1283 = vsel %vm553, %v967, 0
        %v1286 = vsel %vm553, %v968, 0
        %v1289 = vsel %vm553, %v969, 0
        %v1292 = vsel %vm553, %v970, 0
        %v1295 = vsel %vm553, %v971, 0
        %v1298 = vsel %vm553, %v972, 0
        %v1301 = vsel %vm553, %v973, 0
        %v1304 = vsel %vm553, %v974, 0
        %v1307 = vsel %vm553, %v975, 0
        %v1310 = vsel %vm553, %v976, 0
        %v1313 = vsel %vm553, %v977, 0
        %v1316 = vsel %vm553, %v978, 0
        %v1319 = vsel %vm553, %v979, 0
        %v1322 = vsel %vm553, %v980, 0
        %v1325 = vsel %vm650, %v981, 0
        %1327 = vmatpush.msra.mxu0 0.0
        %1328 = vmatpush.msra.mxu0 0.0
        %1329 = vmatpush.msra.mxu0 0.0
        %1330 = vmatpush.msra.mxu0 0.0
        %1331 = vmatpush.msra.mxu0 0.0
        %1332 = vmatpush.msra.mxu0 0.0
        %1333 = vmatpush.msra.mxu0 0.0
        %1334 = vmatpush.msra.mxu0 0.0
        %1335 = vmatpush.msra.mxu0 0.0
        %1336 = vmatpush.msra.mxu0 0.0
        %1337 = vmatpush.msra.mxu0 0.0
        %1338 = vmatpush.msra.mxu0 0.0
        %1339 = vmatpush.msra.mxu0 0.0
        %1340 = vmatpush.msra.mxu0 0.0
        %1341 = vmatpush.msra.mxu0 0.0
        %1342 = vmatpush.msra.mxu0 %v1325
        %1343 = vmatmul.f32.gmra.mxu0 %v1229
        %v1344 = vpop.f32.mrf.mxu0
        %v1345 = vadd.f32 %v1133, %v1344
        %1346 = vmatmul.f32.gmra.mxu0 %v1232
        %v1347 = vpop.f32.mrf.mxu0
        %v1348 = vadd.f32 %v1136, %v1347
        %1349 = vmatmul.f32.gmra.mxu0 %v1235
        %v1350 = vpop.f32.mrf.mxu0
        %v1351 = vadd.f32 %v1139, %v1350
        %1352 = vmatmul.f32.gmra.mxu0 %v1238
        %v1353 = vpop.f32.mrf.mxu0
        %v1354 = vadd.f32 %v1142, %v1353
        %1355 = vmatmul.f32.gmra.mxu0 %v1241
        %v1356 = vpop.f32.mrf.mxu0
        %v1357 = vadd.f32 %v1145, %v1356
        %1358 = vmatmul.f32.gmra.mxu0 %v1244
        %v1359 = vpop.f32.mrf.mxu0
        %v1360 = vadd.f32 %v1148, %v1359
        %1361 = vmatmul.f32.gmra.mxu0 %v1247
        %v1362 = vpop.f32.mrf.mxu0
        %v1363 = vadd.f32 %v1151, %v1362
        %1364 = vmatmul.f32.gmra.mxu0 %v1250
        %v1365 = vpop.f32.mrf.mxu0
        %v1366 = vadd.f32 %v1154, %v1365
        %1367 = vmatmul.f32.gmra.mxu0 %v1253
        %v1368 = vpop.f32.mrf.mxu0
        %v1369 = vadd.f32 %v1157, %v1368
        %1370 = vmatmul.f32.gmra.mxu0 %v1256
        %v1371 = vpop.f32.mrf.mxu0
        %v1372 = vadd.f32 %v1160, %v1371
        %1373 = vmatmul.f32.gmra.mxu0 %v1259
        %v1374 = vpop.f32.mrf.mxu0
        %v1375 = vadd.f32 %v1163, %v1374
        %1376 = vmatmul.f32.gmra.mxu0 %v1262
        %v1377 = vpop.f32.mrf.mxu0
        %v1378 = vadd.f32 %v1166, %v1377
        %1379 = vmatmul.f32.gmra.mxu0 %v1265
        %v1380 = vpop.f32.mrf.mxu0
        %v1381 = vadd.f32 %v1169, %v1380
        %1382 = vmatmul.f32.gmra.mxu0 %v1268
        %v1383 = vpop.f32.mrf.mxu0
        %v1384 = vadd.f32 %v1172, %v1383
        %1385 = vmatmul.f32.gmra.mxu0 %v1271
        %v1386 = vpop.f32.mrf.mxu0
        %v1387 = vadd.f32 %v1175, %v1386
        %1388 = vmatmul.f32.gmra.mxu0 %v1274
        %v1389 = vpop.f32.mrf.mxu0
        %v1390 = vadd.f32 %v1178, %v1389
        %1391 = vmatmul.f32.gmra.mxu0 %v1277
        %v1392 = vpop.f32.mrf.mxu0
        %v1393 = vadd.f32 %v1181, %v1392
        %1394 = vmatmul.f32.gmra.mxu0 %v1280
        %v1395 = vpop.f32.mrf.mxu0
        %v1396 = vadd.f32 %v1184, %v1395
        %1397 = vmatmul.f32.gmra.mxu0 %v1283
        %v1398 = vpop.f32.mrf.mxu0
        %v1399 = vadd.f32 %v1187, %v1398
        %1400 = vmatmul.f32.gmra.mxu0 %v1286
        %v1401 = vpop.f32.mrf.mxu0
        %v1402 = vadd.f32 %v1190, %v1401
        %1403 = vmatmul.f32.gmra.mxu0 %v1289
        %v1404 = vpop.f32.mrf.mxu0
        %v1405 = vadd.f32 %v1193, %v1404
        %1406 = vmatmul.f32.gmra.mxu0 %v1292
        %v1407 = vpop.f32.mrf.mxu0
        %v1408 = vadd.f32 %v1196, %v1407
        %1409 = vmatmul.f32.gmra.mxu0 %v1295
        %v1410 = vpop.f32.mrf.mxu0
        %v1411 = vadd.f32 %v1199, %v1410
        %1412 = vmatmul.f32.gmra.mxu0 %v1298
        %v1413 = vpop.f32.mrf.mxu0
        %v1414 = vadd.f32 %v1202, %v1413
        %1415 = vmatmul.f32.gmra.mxu0 %v1301
        %v1416 = vpop.f32.mrf.mxu0
        %v1417 = vadd.f32 %v1205, %v1416
        %1418 = vmatmul.f32.gmra.mxu0 %v1304
        %v1419 = vpop.f32.mrf.mxu0
        %v1420 = vadd.f32 %v1208, %v1419
        %1421 = vmatmul.f32.gmra.mxu0 %v1307
        %v1422 = vpop.f32.mrf.mxu0
        %v1423 = vadd.f32 %v1211, %v1422
        %1424 = vmatmul.f32.gmra.mxu0 %v1310
        %v1425 = vpop.f32.mrf.mxu0
        %v1426 = vadd.f32 %v1214, %v1425
        %1427 = vmatmul.f32.gmra.mxu0 %v1313
        %v1428 = vpop.f32.mrf.mxu0
        %v1429 = vadd.f32 %v1217, %v1428
        %1430 = vmatmul.f32.gmra.mxu0 %v1316
        %v1431 = vpop.f32.mrf.mxu0
        %v1432 = vadd.f32 %v1220, %v1431
        %1433 = vmatmul.f32.gmra.mxu0 %v1319
        %v1434 = vpop.f32.mrf.mxu0
        %v1435 = vadd.f32 %v1223, %v1434
        %1436 = vmatmul.f32.gmra.mxu0 %v1322
        %v1437 = vpop.f32.mrf.mxu0
        %v1438 = vadd.f32 %v1226, %v1437
        %1439 = vdwg.mxu0
        %v1440 = vld [vmem:[#allocation2 + $0x2] sm:$0xff]
        %v1441 = vld [vmem:[#allocation2 + $0xa] sm:$0xff]
        %v1442 = vld [vmem:[#allocation2 + $0x1a] sm:$0xff]
        %v1443 = vld [vmem:[#allocation2 + $0x22] sm:$0xff]
        %v1444 = vld [vmem:[#allocation2 + $0x32] sm:$0xff]
        %v1445 = vld [vmem:[#allocation2 + $0x3a] sm:$0xff]
        %v1446 = vld [vmem:[#allocation2 + $0x4a] sm:$0xff]
        %v1447 = vld [vmem:[#allocation2 + $0x52] sm:$0xff]
        %v1448 = vld [vmem:[#allocation2 + $0x62] sm:$0xff]
        %v1449 = vld [vmem:[#allocation2 + $0x6a] sm:$0xff]
        %v1450 = vld [vmem:[#allocation2 + $0x7a] sm:$0xff]
        %v1451 = vld [vmem:[#allocation2 + $0x82] sm:$0xff]
        %v1452 = vld [vmem:[#allocation2 + $0x92] sm:$0xff]
        %v1453 = vld [vmem:[#allocation2 + $0x9a] sm:$0xff]
        %v1454 = vld [vmem:[#allocation2 + $0xaa] sm:$0xff]
        %v1455 = vld [vmem:[#allocation2 + $0xb2] sm:$0xff]
        %v1456 = vld [vmem:[#allocation2 + $0xc2] sm:$0xff]
        %v1457 = vld [vmem:[#allocation2 + $0xca] sm:$0xff]
        %v1458 = vld [vmem:[#allocation2 + $0xda] sm:$0xff]
        %v1459 = vld [vmem:[#allocation2 + $0xe2] sm:$0xff]
        %v1460 = vld [vmem:[#allocation2 + $0xf2] sm:$0xff]
        %v1461 = vld [vmem:[#allocation2 + $0xfa] sm:$0xff]
        %v1462 = vld [vmem:[#allocation2 + $0x10a] sm:$0xff]
        %v1463 = vld [vmem:[#allocation2 + $0x112] sm:$0xff]
        %v1464 = vld [vmem:[#allocation2 + $0x122] sm:$0xff]
        %v1465 = vld [vmem:[#allocation2 + $0x12a] sm:$0xff]
        %v1466 = vld [vmem:[#allocation2 + $0x13a] sm:$0xff]
        %v1467 = vld [vmem:[#allocation2 + $0x142] sm:$0xff]
        %v1468 = vld [vmem:[#allocation2 + $0x152] sm:$0xff]
        %v1469 = vld [vmem:[#allocation2 + $0x15a] sm:$0xff]
        %v1470 = vld [vmem:[#allocation2 + $0x16a] sm:$0xff]
        %v1471 = vld [vmem:[#allocation2 + $0x172] sm:$0xff]
        %s1472 = scalar_lea.vmem %s4, 8
        %v1473 = vld [vmem:[%s1472] sm:$0xf]
        %v1475 = vsel %vm553, %v1440, 0
        %v1478 = vsel %vm553, %v1441, 0
        %v1481 = vsel %vm553, %v1442, 0
        %v1484 = vsel %vm553, %v1443, 0
        %v1487 = vsel %vm553, %v1444, 0
        %v1490 = vsel %vm553, %v1445, 0
        %v1493 = vsel %vm553, %v1446, 0
        %v1496 = vsel %vm553, %v1447, 0
        %v1499 = vsel %vm553, %v1448, 0
        %v1502 = vsel %vm553, %v1449, 0
        %v1505 = vsel %vm553, %v1450, 0
        %v1508 = vsel %vm553, %v1451, 0
        %v1511 = vsel %vm553, %v1452, 0
        %v1514 = vsel %vm553, %v1453, 0
        %v1517 = vsel %vm553, %v1454, 0
        %v1520 = vsel %vm553, %v1455, 0
        %v1523 = vsel %vm553, %v1456, 0
        %v1526 = vsel %vm553, %v1457, 0
        %v1529 = vsel %vm553, %v1458, 0
        %v1532 = vsel %vm553, %v1459, 0
        %v1535 = vsel %vm553, %v1460, 0
        %v1538 = vsel %vm553, %v1461, 0
        %v1541 = vsel %vm553, %v1462, 0
        %v1544 = vsel %vm553, %v1463, 0
        %v1547 = vsel %vm553, %v1464, 0
        %v1550 = vsel %vm553, %v1465, 0
        %v1553 = vsel %vm553, %v1466, 0
        %v1556 = vsel %vm553, %v1467, 0
        %v1559 = vsel %vm553, %v1468, 0
        %v1562 = vsel %vm553, %v1469, 0
        %v1565 = vsel %vm553, %v1470, 0
        %v1568 = vsel %vm553, %v1471, 0
        %v1571 = vsel %vm650, %v1473, 0
        %1573 = vmatpush.msra.mxu0 0.0
        %1574 = vmatpush.msra.mxu0 0.0
        %1575 = vmatpush.msra.mxu0 0.0
        %1576 = vmatpush.msra.mxu0 0.0
        %1577 = vmatpush.msra.mxu0 0.0
        %1578 = vmatpush.msra.mxu0 0.0
        %1579 = vmatpush.msra.mxu0 0.0
        %1580 = vmatpush.msra.mxu0 0.0
        %1581 = vmatpush.msra.mxu0 0.0
        %1582 = vmatpush.msra.mxu0 0.0
        %1583 = vmatpush.msra.mxu0 0.0
        %1584 = vmatpush.msra.mxu0 0.0
        %1585 = vmatpush.msra.mxu0 0.0
        %1586 = vmatpush.msra.mxu0 0.0
        %1587 = vmatpush.msra.mxu0 0.0
        %1588 = vmatpush.msra.mxu0 %v1571
        %1589 = vmatmul.f32.gmra.mxu0 %v1475
        %v1590 = vpop.f32.mrf.mxu0
        %v1591 = vadd.f32 0.0, %v1590
        %1592 = vmatmul.f32.gmra.mxu0 %v1478
        %v1593 = vpop.f32.mrf.mxu0
        %v1594 = vadd.f32 0.0, %v1593
        %1595 = vmatmul.f32.gmra.mxu0 %v1481
        %v1596 = vpop.f32.mrf.mxu0
        %v1597 = vadd.f32 0.0, %v1596
        %1598 = vmatmul.f32.gmra.mxu0 %v1484
        %v1599 = vpop.f32.mrf.mxu0
        %v1600 = vadd.f32 0.0, %v1599
        %1601 = vmatmul.f32.gmra.mxu0 %v1487
        %v1602 = vpop.f32.mrf.mxu0
        %v1603 = vadd.f32 0.0, %v1602
        %1604 = vmatmul.f32.gmra.mxu0 %v1490
        %v1605 = vpop.f32.mrf.mxu0
        %v1606 = vadd.f32 0.0, %v1605
        %1607 = vmatmul.f32.gmra.mxu0 %v1493
        %v1608 = vpop.f32.mrf.mxu0
        %v1609 = vadd.f32 0.0, %v1608
        %1610 = vmatmul.f32.gmra.mxu0 %v1496
        %v1611 = vpop.f32.mrf.mxu0
        %v1612 = vadd.f32 0.0, %v1611
        %1613 = vmatmul.f32.gmra.mxu0 %v1499
        %v1614 = vpop.f32.mrf.mxu0
        %v1615 = vadd.f32 0.0, %v1614
        %1616 = vmatmul.f32.gmra.mxu0 %v1502
        %v1617 = vpop.f32.mrf.mxu0
        %v1618 = vadd.f32 0.0, %v1617
        %1619 = vmatmul.f32.gmra.mxu0 %v1505
        %v1620 = vpop.f32.mrf.mxu0
        %v1621 = vadd.f32 0.0, %v1620
        %1622 = vmatmul.f32.gmra.mxu0 %v1508
        %v1623 = vpop.f32.mrf.mxu0
        %v1624 = vadd.f32 0.0, %v1623
        %1625 = vmatmul.f32.gmra.mxu0 %v1511
        %v1626 = vpop.f32.mrf.mxu0
        %v1627 = vadd.f32 0.0, %v1626
        %1628 = vmatmul.f32.gmra.mxu0 %v1514
        %v1629 = vpop.f32.mrf.mxu0
        %v1630 = vadd.f32 0.0, %v1629
        %1631 = vmatmul.f32.gmra.mxu0 %v1517
        %v1632 = vpop.f32.mrf.mxu0
        %v1633 = vadd.f32 0.0, %v1632
        %1634 = vmatmul.f32.gmra.mxu0 %v1520
        %v1635 = vpop.f32.mrf.mxu0
        %v1636 = vadd.f32 0.0, %v1635
        %1637 = vmatmul.f32.gmra.mxu0 %v1523
        %v1638 = vpop.f32.mrf.mxu0
        %v1639 = vadd.f32 0.0, %v1638
        %1640 = vmatmul.f32.gmra.mxu0 %v1526
        %v1641 = vpop.f32.mrf.mxu0
        %v1642 = vadd.f32 0.0, %v1641
        %1643 = vmatmul.f32.gmra.mxu0 %v1529
        %v1644 = vpop.f32.mrf.mxu0
        %v1645 = vadd.f32 0.0, %v1644
        %1646 = vmatmul.f32.gmra.mxu0 %v1532
        %v1647 = vpop.f32.mrf.mxu0
        %v1648 = vadd.f32 0.0, %v1647
        %1649 = vmatmul.f32.gmra.mxu0 %v1535
        %v1650 = vpop.f32.mrf.mxu0
        %v1651 = vadd.f32 0.0, %v1650
        %1652 = vmatmul.f32.gmra.mxu0 %v1538
        %v1653 = vpop.f32.mrf.mxu0
        %v1654 = vadd.f32 0.0, %v1653
        %1655 = vmatmul.f32.gmra.mxu0 %v1541
        %v1656 = vpop.f32.mrf.mxu0
        %v1657 = vadd.f32 0.0, %v1656
        %1658 = vmatmul.f32.gmra.mxu0 %v1544
        %v1659 = vpop.f32.mrf.mxu0
        %v1660 = vadd.f32 0.0, %v1659
        %1661 = vmatmul.f32.gmra.mxu0 %v1547
        %v1662 = vpop.f32.mrf.mxu0
        %v1663 = vadd.f32 0.0, %v1662
        %1664 = vmatmul.f32.gmra.mxu0 %v1550
        %v1665 = vpop.f32.mrf.mxu0
        %v1666 = vadd.f32 0.0, %v1665
        %1667 = vmatmul.f32.gmra.mxu0 %v1553
        %v1668 = vpop.f32.mrf.mxu0
        %v1669 = vadd.f32 0.0, %v1668
        %1670 = vmatmul.f32.gmra.mxu0 %v1556
        %v1671 = vpop.f32.mrf.mxu0
        %v1672 = vadd.f32 0.0, %v1671
        %1673 = vmatmul.f32.gmra.mxu0 %v1559
        %v1674 = vpop.f32.mrf.mxu0
        %v1675 = vadd.f32 0.0, %v1674
        %1676 = vmatmul.f32.gmra.mxu0 %v1562
        %v1677 = vpop.f32.mrf.mxu0
        %v1678 = vadd.f32 0.0, %v1677
        %1679 = vmatmul.f32.gmra.mxu0 %v1565
        %v1680 = vpop.f32.mrf.mxu0
        %v1681 = vadd.f32 0.0, %v1680
        %1682 = vmatmul.f32.gmra.mxu0 %v1568
        %v1683 = vpop.f32.mrf.mxu0
        %v1684 = vadd.f32 0.0, %v1683
        %1685 = vdwg.mxu0
        %v1686 = vadd.f32 %v1345, %v1591
        %v1687 = vadd.f32 %v1348, %v1594
        %v1688 = vadd.f32 %v1351, %v1597
        %v1689 = vadd.f32 %v1354, %v1600
        %v1690 = vadd.f32 %v1357, %v1603
        %v1691 = vadd.f32 %v1360, %v1606
        %v1692 = vadd.f32 %v1363, %v1609
        %v1693 = vadd.f32 %v1366, %v1612
        %v1694 = vadd.f32 %v1369, %v1615
        %v1695 = vadd.f32 %v1372, %v1618
        %v1696 = vadd.f32 %v1375, %v1621
        %v1697 = vadd.f32 %v1378, %v1624
        %v1698 = vadd.f32 %v1381, %v1627
        %v1699 = vadd.f32 %v1384, %v1630
        %v1700 = vadd.f32 %v1387, %v1633
        %v1701 = vadd.f32 %v1390, %v1636
        %v1702 = vadd.f32 %v1393, %v1639
        %v1703 = vadd.f32 %v1396, %v1642
        %v1704 = vadd.f32 %v1399, %v1645
        %v1705 = vadd.f32 %v1402, %v1648
        %v1706 = vadd.f32 %v1405, %v1651
        %v1707 = vadd.f32 %v1408, %v1654
        %v1708 = vadd.f32 %v1411, %v1657
        %v1709 = vadd.f32 %v1414, %v1660
        %v1710 = vadd.f32 %v1417, %v1663
        %v1711 = vadd.f32 %v1420, %v1666
        %v1712 = vadd.f32 %v1423, %v1669
        %v1713 = vadd.f32 %v1426, %v1672
        %v1714 = vadd.f32 %v1429, %v1675
        %v1715 = vadd.f32 %v1432, %v1678
        %v1716 = vadd.f32 %v1435, %v1681
        %v1717 = vadd.f32 %v1438, %v1684
        %v1718 = vld [vmem:[%s916] sm:$0xff]
        %v1719 = vld [vmem:[%s916 + $0x8] sm:$0xff]
        %v1720 = vld [vmem:[%s916 + $0x18] sm:$0xff]
        %v1721 = vld [vmem:[%s916 + $0x20] sm:$0xff]
        %v1722 = vld [vmem:[%s916 + $0x30] sm:$0xff]
        %v1723 = vld [vmem:[%s916 + $0x38] sm:$0xff]
        %v1724 = vld [vmem:[%s916 + $0x48] sm:$0xff]
        %v1725 = vld [vmem:[%s916 + $0x50] sm:$0xff]
        %v1726 = vld [vmem:[%s916 + $0x60] sm:$0xff]
        %v1727 = vld [vmem:[%s916 + $0x68] sm:$0xff]
        %v1728 = vld [vmem:[%s916 + $0x78] sm:$0xff]
        %v1729 = vld [vmem:[%s916 + $0x80] sm:$0xff]
        %v1730 = vld [vmem:[%s916 + $0x90] sm:$0xff]
        %v1731 = vld [vmem:[%s916 + $0x98] sm:$0xff]
        %v1732 = vld [vmem:[%s916 + $0xa8] sm:$0xff]
        %v1733 = vld [vmem:[%s916 + $0xb0] sm:$0xff]
        %v1734 = vld [vmem:[%s916 + $0xc0] sm:$0xff]
        %v1735 = vld [vmem:[%s916 + $0xc8] sm:$0xff]
        %v1736 = vld [vmem:[%s916 + $0xd8] sm:$0xff]
        %v1737 = vld [vmem:[%s916 + $0xe0] sm:$0xff]
        %v1738 = vld [vmem:[%s916 + $0xf0] sm:$0xff]
        %v1739 = vld [vmem:[%s916 + $0xf8] sm:$0xff]
        %v1740 = vld [vmem:[%s916 + $0x108] sm:$0xff]
        %v1741 = vld [vmem:[%s916 + $0x110] sm:$0xff]
        %v1742 = vld [vmem:[%s916 + $0x120] sm:$0xff]
        %v1743 = vld [vmem:[%s916 + $0x128] sm:$0xff]
        %v1744 = vld [vmem:[%s916 + $0x138] sm:$0xff]
        %v1745 = vld [vmem:[%s916 + $0x140] sm:$0xff]
        %v1746 = vld [vmem:[%s916 + $0x150] sm:$0xff]
        %v1747 = vld [vmem:[%s916 + $0x158] sm:$0xff]
        %v1748 = vld [vmem:[%s916 + $0x168] sm:$0xff]
        %v1749 = vld [vmem:[%s916 + $0x170] sm:$0xff]
        %s1750 = scalar_lea.vmem %s4, 12
        %v1751 = vld [vmem:[%s1750] sm:$0xf]
        %v1753 = vsel %vm553, %v1718, 0
        %v1756 = vsel %vm553, %v1719, 0
        %v1759 = vsel %vm553, %v1720, 0
        %v1762 = vsel %vm553, %v1721, 0
        %v1765 = vsel %vm553, %v1722, 0
        %v1768 = vsel %vm553, %v1723, 0
        %v1771 = vsel %vm553, %v1724, 0
        %v1774 = vsel %vm553, %v1725, 0
        %v1777 = vsel %vm553, %v1726, 0
        %v1780 = vsel %vm553, %v1727, 0
        %v1783 = vsel %vm553, %v1728, 0
        %v1786 = vsel %vm553, %v1729, 0
        %v1789 = vsel %vm553, %v1730, 0
        %v1792 = vsel %vm553, %v1731, 0
        %v1795 = vsel %vm553, %v1732, 0
        %v1798 = vsel %vm553, %v1733, 0
        %v1801 = vsel %vm553, %v1734, 0
        %v1804 = vsel %vm553, %v1735, 0
        %v1807 = vsel %vm553, %v1736, 0
        %v1810 = vsel %vm553, %v1737, 0
        %v1813 = vsel %vm553, %v1738, 0
        %v1816 = vsel %vm553, %v1739, 0
        %v1819 = vsel %vm553, %v1740, 0
        %v1822 = vsel %vm553, %v1741, 0
        %v1825 = vsel %vm553, %v1742, 0
        %v1828 = vsel %vm553, %v1743, 0
        %v1831 = vsel %vm553, %v1744, 0
        %v1834 = vsel %vm553, %v1745, 0
        %v1837 = vsel %vm553, %v1746, 0
        %v1840 = vsel %vm553, %v1747, 0
        %v1843 = vsel %vm553, %v1748, 0
        %v1846 = vsel %vm553, %v1749, 0
        %v1849 = vsel %vm650, %v1751, 0
        %1851 = vmatpush.msra.mxu0 0.0
        %1852 = vmatpush.msra.mxu0 0.0
        %1853 = vmatpush.msra.mxu0 0.0
        %1854 = vmatpush.msra.mxu0 0.0
        %1855 = vmatpush.msra.mxu0 0.0
        %1856 = vmatpush.msra.mxu0 0.0
        %1857 = vmatpush.msra.mxu0 0.0
        %1858 = vmatpush.msra.mxu0 0.0
        %1859 = vmatpush.msra.mxu0 0.0
        %1860 = vmatpush.msra.mxu0 0.0
        %1861 = vmatpush.msra.mxu0 0.0
        %1862 = vmatpush.msra.mxu0 0.0
        %1863 = vmatpush.msra.mxu0 0.0
        %1864 = vmatpush.msra.mxu0 0.0
        %1865 = vmatpush.msra.mxu0 0.0
        %1866 = vmatpush.msra.mxu0 %v1849
        %1867 = vmatmul.f32.gmra.mxu0 %v1753
        %v1868 = vpop.f32.mrf.mxu0
        %v1869 = vadd.f32 0.0, %v1868
        %1870 = vmatmul.f32.gmra.mxu0 %v1756
        %v1871 = vpop.f32.mrf.mxu0
        %v1872 = vadd.f32 0.0, %v1871
        %1873 = vmatmul.f32.gmra.mxu0 %v1759
        %v1874 = vpop.f32.mrf.mxu0
        %v1875 = vadd.f32 0.0, %v1874
        %1876 = vmatmul.f32.gmra.mxu0 %v1762
        %v1877 = vpop.f32.mrf.mxu0
        %v1878 = vadd.f32 0.0, %v1877
        %1879 = vmatmul.f32.gmra.mxu0 %v1765
        %v1880 = vpop.f32.mrf.mxu0
        %v1881 = vadd.f32 0.0, %v1880
        %1882 = vmatmul.f32.gmra.mxu0 %v1768
        %v1883 = vpop.f32.mrf.mxu0
        %v1884 = vadd.f32 0.0, %v1883
        %1885 = vmatmul.f32.gmra.mxu0 %v1771
        %v1886 = vpop.f32.mrf.mxu0
        %v1887 = vadd.f32 0.0, %v1886
        %1888 = vmatmul.f32.gmra.mxu0 %v1774
        %v1889 = vpop.f32.mrf.mxu0
        %v1890 = vadd.f32 0.0, %v1889
        %1891 = vmatmul.f32.gmra.mxu0 %v1777
        %v1892 = vpop.f32.mrf.mxu0
        %v1893 = vadd.f32 0.0, %v1892
        %1894 = vmatmul.f32.gmra.mxu0 %v1780
        %v1895 = vpop.f32.mrf.mxu0
        %v1896 = vadd.f32 0.0, %v1895
        %1897 = vmatmul.f32.gmra.mxu0 %v1783
        %v1898 = vpop.f32.mrf.mxu0
        %v1899 = vadd.f32 0.0, %v1898
        %1900 = vmatmul.f32.gmra.mxu0 %v1786
        %v1901 = vpop.f32.mrf.mxu0
        %v1902 = vadd.f32 0.0, %v1901
        %1903 = vmatmul.f32.gmra.mxu0 %v1789
        %v1904 = vpop.f32.mrf.mxu0
        %v1905 = vadd.f32 0.0, %v1904
        %1906 = vmatmul.f32.gmra.mxu0 %v1792
        %v1907 = vpop.f32.mrf.mxu0
        %v1908 = vadd.f32 0.0, %v1907
        %1909 = vmatmul.f32.gmra.mxu0 %v1795
        %v1910 = vpop.f32.mrf.mxu0
        %v1911 = vadd.f32 0.0, %v1910
        %1912 = vmatmul.f32.gmra.mxu0 %v1798
        %v1913 = vpop.f32.mrf.mxu0
        %v1914 = vadd.f32 0.0, %v1913
        %1915 = vmatmul.f32.gmra.mxu0 %v1801
        %v1916 = vpop.f32.mrf.mxu0
        %v1917 = vadd.f32 0.0, %v1916
        %1918 = vmatmul.f32.gmra.mxu0 %v1804
        %v1919 = vpop.f32.mrf.mxu0
        %v1920 = vadd.f32 0.0, %v1919
        %1921 = vmatmul.f32.gmra.mxu0 %v1807
        %v1922 = vpop.f32.mrf.mxu0
        %v1923 = vadd.f32 0.0, %v1922
        %1924 = vmatmul.f32.gmra.mxu0 %v1810
        %v1925 = vpop.f32.mrf.mxu0
        %v1926 = vadd.f32 0.0, %v1925
        %1927 = vmatmul.f32.gmra.mxu0 %v1813
        %v1928 = vpop.f32.mrf.mxu0
        %v1929 = vadd.f32 0.0, %v1928
        %1930 = vmatmul.f32.gmra.mxu0 %v1816
        %v1931 = vpop.f32.mrf.mxu0
        %v1932 = vadd.f32 0.0, %v1931
        %1933 = vmatmul.f32.gmra.mxu0 %v1819
        %v1934 = vpop.f32.mrf.mxu0
        %v1935 = vadd.f32 0.0, %v1934
        %1936 = vmatmul.f32.gmra.mxu0 %v1822
        %v1937 = vpop.f32.mrf.mxu0
        %v1938 = vadd.f32 0.0, %v1937
        %1939 = vmatmul.f32.gmra.mxu0 %v1825
        %v1940 = vpop.f32.mrf.mxu0
        %v1941 = vadd.f32 0.0, %v1940
        %1942 = vmatmul.f32.gmra.mxu0 %v1828
        %v1943 = vpop.f32.mrf.mxu0
        %v1944 = vadd.f32 0.0, %v1943
        %1945 = vmatmul.f32.gmra.mxu0 %v1831
        %v1946 = vpop.f32.mrf.mxu0
        %v1947 = vadd.f32 0.0, %v1946
        %1948 = vmatmul.f32.gmra.mxu0 %v1834
        %v1949 = vpop.f32.mrf.mxu0
        %v1950 = vadd.f32 0.0, %v1949
        %1951 = vmatmul.f32.gmra.mxu0 %v1837
        %v1952 = vpop.f32.mrf.mxu0
        %v1953 = vadd.f32 0.0, %v1952
        %1954 = vmatmul.f32.gmra.mxu0 %v1840
        %v1955 = vpop.f32.mrf.mxu0
        %v1956 = vadd.f32 0.0, %v1955
        %1957 = vmatmul.f32.gmra.mxu0 %v1843
        %v1958 = vpop.f32.mrf.mxu0
        %v1959 = vadd.f32 0.0, %v1958
        %1960 = vmatmul.f32.gmra.mxu0 %v1846
        %v1961 = vpop.f32.mrf.mxu0
        %v1962 = vadd.f32 0.0, %v1961
        %1963 = vdwg.mxu0
        %v1964 = vadd.f32 %v1686, %v1869
        %v1965 = vadd.f32 %v1687, %v1872
        %v1966 = vadd.f32 %v1688, %v1875
        %v1967 = vadd.f32 %v1689, %v1878
        %v1968 = vadd.f32 %v1690, %v1881
        %v1969 = vadd.f32 %v1691, %v1884
        %v1970 = vadd.f32 %v1692, %v1887
        %v1971 = vadd.f32 %v1693, %v1890
        %v1972 = vadd.f32 %v1694, %v1893
        %v1973 = vadd.f32 %v1695, %v1896
        %v1974 = vadd.f32 %v1696, %v1899
        %v1975 = vadd.f32 %v1697, %v1902
        %v1976 = vadd.f32 %v1698, %v1905
        %v1977 = vadd.f32 %v1699, %v1908
        %v1978 = vadd.f32 %v1700, %v1911
        %v1979 = vadd.f32 %v1701, %v1914
        %v1980 = vadd.f32 %v1702, %v1917
        %v1981 = vadd.f32 %v1703, %v1920
        %v1982 = vadd.f32 %v1704, %v1923
        %v1983 = vadd.f32 %v1705, %v1926
        %v1984 = vadd.f32 %v1706, %v1929
        %v1985 = vadd.f32 %v1707, %v1932
        %v1986 = vadd.f32 %v1708, %v1935
        %v1987 = vadd.f32 %v1709, %v1938
        %v1988 = vadd.f32 %v1710, %v1941
        %v1989 = vadd.f32 %v1711, %v1944
        %v1990 = vadd.f32 %v1712, %v1947
        %v1991 = vadd.f32 %v1713, %v1950
        %v1992 = vadd.f32 %v1714, %v1953
        %v1993 = vadd.f32 %v1715, %v1956
        %v1994 = vadd.f32 %v1716, %v1959
        %v1995 = vadd.f32 %v1717, %v1962
        %v1996 = vld [vmem:[%s916 + $0x1] sm:$0xff]
        %v1997 = vld [vmem:[%s916 + $0x9] sm:$0xff]
        %v1998 = vld [vmem:[%s916 + $0x19] sm:$0xff]
        %v1999 = vld [vmem:[%s916 + $0x21] sm:$0xff]
        %v2000 = vld [vmem:[%s916 + $0x31] sm:$0xff]
        %v2001 = vld [vmem:[%s916 + $0x39] sm:$0xff]
        %v2002 = vld [vmem:[%s916 + $0x49] sm:$0xff]
        %v2003 = vld [vmem:[%s916 + $0x51] sm:$0xff]
        %v2004 = vld [vmem:[%s916 + $0x61] sm:$0xff]
        %v2005 = vld [vmem:[%s916 + $0x69] sm:$0xff]
        %v2006 = vld [vmem:[%s916 + $0x79] sm:$0xff]
        %v2007 = vld [vmem:[%s916 + $0x81] sm:$0xff]
        %v2008 = vld [vmem:[%s916 + $0x91] sm:$0xff]
        %v2009 = vld [vmem:[%s916 + $0x99] sm:$0xff]
        %v2010 = vld [vmem:[%s916 + $0xa9] sm:$0xff]
        %v2011 = vld [vmem:[%s916 + $0xb1] sm:$0xff]
        %v2012 = vld [vmem:[%s916 + $0xc1] sm:$0xff]
        %v2013 = vld [vmem:[%s916 + $0xc9] sm:$0xff]
        %v2014 = vld [vmem:[%s916 + $0xd9] sm:$0xff]
        %v2015 = vld [vmem:[%s916 + $0xe1] sm:$0xff]
        %v2016 = vld [vmem:[%s916 + $0xf1] sm:$0xff]
        %v2017 = vld [vmem:[%s916 + $0xf9] sm:$0xff]
        %v2018 = vld [vmem:[%s916 + $0x109] sm:$0xff]
        %v2019 = vld [vmem:[%s916 + $0x111] sm:$0xff]
        %v2020 = vld [vmem:[%s916 + $0x121] sm:$0xff]
        %v2021 = vld [vmem:[%s916 + $0x129] sm:$0xff]
        %v2022 = vld [vmem:[%s916 + $0x139] sm:$0xff]
        %v2023 = vld [vmem:[%s916 + $0x141] sm:$0xff]
        %v2024 = vld [vmem:[%s916 + $0x151] sm:$0xff]
        %v2025 = vld [vmem:[%s916 + $0x159] sm:$0xff]
        %v2026 = vld [vmem:[%s916 + $0x169] sm:$0xff]
        %v2027 = vld [vmem:[%s916 + $0x171] sm:$0xff]
        %s2028 = scalar_lea.vmem %s4, 16
        %v2029 = vld [vmem:[%s2028] sm:$0xf]
        %v2031 = vsel %vm553, %v1996, 0
        %v2034 = vsel %vm553, %v1997, 0
        %v2037 = vsel %vm553, %v1998, 0
        %v2040 = vsel %vm553, %v1999, 0
        %v2043 = vsel %vm553, %v2000, 0
        %v2046 = vsel %vm553, %v2001, 0
        %v2049 = vsel %vm553, %v2002, 0
        %v2052 = vsel %vm553, %v2003, 0
        %v2055 = vsel %vm553, %v2004, 0
        %v2058 = vsel %vm553, %v2005, 0
        %v2061 = vsel %vm553, %v2006, 0
        %v2064 = vsel %vm553, %v2007, 0
        %v2067 = vsel %vm553, %v2008, 0
        %v2070 = vsel %vm553, %v2009, 0
        %v2073 = vsel %vm553, %v2010, 0
        %v2076 = vsel %vm553, %v2011, 0
        %v2079 = vsel %vm553, %v2012, 0
        %v2082 = vsel %vm553, %v2013, 0
        %v2085 = vsel %vm553, %v2014, 0
        %v2088 = vsel %vm553, %v2015, 0
        %v2091 = vsel %vm553, %v2016, 0
        %v2094 = vsel %vm553, %v2017, 0
        %v2097 = vsel %vm553, %v2018, 0
        %v2100 = vsel %vm553, %v2019, 0
        %v2103 = vsel %vm553, %v2020, 0
        %v2106 = vsel %vm553, %v2021, 0
        %v2109 = vsel %vm553, %v2022, 0
        %v2112 = vsel %vm553, %v2023, 0
        %v2115 = vsel %vm553, %v2024, 0
        %v2118 = vsel %vm553, %v2025, 0
        %v2121 = vsel %vm553, %v2026, 0
        %v2124 = vsel %vm553, %v2027, 0
        %v2127 = vsel %vm650, %v2029, 0
        %2129 = vmatpush.msra.mxu0 0.0
        %2130 = vmatpush.msra.mxu0 0.0
        %2131 = vmatpush.msra.mxu0 0.0
        %2132 = vmatpush.msra.mxu0 0.0
        %2133 = vmatpush.msra.mxu0 0.0
        %2134 = vmatpush.msra.mxu0 0.0
        %2135 = vmatpush.msra.mxu0 0.0
        %2136 = vmatpush.msra.mxu0 0.0
        %2137 = vmatpush.msra.mxu0 0.0
        %2138 = vmatpush.msra.mxu0 0.0
        %2139 = vmatpush.msra.mxu0 0.0
        %2140 = vmatpush.msra.mxu0 0.0
        %2141 = vmatpush.msra.mxu0 0.0
        %2142 = vmatpush.msra.mxu0 0.0
        %2143 = vmatpush.msra.mxu0 0.0
        %2144 = vmatpush.msra.mxu0 %v2127
        %2145 = vmatmul.f32.gmra.mxu0 %v2031
        %v2146 = vpop.f32.mrf.mxu0
        %v2147 = vadd.f32 0.0, %v2146
        %2148 = vmatmul.f32.gmra.mxu0 %v2034
        %v2149 = vpop.f32.mrf.mxu0
        %v2150 = vadd.f32 0.0, %v2149
        %2151 = vmatmul.f32.gmra.mxu0 %v2037
        %v2152 = vpop.f32.mrf.mxu0
        %v2153 = vadd.f32 0.0, %v2152
        %2154 = vmatmul.f32.gmra.mxu0 %v2040
        %v2155 = vpop.f32.mrf.mxu0
        %v2156 = vadd.f32 0.0, %v2155
        %2157 = vmatmul.f32.gmra.mxu0 %v2043
        %v2158 = vpop.f32.mrf.mxu0
        %v2159 = vadd.f32 0.0, %v2158
        %2160 = vmatmul.f32.gmra.mxu0 %v2046
        %v2161 = vpop.f32.mrf.mxu0
        %v2162 = vadd.f32 0.0, %v2161
        %2163 = vmatmul.f32.gmra.mxu0 %v2049
        %v2164 = vpop.f32.mrf.mxu0
        %v2165 = vadd.f32 0.0, %v2164
        %2166 = vmatmul.f32.gmra.mxu0 %v2052
        %v2167 = vpop.f32.mrf.mxu0
        %v2168 = vadd.f32 0.0, %v2167
        %2169 = vmatmul.f32.gmra.mxu0 %v2055
        %v2170 = vpop.f32.mrf.mxu0
        %v2171 = vadd.f32 0.0, %v2170
        %2172 = vmatmul.f32.gmra.mxu0 %v2058
        %v2173 = vpop.f32.mrf.mxu0
        %v2174 = vadd.f32 0.0, %v2173
        %2175 = vmatmul.f32.gmra.mxu0 %v2061
        %v2176 = vpop.f32.mrf.mxu0
        %v2177 = vadd.f32 0.0, %v2176
        %2178 = vmatmul.f32.gmra.mxu0 %v2064
        %v2179 = vpop.f32.mrf.mxu0
        %v2180 = vadd.f32 0.0, %v2179
        %2181 = vmatmul.f32.gmra.mxu0 %v2067
        %v2182 = vpop.f32.mrf.mxu0
        %v2183 = vadd.f32 0.0, %v2182
        %2184 = vmatmul.f32.gmra.mxu0 %v2070
        %v2185 = vpop.f32.mrf.mxu0
        %v2186 = vadd.f32 0.0, %v2185
        %2187 = vmatmul.f32.gmra.mxu0 %v2073
        %v2188 = vpop.f32.mrf.mxu0
        %v2189 = vadd.f32 0.0, %v2188
        %2190 = vmatmul.f32.gmra.mxu0 %v2076
        %v2191 = vpop.f32.mrf.mxu0
        %v2192 = vadd.f32 0.0, %v2191
        %2193 = vmatmul.f32.gmra.mxu0 %v2079
        %v2194 = vpop.f32.mrf.mxu0
        %v2195 = vadd.f32 0.0, %v2194
        %2196 = vmatmul.f32.gmra.mxu0 %v2082
        %v2197 = vpop.f32.mrf.mxu0
        %v2198 = vadd.f32 0.0, %v2197
        %2199 = vmatmul.f32.gmra.mxu0 %v2085
        %v2200 = vpop.f32.mrf.mxu0
        %v2201 = vadd.f32 0.0, %v2200
        %2202 = vmatmul.f32.gmra.mxu0 %v2088
        %v2203 = vpop.f32.mrf.mxu0
        %v2204 = vadd.f32 0.0, %v2203
        %2205 = vmatmul.f32.gmra.mxu0 %v2091
        %v2206 = vpop.f32.mrf.mxu0
        %v2207 = vadd.f32 0.0, %v2206
        %2208 = vmatmul.f32.gmra.mxu0 %v2094
        %v2209 = vpop.f32.mrf.mxu0
        %v2210 = vadd.f32 0.0, %v2209
        %2211 = vmatmul.f32.gmra.mxu0 %v2097
        %v2212 = vpop.f32.mrf.mxu0
        %v2213 = vadd.f32 0.0, %v2212
        %2214 = vmatmul.f32.gmra.mxu0 %v2100
        %v2215 = vpop.f32.mrf.mxu0
        %v2216 = vadd.f32 0.0, %v2215
        %2217 = vmatmul.f32.gmra.mxu0 %v2103
        %v2218 = vpop.f32.mrf.mxu0
        %v2219 = vadd.f32 0.0, %v2218
        %2220 = vmatmul.f32.gmra.mxu0 %v2106
        %v2221 = vpop.f32.mrf.mxu0
        %v2222 = vadd.f32 0.0, %v2221
        %2223 = vmatmul.f32.gmra.mxu0 %v2109
        %v2224 = vpop.f32.mrf.mxu0
        %v2225 = vadd.f32 0.0, %v2224
        %2226 = vmatmul.f32.gmra.mxu0 %v2112
        %v2227 = vpop.f32.mrf.mxu0
        %v2228 = vadd.f32 0.0, %v2227
        %2229 = vmatmul.f32.gmra.mxu0 %v2115
        %v2230 = vpop.f32.mrf.mxu0
        %v2231 = vadd.f32 0.0, %v2230
        %2232 = vmatmul.f32.gmra.mxu0 %v2118
        %v2233 = vpop.f32.mrf.mxu0
        %v2234 = vadd.f32 0.0, %v2233
        %2235 = vmatmul.f32.gmra.mxu0 %v2121
        %v2236 = vpop.f32.mrf.mxu0
        %v2237 = vadd.f32 0.0, %v2236
        %2238 = vmatmul.f32.gmra.mxu0 %v2124
        %v2239 = vpop.f32.mrf.mxu0
        %v2240 = vadd.f32 0.0, %v2239
        %2241 = vdwg.mxu0
        %v2242 = vadd.f32 %v1964, %v2147
        %v2243 = vadd.f32 %v1965, %v2150
        %v2244 = vadd.f32 %v1966, %v2153
        %v2245 = vadd.f32 %v1967, %v2156
        %v2246 = vadd.f32 %v1968, %v2159
        %v2247 = vadd.f32 %v1969, %v2162
        %v2248 = vadd.f32 %v1970, %v2165
        %v2249 = vadd.f32 %v1971, %v2168
        %v2250 = vadd.f32 %v1972, %v2171
        %v2251 = vadd.f32 %v1973, %v2174
        %v2252 = vadd.f32 %v1974, %v2177
        %v2253 = vadd.f32 %v1975, %v2180
        %v2254 = vadd.f32 %v1976, %v2183
        %v2255 = vadd.f32 %v1977, %v2186
        %v2256 = vadd.f32 %v1978, %v2189
        %v2257 = vadd.f32 %v1979, %v2192
        %v2258 = vadd.f32 %v1980, %v2195
        %v2259 = vadd.f32 %v1981, %v2198
        %v2260 = vadd.f32 %v1982, %v2201
        %v2261 = vadd.f32 %v1983, %v2204
        %v2262 = vadd.f32 %v1984, %v2207
        %v2263 = vadd.f32 %v1985, %v2210
        %v2264 = vadd.f32 %v1986, %v2213
        %v2265 = vadd.f32 %v1987, %v2216
        %v2266 = vadd.f32 %v1988, %v2219
        %v2267 = vadd.f32 %v1989, %v2222
        %v2268 = vadd.f32 %v1990, %v2225
        %v2269 = vadd.f32 %v1991, %v2228
        %v2270 = vadd.f32 %v1992, %v2231
        %v2271 = vadd.f32 %v1993, %v2234
        %v2272 = vadd.f32 %v1994, %v2237
        %v2273 = vadd.f32 %v1995, %v2240
        %v2274 = vld [vmem:[%s916 + $0x2] sm:$0xff]
        %v2275 = vld [vmem:[%s916 + $0xa] sm:$0xff]
        %v2276 = vld [vmem:[%s916 + $0x1a] sm:$0xff]
        %v2277 = vld [vmem:[%s916 + $0x22] sm:$0xff]
        %v2278 = vld [vmem:[%s916 + $0x32] sm:$0xff]
        %v2279 = vld [vmem:[%s916 + $0x3a] sm:$0xff]
        %v2280 = vld [vmem:[%s916 + $0x4a] sm:$0xff]
        %v2281 = vld [vmem:[%s916 + $0x52] sm:$0xff]
        %v2282 = vld [vmem:[%s916 + $0x62] sm:$0xff]
        %v2283 = vld [vmem:[%s916 + $0x6a] sm:$0xff]
        %v2284 = vld [vmem:[%s916 + $0x7a] sm:$0xff]
        %v2285 = vld [vmem:[%s916 + $0x82] sm:$0xff]
        %v2286 = vld [vmem:[%s916 + $0x92] sm:$0xff]
        %v2287 = vld [vmem:[%s916 + $0x9a] sm:$0xff]
        %v2288 = vld [vmem:[%s916 + $0xaa] sm:$0xff]
        %v2289 = vld [vmem:[%s916 + $0xb2] sm:$0xff]
        %v2290 = vld [vmem:[%s916 + $0xc2] sm:$0xff]
        %v2291 = vld [vmem:[%s916 + $0xca] sm:$0xff]
        %v2292 = vld [vmem:[%s916 + $0xda] sm:$0xff]
        %v2293 = vld [vmem:[%s916 + $0xe2] sm:$0xff]
        %v2294 = vld [vmem:[%s916 + $0xf2] sm:$0xff]
        %v2295 = vld [vmem:[%s916 + $0xfa] sm:$0xff]
        %v2296 = vld [vmem:[%s916 + $0x10a] sm:$0xff]
        %v2297 = vld [vmem:[%s916 + $0x112] sm:$0xff]
        %v2298 = vld [vmem:[%s916 + $0x122] sm:$0xff]
        %v2299 = vld [vmem:[%s916 + $0x12a] sm:$0xff]
        %v2300 = vld [vmem:[%s916 + $0x13a] sm:$0xff]
        %v2301 = vld [vmem:[%s916 + $0x142] sm:$0xff]
        %v2302 = vld [vmem:[%s916 + $0x152] sm:$0xff]
        %v2303 = vld [vmem:[%s916 + $0x15a] sm:$0xff]
        %v2304 = vld [vmem:[%s916 + $0x16a] sm:$0xff]
        %v2305 = vld [vmem:[%s916 + $0x172] sm:$0xff]
        %s2306 = scalar_lea.vmem %s4, 20
        %v2307 = vld [vmem:[%s2306] sm:$0xf]
        %v2309 = vsel %vm553, %v2274, 0
        %v2312 = vsel %vm553, %v2275, 0
        %v2315 = vsel %vm553, %v2276, 0
        %v2318 = vsel %vm553, %v2277, 0
        %v2321 = vsel %vm553, %v2278, 0
        %v2324 = vsel %vm553, %v2279, 0
        %v2327 = vsel %vm553, %v2280, 0
        %v2330 = vsel %vm553, %v2281, 0
        %v2333 = vsel %vm553, %v2282, 0
        %v2336 = vsel %vm553, %v2283, 0
        %v2339 = vsel %vm553, %v2284, 0
        %v2342 = vsel %vm553, %v2285, 0
        %v2345 = vsel %vm553, %v2286, 0
        %v2348 = vsel %vm553, %v2287, 0
        %v2351 = vsel %vm553, %v2288, 0
        %v2354 = vsel %vm553, %v2289, 0
        %v2357 = vsel %vm553, %v2290, 0
        %v2360 = vsel %vm553, %v2291, 0
        %v2363 = vsel %vm553, %v2292, 0
        %v2366 = vsel %vm553, %v2293, 0
        %v2369 = vsel %vm553, %v2294, 0
        %v2372 = vsel %vm553, %v2295, 0
        %v2375 = vsel %vm553, %v2296, 0
        %v2378 = vsel %vm553, %v2297, 0
        %v2381 = vsel %vm553, %v2298, 0
        %v2384 = vsel %vm553, %v2299, 0
        %v2387 = vsel %vm553, %v2300, 0
        %v2390 = vsel %vm553, %v2301, 0
        %v2393 = vsel %vm553, %v2302, 0
        %v2396 = vsel %vm553, %v2303, 0
        %v2399 = vsel %vm553, %v2304, 0
        %v2402 = vsel %vm553, %v2305, 0
        %v2405 = vsel %vm650, %v2307, 0
        %2407 = vmatpush.msra.mxu0 0.0
        %2408 = vmatpush.msra.mxu0 0.0
        %2409 = vmatpush.msra.mxu0 0.0
        %2410 = vmatpush.msra.mxu0 0.0
        %2411 = vmatpush.msra.mxu0 0.0
        %2412 = vmatpush.msra.mxu0 0.0
        %2413 = vmatpush.msra.mxu0 0.0
        %2414 = vmatpush.msra.mxu0 0.0
        %2415 = vmatpush.msra.mxu0 0.0
        %2416 = vmatpush.msra.mxu0 0.0
        %2417 = vmatpush.msra.mxu0 0.0
        %2418 = vmatpush.msra.mxu0 0.0
        %2419 = vmatpush.msra.mxu0 0.0
        %2420 = vmatpush.msra.mxu0 0.0
        %2421 = vmatpush.msra.mxu0 0.0
        %2422 = vmatpush.msra.mxu0 %v2405
        %2423 = vmatmul.f32.gmra.mxu0 %v2309
        %v2424 = vpop.f32.mrf.mxu0
        %v2425 = vadd.f32 0.0, %v2424
        %2426 = vmatmul.f32.gmra.mxu0 %v2312
        %v2427 = vpop.f32.mrf.mxu0
        %v2428 = vadd.f32 0.0, %v2427
        %2429 = vmatmul.f32.gmra.mxu0 %v2315
        %v2430 = vpop.f32.mrf.mxu0
        %v2431 = vadd.f32 0.0, %v2430
        %2432 = vmatmul.f32.gmra.mxu0 %v2318
        %v2433 = vpop.f32.mrf.mxu0
        %v2434 = vadd.f32 0.0, %v2433
        %2435 = vmatmul.f32.gmra.mxu0 %v2321
        %v2436 = vpop.f32.mrf.mxu0
        %v2437 = vadd.f32 0.0, %v2436
        %2438 = vmatmul.f32.gmra.mxu0 %v2324
        %v2439 = vpop.f32.mrf.mxu0
        %v2440 = vadd.f32 0.0, %v2439
        %2441 = vmatmul.f32.gmra.mxu0 %v2327
        %v2442 = vpop.f32.mrf.mxu0
        %v2443 = vadd.f32 0.0, %v2442
        %2444 = vmatmul.f32.gmra.mxu0 %v2330
        %v2445 = vpop.f32.mrf.mxu0
        %v2446 = vadd.f32 0.0, %v2445
        %2447 = vmatmul.f32.gmra.mxu0 %v2333
        %v2448 = vpop.f32.mrf.mxu0
        %v2449 = vadd.f32 0.0, %v2448
        %2450 = vmatmul.f32.gmra.mxu0 %v2336
        %v2451 = vpop.f32.mrf.mxu0
        %v2452 = vadd.f32 0.0, %v2451
        %2453 = vmatmul.f32.gmra.mxu0 %v2339
        %v2454 = vpop.f32.mrf.mxu0
        %v2455 = vadd.f32 0.0, %v2454
        %2456 = vmatmul.f32.gmra.mxu0 %v2342
        %v2457 = vpop.f32.mrf.mxu0
        %v2458 = vadd.f32 0.0, %v2457
        %2459 = vmatmul.f32.gmra.mxu0 %v2345
        %v2460 = vpop.f32.mrf.mxu0
        %v2461 = vadd.f32 0.0, %v2460
        %2462 = vmatmul.f32.gmra.mxu0 %v2348
        %v2463 = vpop.f32.mrf.mxu0
        %v2464 = vadd.f32 0.0, %v2463
        %2465 = vmatmul.f32.gmra.mxu0 %v2351
        %v2466 = vpop.f32.mrf.mxu0
        %v2467 = vadd.f32 0.0, %v2466
        %2468 = vmatmul.f32.gmra.mxu0 %v2354
        %v2469 = vpop.f32.mrf.mxu0
        %v2470 = vadd.f32 0.0, %v2469
        %2471 = vmatmul.f32.gmra.mxu0 %v2357
        %v2472 = vpop.f32.mrf.mxu0
        %v2473 = vadd.f32 0.0, %v2472
        %2474 = vmatmul.f32.gmra.mxu0 %v2360
        %v2475 = vpop.f32.mrf.mxu0
        %v2476 = vadd.f32 0.0, %v2475
        %2477 = vmatmul.f32.gmra.mxu0 %v2363
        %v2478 = vpop.f32.mrf.mxu0
        %v2479 = vadd.f32 0.0, %v2478
        %2480 = vmatmul.f32.gmra.mxu0 %v2366
        %v2481 = vpop.f32.mrf.mxu0
        %v2482 = vadd.f32 0.0, %v2481
        %2483 = vmatmul.f32.gmra.mxu0 %v2369
        %v2484 = vpop.f32.mrf.mxu0
        %v2485 = vadd.f32 0.0, %v2484
        %2486 = vmatmul.f32.gmra.mxu0 %v2372
        %v2487 = vpop.f32.mrf.mxu0
        %v2488 = vadd.f32 0.0, %v2487
        %2489 = vmatmul.f32.gmra.mxu0 %v2375
        %v2490 = vpop.f32.mrf.mxu0
        %v2491 = vadd.f32 0.0, %v2490
        %2492 = vmatmul.f32.gmra.mxu0 %v2378
        %v2493 = vpop.f32.mrf.mxu0
        %v2494 = vadd.f32 0.0, %v2493
        %2495 = vmatmul.f32.gmra.mxu0 %v2381
        %v2496 = vpop.f32.mrf.mxu0
        %v2497 = vadd.f32 0.0, %v2496
        %2498 = vmatmul.f32.gmra.mxu0 %v2384
        %v2499 = vpop.f32.mrf.mxu0
        %v2500 = vadd.f32 0.0, %v2499
        %2501 = vmatmul.f32.gmra.mxu0 %v2387
        %v2502 = vpop.f32.mrf.mxu0
        %v2503 = vadd.f32 0.0, %v2502
        %2504 = vmatmul.f32.gmra.mxu0 %v2390
        %v2505 = vpop.f32.mrf.mxu0
        %v2506 = vadd.f32 0.0, %v2505
        %2507 = vmatmul.f32.gmra.mxu0 %v2393
        %v2508 = vpop.f32.mrf.mxu0
        %v2509 = vadd.f32 0.0, %v2508
        %2510 = vmatmul.f32.gmra.mxu0 %v2396
        %v2511 = vpop.f32.mrf.mxu0
        %v2512 = vadd.f32 0.0, %v2511
        %2513 = vmatmul.f32.gmra.mxu0 %v2399
        %v2514 = vpop.f32.mrf.mxu0
        %v2515 = vadd.f32 0.0, %v2514
        %2516 = vmatmul.f32.gmra.mxu0 %v2402
        %v2517 = vpop.f32.mrf.mxu0
        %v2518 = vadd.f32 0.0, %v2517
        %2519 = vdwg.mxu0
        %v2520 = vadd.f32 %v2242, %v2425
        %v2521 = vadd.f32 %v2243, %v2428
        %v2522 = vadd.f32 %v2244, %v2431
        %v2523 = vadd.f32 %v2245, %v2434
        %v2524 = vadd.f32 %v2246, %v2437
        %v2525 = vadd.f32 %v2247, %v2440
        %v2526 = vadd.f32 %v2248, %v2443
        %v2527 = vadd.f32 %v2249, %v2446
        %v2528 = vadd.f32 %v2250, %v2449
        %v2529 = vadd.f32 %v2251, %v2452
        %v2530 = vadd.f32 %v2252, %v2455
        %v2531 = vadd.f32 %v2253, %v2458
        %v2532 = vadd.f32 %v2254, %v2461
        %v2533 = vadd.f32 %v2255, %v2464
        %v2534 = vadd.f32 %v2256, %v2467
        %v2535 = vadd.f32 %v2257, %v2470
        %v2536 = vadd.f32 %v2258, %v2473
        %v2537 = vadd.f32 %v2259, %v2476
        %v2538 = vadd.f32 %v2260, %v2479
        %v2539 = vadd.f32 %v2261, %v2482
        %v2540 = vadd.f32 %v2262, %v2485
        %v2541 = vadd.f32 %v2263, %v2488
        %v2542 = vadd.f32 %v2264, %v2491
        %v2543 = vadd.f32 %v2265, %v2494
        %v2544 = vadd.f32 %v2266, %v2497
        %v2545 = vadd.f32 %v2267, %v2500
        %v2546 = vadd.f32 %v2268, %v2503
        %v2547 = vadd.f32 %v2269, %v2506
        %v2548 = vadd.f32 %v2270, %v2509
        %v2549 = vadd.f32 %v2271, %v2512
        %v2550 = vadd.f32 %v2272, %v2515
        %v2551 = vadd.f32 %v2273, %v2518
        %s2552 = scalar_lea.vmem [#allocation2], 48
        %v2553 = vld [vmem:[%s2552] sm:$0xff]
        %v2554 = vld [vmem:[%s2552 + $0x8] sm:$0xff]
        %v2555 = vld [vmem:[%s2552 + $0x18] sm:$0xff]
        %v2556 = vld [vmem:[%s2552 + $0x20] sm:$0xff]
        %v2557 = vld [vmem:[%s2552 + $0x30] sm:$0xff]
        %v2558 = vld [vmem:[%s2552 + $0x38] sm:$0xff]
        %v2559 = vld [vmem:[%s2552 + $0x48] sm:$0xff]
        %v2560 = vld [vmem:[%s2552 + $0x50] sm:$0xff]
        %v2561 = vld [vmem:[%s2552 + $0x60] sm:$0xff]
        %v2562 = vld [vmem:[%s2552 + $0x68] sm:$0xff]
        %v2563 = vld [vmem:[%s2552 + $0x78] sm:$0xff]
        %v2564 = vld [vmem:[%s2552 + $0x80] sm:$0xff]
        %v2565 = vld [vmem:[%s2552 + $0x90] sm:$0xff]
        %v2566 = vld [vmem:[%s2552 + $0x98] sm:$0xff]
        %v2567 = vld [vmem:[%s2552 + $0xa8] sm:$0xff]
        %v2568 = vld [vmem:[%s2552 + $0xb0] sm:$0xff]
        %v2569 = vld [vmem:[%s2552 + $0xc0] sm:$0xff]
        %v2570 = vld [vmem:[%s2552 + $0xc8] sm:$0xff]
        %v2571 = vld [vmem:[%s2552 + $0xd8] sm:$0xff]
        %v2572 = vld [vmem:[%s2552 + $0xe0] sm:$0xff]
        %v2573 = vld [vmem:[%s2552 + $0xf0] sm:$0xff]
        %v2574 = vld [vmem:[%s2552 + $0xf8] sm:$0xff]
        %v2575 = vld [vmem:[%s2552 + $0x108] sm:$0xff]
        %v2576 = vld [vmem:[%s2552 + $0x110] sm:$0xff]
        %v2577 = vld [vmem:[%s2552 + $0x120] sm:$0xff]
        %v2578 = vld [vmem:[%s2552 + $0x128] sm:$0xff]
        %v2579 = vld [vmem:[%s2552 + $0x138] sm:$0xff]
        %v2580 = vld [vmem:[%s2552 + $0x140] sm:$0xff]
        %v2581 = vld [vmem:[%s2552 + $0x150] sm:$0xff]
        %v2582 = vld [vmem:[%s2552 + $0x158] sm:$0xff]
        %v2583 = vld [vmem:[%s2552 + $0x168] sm:$0xff]
        %v2584 = vld [vmem:[%s2552 + $0x170] sm:$0xff]
        %s2585 = scalar_lea.vmem %s4, 24
        %v2586 = vld [vmem:[%s2585] sm:$0xf]
        %v2588 = vsel %vm553, %v2553, 0
        %v2591 = vsel %vm553, %v2554, 0
        %v2594 = vsel %vm553, %v2555, 0
        %v2597 = vsel %vm553, %v2556, 0
        %v2600 = vsel %vm553, %v2557, 0
        %v2603 = vsel %vm553, %v2558, 0
        %v2606 = vsel %vm553, %v2559, 0
        %v2609 = vsel %vm553, %v2560, 0
        %v2612 = vsel %vm553, %v2561, 0
        %v2615 = vsel %vm553, %v2562, 0
        %v2618 = vsel %vm553, %v2563, 0
        %v2621 = vsel %vm553, %v2564, 0
        %v2624 = vsel %vm553, %v2565, 0
        %v2627 = vsel %vm553, %v2566, 0
        %v2630 = vsel %vm553, %v2567, 0
        %v2633 = vsel %vm553, %v2568, 0
        %v2636 = vsel %vm553, %v2569, 0
        %v2639 = vsel %vm553, %v2570, 0
        %v2642 = vsel %vm553, %v2571, 0
        %v2645 = vsel %vm553, %v2572, 0
        %v2648 = vsel %vm553, %v2573, 0
        %v2651 = vsel %vm553, %v2574, 0
        %v2654 = vsel %vm553, %v2575, 0
        %v2657 = vsel %vm553, %v2576, 0
        %v2660 = vsel %vm553, %v2577, 0
        %v2663 = vsel %vm553, %v2578, 0
        %v2666 = vsel %vm553, %v2579, 0
        %v2669 = vsel %vm553, %v2580, 0
        %v2672 = vsel %vm553, %v2581, 0
        %v2675 = vsel %vm553, %v2582, 0
        %v2678 = vsel %vm553, %v2583, 0
        %v2681 = vsel %vm553, %v2584, 0
        %v2684 = vsel %vm650, %v2586, 0
        %2686 = vmatpush.msra.mxu0 0.0
        %2687 = vmatpush.msra.mxu0 0.0
        %2688 = vmatpush.msra.mxu0 0.0
        %2689 = vmatpush.msra.mxu0 0.0
        %2690 = vmatpush.msra.mxu0 0.0
        %2691 = vmatpush.msra.mxu0 0.0
        %2692 = vmatpush.msra.mxu0 0.0
        %2693 = vmatpush.msra.mxu0 0.0
        %2694 = vmatpush.msra.mxu0 0.0
        %2695 = vmatpush.msra.mxu0 0.0
        %2696 = vmatpush.msra.mxu0 0.0
        %2697 = vmatpush.msra.mxu0 0.0
        %2698 = vmatpush.msra.mxu0 0.0
        %2699 = vmatpush.msra.mxu0 0.0
        %2700 = vmatpush.msra.mxu0 0.0
        %2701 = vmatpush.msra.mxu0 %v2684
        %2702 = vmatmul.f32.gmra.mxu0 %v2588
        %v2703 = vpop.f32.mrf.mxu0
        %v2704 = vadd.f32 0.0, %v2703
        %2705 = vmatmul.f32.gmra.mxu0 %v2591
        %v2706 = vpop.f32.mrf.mxu0
        %v2707 = vadd.f32 0.0, %v2706
        %2708 = vmatmul.f32.gmra.mxu0 %v2594
        %v2709 = vpop.f32.mrf.mxu0
        %v2710 = vadd.f32 0.0, %v2709
        %2711 = vmatmul.f32.gmra.mxu0 %v2597
        %v2712 = vpop.f32.mrf.mxu0
        %v2713 = vadd.f32 0.0, %v2712
        %2714 = vmatmul.f32.gmra.mxu0 %v2600
        %v2715 = vpop.f32.mrf.mxu0
        %v2716 = vadd.f32 0.0, %v2715
        %2717 = vmatmul.f32.gmra.mxu0 %v2603
        %v2718 = vpop.f32.mrf.mxu0
        %v2719 = vadd.f32 0.0, %v2718
        %2720 = vmatmul.f32.gmra.mxu0 %v2606
        %v2721 = vpop.f32.mrf.mxu0
        %v2722 = vadd.f32 0.0, %v2721
        %2723 = vmatmul.f32.gmra.mxu0 %v2609
        %v2724 = vpop.f32.mrf.mxu0
        %v2725 = vadd.f32 0.0, %v2724
        %2726 = vmatmul.f32.gmra.mxu0 %v2612
        %v2727 = vpop.f32.mrf.mxu0
        %v2728 = vadd.f32 0.0, %v2727
        %2729 = vmatmul.f32.gmra.mxu0 %v2615
        %v2730 = vpop.f32.mrf.mxu0
        %v2731 = vadd.f32 0.0, %v2730
        %2732 = vmatmul.f32.gmra.mxu0 %v2618
        %v2733 = vpop.f32.mrf.mxu0
        %v2734 = vadd.f32 0.0, %v2733
        %2735 = vmatmul.f32.gmra.mxu0 %v2621
        %v2736 = vpop.f32.mrf.mxu0
        %v2737 = vadd.f32 0.0, %v2736
        %2738 = vmatmul.f32.gmra.mxu0 %v2624
        %v2739 = vpop.f32.mrf.mxu0
        %v2740 = vadd.f32 0.0, %v2739
        %2741 = vmatmul.f32.gmra.mxu0 %v2627
        %v2742 = vpop.f32.mrf.mxu0
        %v2743 = vadd.f32 0.0, %v2742
        %2744 = vmatmul.f32.gmra.mxu0 %v2630
        %v2745 = vpop.f32.mrf.mxu0
        %v2746 = vadd.f32 0.0, %v2745
        %2747 = vmatmul.f32.gmra.mxu0 %v2633
        %v2748 = vpop.f32.mrf.mxu0
        %v2749 = vadd.f32 0.0, %v2748
        %2750 = vmatmul.f32.gmra.mxu0 %v2636
        %v2751 = vpop.f32.mrf.mxu0
        %v2752 = vadd.f32 0.0, %v2751
        %2753 = vmatmul.f32.gmra.mxu0 %v2639
        %v2754 = vpop.f32.mrf.mxu0
        %v2755 = vadd.f32 0.0, %v2754
        %2756 = vmatmul.f32.gmra.mxu0 %v2642
        %v2757 = vpop.f32.mrf.mxu0
        %v2758 = vadd.f32 0.0, %v2757
        %2759 = vmatmul.f32.gmra.mxu0 %v2645
        %v2760 = vpop.f32.mrf.mxu0
        %v2761 = vadd.f32 0.0, %v2760
        %2762 = vmatmul.f32.gmra.mxu0 %v2648
        %v2763 = vpop.f32.mrf.mxu0
        %v2764 = vadd.f32 0.0, %v2763
        %2765 = vmatmul.f32.gmra.mxu0 %v2651
        %v2766 = vpop.f32.mrf.mxu0
        %v2767 = vadd.f32 0.0, %v2766
        %2768 = vmatmul.f32.gmra.mxu0 %v2654
        %v2769 = vpop.f32.mrf.mxu0
        %v2770 = vadd.f32 0.0, %v2769
        %2771 = vmatmul.f32.gmra.mxu0 %v2657
        %v2772 = vpop.f32.mrf.mxu0
        %v2773 = vadd.f32 0.0, %v2772
        %2774 = vmatmul.f32.gmra.mxu0 %v2660
        %v2775 = vpop.f32.mrf.mxu0
        %v2776 = vadd.f32 0.0, %v2775
        %2777 = vmatmul.f32.gmra.mxu0 %v2663
        %v2778 = vpop.f32.mrf.mxu0
        %v2779 = vadd.f32 0.0, %v2778
        %2780 = vmatmul.f32.gmra.mxu0 %v2666
        %v2781 = vpop.f32.mrf.mxu0
        %v2782 = vadd.f32 0.0, %v2781
        %2783 = vmatmul.f32.gmra.mxu0 %v2669
        %v2784 = vpop.f32.mrf.mxu0
        %v2785 = vadd.f32 0.0, %v2784
        %2786 = vmatmul.f32.gmra.mxu0 %v2672
        %v2787 = vpop.f32.mrf.mxu0
        %v2788 = vadd.f32 0.0, %v2787
        %2789 = vmatmul.f32.gmra.mxu0 %v2675
        %v2790 = vpop.f32.mrf.mxu0
        %v2791 = vadd.f32 0.0, %v2790
        %2792 = vmatmul.f32.gmra.mxu0 %v2678
        %v2793 = vpop.f32.mrf.mxu0
        %v2794 = vadd.f32 0.0, %v2793
        %2795 = vmatmul.f32.gmra.mxu0 %v2681
        %v2796 = vpop.f32.mrf.mxu0
        %v2797 = vadd.f32 0.0, %v2796
        %2798 = vdwg.mxu0
        %v2799 = vadd.f32 %v2520, %v2704
        %v2800 = vadd.f32 %v2521, %v2707
        %v2801 = vadd.f32 %v2522, %v2710
        %v2802 = vadd.f32 %v2523, %v2713
        %v2803 = vadd.f32 %v2524, %v2716
        %v2804 = vadd.f32 %v2525, %v2719
        %v2805 = vadd.f32 %v2526, %v2722
        %v2806 = vadd.f32 %v2527, %v2725
        %v2807 = vadd.f32 %v2528, %v2728
        %v2808 = vadd.f32 %v2529, %v2731
        %v2809 = vadd.f32 %v2530, %v2734
        %v2810 = vadd.f32 %v2531, %v2737
        %v2811 = vadd.f32 %v2532, %v2740
        %v2812 = vadd.f32 %v2533, %v2743
        %v2813 = vadd.f32 %v2534, %v2746
        %v2814 = vadd.f32 %v2535, %v2749
        %v2815 = vadd.f32 %v2536, %v2752
        %v2816 = vadd.f32 %v2537, %v2755
        %v2817 = vadd.f32 %v2538, %v2758
        %v2818 = vadd.f32 %v2539, %v2761
        %v2819 = vadd.f32 %v2540, %v2764
        %v2820 = vadd.f32 %v2541, %v2767
        %v2821 = vadd.f32 %v2542, %v2770
        %v2822 = vadd.f32 %v2543, %v2773
        %v2823 = vadd.f32 %v2544, %v2776
        %v2824 = vadd.f32 %v2545, %v2779
        %v2825 = vadd.f32 %v2546, %v2782
        %v2826 = vadd.f32 %v2547, %v2785
        %v2827 = vadd.f32 %v2548, %v2788
        %v2828 = vadd.f32 %v2549, %v2791
        %v2829 = vadd.f32 %v2550, %v2794
        %v2830 = vadd.f32 %v2551, %v2797
        %v2831 = vld [vmem:[%s2552 + $0x1] sm:$0xff]
        %v2832 = vld [vmem:[%s2552 + $0x9] sm:$0xff]
        %v2833 = vld [vmem:[%s2552 + $0x19] sm:$0xff]
        %v2834 = vld [vmem:[%s2552 + $0x21] sm:$0xff]
        %v2835 = vld [vmem:[%s2552 + $0x31] sm:$0xff]
        %v2836 = vld [vmem:[%s2552 + $0x39] sm:$0xff]
        %v2837 = vld [vmem:[%s2552 + $0x49] sm:$0xff]
        %v2838 = vld [vmem:[%s2552 + $0x51] sm:$0xff]
        %v2839 = vld [vmem:[%s2552 + $0x61] sm:$0xff]
        %v2840 = vld [vmem:[%s2552 + $0x69] sm:$0xff]
        %v2841 = vld [vmem:[%s2552 + $0x79] sm:$0xff]
        %v2842 = vld [vmem:[%s2552 + $0x81] sm:$0xff]
        %v2843 = vld [vmem:[%s2552 + $0x91] sm:$0xff]
        %v2844 = vld [vmem:[%s2552 + $0x99] sm:$0xff]
        %v2845 = vld [vmem:[%s2552 + $0xa9] sm:$0xff]
        %v2846 = vld [vmem:[%s2552 + $0xb1] sm:$0xff]
        %v2847 = vld [vmem:[%s2552 + $0xc1] sm:$0xff]
        %v2848 = vld [vmem:[%s2552 + $0xc9] sm:$0xff]
        %v2849 = vld [vmem:[%s2552 + $0xd9] sm:$0xff]
        %v2850 = vld [vmem:[%s2552 + $0xe1] sm:$0xff]
        %v2851 = vld [vmem:[%s2552 + $0xf1] sm:$0xff]
        %v2852 = vld [vmem:[%s2552 + $0xf9] sm:$0xff]
        %v2853 = vld [vmem:[%s2552 + $0x109] sm:$0xff]
        %v2854 = vld [vmem:[%s2552 + $0x111] sm:$0xff]
        %v2855 = vld [vmem:[%s2552 + $0x121] sm:$0xff]
        %v2856 = vld [vmem:[%s2552 + $0x129] sm:$0xff]
        %v2857 = vld [vmem:[%s2552 + $0x139] sm:$0xff]
        %v2858 = vld [vmem:[%s2552 + $0x141] sm:$0xff]
        %v2859 = vld [vmem:[%s2552 + $0x151] sm:$0xff]
        %v2860 = vld [vmem:[%s2552 + $0x159] sm:$0xff]
        %v2861 = vld [vmem:[%s2552 + $0x169] sm:$0xff]
        %v2862 = vld [vmem:[%s2552 + $0x171] sm:$0xff]
        %s2863 = scalar_lea.vmem %s4, 28
        %v2864 = vld [vmem:[%s2863] sm:$0xf]
        %v2866 = vsel %vm553, %v2831, 0
        %v2869 = vsel %vm553, %v2832, 0
        %v2872 = vsel %vm553, %v2833, 0
        %v2875 = vsel %vm553, %v2834, 0
        %v2878 = vsel %vm553, %v2835, 0
        %v2881 = vsel %vm553, %v2836, 0
        %v2884 = vsel %vm553, %v2837, 0
        %v2887 = vsel %vm553, %v2838, 0
        %v2890 = vsel %vm553, %v2839, 0
        %v2893 = vsel %vm553, %v2840, 0
        %v2896 = vsel %vm553, %v2841, 0
        %v2899 = vsel %vm553, %v2842, 0
        %v2902 = vsel %vm553, %v2843, 0
        %v2905 = vsel %vm553, %v2844, 0
        %v2908 = vsel %vm553, %v2845, 0
        %v2911 = vsel %vm553, %v2846, 0
        %v2914 = vsel %vm553, %v2847, 0
        %v2917 = vsel %vm553, %v2848, 0
        %v2920 = vsel %vm553, %v2849, 0
        %v2923 = vsel %vm553, %v2850, 0
        %v2926 = vsel %vm553, %v2851, 0
        %v2929 = vsel %vm553, %v2852, 0
        %v2932 = vsel %vm553, %v2853, 0
        %v2935 = vsel %vm553, %v2854, 0
        %v2938 = vsel %vm553, %v2855, 0
        %v2941 = vsel %vm553, %v2856, 0
        %v2944 = vsel %vm553, %v2857, 0
        %v2947 = vsel %vm553, %v2858, 0
        %v2950 = vsel %vm553, %v2859, 0
        %v2953 = vsel %vm553, %v2860, 0
        %v2956 = vsel %vm553, %v2861, 0
        %v2959 = vsel %vm553, %v2862, 0
        %v2962 = vsel %vm650, %v2864, 0
        %2964 = vmatpush.msra.mxu0 0.0
        %2965 = vmatpush.msra.mxu0 0.0
        %2966 = vmatpush.msra.mxu0 0.0
        %2967 = vmatpush.msra.mxu0 0.0
        %2968 = vmatpush.msra.mxu0 0.0
        %2969 = vmatpush.msra.mxu0 0.0
        %2970 = vmatpush.msra.mxu0 0.0
        %2971 = vmatpush.msra.mxu0 0.0
        %2972 = vmatpush.msra.mxu0 0.0
        %2973 = vmatpush.msra.mxu0 0.0
        %2974 = vmatpush.msra.mxu0 0.0
        %2975 = vmatpush.msra.mxu0 0.0
        %2976 = vmatpush.msra.mxu0 0.0
        %2977 = vmatpush.msra.mxu0 0.0
        %2978 = vmatpush.msra.mxu0 0.0
        %2979 = vmatpush.msra.mxu0 %v2962
        %2980 = vmatmul.f32.gmra.mxu0 %v2866
        %v2981 = vpop.f32.mrf.mxu0
        %v2982 = vadd.f32 0.0, %v2981
        %2983 = vmatmul.f32.gmra.mxu0 %v2869
        %v2984 = vpop.f32.mrf.mxu0
        %v2985 = vadd.f32 0.0, %v2984
        %2986 = vmatmul.f32.gmra.mxu0 %v2872
        %v2987 = vpop.f32.mrf.mxu0
        %v2988 = vadd.f32 0.0, %v2987
        %2989 = vmatmul.f32.gmra.mxu0 %v2875
        %v2990 = vpop.f32.mrf.mxu0
        %v2991 = vadd.f32 0.0, %v2990
        %2992 = vmatmul.f32.gmra.mxu0 %v2878
        %v2993 = vpop.f32.mrf.mxu0
        %v2994 = vadd.f32 0.0, %v2993
        %2995 = vmatmul.f32.gmra.mxu0 %v2881
        %v2996 = vpop.f32.mrf.mxu0
        %v2997 = vadd.f32 0.0, %v2996
        %2998 = vmatmul.f32.gmra.mxu0 %v2884
        %v2999 = vpop.f32.mrf.mxu0
        %v3000 = vadd.f32 0.0, %v2999
        %3001 = vmatmul.f32.gmra.mxu0 %v2887
        %v3002 = vpop.f32.mrf.mxu0
        %v3003 = vadd.f32 0.0, %v3002
        %3004 = vmatmul.f32.gmra.mxu0 %v2890
        %v3005 = vpop.f32.mrf.mxu0
        %v3006 = vadd.f32 0.0, %v3005
        %3007 = vmatmul.f32.gmra.mxu0 %v2893
        %v3008 = vpop.f32.mrf.mxu0
        %v3009 = vadd.f32 0.0, %v3008
        %3010 = vmatmul.f32.gmra.mxu0 %v2896
        %v3011 = vpop.f32.mrf.mxu0
        %v3012 = vadd.f32 0.0, %v3011
        %3013 = vmatmul.f32.gmra.mxu0 %v2899
        %v3014 = vpop.f32.mrf.mxu0
        %v3015 = vadd.f32 0.0, %v3014
        %3016 = vmatmul.f32.gmra.mxu0 %v2902
        %v3017 = vpop.f32.mrf.mxu0
        %v3018 = vadd.f32 0.0, %v3017
        %3019 = vmatmul.f32.gmra.mxu0 %v2905
        %v3020 = vpop.f32.mrf.mxu0
        %v3021 = vadd.f32 0.0, %v3020
        %3022 = vmatmul.f32.gmra.mxu0 %v2908
        %v3023 = vpop.f32.mrf.mxu0
        %v3024 = vadd.f32 0.0, %v3023
        %3025 = vmatmul.f32.gmra.mxu0 %v2911
        %v3026 = vpop.f32.mrf.mxu0
        %v3027 = vadd.f32 0.0, %v3026
        %3028 = vmatmul.f32.gmra.mxu0 %v2914
        %v3029 = vpop.f32.mrf.mxu0
        %v3030 = vadd.f32 0.0, %v3029
        %3031 = vmatmul.f32.gmra.mxu0 %v2917
        %v3032 = vpop.f32.mrf.mxu0
        %v3033 = vadd.f32 0.0, %v3032
        %3034 = vmatmul.f32.gmra.mxu0 %v2920
        %v3035 = vpop.f32.mrf.mxu0
        %v3036 = vadd.f32 0.0, %v3035
        %3037 = vmatmul.f32.gmra.mxu0 %v2923
        %v3038 = vpop.f32.mrf.mxu0
        %v3039 = vadd.f32 0.0, %v3038
        %3040 = vmatmul.f32.gmra.mxu0 %v2926
        %v3041 = vpop.f32.mrf.mxu0
        %v3042 = vadd.f32 0.0, %v3041
        %3043 = vmatmul.f32.gmra.mxu0 %v2929
        %v3044 = vpop.f32.mrf.mxu0
        %v3045 = vadd.f32 0.0, %v3044
        %3046 = vmatmul.f32.gmra.mxu0 %v2932
        %v3047 = vpop.f32.mrf.mxu0
        %v3048 = vadd.f32 0.0, %v3047
        %3049 = vmatmul.f32.gmra.mxu0 %v2935
        %v3050 = vpop.f32.mrf.mxu0
        %v3051 = vadd.f32 0.0, %v3050
        %3052 = vmatmul.f32.gmra.mxu0 %v2938
        %v3053 = vpop.f32.mrf.mxu0
        %v3054 = vadd.f32 0.0, %v3053
        %3055 = vmatmul.f32.gmra.mxu0 %v2941
        %v3056 = vpop.f32.mrf.mxu0
        %v3057 = vadd.f32 0.0, %v3056
        %3058 = vmatmul.f32.gmra.mxu0 %v2944
        %v3059 = vpop.f32.mrf.mxu0
        %v3060 = vadd.f32 0.0, %v3059
        %3061 = vmatmul.f32.gmra.mxu0 %v2947
        %v3062 = vpop.f32.mrf.mxu0
        %v3063 = vadd.f32 0.0, %v3062
        %3064 = vmatmul.f32.gmra.mxu0 %v2950
        %v3065 = vpop.f32.mrf.mxu0
        %v3066 = vadd.f32 0.0, %v3065
        %3067 = vmatmul.f32.gmra.mxu0 %v2953
        %v3068 = vpop.f32.mrf.mxu0
        %v3069 = vadd.f32 0.0, %v3068
        %3070 = vmatmul.f32.gmra.mxu0 %v2956
        %v3071 = vpop.f32.mrf.mxu0
        %v3072 = vadd.f32 0.0, %v3071
        %3073 = vmatmul.f32.gmra.mxu0 %v2959
        %v3074 = vpop.f32.mrf.mxu0
        %v3075 = vadd.f32 0.0, %v3074
        %3076 = vdwg.mxu0
        %v3077 = vadd.f32 %v2799, %v2982
        %v3078 = vadd.f32 %v2800, %v2985
        %v3079 = vadd.f32 %v2801, %v2988
        %v3080 = vadd.f32 %v2802, %v2991
        %v3081 = vadd.f32 %v2803, %v2994
        %v3082 = vadd.f32 %v2804, %v2997
        %v3083 = vadd.f32 %v2805, %v3000
        %v3084 = vadd.f32 %v2806, %v3003
        %v3085 = vadd.f32 %v2807, %v3006
        %v3086 = vadd.f32 %v2808, %v3009
        %v3087 = vadd.f32 %v2809, %v3012
        %v3088 = vadd.f32 %v2810, %v3015
        %v3089 = vadd.f32 %v2811, %v3018
        %v3090 = vadd.f32 %v2812, %v3021
        %v3091 = vadd.f32 %v2813, %v3024
        %v3092 = vadd.f32 %v2814, %v3027
        %v3093 = vadd.f32 %v2815, %v3030
        %v3094 = vadd.f32 %v2816, %v3033
        %v3095 = vadd.f32 %v2817, %v3036
        %v3096 = vadd.f32 %v2818, %v3039
        %v3097 = vadd.f32 %v2819, %v3042
        %v3098 = vadd.f32 %v2820, %v3045
        %v3099 = vadd.f32 %v2821, %v3048
        %v3100 = vadd.f32 %v2822, %v3051
        %v3101 = vadd.f32 %v2823, %v3054
        %v3102 = vadd.f32 %v2824, %v3057
        %v3103 = vadd.f32 %v2825, %v3060
        %v3104 = vadd.f32 %v2826, %v3063
        %v3105 = vadd.f32 %v2827, %v3066
        %v3106 = vadd.f32 %v2828, %v3069
        %v3107 = vadd.f32 %v2829, %v3072
        %v3108 = vadd.f32 %v2830, %v3075
        %v3109 = vld [vmem:[%s2552 + $0x2] sm:$0xff]
        %v3110 = vld [vmem:[%s2552 + $0xa] sm:$0xff]
        %v3111 = vld [vmem:[%s2552 + $0x1a] sm:$0xff]
        %v3112 = vld [vmem:[%s2552 + $0x22] sm:$0xff]
        %v3113 = vld [vmem:[%s2552 + $0x32] sm:$0xff]
        %v3114 = vld [vmem:[%s2552 + $0x3a] sm:$0xff]
        %v3115 = vld [vmem:[%s2552 + $0x4a] sm:$0xff]
        %v3116 = vld [vmem:[%s2552 + $0x52] sm:$0xff]
        %v3117 = vld [vmem:[%s2552 + $0x62] sm:$0xff]
        %v3118 = vld [vmem:[%s2552 + $0x6a] sm:$0xff]
        %v3119 = vld [vmem:[%s2552 + $0x7a] sm:$0xff]
        %v3120 = vld [vmem:[%s2552 + $0x82] sm:$0xff]
        %v3121 = vld [vmem:[%s2552 + $0x92] sm:$0xff]
        %v3122 = vld [vmem:[%s2552 + $0x9a] sm:$0xff]
        %v3123 = vld [vmem:[%s2552 + $0xaa] sm:$0xff]
        %v3124 = vld [vmem:[%s2552 + $0xb2] sm:$0xff]
        %v3125 = vld [vmem:[%s2552 + $0xc2] sm:$0xff]
        %v3126 = vld [vmem:[%s2552 + $0xca] sm:$0xff]
        %v3127 = vld [vmem:[%s2552 + $0xda] sm:$0xff]
        %v3128 = vld [vmem:[%s2552 + $0xe2] sm:$0xff]
        %v3129 = vld [vmem:[%s2552 + $0xf2] sm:$0xff]
        %v3130 = vld [vmem:[%s2552 + $0xfa] sm:$0xff]
        %v3131 = vld [vmem:[%s2552 + $0x10a] sm:$0xff]
        %v3132 = vld [vmem:[%s2552 + $0x112] sm:$0xff]
        %v3133 = vld [vmem:[%s2552 + $0x122] sm:$0xff]
        %v3134 = vld [vmem:[%s2552 + $0x12a] sm:$0xff]
        %v3135 = vld [vmem:[%s2552 + $0x13a] sm:$0xff]
        %v3136 = vld [vmem:[%s2552 + $0x142] sm:$0xff]
        %v3137 = vld [vmem:[%s2552 + $0x152] sm:$0xff]
        %v3138 = vld [vmem:[%s2552 + $0x15a] sm:$0xff]
        %v3139 = vld [vmem:[%s2552 + $0x16a] sm:$0xff]
        %v3140 = vld [vmem:[%s2552 + $0x172] sm:$0xff]
        %s3141 = scalar_lea.vmem %s4, 32
        %v3142 = vld [vmem:[%s3141] sm:$0xf]
        %v3144 = vsel %vm553, %v3109, 0
        %v3147 = vsel %vm553, %v3110, 0
        %v3150 = vsel %vm553, %v3111, 0
        %v3153 = vsel %vm553, %v3112, 0
        %v3156 = vsel %vm553, %v3113, 0
        %v3159 = vsel %vm553, %v3114, 0
        %v3162 = vsel %vm553, %v3115, 0
        %v3165 = vsel %vm553, %v3116, 0
        %v3168 = vsel %vm553, %v3117, 0
        %v3171 = vsel %vm553, %v3118, 0
        %v3174 = vsel %vm553, %v3119, 0
        %v3177 = vsel %vm553, %v3120, 0
        %v3180 = vsel %vm553, %v3121, 0
        %v3183 = vsel %vm553, %v3122, 0
        %v3186 = vsel %vm553, %v3123, 0
        %v3189 = vsel %vm553, %v3124, 0
        %v3192 = vsel %vm553, %v3125, 0
        %v3195 = vsel %vm553, %v3126, 0
        %v3198 = vsel %vm553, %v3127, 0
        %v3201 = vsel %vm553, %v3128, 0
        %v3204 = vsel %vm553, %v3129, 0
        %v3207 = vsel %vm553, %v3130, 0
        %v3210 = vsel %vm553, %v3131, 0
        %v3213 = vsel %vm553, %v3132, 0
        %v3216 = vsel %vm553, %v3133, 0
        %v3219 = vsel %vm553, %v3134, 0
        %v3222 = vsel %vm553, %v3135, 0
        %v3225 = vsel %vm553, %v3136, 0
        %v3228 = vsel %vm553, %v3137, 0
        %v3231 = vsel %vm553, %v3138, 0
        %v3234 = vsel %vm553, %v3139, 0
        %v3237 = vsel %vm553, %v3140, 0
        %v3240 = vsel %vm650, %v3142, 0
        %3242 = vmatpush.msra.mxu0 0.0
        %3243 = vmatpush.msra.mxu0 0.0
        %3244 = vmatpush.msra.mxu0 0.0
        %3245 = vmatpush.msra.mxu0 0.0
        %3246 = vmatpush.msra.mxu0 0.0
        %3247 = vmatpush.msra.mxu0 0.0
        %3248 = vmatpush.msra.mxu0 0.0
        %3249 = vmatpush.msra.mxu0 0.0
        %3250 = vmatpush.msra.mxu0 0.0
        %3251 = vmatpush.msra.mxu0 0.0
        %3252 = vmatpush.msra.mxu0 0.0
        %3253 = vmatpush.msra.mxu0 0.0
        %3254 = vmatpush.msra.mxu0 0.0
        %3255 = vmatpush.msra.mxu0 0.0
        %3256 = vmatpush.msra.mxu0 0.0
        %3257 = vmatpush.msra.mxu0 %v3240
        %3258 = vmatmul.f32.gmra.mxu0 %v3144
        %v3259 = vpop.f32.mrf.mxu0
        %v3260 = vadd.f32 0.0, %v3259
        %3261 = vmatmul.f32.gmra.mxu0 %v3147
        %v3262 = vpop.f32.mrf.mxu0
        %v3263 = vadd.f32 0.0, %v3262
        %3264 = vmatmul.f32.gmra.mxu0 %v3150
        %v3265 = vpop.f32.mrf.mxu0
        %v3266 = vadd.f32 0.0, %v3265
        %3267 = vmatmul.f32.gmra.mxu0 %v3153
        %v3268 = vpop.f32.mrf.mxu0
        %v3269 = vadd.f32 0.0, %v3268
        %3270 = vmatmul.f32.gmra.mxu0 %v3156
        %v3271 = vpop.f32.mrf.mxu0
        %v3272 = vadd.f32 0.0, %v3271
        %3273 = vmatmul.f32.gmra.mxu0 %v3159
        %v3274 = vpop.f32.mrf.mxu0
        %v3275 = vadd.f32 0.0, %v3274
        %3276 = vmatmul.f32.gmra.mxu0 %v3162
        %v3277 = vpop.f32.mrf.mxu0
        %v3278 = vadd.f32 0.0, %v3277
        %3279 = vmatmul.f32.gmra.mxu0 %v3165
        %v3280 = vpop.f32.mrf.mxu0
        %v3281 = vadd.f32 0.0, %v3280
        %3282 = vmatmul.f32.gmra.mxu0 %v3168
        %v3283 = vpop.f32.mrf.mxu0
        %v3284 = vadd.f32 0.0, %v3283
        %3285 = vmatmul.f32.gmra.mxu0 %v3171
        %v3286 = vpop.f32.mrf.mxu0
        %v3287 = vadd.f32 0.0, %v3286
        %3288 = vmatmul.f32.gmra.mxu0 %v3174
        %v3289 = vpop.f32.mrf.mxu0
        %v3290 = vadd.f32 0.0, %v3289
        %3291 = vmatmul.f32.gmra.mxu0 %v3177
        %v3292 = vpop.f32.mrf.mxu0
        %v3293 = vadd.f32 0.0, %v3292
        %3294 = vmatmul.f32.gmra.mxu0 %v3180
        %v3295 = vpop.f32.mrf.mxu0
        %v3296 = vadd.f32 0.0, %v3295
        %3297 = vmatmul.f32.gmra.mxu0 %v3183
        %v3298 = vpop.f32.mrf.mxu0
        %v3299 = vadd.f32 0.0, %v3298
        %3300 = vmatmul.f32.gmra.mxu0 %v3186
        %v3301 = vpop.f32.mrf.mxu0
        %v3302 = vadd.f32 0.0, %v3301
        %3303 = vmatmul.f32.gmra.mxu0 %v3189
        %v3304 = vpop.f32.mrf.mxu0
        %v3305 = vadd.f32 0.0, %v3304
        %3306 = vmatmul.f32.gmra.mxu0 %v3192
        %v3307 = vpop.f32.mrf.mxu0
        %v3308 = vadd.f32 0.0, %v3307
        %3309 = vmatmul.f32.gmra.mxu0 %v3195
        %v3310 = vpop.f32.mrf.mxu0
        %v3311 = vadd.f32 0.0, %v3310
        %3312 = vmatmul.f32.gmra.mxu0 %v3198
        %v3313 = vpop.f32.mrf.mxu0
        %v3314 = vadd.f32 0.0, %v3313
        %3315 = vmatmul.f32.gmra.mxu0 %v3201
        %v3316 = vpop.f32.mrf.mxu0
        %v3317 = vadd.f32 0.0, %v3316
        %3318 = vmatmul.f32.gmra.mxu0 %v3204
        %v3319 = vpop.f32.mrf.mxu0
        %v3320 = vadd.f32 0.0, %v3319
        %3321 = vmatmul.f32.gmra.mxu0 %v3207
        %v3322 = vpop.f32.mrf.mxu0
        %v3323 = vadd.f32 0.0, %v3322
        %3324 = vmatmul.f32.gmra.mxu0 %v3210
        %v3325 = vpop.f32.mrf.mxu0
        %v3326 = vadd.f32 0.0, %v3325
        %3327 = vmatmul.f32.gmra.mxu0 %v3213
        %v3328 = vpop.f32.mrf.mxu0
        %v3329 = vadd.f32 0.0, %v3328
        %3330 = vmatmul.f32.gmra.mxu0 %v3216
        %v3331 = vpop.f32.mrf.mxu0
        %v3332 = vadd.f32 0.0, %v3331
        %3333 = vmatmul.f32.gmra.mxu0 %v3219
        %v3334 = vpop.f32.mrf.mxu0
        %v3335 = vadd.f32 0.0, %v3334
        %3336 = vmatmul.f32.gmra.mxu0 %v3222
        %v3337 = vpop.f32.mrf.mxu0
        %v3338 = vadd.f32 0.0, %v3337
        %3339 = vmatmul.f32.gmra.mxu0 %v3225
        %v3340 = vpop.f32.mrf.mxu0
        %v3341 = vadd.f32 0.0, %v3340
        %3342 = vmatmul.f32.gmra.mxu0 %v3228
        %v3343 = vpop.f32.mrf.mxu0
        %v3344 = vadd.f32 0.0, %v3343
        %3345 = vmatmul.f32.gmra.mxu0 %v3231
        %v3346 = vpop.f32.mrf.mxu0
        %v3347 = vadd.f32 0.0, %v3346
        %3348 = vmatmul.f32.gmra.mxu0 %v3234
        %v3349 = vpop.f32.mrf.mxu0
        %v3350 = vadd.f32 0.0, %v3349
        %3351 = vmatmul.f32.gmra.mxu0 %v3237
        %v3352 = vpop.f32.mrf.mxu0
        %v3353 = vadd.f32 0.0, %v3352
        %3354 = vdwg.mxu0
        %v3355 = vadd.f32 %v3077, %v3260
        %v3356 = vadd.f32 %v3078, %v3263
        %v3357 = vadd.f32 %v3079, %v3266
        %v3358 = vadd.f32 %v3080, %v3269
        %v3359 = vadd.f32 %v3081, %v3272
        %v3360 = vadd.f32 %v3082, %v3275
        %v3361 = vadd.f32 %v3083, %v3278
        %v3362 = vadd.f32 %v3084, %v3281
        %v3363 = vadd.f32 %v3085, %v3284
        %v3364 = vadd.f32 %v3086, %v3287
        %v3365 = vadd.f32 %v3087, %v3290
        %v3366 = vadd.f32 %v3088, %v3293
        %v3367 = vadd.f32 %v3089, %v3296
        %v3368 = vadd.f32 %v3090, %v3299
        %v3369 = vadd.f32 %v3091, %v3302
        %v3370 = vadd.f32 %v3092, %v3305
        %v3371 = vadd.f32 %v3093, %v3308
        %v3372 = vadd.f32 %v3094, %v3311
        %v3373 = vadd.f32 %v3095, %v3314
        %v3374 = vadd.f32 %v3096, %v3317
        %v3375 = vadd.f32 %v3097, %v3320
        %v3376 = vadd.f32 %v3098, %v3323
        %v3377 = vadd.f32 %v3099, %v3326
        %v3378 = vadd.f32 %v3100, %v3329
        %v3379 = vadd.f32 %v3101, %v3332
        %v3380 = vadd.f32 %v3102, %v3335
        %v3381 = vadd.f32 %v3103, %v3338
        %v3382 = vadd.f32 %v3104, %v3341
        %v3383 = vadd.f32 %v3105, %v3344
        %v3384 = vadd.f32 %v3106, %v3347
        %v3385 = vadd.f32 %v3107, %v3350
        %v3386 = vadd.f32 %v3108, %v3353
        %v3387 = vld [vmem:[%s5] sm:$0x1]
        %v3389 = vperm.slane %v3387, 0
        %v3391 = vmul.f32 %v3355, %v3389
        %v3392 = vmul.f32 %v3356, %v3389
        %v3393 = vmul.f32 %v3357, %v3389
        %v3394 = vmul.f32 %v3358, %v3389
        %v3395 = vmul.f32 %v3359, %v3389
        %v3396 = vmul.f32 %v3360, %v3389
        %v3397 = vmul.f32 %v3361, %v3389
        %v3398 = vmul.f32 %v3362, %v3389
        %v3399 = vmul.f32 %v3363, %v3389
        %v3400 = vmul.f32 %v3364, %v3389
        %v3401 = vmul.f32 %v3365, %v3389
        %v3402 = vmul.f32 %v3366, %v3389
        %v3403 = vmul.f32 %v3367, %v3389
        %v3404 = vmul.f32 %v3368, %v3389
        %v3405 = vmul.f32 %v3369, %v3389
        %v3406 = vmul.f32 %v3370, %v3389
        %v3407 = vmul.f32 %v3371, %v3389
        %v3408 = vmul.f32 %v3372, %v3389
        %v3409 = vmul.f32 %v3373, %v3389
        %v3410 = vmul.f32 %v3374, %v3389
        %v3411 = vmul.f32 %v3375, %v3389
        %v3412 = vmul.f32 %v3376, %v3389
        %v3413 = vmul.f32 %v3377, %v3389
        %v3414 = vmul.f32 %v3378, %v3389
        %v3415 = vmul.f32 %v3379, %v3389
        %v3416 = vmul.f32 %v3380, %v3389
        %v3417 = vmul.f32 %v3381, %v3389
        %v3418 = vmul.f32 %v3382, %v3389
        %v3419 = vmul.f32 %v3383, %v3389
        %v3420 = vmul.f32 %v3384, %v3389
        %v3421 = vmul.f32 %v3385, %v3389
        %v3422 = vmul.f32 %v3386, %v3389
        %v3423 = vld [vmem:[%s6] sm:$0x1]
        %v3425 = vperm.slane %v3423, 0
        %v3427 = vadd.f32 %v3391, %v3425
        %v3428 = vadd.f32 %v3392, %v3425
        %v3429 = vadd.f32 %v3393, %v3425
        %v3430 = vadd.f32 %v3394, %v3425
        %v3431 = vadd.f32 %v3395, %v3425
        %v3432 = vadd.f32 %v3396, %v3425
        %v3433 = vadd.f32 %v3397, %v3425
        %v3434 = vadd.f32 %v3398, %v3425
        %v3435 = vadd.f32 %v3399, %v3425
        %v3436 = vadd.f32 %v3400, %v3425
        %v3437 = vadd.f32 %v3401, %v3425
        %v3438 = vadd.f32 %v3402, %v3425
        %v3439 = vadd.f32 %v3403, %v3425
        %v3440 = vadd.f32 %v3404, %v3425
        %v3441 = vadd.f32 %v3405, %v3425
        %v3442 = vadd.f32 %v3406, %v3425
        %v3443 = vadd.f32 %v3407, %v3425
        %v3444 = vadd.f32 %v3408, %v3425
        %v3445 = vadd.f32 %v3409, %v3425
        %v3446 = vadd.f32 %v3410, %v3425
        %v3447 = vadd.f32 %v3411, %v3425
        %v3448 = vadd.f32 %v3412, %v3425
        %v3449 = vadd.f32 %v3413, %v3425
        %v3450 = vadd.f32 %v3414, %v3425
        %v3451 = vadd.f32 %v3415, %v3425
        %v3452 = vadd.f32 %v3416, %v3425
        %v3453 = vadd.f32 %v3417, %v3425
        %v3454 = vadd.f32 %v3418, %v3425
        %v3455 = vadd.f32 %v3419, %v3425
        %v3456 = vadd.f32 %v3420, %v3425
        %v3457 = vadd.f32 %v3421, %v3425
        %v3458 = vadd.f32 %v3422, %v3425
        %v3459 = vmax.f32 %v3427, 0.0
        %v3460 = vmax.f32 %v3428, 0.0
        %v3461 = vmax.f32 %v3429, 0.0
        %v3462 = vmax.f32 %v3430, 0.0
        %v3463 = vmax.f32 %v3431, 0.0
        %v3464 = vmax.f32 %v3432, 0.0
        %v3465 = vmax.f32 %v3433, 0.0
        %v3466 = vmax.f32 %v3434, 0.0
        %v3467 = vmax.f32 %v3435, 0.0
        %v3468 = vmax.f32 %v3436, 0.0
        %v3469 = vmax.f32 %v3437, 0.0
        %v3470 = vmax.f32 %v3438, 0.0
        %v3471 = vmax.f32 %v3439, 0.0
        %v3472 = vmax.f32 %v3440, 0.0
        %v3473 = vmax.f32 %v3441, 0.0
        %v3474 = vmax.f32 %v3442, 0.0
        %v3475 = vmax.f32 %v3443, 0.0
        %v3476 = vmax.f32 %v3444, 0.0
        %v3477 = vmax.f32 %v3445, 0.0
        %v3478 = vmax.f32 %v3446, 0.0
        %v3479 = vmax.f32 %v3447, 0.0
        %v3480 = vmax.f32 %v3448, 0.0
        %v3481 = vmax.f32 %v3449, 0.0
        %v3482 = vmax.f32 %v3450, 0.0
        %v3483 = vmax.f32 %v3451, 0.0
        %v3484 = vmax.f32 %v3452, 0.0
        %v3485 = vmax.f32 %v3453, 0.0
        %v3486 = vmax.f32 %v3454, 0.0
        %v3487 = vmax.f32 %v3455, 0.0
        %v3488 = vmax.f32 %v3456, 0.0
        %v3489 = vmax.f32 %v3457, 0.0
        %v3490 = vmax.f32 %v3458, 0.0
        %3491 = vst.msk [vmem:[#allocation2] sm:$0xff] %vm553, 0.0
        %3492 = vst.msk [vmem:[#allocation2 + $0x8] sm:$0xff] %vm553, 0.0
        %3493 = vst.msk [vmem:[#allocation2 + $0x10] sm:$0x3] %vm873, 0.0
        %3494 = vst.msk [vmem:[%s875] sm:$0xff] %vm553, 0.0
        %3495 = vst.msk [vmem:[%s875 + $0x8] sm:$0xff] %vm553, 0.0
        %3496 = vst.msk [vmem:[%s875 + $0x10] sm:$0x3] %vm873, 0.0
        %3497 = vst.msk [vmem:[#allocation2] sm:$0x1] %vm879, 0.0
        %3498 = vst.msk [vmem:[#allocation2 + $0x18] sm:$0x1] %vm879, 0.0
        %3499 = vst.msk [vmem:[#allocation2 + $0x30] sm:$0x1] %vm879, 0.0
        %3500 = vst.msk [vmem:[#allocation2 + $0x48] sm:$0x1] %vm879, 0.0
        %3501 = vst.msk [vmem:[#allocation2 + $0x60] sm:$0x1] %vm879, 0.0
        %3502 = vst.msk [vmem:[#allocation2 + $0x78] sm:$0x1] %vm879, 0.0
        %3503 = vst.msk [vmem:[#allocation2 + $0x90] sm:$0x1] %vm879, 0.0
        %3504 = vst.msk [vmem:[#allocation2 + $0xa8] sm:$0x1] %vm879, 0.0
        %3505 = vst.msk [vmem:[#allocation2 + $0xc0] sm:$0x1] %vm879, 0.0
        %3506 = vst.msk [vmem:[#allocation2 + $0xd8] sm:$0x1] %vm879, 0.0
        %3507 = vst.msk [vmem:[#allocation2 + $0xf0] sm:$0x1] %vm879, 0.0
        %3508 = vst.msk [vmem:[#allocation2 + $0x108] sm:$0x1] %vm879, 0.0
        %3509 = vst.msk [vmem:[#allocation2 + $0x120] sm:$0x1] %vm879, 0.0
        %3510 = vst.msk [vmem:[#allocation2 + $0x138] sm:$0x1] %vm879, 0.0
        %3511 = vst.msk [vmem:[#allocation2 + $0x150] sm:$0x1] %vm879, 0.0
        %3512 = vst.msk [vmem:[#allocation2 + $0x168] sm:$0x1] %vm879, 0.0
        %3513 = vst.msk [vmem:[#allocation2 + $0x180] sm:$0x1] %vm879, 0.0
        %3514 = vst.msk [vmem:[#allocation2 + $0x198] sm:$0x1] %vm879, 0.0
        %3515 = vst.msk [vmem:[#allocation2 + $0x11] sm:$0x1] %vm879, 0.0
        %3516 = vst.msk [vmem:[#allocation2 + $0x29] sm:$0x1] %vm879, 0.0
        %3517 = vst.msk [vmem:[#allocation2 + $0x41] sm:$0x1] %vm879, 0.0
        %3518 = vst.msk [vmem:[#allocation2 + $0x59] sm:$0x1] %vm879, 0.0
        %3519 = vst.msk [vmem:[#allocation2 + $0x71] sm:$0x1] %vm879, 0.0
        %3520 = vst.msk [vmem:[#allocation2 + $0x89] sm:$0x1] %vm879, 0.0
        %3521 = vst.msk [vmem:[#allocation2 + $0xa1] sm:$0x1] %vm879, 0.0
        %3522 = vst.msk [vmem:[#allocation2 + $0xb9] sm:$0x1] %vm879, 0.0
        %3523 = vst.msk [vmem:[#allocation2 + $0xd1] sm:$0x1] %vm879, 0.0
        %3524 = vst.msk [vmem:[#allocation2 + $0xe9] sm:$0x1] %vm879, 0.0
        %3525 = vst.msk [vmem:[#allocation2 + $0x101] sm:$0x1] %vm879, 0.0
        %3526 = vst.msk [vmem:[#allocation2 + $0x119] sm:$0x1] %vm879, 0.0
        %3527 = vst.msk [vmem:[#allocation2 + $0x131] sm:$0x1] %vm879, 0.0
        %3528 = vst.msk [vmem:[#allocation2 + $0x149] sm:$0x1] %vm879, 0.0
        %3529 = vst.msk [vmem:[#allocation2 + $0x161] sm:$0x1] %vm879, 0.0
        %3530 = vst.msk [vmem:[#allocation2 + $0x179] sm:$0x1] %vm879, 0.0
        %3531 = vst.msk [vmem:[#allocation2 + $0x191] sm:$0x1] %vm879, 0.0
        %3532 = vst.msk [vmem:[#allocation2 + $0x1a9] sm:$0x1] %vm879, 0.0
        %3565 = vrot.lane.b32.xlu0 %v839, 124
        %v3566 = vpop.permute.xlu0 %3565
        %3567 = vrot.lane.b32.xlu0 %v840, 124
        %v3568 = vpop.permute.xlu0 %3567
        %3569 = vrot.lane.b32.xlu0 %v841, 124
        %v3570 = vpop.permute.xlu0 %3569
        %3571 = vrot.lane.b32.xlu0 %v842, 124
        %v3572 = vpop.permute.xlu0 %3571
        %3573 = vrot.lane.b32.xlu0 %v843, 124
        %v3574 = vpop.permute.xlu0 %3573
        %3575 = vrot.lane.b32.xlu0 %v844, 124
        %v3576 = vpop.permute.xlu0 %3575
        %3577 = vrot.lane.b32.xlu0 %v845, 124
        %v3578 = vpop.permute.xlu0 %3577
        %3579 = vrot.lane.b32.xlu0 %v846, 124
        %v3580 = vpop.permute.xlu0 %3579
        %3581 = vrot.lane.b32.xlu0 %v847, 124
        %v3582 = vpop.permute.xlu0 %3581
        %3583 = vrot.lane.b32.xlu0 %v848, 124
        %v3584 = vpop.permute.xlu0 %3583
        %3585 = vrot.lane.b32.xlu0 %v849, 124
        %v3586 = vpop.permute.xlu0 %3585
        %3587 = vrot.lane.b32.xlu0 %v850, 124
        %v3588 = vpop.permute.xlu0 %3587
        %3589 = vrot.lane.b32.xlu0 %v851, 124
        %v3590 = vpop.permute.xlu0 %3589
        %3591 = vrot.lane.b32.xlu0 %v852, 124
        %v3592 = vpop.permute.xlu0 %3591
        %3593 = vrot.lane.b32.xlu0 %v853, 124
        %v3594 = vpop.permute.xlu0 %3593
        %3595 = vrot.lane.b32.xlu0 %v854, 124
        %v3596 = vpop.permute.xlu0 %3595
        %3597 = vrot.lane.b32.xlu0 %v855, 124
        %v3598 = vpop.permute.xlu0 %3597
        %3599 = vrot.lane.b32.xlu0 %v856, 124
        %v3600 = vpop.permute.xlu0 %3599
        %3601 = vrot.lane.b32.xlu0 %v857, 124
        %v3602 = vpop.permute.xlu0 %3601
        %3603 = vrot.lane.b32.xlu0 %v858, 124
        %v3604 = vpop.permute.xlu0 %3603
        %3605 = vrot.lane.b32.xlu0 %v859, 124
        %v3606 = vpop.permute.xlu0 %3605
        %3607 = vrot.lane.b32.xlu0 %v860, 124
        %v3608 = vpop.permute.xlu0 %3607
        %3609 = vrot.lane.b32.xlu0 %v861, 124
        %v3610 = vpop.permute.xlu0 %3609
        %3611 = vrot.lane.b32.xlu0 %v862, 124
        %v3612 = vpop.permute.xlu0 %3611
        %3613 = vrot.lane.b32.xlu0 %v863, 124
        %v3614 = vpop.permute.xlu0 %3613
        %3615 = vrot.lane.b32.xlu0 %v864, 124
        %v3616 = vpop.permute.xlu0 %3615
        %3617 = vrot.lane.b32.xlu0 %v865, 124
        %v3618 = vpop.permute.xlu0 %3617
        %3619 = vrot.lane.b32.xlu0 %v866, 124
        %v3620 = vpop.permute.xlu0 %3619
        %3621 = vrot.lane.b32.xlu0 %v867, 124
        %v3622 = vpop.permute.xlu0 %3621
        %3623 = vrot.lane.b32.xlu0 %v868, 124
        %v3624 = vpop.permute.xlu0 %3623
        %3625 = vrot.lane.b32.xlu0 %v869, 124
        %v3626 = vpop.permute.xlu0 %3625
        %3627 = vrot.lane.b32.xlu0 %v870, 124
        %v3628 = vpop.permute.xlu0 %3627
        %3661 = vst.msk [vmem:[%s916 + $0x1] sm:$0xff] %vm553, %v3566
        %3662 = vst.msk [vmem:[%s916 + $0x9] sm:$0xff] %vm553, %v3568
        %3663 = vst.msk [vmem:[%s916 + $0x19] sm:$0xff] %vm553, %v3570
        %3664 = vst.msk [vmem:[%s916 + $0x21] sm:$0xff] %vm553, %v3572
        %3665 = vst.msk [vmem:[%s916 + $0x31] sm:$0xff] %vm553, %v3574
        %3666 = vst.msk [vmem:[%s916 + $0x39] sm:$0xff] %vm553, %v3576
        %3667 = vst.msk [vmem:[%s916 + $0x49] sm:$0xff] %vm553, %v3578
        %3668 = vst.msk [vmem:[%s916 + $0x51] sm:$0xff] %vm553, %v3580
        %3669 = vst.msk [vmem:[%s916 + $0x61] sm:$0xff] %vm553, %v3582
        %3670 = vst.msk [vmem:[%s916 + $0x69] sm:$0xff] %vm553, %v3584
        %3671 = vst.msk [vmem:[%s916 + $0x79] sm:$0xff] %vm553, %v3586
        %3672 = vst.msk [vmem:[%s916 + $0x81] sm:$0xff] %vm553, %v3588
        %3673 = vst.msk [vmem:[%s916 + $0x91] sm:$0xff] %vm553, %v3590
        %3674 = vst.msk [vmem:[%s916 + $0x99] sm:$0xff] %vm553, %v3592
        %3675 = vst.msk [vmem:[%s916 + $0xa9] sm:$0xff] %vm553, %v3594
        %3676 = vst.msk [vmem:[%s916 + $0xb1] sm:$0xff] %vm553, %v3596
        %3677 = vst.msk [vmem:[%s916 + $0xc1] sm:$0xff] %vm553, %v3598
        %3678 = vst.msk [vmem:[%s916 + $0xc9] sm:$0xff] %vm553, %v3600
        %3679 = vst.msk [vmem:[%s916 + $0xd9] sm:$0xff] %vm553, %v3602
        %3680 = vst.msk [vmem:[%s916 + $0xe1] sm:$0xff] %vm553, %v3604
        %3681 = vst.msk [vmem:[%s916 + $0xf1] sm:$0xff] %vm553, %v3606
        %3682 = vst.msk [vmem:[%s916 + $0xf9] sm:$0xff] %vm553, %v3608
        %3683 = vst.msk [vmem:[%s916 + $0x109] sm:$0xff] %vm553, %v3610
        %3684 = vst.msk [vmem:[%s916 + $0x111] sm:$0xff] %vm553, %v3612
        %3685 = vst.msk [vmem:[%s916 + $0x121] sm:$0xff] %vm553, %v3614
        %3686 = vst.msk [vmem:[%s916 + $0x129] sm:$0xff] %vm553, %v3616
        %3687 = vst.msk [vmem:[%s916 + $0x139] sm:$0xff] %vm553, %v3618
        %3688 = vst.msk [vmem:[%s916 + $0x141] sm:$0xff] %vm553, %v3620
        %3689 = vst.msk [vmem:[%s916 + $0x151] sm:$0xff] %vm553, %v3622
        %3690 = vst.msk [vmem:[%s916 + $0x159] sm:$0xff] %vm553, %v3624
        %3691 = vst.msk [vmem:[%s916 + $0x169] sm:$0xff] %vm553, %v3626
        %3692 = vst.msk [vmem:[%s916 + $0x171] sm:$0xff] %vm553, %v3628
        %v3693 = vld [vmem:[#allocation2] sm:$0xff]
        %v3694 = vld [vmem:[#allocation2 + $0x8] sm:$0xff]
        %v3695 = vld [vmem:[#allocation2 + $0x18] sm:$0xff]
        %v3696 = vld [vmem:[#allocation2 + $0x20] sm:$0xff]
        %v3697 = vld [vmem:[#allocation2 + $0x30] sm:$0xff]
        %v3698 = vld [vmem:[#allocation2 + $0x38] sm:$0xff]
        %v3699 = vld [vmem:[#allocation2 + $0x48] sm:$0xff]
        %v3700 = vld [vmem:[#allocation2 + $0x50] sm:$0xff]
        %v3701 = vld [vmem:[#allocation2 + $0x60] sm:$0xff]
        %v3702 = vld [vmem:[#allocation2 + $0x68] sm:$0xff]
        %v3703 = vld [vmem:[#allocation2 + $0x78] sm:$0xff]
        %v3704 = vld [vmem:[#allocation2 + $0x80] sm:$0xff]
        %v3705 = vld [vmem:[#allocation2 + $0x90] sm:$0xff]
        %v3706 = vld [vmem:[#allocation2 + $0x98] sm:$0xff]
        %v3707 = vld [vmem:[#allocation2 + $0xa8] sm:$0xff]
        %v3708 = vld [vmem:[#allocation2 + $0xb0] sm:$0xff]
        %v3709 = vld [vmem:[#allocation2 + $0xc0] sm:$0xff]
        %v3710 = vld [vmem:[#allocation2 + $0xc8] sm:$0xff]
        %v3711 = vld [vmem:[#allocation2 + $0xd8] sm:$0xff]
        %v3712 = vld [vmem:[#allocation2 + $0xe0] sm:$0xff]
        %v3713 = vld [vmem:[#allocation2 + $0xf0] sm:$0xff]
        %v3714 = vld [vmem:[#allocation2 + $0xf8] sm:$0xff]
        %v3715 = vld [vmem:[#allocation2 + $0x108] sm:$0xff]
        %v3716 = vld [vmem:[#allocation2 + $0x110] sm:$0xff]
        %v3717 = vld [vmem:[#allocation2 + $0x120] sm:$0xff]
        %v3718 = vld [vmem:[#allocation2 + $0x128] sm:$0xff]
        %v3719 = vld [vmem:[#allocation2 + $0x138] sm:$0xff]
        %v3720 = vld [vmem:[#allocation2 + $0x140] sm:$0xff]
        %v3721 = vld [vmem:[#allocation2 + $0x150] sm:$0xff]
        %v3722 = vld [vmem:[#allocation2 + $0x158] sm:$0xff]
        %v3723 = vld [vmem:[#allocation2 + $0x168] sm:$0xff]
        %v3724 = vld [vmem:[#allocation2 + $0x170] sm:$0xff]
        %v3725 = vld [vmem:[%s7] sm:$0xf]
        %v3726 = vld [vmem:[#allocation2 + $0x1] sm:$0xff]
        %v3727 = vld [vmem:[#allocation2 + $0x9] sm:$0xff]
        %v3728 = vld [vmem:[#allocation2 + $0x19] sm:$0xff]
        %v3729 = vld [vmem:[#allocation2 + $0x21] sm:$0xff]
        %v3730 = vld [vmem:[#allocation2 + $0x31] sm:$0xff]
        %v3731 = vld [vmem:[#allocation2 + $0x39] sm:$0xff]
        %v3732 = vld [vmem:[#allocation2 + $0x49] sm:$0xff]
        %v3733 = vld [vmem:[#allocation2 + $0x51] sm:$0xff]
        %v3734 = vld [vmem:[#allocation2 + $0x61] sm:$0xff]
        %v3735 = vld [vmem:[#allocation2 + $0x69] sm:$0xff]
        %v3736 = vld [vmem:[#allocation2 + $0x79] sm:$0xff]
        %v3737 = vld [vmem:[#allocation2 + $0x81] sm:$0xff]
        %v3738 = vld [vmem:[#allocation2 + $0x91] sm:$0xff]
        %v3739 = vld [vmem:[#allocation2 + $0x99] sm:$0xff]
        %v3740 = vld [vmem:[#allocation2 + $0xa9] sm:$0xff]
        %v3741 = vld [vmem:[#allocation2 + $0xb1] sm:$0xff]
        %v3742 = vld [vmem:[#allocation2 + $0xc1] sm:$0xff]
        %v3743 = vld [vmem:[#allocation2 + $0xc9] sm:$0xff]
        %v3744 = vld [vmem:[#allocation2 + $0xd9] sm:$0xff]
        %v3745 = vld [vmem:[#allocation2 + $0xe1] sm:$0xff]
        %v3746 = vld [vmem:[#allocation2 + $0xf1] sm:$0xff]
        %v3747 = vld [vmem:[#allocation2 + $0xf9] sm:$0xff]
        %v3748 = vld [vmem:[#allocation2 + $0x109] sm:$0xff]
        %v3749 = vld [vmem:[#allocation2 + $0x111] sm:$0xff]
        %v3750 = vld [vmem:[#allocation2 + $0x121] sm:$0xff]
        %v3751 = vld [vmem:[#allocation2 + $0x129] sm:$0xff]
        %v3752 = vld [vmem:[#allocation2 + $0x139] sm:$0xff]
        %v3753 = vld [vmem:[#allocation2 + $0x141] sm:$0xff]
        %v3754 = vld [vmem:[#allocation2 + $0x151] sm:$0xff]
        %v3755 = vld [vmem:[#allocation2 + $0x159] sm:$0xff]
        %v3756 = vld [vmem:[#allocation2 + $0x169] sm:$0xff]
        %v3757 = vld [vmem:[#allocation2 + $0x171] sm:$0xff]
        %s3758 = scalar_lea.vmem %s7, 4
        %v3759 = vld [vmem:[%s3758] sm:$0xf]
        %v3761 = vsel %vm553, %v3726, 0
        %v3764 = vsel %vm553, %v3727, 0
        %v3767 = vsel %vm553, %v3728, 0
        %v3770 = vsel %vm553, %v3729, 0
        %v3773 = vsel %vm553, %v3730, 0
        %v3776 = vsel %vm553, %v3731, 0
        %v3779 = vsel %vm553, %v3732, 0
        %v3782 = vsel %vm553, %v3733, 0
        %v3785 = vsel %vm553, %v3734, 0
        %v3788 = vsel %vm553, %v3735, 0
        %v3791 = vsel %vm553, %v3736, 0
        %v3794 = vsel %vm553, %v3737, 0
        %v3797 = vsel %vm553, %v3738, 0
        %v3800 = vsel %vm553, %v3739, 0
        %v3803 = vsel %vm553, %v3740, 0
        %v3806 = vsel %vm553, %v3741, 0
        %v3809 = vsel %vm553, %v3742, 0
        %v3812 = vsel %vm553, %v3743, 0
        %v3815 = vsel %vm553, %v3744, 0
        %v3818 = vsel %vm553, %v3745, 0
        %v3821 = vsel %vm553, %v3746, 0
        %v3824 = vsel %vm553, %v3747, 0
        %v3827 = vsel %vm553, %v3748, 0
        %v3830 = vsel %vm553, %v3749, 0
        %v3833 = vsel %vm553, %v3750, 0
        %v3836 = vsel %vm553, %v3751, 0
        %v3839 = vsel %vm553, %v3752, 0
        %v3842 = vsel %vm553, %v3753, 0
        %v3845 = vsel %vm553, %v3754, 0
        %v3848 = vsel %vm553, %v3755, 0
        %v3851 = vsel %vm553, %v3756, 0
        %v3854 = vsel %vm553, %v3757, 0
        %v3857 = vsel %vm650, %v3759, 0
        %3859 = vmatpush.msra.mxu0 0.0
        %3860 = vmatpush.msra.mxu0 0.0
        %3861 = vmatpush.msra.mxu0 0.0
        %3862 = vmatpush.msra.mxu0 0.0
        %3863 = vmatpush.msra.mxu0 0.0
        %3864 = vmatpush.msra.mxu0 0.0
        %3865 = vmatpush.msra.mxu0 0.0
        %3866 = vmatpush.msra.mxu0 0.0
        %3867 = vmatpush.msra.mxu0 0.0
        %3868 = vmatpush.msra.mxu0 0.0
        %3869 = vmatpush.msra.mxu0 0.0
        %3870 = vmatpush.msra.mxu0 0.0
        %3871 = vmatpush.msra.mxu0 0.0
        %3872 = vmatpush.msra.mxu0 0.0
        %3873 = vmatpush.msra.mxu0 0.0
        %3874 = vmatpush.msra.mxu0 %v3857
        %3875 = vmatmul.f32.gmra.mxu0 %v3761
        %v3876 = vpop.f32.mrf.mxu0
        %v3877 = vadd.f32 0.0, %v3876
        %3878 = vmatmul.f32.gmra.mxu0 %v3764
        %v3879 = vpop.f32.mrf.mxu0
        %v3880 = vadd.f32 0.0, %v3879
        %3881 = vmatmul.f32.gmra.mxu0 %v3767
        %v3882 = vpop.f32.mrf.mxu0
        %v3883 = vadd.f32 0.0, %v3882
        %3884 = vmatmul.f32.gmra.mxu0 %v3770
        %v3885 = vpop.f32.mrf.mxu0
        %v3886 = vadd.f32 0.0, %v3885
        %3887 = vmatmul.f32.gmra.mxu0 %v3773
        %v3888 = vpop.f32.mrf.mxu0
        %v3889 = vadd.f32 0.0, %v3888
        %3890 = vmatmul.f32.gmra.mxu0 %v3776
        %v3891 = vpop.f32.mrf.mxu0
        %v3892 = vadd.f32 0.0, %v3891
        %3893 = vmatmul.f32.gmra.mxu0 %v3779
        %v3894 = vpop.f32.mrf.mxu0
        %v3895 = vadd.f32 0.0, %v3894
        %3896 = vmatmul.f32.gmra.mxu0 %v3782
        %v3897 = vpop.f32.mrf.mxu0
        %v3898 = vadd.f32 0.0, %v3897
        %3899 = vmatmul.f32.gmra.mxu0 %v3785
        %v3900 = vpop.f32.mrf.mxu0
        %v3901 = vadd.f32 0.0, %v3900
        %3902 = vmatmul.f32.gmra.mxu0 %v3788
        %v3903 = vpop.f32.mrf.mxu0
        %v3904 = vadd.f32 0.0, %v3903
        %3905 = vmatmul.f32.gmra.mxu0 %v3791
        %v3906 = vpop.f32.mrf.mxu0
        %v3907 = vadd.f32 0.0, %v3906
        %3908 = vmatmul.f32.gmra.mxu0 %v3794
        %v3909 = vpop.f32.mrf.mxu0
        %v3910 = vadd.f32 0.0, %v3909
        %3911 = vmatmul.f32.gmra.mxu0 %v3797
        %v3912 = vpop.f32.mrf.mxu0
        %v3913 = vadd.f32 0.0, %v3912
        %3914 = vmatmul.f32.gmra.mxu0 %v3800
        %v3915 = vpop.f32.mrf.mxu0
        %v3916 = vadd.f32 0.0, %v3915
        %3917 = vmatmul.f32.gmra.mxu0 %v3803
        %v3918 = vpop.f32.mrf.mxu0
        %v3919 = vadd.f32 0.0, %v3918
        %3920 = vmatmul.f32.gmra.mxu0 %v3806
        %v3921 = vpop.f32.mrf.mxu0
        %v3922 = vadd.f32 0.0, %v3921
        %3923 = vmatmul.f32.gmra.mxu0 %v3809
        %v3924 = vpop.f32.mrf.mxu0
        %v3925 = vadd.f32 0.0, %v3924
        %3926 = vmatmul.f32.gmra.mxu0 %v3812
        %v3927 = vpop.f32.mrf.mxu0
        %v3928 = vadd.f32 0.0, %v3927
        %3929 = vmatmul.f32.gmra.mxu0 %v3815
        %v3930 = vpop.f32.mrf.mxu0
        %v3931 = vadd.f32 0.0, %v3930
        %3932 = vmatmul.f32.gmra.mxu0 %v3818
        %v3933 = vpop.f32.mrf.mxu0
        %v3934 = vadd.f32 0.0, %v3933
        %3935 = vmatmul.f32.gmra.mxu0 %v3821
        %v3936 = vpop.f32.mrf.mxu0
        %v3937 = vadd.f32 0.0, %v3936
        %3938 = vmatmul.f32.gmra.mxu0 %v3824
        %v3939 = vpop.f32.mrf.mxu0
        %v3940 = vadd.f32 0.0, %v3939
        %3941 = vmatmul.f32.gmra.mxu0 %v3827
        %v3942 = vpop.f32.mrf.mxu0
        %v3943 = vadd.f32 0.0, %v3942
        %3944 = vmatmul.f32.gmra.mxu0 %v3830
        %v3945 = vpop.f32.mrf.mxu0
        %v3946 = vadd.f32 0.0, %v3945
        %3947 = vmatmul.f32.gmra.mxu0 %v3833
        %v3948 = vpop.f32.mrf.mxu0
        %v3949 = vadd.f32 0.0, %v3948
        %3950 = vmatmul.f32.gmra.mxu0 %v3836
        %v3951 = vpop.f32.mrf.mxu0
        %v3952 = vadd.f32 0.0, %v3951
        %3953 = vmatmul.f32.gmra.mxu0 %v3839
        %v3954 = vpop.f32.mrf.mxu0
        %v3955 = vadd.f32 0.0, %v3954
        %3956 = vmatmul.f32.gmra.mxu0 %v3842
        %v3957 = vpop.f32.mrf.mxu0
        %v3958 = vadd.f32 0.0, %v3957
        %3959 = vmatmul.f32.gmra.mxu0 %v3845
        %v3960 = vpop.f32.mrf.mxu0
        %v3961 = vadd.f32 0.0, %v3960
        %3962 = vmatmul.f32.gmra.mxu0 %v3848
        %v3963 = vpop.f32.mrf.mxu0
        %v3964 = vadd.f32 0.0, %v3963
        %3965 = vmatmul.f32.gmra.mxu0 %v3851
        %v3966 = vpop.f32.mrf.mxu0
        %v3967 = vadd.f32 0.0, %v3966
        %3968 = vmatmul.f32.gmra.mxu0 %v3854
        %v3969 = vpop.f32.mrf.mxu0
        %v3970 = vadd.f32 0.0, %v3969
        %3971 = vdwg.mxu0
        %v3973 = vsel %vm553, %v3693, 0
        %v3976 = vsel %vm553, %v3694, 0
        %v3979 = vsel %vm553, %v3695, 0
        %v3982 = vsel %vm553, %v3696, 0
        %v3985 = vsel %vm553, %v3697, 0
        %v3988 = vsel %vm553, %v3698, 0
        %v3991 = vsel %vm553, %v3699, 0
        %v3994 = vsel %vm553, %v3700, 0
        %v3997 = vsel %vm553, %v3701, 0
        %v4000 = vsel %vm553, %v3702, 0
        %v4003 = vsel %vm553, %v3703, 0
        %v4006 = vsel %vm553, %v3704, 0
        %v4009 = vsel %vm553, %v3705, 0
        %v4012 = vsel %vm553, %v3706, 0
        %v4015 = vsel %vm553, %v3707, 0
        %v4018 = vsel %vm553, %v3708, 0
        %v4021 = vsel %vm553, %v3709, 0
        %v4024 = vsel %vm553, %v3710, 0
        %v4027 = vsel %vm553, %v3711, 0
        %v4030 = vsel %vm553, %v3712, 0
        %v4033 = vsel %vm553, %v3713, 0
        %v4036 = vsel %vm553, %v3714, 0
        %v4039 = vsel %vm553, %v3715, 0
        %v4042 = vsel %vm553, %v3716, 0
        %v4045 = vsel %vm553, %v3717, 0
        %v4048 = vsel %vm553, %v3718, 0
        %v4051 = vsel %vm553, %v3719, 0
        %v4054 = vsel %vm553, %v3720, 0
        %v4057 = vsel %vm553, %v3721, 0
        %v4060 = vsel %vm553, %v3722, 0
        %v4063 = vsel %vm553, %v3723, 0
        %v4066 = vsel %vm553, %v3724, 0
        %v4069 = vsel %vm650, %v3725, 0
        %4071 = vmatpush.msra.mxu0 0.0
        %4072 = vmatpush.msra.mxu0 0.0
        %4073 = vmatpush.msra.mxu0 0.0
        %4074 = vmatpush.msra.mxu0 0.0
        %4075 = vmatpush.msra.mxu0 0.0
        %4076 = vmatpush.msra.mxu0 0.0
        %4077 = vmatpush.msra.mxu0 0.0
        %4078 = vmatpush.msra.mxu0 0.0
        %4079 = vmatpush.msra.mxu0 0.0
        %4080 = vmatpush.msra.mxu0 0.0
        %4081 = vmatpush.msra.mxu0 0.0
        %4082 = vmatpush.msra.mxu0 0.0
        %4083 = vmatpush.msra.mxu0 0.0
        %4084 = vmatpush.msra.mxu0 0.0
        %4085 = vmatpush.msra.mxu0 0.0
        %4086 = vmatpush.msra.mxu0 %v4069
        %4087 = vmatmul.f32.gmra.mxu0 %v3973
        %v4088 = vpop.f32.mrf.mxu0
        %v4089 = vadd.f32 %v3877, %v4088
        %4090 = vmatmul.f32.gmra.mxu0 %v3976
        %v4091 = vpop.f32.mrf.mxu0
        %v4092 = vadd.f32 %v3880, %v4091
        %4093 = vmatmul.f32.gmra.mxu0 %v3979
        %v4094 = vpop.f32.mrf.mxu0
        %v4095 = vadd.f32 %v3883, %v4094
        %4096 = vmatmul.f32.gmra.mxu0 %v3982
        %v4097 = vpop.f32.mrf.mxu0
        %v4098 = vadd.f32 %v3886, %v4097
        %4099 = vmatmul.f32.gmra.mxu0 %v3985
        %v4100 = vpop.f32.mrf.mxu0
        %v4101 = vadd.f32 %v3889, %v4100
        %4102 = vmatmul.f32.gmra.mxu0 %v3988
        %v4103 = vpop.f32.mrf.mxu0
        %v4104 = vadd.f32 %v3892, %v4103
        %4105 = vmatmul.f32.gmra.mxu0 %v3991
        %v4106 = vpop.f32.mrf.mxu0
        %v4107 = vadd.f32 %v3895, %v4106
        %4108 = vmatmul.f32.gmra.mxu0 %v3994
        %v4109 = vpop.f32.mrf.mxu0
        %v4110 = vadd.f32 %v3898, %v4109
        %4111 = vmatmul.f32.gmra.mxu0 %v3997
        %v4112 = vpop.f32.mrf.mxu0
        %v4113 = vadd.f32 %v3901, %v4112
        %4114 = vmatmul.f32.gmra.mxu0 %v4000
        %v4115 = vpop.f32.mrf.mxu0
        %v4116 = vadd.f32 %v3904, %v4115
        %4117 = vmatmul.f32.gmra.mxu0 %v4003
        %v4118 = vpop.f32.mrf.mxu0
        %v4119 = vadd.f32 %v3907, %v4118
        %4120 = vmatmul.f32.gmra.mxu0 %v4006
        %v4121 = vpop.f32.mrf.mxu0
        %v4122 = vadd.f32 %v3910, %v4121
        %4123 = vmatmul.f32.gmra.mxu0 %v4009
        %v4124 = vpop.f32.mrf.mxu0
        %v4125 = vadd.f32 %v3913, %v4124
        %4126 = vmatmul.f32.gmra.mxu0 %v4012
        %v4127 = vpop.f32.mrf.mxu0
        %v4128 = vadd.f32 %v3916, %v4127
        %4129 = vmatmul.f32.gmra.mxu0 %v4015
        %v4130 = vpop.f32.mrf.mxu0
        %v4131 = vadd.f32 %v3919, %v4130
        %4132 = vmatmul.f32.gmra.mxu0 %v4018
        %v4133 = vpop.f32.mrf.mxu0
        %v4134 = vadd.f32 %v3922, %v4133
        %4135 = vmatmul.f32.gmra.mxu0 %v4021
        %v4136 = vpop.f32.mrf.mxu0
        %v4137 = vadd.f32 %v3925, %v4136
        %4138 = vmatmul.f32.gmra.mxu0 %v4024
        %v4139 = vpop.f32.mrf.mxu0
        %v4140 = vadd.f32 %v3928, %v4139
        %4141 = vmatmul.f32.gmra.mxu0 %v4027
        %v4142 = vpop.f32.mrf.mxu0
        %v4143 = vadd.f32 %v3931, %v4142
        %4144 = vmatmul.f32.gmra.mxu0 %v4030
        %v4145 = vpop.f32.mrf.mxu0
        %v4146 = vadd.f32 %v3934, %v4145
        %4147 = vmatmul.f32.gmra.mxu0 %v4033
        %v4148 = vpop.f32.mrf.mxu0
        %v4149 = vadd.f32 %v3937, %v4148
        %4150 = vmatmul.f32.gmra.mxu0 %v4036
        %v4151 = vpop.f32.mrf.mxu0
        %v4152 = vadd.f32 %v3940, %v4151
        %4153 = vmatmul.f32.gmra.mxu0 %v4039
        %v4154 = vpop.f32.mrf.mxu0
        %v4155 = vadd.f32 %v3943, %v4154
        %4156 = vmatmul.f32.gmra.mxu0 %v4042
        %v4157 = vpop.f32.mrf.mxu0
        %v4158 = vadd.f32 %v3946, %v4157
        %4159 = vmatmul.f32.gmra.mxu0 %v4045
        %v4160 = vpop.f32.mrf.mxu0
        %v4161 = vadd.f32 %v3949, %v4160
        %4162 = vmatmul.f32.gmra.mxu0 %v4048
        %v4163 = vpop.f32.mrf.mxu0
        %v4164 = vadd.f32 %v3952, %v4163
        %4165 = vmatmul.f32.gmra.mxu0 %v4051
        %v4166 = vpop.f32.mrf.mxu0
        %v4167 = vadd.f32 %v3955, %v4166
        %4168 = vmatmul.f32.gmra.mxu0 %v4054
        %v4169 = vpop.f32.mrf.mxu0
        %v4170 = vadd.f32 %v3958, %v4169
        %4171 = vmatmul.f32.gmra.mxu0 %v4057
        %v4172 = vpop.f32.mrf.mxu0
        %v4173 = vadd.f32 %v3961, %v4172
        %4174 = vmatmul.f32.gmra.mxu0 %v4060
        %v4175 = vpop.f32.mrf.mxu0
        %v4176 = vadd.f32 %v3964, %v4175
        %4177 = vmatmul.f32.gmra.mxu0 %v4063
        %v4178 = vpop.f32.mrf.mxu0
        %v4179 = vadd.f32 %v3967, %v4178
        %4180 = vmatmul.f32.gmra.mxu0 %v4066
        %v4181 = vpop.f32.mrf.mxu0
        %v4182 = vadd.f32 %v3970, %v4181
        %4183 = vdwg.mxu0
        %v4184 = vld [vmem:[#allocation2 + $0x2] sm:$0xff]
        %v4185 = vld [vmem:[#allocation2 + $0xa] sm:$0xff]
        %v4186 = vld [vmem:[#allocation2 + $0x1a] sm:$0xff]
        %v4187 = vld [vmem:[#allocation2 + $0x22] sm:$0xff]
        %v4188 = vld [vmem:[#allocation2 + $0x32] sm:$0xff]
        %v4189 = vld [vmem:[#allocation2 + $0x3a] sm:$0xff]
        %v4190 = vld [vmem:[#allocation2 + $0x4a] sm:$0xff]
        %v4191 = vld [vmem:[#allocation2 + $0x52] sm:$0xff]
        %v4192 = vld [vmem:[#allocation2 + $0x62] sm:$0xff]
        %v4193 = vld [vmem:[#allocation2 + $0x6a] sm:$0xff]
        %v4194 = vld [vmem:[#allocation2 + $0x7a] sm:$0xff]
        %v4195 = vld [vmem:[#allocation2 + $0x82] sm:$0xff]
        %v4196 = vld [vmem:[#allocation2 + $0x92] sm:$0xff]
        %v4197 = vld [vmem:[#allocation2 + $0x9a] sm:$0xff]
        %v4198 = vld [vmem:[#allocation2 + $0xaa] sm:$0xff]
        %v4199 = vld [vmem:[#allocation2 + $0xb2] sm:$0xff]
        %v4200 = vld [vmem:[#allocation2 + $0xc2] sm:$0xff]
        %v4201 = vld [vmem:[#allocation2 + $0xca] sm:$0xff]
        %v4202 = vld [vmem:[#allocation2 + $0xda] sm:$0xff]
        %v4203 = vld [vmem:[#allocation2 + $0xe2] sm:$0xff]
        %v4204 = vld [vmem:[#allocation2 + $0xf2] sm:$0xff]
        %v4205 = vld [vmem:[#allocation2 + $0xfa] sm:$0xff]
        %v4206 = vld [vmem:[#allocation2 + $0x10a] sm:$0xff]
        %v4207 = vld [vmem:[#allocation2 + $0x112] sm:$0xff]
        %v4208 = vld [vmem:[#allocation2 + $0x122] sm:$0xff]
        %v4209 = vld [vmem:[#allocation2 + $0x12a] sm:$0xff]
        %v4210 = vld [vmem:[#allocation2 + $0x13a] sm:$0xff]
        %v4211 = vld [vmem:[#allocation2 + $0x142] sm:$0xff]
        %v4212 = vld [vmem:[#allocation2 + $0x152] sm:$0xff]
        %v4213 = vld [vmem:[#allocation2 + $0x15a] sm:$0xff]
        %v4214 = vld [vmem:[#allocation2 + $0x16a] sm:$0xff]
        %v4215 = vld [vmem:[#allocation2 + $0x172] sm:$0xff]
        %s4216 = scalar_lea.vmem %s7, 8
        %v4217 = vld [vmem:[%s4216] sm:$0xf]
        %v4219 = vsel %vm553, %v4184, 0
        %v4222 = vsel %vm553, %v4185, 0
        %v4225 = vsel %vm553, %v4186, 0
        %v4228 = vsel %vm553, %v4187, 0
        %v4231 = vsel %vm553, %v4188, 0
        %v4234 = vsel %vm553, %v4189, 0
        %v4237 = vsel %vm553, %v4190, 0
        %v4240 = vsel %vm553, %v4191, 0
        %v4243 = vsel %vm553, %v4192, 0
        %v4246 = vsel %vm553, %v4193, 0
        %v4249 = vsel %vm553, %v4194, 0
        %v4252 = vsel %vm553, %v4195, 0
        %v4255 = vsel %vm553, %v4196, 0
        %v4258 = vsel %vm553, %v4197, 0
        %v4261 = vsel %vm553, %v4198, 0
        %v4264 = vsel %vm553, %v4199, 0
        %v4267 = vsel %vm553, %v4200, 0
        %v4270 = vsel %vm553, %v4201, 0
        %v4273 = vsel %vm553, %v4202, 0
        %v4276 = vsel %vm553, %v4203, 0
        %v4279 = vsel %vm553, %v4204, 0
        %v4282 = vsel %vm553, %v4205, 0
        %v4285 = vsel %vm553, %v4206, 0
        %v4288 = vsel %vm553, %v4207, 0
        %v4291 = vsel %vm553, %v4208, 0
        %v4294 = vsel %vm553, %v4209, 0
        %v4297 = vsel %vm553, %v4210, 0
        %v4300 = vsel %vm553, %v4211, 0
        %v4303 = vsel %vm553, %v4212, 0
        %v4306 = vsel %vm553, %v4213, 0
        %v4309 = vsel %vm553, %v4214, 0
        %v4312 = vsel %vm553, %v4215, 0
        %v4315 = vsel %vm650, %v4217, 0
        %4317 = vmatpush.msra.mxu0 0.0
        %4318 = vmatpush.msra.mxu0 0.0
        %4319 = vmatpush.msra.mxu0 0.0
        %4320 = vmatpush.msra.mxu0 0.0
        %4321 = vmatpush.msra.mxu0 0.0
        %4322 = vmatpush.msra.mxu0 0.0
        %4323 = vmatpush.msra.mxu0 0.0
        %4324 = vmatpush.msra.mxu0 0.0
        %4325 = vmatpush.msra.mxu0 0.0
        %4326 = vmatpush.msra.mxu0 0.0
        %4327 = vmatpush.msra.mxu0 0.0
        %4328 = vmatpush.msra.mxu0 0.0
        %4329 = vmatpush.msra.mxu0 0.0
        %4330 = vmatpush.msra.mxu0 0.0
        %4331 = vmatpush.msra.mxu0 0.0
        %4332 = vmatpush.msra.mxu0 %v4315
        %4333 = vmatmul.f32.gmra.mxu0 %v4219
        %v4334 = vpop.f32.mrf.mxu0
        %v4335 = vadd.f32 0.0, %v4334
        %4336 = vmatmul.f32.gmra.mxu0 %v4222
        %v4337 = vpop.f32.mrf.mxu0
        %v4338 = vadd.f32 0.0, %v4337
        %4339 = vmatmul.f32.gmra.mxu0 %v4225
        %v4340 = vpop.f32.mrf.mxu0
        %v4341 = vadd.f32 0.0, %v4340
        %4342 = vmatmul.f32.gmra.mxu0 %v4228
        %v4343 = vpop.f32.mrf.mxu0
        %v4344 = vadd.f32 0.0, %v4343
        %4345 = vmatmul.f32.gmra.mxu0 %v4231
        %v4346 = vpop.f32.mrf.mxu0
        %v4347 = vadd.f32 0.0, %v4346
        %4348 = vmatmul.f32.gmra.mxu0 %v4234
        %v4349 = vpop.f32.mrf.mxu0
        %v4350 = vadd.f32 0.0, %v4349
        %4351 = vmatmul.f32.gmra.mxu0 %v4237
        %v4352 = vpop.f32.mrf.mxu0
        %v4353 = vadd.f32 0.0, %v4352
        %4354 = vmatmul.f32.gmra.mxu0 %v4240
        %v4355 = vpop.f32.mrf.mxu0
        %v4356 = vadd.f32 0.0, %v4355
        %4357 = vmatmul.f32.gmra.mxu0 %v4243
        %v4358 = vpop.f32.mrf.mxu0
        %v4359 = vadd.f32 0.0, %v4358
        %4360 = vmatmul.f32.gmra.mxu0 %v4246
        %v4361 = vpop.f32.mrf.mxu0
        %v4362 = vadd.f32 0.0, %v4361
        %4363 = vmatmul.f32.gmra.mxu0 %v4249
        %v4364 = vpop.f32.mrf.mxu0
        %v4365 = vadd.f32 0.0, %v4364
        %4366 = vmatmul.f32.gmra.mxu0 %v4252
        %v4367 = vpop.f32.mrf.mxu0
        %v4368 = vadd.f32 0.0, %v4367
        %4369 = vmatmul.f32.gmra.mxu0 %v4255
        %v4370 = vpop.f32.mrf.mxu0
        %v4371 = vadd.f32 0.0, %v4370
        %4372 = vmatmul.f32.gmra.mxu0 %v4258
        %v4373 = vpop.f32.mrf.mxu0
        %v4374 = vadd.f32 0.0, %v4373
        %4375 = vmatmul.f32.gmra.mxu0 %v4261
        %v4376 = vpop.f32.mrf.mxu0
        %v4377 = vadd.f32 0.0, %v4376
        %4378 = vmatmul.f32.gmra.mxu0 %v4264
        %v4379 = vpop.f32.mrf.mxu0
        %v4380 = vadd.f32 0.0, %v4379
        %4381 = vmatmul.f32.gmra.mxu0 %v4267
        %v4382 = vpop.f32.mrf.mxu0
        %v4383 = vadd.f32 0.0, %v4382
        %4384 = vmatmul.f32.gmra.mxu0 %v4270
        %v4385 = vpop.f32.mrf.mxu0
        %v4386 = vadd.f32 0.0, %v4385
        %4387 = vmatmul.f32.gmra.mxu0 %v4273
        %v4388 = vpop.f32.mrf.mxu0
        %v4389 = vadd.f32 0.0, %v4388
        %4390 = vmatmul.f32.gmra.mxu0 %v4276
        %v4391 = vpop.f32.mrf.mxu0
        %v4392 = vadd.f32 0.0, %v4391
        %4393 = vmatmul.f32.gmra.mxu0 %v4279
        %v4394 = vpop.f32.mrf.mxu0
        %v4395 = vadd.f32 0.0, %v4394
        %4396 = vmatmul.f32.gmra.mxu0 %v4282
        %v4397 = vpop.f32.mrf.mxu0
        %v4398 = vadd.f32 0.0, %v4397
        %4399 = vmatmul.f32.gmra.mxu0 %v4285
        %v4400 = vpop.f32.mrf.mxu0
        %v4401 = vadd.f32 0.0, %v4400
        %4402 = vmatmul.f32.gmra.mxu0 %v4288
        %v4403 = vpop.f32.mrf.mxu0
        %v4404 = vadd.f32 0.0, %v4403
        %4405 = vmatmul.f32.gmra.mxu0 %v4291
        %v4406 = vpop.f32.mrf.mxu0
        %v4407 = vadd.f32 0.0, %v4406
        %4408 = vmatmul.f32.gmra.mxu0 %v4294
        %v4409 = vpop.f32.mrf.mxu0
        %v4410 = vadd.f32 0.0, %v4409
        %4411 = vmatmul.f32.gmra.mxu0 %v4297
        %v4412 = vpop.f32.mrf.mxu0
        %v4413 = vadd.f32 0.0, %v4412
        %4414 = vmatmul.f32.gmra.mxu0 %v4300
        %v4415 = vpop.f32.mrf.mxu0
        %v4416 = vadd.f32 0.0, %v4415
        %4417 = vmatmul.f32.gmra.mxu0 %v4303
        %v4418 = vpop.f32.mrf.mxu0
        %v4419 = vadd.f32 0.0, %v4418
        %4420 = vmatmul.f32.gmra.mxu0 %v4306
        %v4421 = vpop.f32.mrf.mxu0
        %v4422 = vadd.f32 0.0, %v4421
        %4423 = vmatmul.f32.gmra.mxu0 %v4309
        %v4424 = vpop.f32.mrf.mxu0
        %v4425 = vadd.f32 0.0, %v4424
        %4426 = vmatmul.f32.gmra.mxu0 %v4312
        %v4427 = vpop.f32.mrf.mxu0
        %v4428 = vadd.f32 0.0, %v4427
        %4429 = vdwg.mxu0
        %v4430 = vadd.f32 %v4089, %v4335
        %v4431 = vadd.f32 %v4092, %v4338
        %v4432 = vadd.f32 %v4095, %v4341
        %v4433 = vadd.f32 %v4098, %v4344
        %v4434 = vadd.f32 %v4101, %v4347
        %v4435 = vadd.f32 %v4104, %v4350
        %v4436 = vadd.f32 %v4107, %v4353
        %v4437 = vadd.f32 %v4110, %v4356
        %v4438 = vadd.f32 %v4113, %v4359
        %v4439 = vadd.f32 %v4116, %v4362
        %v4440 = vadd.f32 %v4119, %v4365
        %v4441 = vadd.f32 %v4122, %v4368
        %v4442 = vadd.f32 %v4125, %v4371
        %v4443 = vadd.f32 %v4128, %v4374
        %v4444 = vadd.f32 %v4131, %v4377
        %v4445 = vadd.f32 %v4134, %v4380
        %v4446 = vadd.f32 %v4137, %v4383
        %v4447 = vadd.f32 %v4140, %v4386
        %v4448 = vadd.f32 %v4143, %v4389
        %v4449 = vadd.f32 %v4146, %v4392
        %v4450 = vadd.f32 %v4149, %v4395
        %v4451 = vadd.f32 %v4152, %v4398
        %v4452 = vadd.f32 %v4155, %v4401
        %v4453 = vadd.f32 %v4158, %v4404
        %v4454 = vadd.f32 %v4161, %v4407
        %v4455 = vadd.f32 %v4164, %v4410
        %v4456 = vadd.f32 %v4167, %v4413
        %v4457 = vadd.f32 %v4170, %v4416
        %v4458 = vadd.f32 %v4173, %v4419
        %v4459 = vadd.f32 %v4176, %v4422
        %v4460 = vadd.f32 %v4179, %v4425
        %v4461 = vadd.f32 %v4182, %v4428
        %v4462 = vld [vmem:[%s916] sm:$0xff]
        %v4463 = vld [vmem:[%s916 + $0x8] sm:$0xff]
        %v4464 = vld [vmem:[%s916 + $0x18] sm:$0xff]
        %v4465 = vld [vmem:[%s916 + $0x20] sm:$0xff]
        %v4466 = vld [vmem:[%s916 + $0x30] sm:$0xff]
        %v4467 = vld [vmem:[%s916 + $0x38] sm:$0xff]
        %v4468 = vld [vmem:[%s916 + $0x48] sm:$0xff]
        %v4469 = vld [vmem:[%s916 + $0x50] sm:$0xff]
        %v4470 = vld [vmem:[%s916 + $0x60] sm:$0xff]
        %v4471 = vld [vmem:[%s916 + $0x68] sm:$0xff]
        %v4472 = vld [vmem:[%s916 + $0x78] sm:$0xff]
        %v4473 = vld [vmem:[%s916 + $0x80] sm:$0xff]
        %v4474 = vld [vmem:[%s916 + $0x90] sm:$0xff]
        %v4475 = vld [vmem:[%s916 + $0x98] sm:$0xff]
        %v4476 = vld [vmem:[%s916 + $0xa8] sm:$0xff]
        %v4477 = vld [vmem:[%s916 + $0xb0] sm:$0xff]
        %v4478 = vld [vmem:[%s916 + $0xc0] sm:$0xff]
        %v4479 = vld [vmem:[%s916 + $0xc8] sm:$0xff]
        %v4480 = vld [vmem:[%s916 + $0xd8] sm:$0xff]
        %v4481 = vld [vmem:[%s916 + $0xe0] sm:$0xff]
        %v4482 = vld [vmem:[%s916 + $0xf0] sm:$0xff]
        %v4483 = vld [vmem:[%s916 + $0xf8] sm:$0xff]
        %v4484 = vld [vmem:[%s916 + $0x108] sm:$0xff]
        %v4485 = vld [vmem:[%s916 + $0x110] sm:$0xff]
        %v4486 = vld [vmem:[%s916 + $0x120] sm:$0xff]
        %v4487 = vld [vmem:[%s916 + $0x128] sm:$0xff]
        %v4488 = vld [vmem:[%s916 + $0x138] sm:$0xff]
        %v4489 = vld [vmem:[%s916 + $0x140] sm:$0xff]
        %v4490 = vld [vmem:[%s916 + $0x150] sm:$0xff]
        %v4491 = vld [vmem:[%s916 + $0x158] sm:$0xff]
        %v4492 = vld [vmem:[%s916 + $0x168] sm:$0xff]
        %v4493 = vld [vmem:[%s916 + $0x170] sm:$0xff]
        %s4494 = scalar_lea.vmem %s7, 12
        %v4495 = vld [vmem:[%s4494] sm:$0xf]
        %v4497 = vsel %vm553, %v4462, 0
        %v4500 = vsel %vm553, %v4463, 0
        %v4503 = vsel %vm553, %v4464, 0
        %v4506 = vsel %vm553, %v4465, 0
        %v4509 = vsel %vm553, %v4466, 0
        %v4512 = vsel %vm553, %v4467, 0
        %v4515 = vsel %vm553, %v4468, 0
        %v4518 = vsel %vm553, %v4469, 0
        %v4521 = vsel %vm553, %v4470, 0
        %v4524 = vsel %vm553, %v4471, 0
        %v4527 = vsel %vm553, %v4472, 0
        %v4530 = vsel %vm553, %v4473, 0
        %v4533 = vsel %vm553, %v4474, 0
        %v4536 = vsel %vm553, %v4475, 0
        %v4539 = vsel %vm553, %v4476, 0
        %v4542 = vsel %vm553, %v4477, 0
        %v4545 = vsel %vm553, %v4478, 0
        %v4548 = vsel %vm553, %v4479, 0
        %v4551 = vsel %vm553, %v4480, 0
        %v4554 = vsel %vm553, %v4481, 0
        %v4557 = vsel %vm553, %v4482, 0
        %v4560 = vsel %vm553, %v4483, 0
        %v4563 = vsel %vm553, %v4484, 0
        %v4566 = vsel %vm553, %v4485, 0
        %v4569 = vsel %vm553, %v4486, 0
        %v4572 = vsel %vm553, %v4487, 0
        %v4575 = vsel %vm553, %v4488, 0
        %v4578 = vsel %vm553, %v4489, 0
        %v4581 = vsel %vm553, %v4490, 0
        %v4584 = vsel %vm553, %v4491, 0
        %v4587 = vsel %vm553, %v4492, 0
        %v4590 = vsel %vm553, %v4493, 0
        %v4593 = vsel %vm650, %v4495, 0
        %4595 = vmatpush.msra.mxu0 0.0
        %4596 = vmatpush.msra.mxu0 0.0
        %4597 = vmatpush.msra.mxu0 0.0
        %4598 = vmatpush.msra.mxu0 0.0
        %4599 = vmatpush.msra.mxu0 0.0
        %4600 = vmatpush.msra.mxu0 0.0
        %4601 = vmatpush.msra.mxu0 0.0
        %4602 = vmatpush.msra.mxu0 0.0
        %4603 = vmatpush.msra.mxu0 0.0
        %4604 = vmatpush.msra.mxu0 0.0
        %4605 = vmatpush.msra.mxu0 0.0
        %4606 = vmatpush.msra.mxu0 0.0
        %4607 = vmatpush.msra.mxu0 0.0
        %4608 = vmatpush.msra.mxu0 0.0
        %4609 = vmatpush.msra.mxu0 0.0
        %4610 = vmatpush.msra.mxu0 %v4593
        %4611 = vmatmul.f32.gmra.mxu0 %v4497
        %v4612 = vpop.f32.mrf.mxu0
        %v4613 = vadd.f32 0.0, %v4612
        %4614 = vmatmul.f32.gmra.mxu0 %v4500
        %v4615 = vpop.f32.mrf.mxu0
        %v4616 = vadd.f32 0.0, %v4615
        %4617 = vmatmul.f32.gmra.mxu0 %v4503
        %v4618 = vpop.f32.mrf.mxu0
        %v4619 = vadd.f32 0.0, %v4618
        %4620 = vmatmul.f32.gmra.mxu0 %v4506
        %v4621 = vpop.f32.mrf.mxu0
        %v4622 = vadd.f32 0.0, %v4621
        %4623 = vmatmul.f32.gmra.mxu0 %v4509
        %v4624 = vpop.f32.mrf.mxu0
        %v4625 = vadd.f32 0.0, %v4624
        %4626 = vmatmul.f32.gmra.mxu0 %v4512
        %v4627 = vpop.f32.mrf.mxu0
        %v4628 = vadd.f32 0.0, %v4627
        %4629 = vmatmul.f32.gmra.mxu0 %v4515
        %v4630 = vpop.f32.mrf.mxu0
        %v4631 = vadd.f32 0.0, %v4630
        %4632 = vmatmul.f32.gmra.mxu0 %v4518
        %v4633 = vpop.f32.mrf.mxu0
        %v4634 = vadd.f32 0.0, %v4633
        %4635 = vmatmul.f32.gmra.mxu0 %v4521
        %v4636 = vpop.f32.mrf.mxu0
        %v4637 = vadd.f32 0.0, %v4636
        %4638 = vmatmul.f32.gmra.mxu0 %v4524
        %v4639 = vpop.f32.mrf.mxu0
        %v4640 = vadd.f32 0.0, %v4639
        %4641 = vmatmul.f32.gmra.mxu0 %v4527
        %v4642 = vpop.f32.mrf.mxu0
        %v4643 = vadd.f32 0.0, %v4642
        %4644 = vmatmul.f32.gmra.mxu0 %v4530
        %v4645 = vpop.f32.mrf.mxu0
        %v4646 = vadd.f32 0.0, %v4645
        %4647 = vmatmul.f32.gmra.mxu0 %v4533
        %v4648 = vpop.f32.mrf.mxu0
        %v4649 = vadd.f32 0.0, %v4648
        %4650 = vmatmul.f32.gmra.mxu0 %v4536
        %v4651 = vpop.f32.mrf.mxu0
        %v4652 = vadd.f32 0.0, %v4651
        %4653 = vmatmul.f32.gmra.mxu0 %v4539
        %v4654 = vpop.f32.mrf.mxu0
        %v4655 = vadd.f32 0.0, %v4654
        %4656 = vmatmul.f32.gmra.mxu0 %v4542
        %v4657 = vpop.f32.mrf.mxu0
        %v4658 = vadd.f32 0.0, %v4657
        %4659 = vmatmul.f32.gmra.mxu0 %v4545
        %v4660 = vpop.f32.mrf.mxu0
        %v4661 = vadd.f32 0.0, %v4660
        %4662 = vmatmul.f32.gmra.mxu0 %v4548
        %v4663 = vpop.f32.mrf.mxu0
        %v4664 = vadd.f32 0.0, %v4663
        %4665 = vmatmul.f32.gmra.mxu0 %v4551
        %v4666 = vpop.f32.mrf.mxu0
        %v4667 = vadd.f32 0.0, %v4666
        %4668 = vmatmul.f32.gmra.mxu0 %v4554
        %v4669 = vpop.f32.mrf.mxu0
        %v4670 = vadd.f32 0.0, %v4669
        %4671 = vmatmul.f32.gmra.mxu0 %v4557
        %v4672 = vpop.f32.mrf.mxu0
        %v4673 = vadd.f32 0.0, %v4672
        %4674 = vmatmul.f32.gmra.mxu0 %v4560
        %v4675 = vpop.f32.mrf.mxu0
        %v4676 = vadd.f32 0.0, %v4675
        %4677 = vmatmul.f32.gmra.mxu0 %v4563
        %v4678 = vpop.f32.mrf.mxu0
        %v4679 = vadd.f32 0.0, %v4678
        %4680 = vmatmul.f32.gmra.mxu0 %v4566
        %v4681 = vpop.f32.mrf.mxu0
        %v4682 = vadd.f32 0.0, %v4681
        %4683 = vmatmul.f32.gmra.mxu0 %v4569
        %v4684 = vpop.f32.mrf.mxu0
        %v4685 = vadd.f32 0.0, %v4684
        %4686 = vmatmul.f32.gmra.mxu0 %v4572
        %v4687 = vpop.f32.mrf.mxu0
        %v4688 = vadd.f32 0.0, %v4687
        %4689 = vmatmul.f32.gmra.mxu0 %v4575
        %v4690 = vpop.f32.mrf.mxu0
        %v4691 = vadd.f32 0.0, %v4690
        %4692 = vmatmul.f32.gmra.mxu0 %v4578
        %v4693 = vpop.f32.mrf.mxu0
        %v4694 = vadd.f32 0.0, %v4693
        %4695 = vmatmul.f32.gmra.mxu0 %v4581
        %v4696 = vpop.f32.mrf.mxu0
        %v4697 = vadd.f32 0.0, %v4696
        %4698 = vmatmul.f32.gmra.mxu0 %v4584
        %v4699 = vpop.f32.mrf.mxu0
        %v4700 = vadd.f32 0.0, %v4699
        %4701 = vmatmul.f32.gmra.mxu0 %v4587
        %v4702 = vpop.f32.mrf.mxu0
        %v4703 = vadd.f32 0.0, %v4702
        %4704 = vmatmul.f32.gmra.mxu0 %v4590
        %v4705 = vpop.f32.mrf.mxu0
        %v4706 = vadd.f32 0.0, %v4705
        %4707 = vdwg.mxu0
        %v4708 = vadd.f32 %v4430, %v4613
        %v4709 = vadd.f32 %v4431, %v4616
        %v4710 = vadd.f32 %v4432, %v4619
        %v4711 = vadd.f32 %v4433, %v4622
        %v4712 = vadd.f32 %v4434, %v4625
        %v4713 = vadd.f32 %v4435, %v4628
        %v4714 = vadd.f32 %v4436, %v4631
        %v4715 = vadd.f32 %v4437, %v4634
        %v4716 = vadd.f32 %v4438, %v4637
        %v4717 = vadd.f32 %v4439, %v4640
        %v4718 = vadd.f32 %v4440, %v4643
        %v4719 = vadd.f32 %v4441, %v4646
        %v4720 = vadd.f32 %v4442, %v4649
        %v4721 = vadd.f32 %v4443, %v4652
        %v4722 = vadd.f32 %v4444, %v4655
        %v4723 = vadd.f32 %v4445, %v4658
        %v4724 = vadd.f32 %v4446, %v4661
        %v4725 = vadd.f32 %v4447, %v4664
        %v4726 = vadd.f32 %v4448, %v4667
        %v4727 = vadd.f32 %v4449, %v4670
        %v4728 = vadd.f32 %v4450, %v4673
        %v4729 = vadd.f32 %v4451, %v4676
        %v4730 = vadd.f32 %v4452, %v4679
        %v4731 = vadd.f32 %v4453, %v4682
        %v4732 = vadd.f32 %v4454, %v4685
        %v4733 = vadd.f32 %v4455, %v4688
        %v4734 = vadd.f32 %v4456, %v4691
        %v4735 = vadd.f32 %v4457, %v4694
        %v4736 = vadd.f32 %v4458, %v4697
        %v4737 = vadd.f32 %v4459, %v4700
        %v4738 = vadd.f32 %v4460, %v4703
        %v4739 = vadd.f32 %v4461, %v4706
        %v4740 = vld [vmem:[%s916 + $0x1] sm:$0xff]
        %v4741 = vld [vmem:[%s916 + $0x9] sm:$0xff]
        %v4742 = vld [vmem:[%s916 + $0x19] sm:$0xff]
        %v4743 = vld [vmem:[%s916 + $0x21] sm:$0xff]
        %v4744 = vld [vmem:[%s916 + $0x31] sm:$0xff]
        %v4745 = vld [vmem:[%s916 + $0x39] sm:$0xff]
        %v4746 = vld [vmem:[%s916 + $0x49] sm:$0xff]
        %v4747 = vld [vmem:[%s916 + $0x51] sm:$0xff]
        %v4748 = vld [vmem:[%s916 + $0x61] sm:$0xff]
        %v4749 = vld [vmem:[%s916 + $0x69] sm:$0xff]
        %v4750 = vld [vmem:[%s916 + $0x79] sm:$0xff]
        %v4751 = vld [vmem:[%s916 + $0x81] sm:$0xff]
        %v4752 = vld [vmem:[%s916 + $0x91] sm:$0xff]
        %v4753 = vld [vmem:[%s916 + $0x99] sm:$0xff]
        %v4754 = vld [vmem:[%s916 + $0xa9] sm:$0xff]
        %v4755 = vld [vmem:[%s916 + $0xb1] sm:$0xff]
        %v4756 = vld [vmem:[%s916 + $0xc1] sm:$0xff]
        %v4757 = vld [vmem:[%s916 + $0xc9] sm:$0xff]
        %v4758 = vld [vmem:[%s916 + $0xd9] sm:$0xff]
        %v4759 = vld [vmem:[%s916 + $0xe1] sm:$0xff]
        %v4760 = vld [vmem:[%s916 + $0xf1] sm:$0xff]
        %v4761 = vld [vmem:[%s916 + $0xf9] sm:$0xff]
        %v4762 = vld [vmem:[%s916 + $0x109] sm:$0xff]
        %v4763 = vld [vmem:[%s916 + $0x111] sm:$0xff]
        %v4764 = vld [vmem:[%s916 + $0x121] sm:$0xff]
        %v4765 = vld [vmem:[%s916 + $0x129] sm:$0xff]
        %v4766 = vld [vmem:[%s916 + $0x139] sm:$0xff]
        %v4767 = vld [vmem:[%s916 + $0x141] sm:$0xff]
        %v4768 = vld [vmem:[%s916 + $0x151] sm:$0xff]
        %v4769 = vld [vmem:[%s916 + $0x159] sm:$0xff]
        %v4770 = vld [vmem:[%s916 + $0x169] sm:$0xff]
        %v4771 = vld [vmem:[%s916 + $0x171] sm:$0xff]
        %s4772 = scalar_lea.vmem %s7, 16
        %v4773 = vld [vmem:[%s4772] sm:$0xf]
        %v4775 = vsel %vm553, %v4740, 0
        %v4778 = vsel %vm553, %v4741, 0
        %v4781 = vsel %vm553, %v4742, 0
        %v4784 = vsel %vm553, %v4743, 0
        %v4787 = vsel %vm553, %v4744, 0
        %v4790 = vsel %vm553, %v4745, 0
        %v4793 = vsel %vm553, %v4746, 0
        %v4796 = vsel %vm553, %v4747, 0
        %v4799 = vsel %vm553, %v4748, 0
        %v4802 = vsel %vm553, %v4749, 0
        %v4805 = vsel %vm553, %v4750, 0
        %v4808 = vsel %vm553, %v4751, 0
        %v4811 = vsel %vm553, %v4752, 0
        %v4814 = vsel %vm553, %v4753, 0
        %v4817 = vsel %vm553, %v4754, 0
        %v4820 = vsel %vm553, %v4755, 0
        %v4823 = vsel %vm553, %v4756, 0
        %v4826 = vsel %vm553, %v4757, 0
        %v4829 = vsel %vm553, %v4758, 0
        %v4832 = vsel %vm553, %v4759, 0
        %v4835 = vsel %vm553, %v4760, 0
        %v4838 = vsel %vm553, %v4761, 0
        %v4841 = vsel %vm553, %v4762, 0
        %v4844 = vsel %vm553, %v4763, 0
        %v4847 = vsel %vm553, %v4764, 0
        %v4850 = vsel %vm553, %v4765, 0
        %v4853 = vsel %vm553, %v4766, 0
        %v4856 = vsel %vm553, %v4767, 0
        %v4859 = vsel %vm553, %v4768, 0
        %v4862 = vsel %vm553, %v4769, 0
        %v4865 = vsel %vm553, %v4770, 0
        %v4868 = vsel %vm553, %v4771, 0
        %v4871 = vsel %vm650, %v4773, 0
        %4873 = vmatpush.msra.mxu0 0.0
        %4874 = vmatpush.msra.mxu0 0.0
        %4875 = vmatpush.msra.mxu0 0.0
        %4876 = vmatpush.msra.mxu0 0.0
        %4877 = vmatpush.msra.mxu0 0.0
        %4878 = vmatpush.msra.mxu0 0.0
        %4879 = vmatpush.msra.mxu0 0.0
        %4880 = vmatpush.msra.mxu0 0.0
        %4881 = vmatpush.msra.mxu0 0.0
        %4882 = vmatpush.msra.mxu0 0.0
        %4883 = vmatpush.msra.mxu0 0.0
        %4884 = vmatpush.msra.mxu0 0.0
        %4885 = vmatpush.msra.mxu0 0.0
        %4886 = vmatpush.msra.mxu0 0.0
        %4887 = vmatpush.msra.mxu0 0.0
        %4888 = vmatpush.msra.mxu0 %v4871
        %4889 = vmatmul.f32.gmra.mxu0 %v4775
        %v4890 = vpop.f32.mrf.mxu0
        %v4891 = vadd.f32 0.0, %v4890
        %4892 = vmatmul.f32.gmra.mxu0 %v4778
        %v4893 = vpop.f32.mrf.mxu0
        %v4894 = vadd.f32 0.0, %v4893
        %4895 = vmatmul.f32.gmra.mxu0 %v4781
        %v4896 = vpop.f32.mrf.mxu0
        %v4897 = vadd.f32 0.0, %v4896
        %4898 = vmatmul.f32.gmra.mxu0 %v4784
        %v4899 = vpop.f32.mrf.mxu0
        %v4900 = vadd.f32 0.0, %v4899
        %4901 = vmatmul.f32.gmra.mxu0 %v4787
        %v4902 = vpop.f32.mrf.mxu0
        %v4903 = vadd.f32 0.0, %v4902
        %4904 = vmatmul.f32.gmra.mxu0 %v4790
        %v4905 = vpop.f32.mrf.mxu0
        %v4906 = vadd.f32 0.0, %v4905
        %4907 = vmatmul.f32.gmra.mxu0 %v4793
        %v4908 = vpop.f32.mrf.mxu0
        %v4909 = vadd.f32 0.0, %v4908
        %4910 = vmatmul.f32.gmra.mxu0 %v4796
        %v4911 = vpop.f32.mrf.mxu0
        %v4912 = vadd.f32 0.0, %v4911
        %4913 = vmatmul.f32.gmra.mxu0 %v4799
        %v4914 = vpop.f32.mrf.mxu0
        %v4915 = vadd.f32 0.0, %v4914
        %4916 = vmatmul.f32.gmra.mxu0 %v4802
        %v4917 = vpop.f32.mrf.mxu0
        %v4918 = vadd.f32 0.0, %v4917
        %4919 = vmatmul.f32.gmra.mxu0 %v4805
        %v4920 = vpop.f32.mrf.mxu0
        %v4921 = vadd.f32 0.0, %v4920
        %4922 = vmatmul.f32.gmra.mxu0 %v4808
        %v4923 = vpop.f32.mrf.mxu0
        %v4924 = vadd.f32 0.0, %v4923
        %4925 = vmatmul.f32.gmra.mxu0 %v4811
        %v4926 = vpop.f32.mrf.mxu0
        %v4927 = vadd.f32 0.0, %v4926
        %4928 = vmatmul.f32.gmra.mxu0 %v4814
        %v4929 = vpop.f32.mrf.mxu0
        %v4930 = vadd.f32 0.0, %v4929
        %4931 = vmatmul.f32.gmra.mxu0 %v4817
        %v4932 = vpop.f32.mrf.mxu0
        %v4933 = vadd.f32 0.0, %v4932
        %4934 = vmatmul.f32.gmra.mxu0 %v4820
        %v4935 = vpop.f32.mrf.mxu0
        %v4936 = vadd.f32 0.0, %v4935
        %4937 = vmatmul.f32.gmra.mxu0 %v4823
        %v4938 = vpop.f32.mrf.mxu0
        %v4939 = vadd.f32 0.0, %v4938
        %4940 = vmatmul.f32.gmra.mxu0 %v4826
        %v4941 = vpop.f32.mrf.mxu0
        %v4942 = vadd.f32 0.0, %v4941
        %4943 = vmatmul.f32.gmra.mxu0 %v4829
        %v4944 = vpop.f32.mrf.mxu0
        %v4945 = vadd.f32 0.0, %v4944
        %4946 = vmatmul.f32.gmra.mxu0 %v4832
        %v4947 = vpop.f32.mrf.mxu0
        %v4948 = vadd.f32 0.0, %v4947
        %4949 = vmatmul.f32.gmra.mxu0 %v4835
        %v4950 = vpop.f32.mrf.mxu0
        %v4951 = vadd.f32 0.0, %v4950
        %4952 = vmatmul.f32.gmra.mxu0 %v4838
        %v4953 = vpop.f32.mrf.mxu0
        %v4954 = vadd.f32 0.0, %v4953
        %4955 = vmatmul.f32.gmra.mxu0 %v4841
        %v4956 = vpop.f32.mrf.mxu0
        %v4957 = vadd.f32 0.0, %v4956
        %4958 = vmatmul.f32.gmra.mxu0 %v4844
        %v4959 = vpop.f32.mrf.mxu0
        %v4960 = vadd.f32 0.0, %v4959
        %4961 = vmatmul.f32.gmra.mxu0 %v4847
        %v4962 = vpop.f32.mrf.mxu0
        %v4963 = vadd.f32 0.0, %v4962
        %4964 = vmatmul.f32.gmra.mxu0 %v4850
        %v4965 = vpop.f32.mrf.mxu0
        %v4966 = vadd.f32 0.0, %v4965
        %4967 = vmatmul.f32.gmra.mxu0 %v4853
        %v4968 = vpop.f32.mrf.mxu0
        %v4969 = vadd.f32 0.0, %v4968
        %4970 = vmatmul.f32.gmra.mxu0 %v4856
        %v4971 = vpop.f32.mrf.mxu0
        %v4972 = vadd.f32 0.0, %v4971
        %4973 = vmatmul.f32.gmra.mxu0 %v4859
        %v4974 = vpop.f32.mrf.mxu0
        %v4975 = vadd.f32 0.0, %v4974
        %4976 = vmatmul.f32.gmra.mxu0 %v4862
        %v4977 = vpop.f32.mrf.mxu0
        %v4978 = vadd.f32 0.0, %v4977
        %4979 = vmatmul.f32.gmra.mxu0 %v4865
        %v4980 = vpop.f32.mrf.mxu0
        %v4981 = vadd.f32 0.0, %v4980
        %4982 = vmatmul.f32.gmra.mxu0 %v4868
        %v4983 = vpop.f32.mrf.mxu0
        %v4984 = vadd.f32 0.0, %v4983
        %4985 = vdwg.mxu0
        %v4986 = vadd.f32 %v4708, %v4891
        %v4987 = vadd.f32 %v4709, %v4894
        %v4988 = vadd.f32 %v4710, %v4897
        %v4989 = vadd.f32 %v4711, %v4900
        %v4990 = vadd.f32 %v4712, %v4903
        %v4991 = vadd.f32 %v4713, %v4906
        %v4992 = vadd.f32 %v4714, %v4909
        %v4993 = vadd.f32 %v4715, %v4912
        %v4994 = vadd.f32 %v4716, %v4915
        %v4995 = vadd.f32 %v4717, %v4918
        %v4996 = vadd.f32 %v4718, %v4921
        %v4997 = vadd.f32 %v4719, %v4924
        %v4998 = vadd.f32 %v4720, %v4927
        %v4999 = vadd.f32 %v4721, %v4930
        %v5000 = vadd.f32 %v4722, %v4933
        %v5001 = vadd.f32 %v4723, %v4936
        %v5002 = vadd.f32 %v4724, %v4939
        %v5003 = vadd.f32 %v4725, %v4942
        %v5004 = vadd.f32 %v4726, %v4945
        %v5005 = vadd.f32 %v4727, %v4948
        %v5006 = vadd.f32 %v4728, %v4951
        %v5007 = vadd.f32 %v4729, %v4954
        %v5008 = vadd.f32 %v4730, %v4957
        %v5009 = vadd.f32 %v4731, %v4960
        %v5010 = vadd.f32 %v4732, %v4963
        %v5011 = vadd.f32 %v4733, %v4966
        %v5012 = vadd.f32 %v4734, %v4969
        %v5013 = vadd.f32 %v4735, %v4972
        %v5014 = vadd.f32 %v4736, %v4975
        %v5015 = vadd.f32 %v4737, %v4978
        %v5016 = vadd.f32 %v4738, %v4981
        %v5017 = vadd.f32 %v4739, %v4984
        %v5018 = vld [vmem:[%s916 + $0x2] sm:$0xff]
        %v5019 = vld [vmem:[%s916 + $0xa] sm:$0xff]
        %v5020 = vld [vmem:[%s916 + $0x1a] sm:$0xff]
        %v5021 = vld [vmem:[%s916 + $0x22] sm:$0xff]
        %v5022 = vld [vmem:[%s916 + $0x32] sm:$0xff]
        %v5023 = vld [vmem:[%s916 + $0x3a] sm:$0xff]
        %v5024 = vld [vmem:[%s916 + $0x4a] sm:$0xff]
        %v5025 = vld [vmem:[%s916 + $0x52] sm:$0xff]
        %v5026 = vld [vmem:[%s916 + $0x62] sm:$0xff]
        %v5027 = vld [vmem:[%s916 + $0x6a] sm:$0xff]
        %v5028 = vld [vmem:[%s916 + $0x7a] sm:$0xff]
        %v5029 = vld [vmem:[%s916 + $0x82] sm:$0xff]
        %v5030 = vld [vmem:[%s916 + $0x92] sm:$0xff]
        %v5031 = vld [vmem:[%s916 + $0x9a] sm:$0xff]
        %v5032 = vld [vmem:[%s916 + $0xaa] sm:$0xff]
        %v5033 = vld [vmem:[%s916 + $0xb2] sm:$0xff]
        %v5034 = vld [vmem:[%s916 + $0xc2] sm:$0xff]
        %v5035 = vld [vmem:[%s916 + $0xca] sm:$0xff]
        %v5036 = vld [vmem:[%s916 + $0xda] sm:$0xff]
        %v5037 = vld [vmem:[%s916 + $0xe2] sm:$0xff]
        %v5038 = vld [vmem:[%s916 + $0xf2] sm:$0xff]
        %v5039 = vld [vmem:[%s916 + $0xfa] sm:$0xff]
        %v5040 = vld [vmem:[%s916 + $0x10a] sm:$0xff]
        %v5041 = vld [vmem:[%s916 + $0x112] sm:$0xff]
        %v5042 = vld [vmem:[%s916 + $0x122] sm:$0xff]
        %v5043 = vld [vmem:[%s916 + $0x12a] sm:$0xff]
        %v5044 = vld [vmem:[%s916 + $0x13a] sm:$0xff]
        %v5045 = vld [vmem:[%s916 + $0x142] sm:$0xff]
        %v5046 = vld [vmem:[%s916 + $0x152] sm:$0xff]
        %v5047 = vld [vmem:[%s916 + $0x15a] sm:$0xff]
        %v5048 = vld [vmem:[%s916 + $0x16a] sm:$0xff]
        %v5049 = vld [vmem:[%s916 + $0x172] sm:$0xff]
        %s5050 = scalar_lea.vmem %s7, 20
        %v5051 = vld [vmem:[%s5050] sm:$0xf]
        %v5053 = vsel %vm553, %v5018, 0
        %v5056 = vsel %vm553, %v5019, 0
        %v5059 = vsel %vm553, %v5020, 0
        %v5062 = vsel %vm553, %v5021, 0
        %v5065 = vsel %vm553, %v5022, 0
        %v5068 = vsel %vm553, %v5023, 0
        %v5071 = vsel %vm553, %v5024, 0
        %v5074 = vsel %vm553, %v5025, 0
        %v5077 = vsel %vm553, %v5026, 0
        %v5080 = vsel %vm553, %v5027, 0
        %v5083 = vsel %vm553, %v5028, 0
        %v5086 = vsel %vm553, %v5029, 0
        %v5089 = vsel %vm553, %v5030, 0
        %v5092 = vsel %vm553, %v5031, 0
        %v5095 = vsel %vm553, %v5032, 0
        %v5098 = vsel %vm553, %v5033, 0
        %v5101 = vsel %vm553, %v5034, 0
        %v5104 = vsel %vm553, %v5035, 0
        %v5107 = vsel %vm553, %v5036, 0
        %v5110 = vsel %vm553, %v5037, 0
        %v5113 = vsel %vm553, %v5038, 0
        %v5116 = vsel %vm553, %v5039, 0
        %v5119 = vsel %vm553, %v5040, 0
        %v5122 = vsel %vm553, %v5041, 0
        %v5125 = vsel %vm553, %v5042, 0
        %v5128 = vsel %vm553, %v5043, 0
        %v5131 = vsel %vm553, %v5044, 0
        %v5134 = vsel %vm553, %v5045, 0
        %v5137 = vsel %vm553, %v5046, 0
        %v5140 = vsel %vm553, %v5047, 0
        %v5143 = vsel %vm553, %v5048, 0
        %v5146 = vsel %vm553, %v5049, 0
        %v5149 = vsel %vm650, %v5051, 0
        %5151 = vmatpush.msra.mxu0 0.0
        %5152 = vmatpush.msra.mxu0 0.0
        %5153 = vmatpush.msra.mxu0 0.0
        %5154 = vmatpush.msra.mxu0 0.0
        %5155 = vmatpush.msra.mxu0 0.0
        %5156 = vmatpush.msra.mxu0 0.0
        %5157 = vmatpush.msra.mxu0 0.0
        %5158 = vmatpush.msra.mxu0 0.0
        %5159 = vmatpush.msra.mxu0 0.0
        %5160 = vmatpush.msra.mxu0 0.0
        %5161 = vmatpush.msra.mxu0 0.0
        %5162 = vmatpush.msra.mxu0 0.0
        %5163 = vmatpush.msra.mxu0 0.0
        %5164 = vmatpush.msra.mxu0 0.0
        %5165 = vmatpush.msra.mxu0 0.0
        %5166 = vmatpush.msra.mxu0 %v5149
        %5167 = vmatmul.f32.gmra.mxu0 %v5053
        %v5168 = vpop.f32.mrf.mxu0
        %v5169 = vadd.f32 0.0, %v5168
        %5170 = vmatmul.f32.gmra.mxu0 %v5056
        %v5171 = vpop.f32.mrf.mxu0
        %v5172 = vadd.f32 0.0, %v5171
        %5173 = vmatmul.f32.gmra.mxu0 %v5059
        %v5174 = vpop.f32.mrf.mxu0
        %v5175 = vadd.f32 0.0, %v5174
        %5176 = vmatmul.f32.gmra.mxu0 %v5062
        %v5177 = vpop.f32.mrf.mxu0
        %v5178 = vadd.f32 0.0, %v5177
        %5179 = vmatmul.f32.gmra.mxu0 %v5065
        %v5180 = vpop.f32.mrf.mxu0
        %v5181 = vadd.f32 0.0, %v5180
        %5182 = vmatmul.f32.gmra.mxu0 %v5068
        %v5183 = vpop.f32.mrf.mxu0
        %v5184 = vadd.f32 0.0, %v5183
        %5185 = vmatmul.f32.gmra.mxu0 %v5071
        %v5186 = vpop.f32.mrf.mxu0
        %v5187 = vadd.f32 0.0, %v5186
        %5188 = vmatmul.f32.gmra.mxu0 %v5074
        %v5189 = vpop.f32.mrf.mxu0
        %v5190 = vadd.f32 0.0, %v5189
        %5191 = vmatmul.f32.gmra.mxu0 %v5077
        %v5192 = vpop.f32.mrf.mxu0
        %v5193 = vadd.f32 0.0, %v5192
        %5194 = vmatmul.f32.gmra.mxu0 %v5080
        %v5195 = vpop.f32.mrf.mxu0
        %v5196 = vadd.f32 0.0, %v5195
        %5197 = vmatmul.f32.gmra.mxu0 %v5083
        %v5198 = vpop.f32.mrf.mxu0
        %v5199 = vadd.f32 0.0, %v5198
        %5200 = vmatmul.f32.gmra.mxu0 %v5086
        %v5201 = vpop.f32.mrf.mxu0
        %v5202 = vadd.f32 0.0, %v5201
        %5203 = vmatmul.f32.gmra.mxu0 %v5089
        %v5204 = vpop.f32.mrf.mxu0
        %v5205 = vadd.f32 0.0, %v5204
        %5206 = vmatmul.f32.gmra.mxu0 %v5092
        %v5207 = vpop.f32.mrf.mxu0
        %v5208 = vadd.f32 0.0, %v5207
        %5209 = vmatmul.f32.gmra.mxu0 %v5095
        %v5210 = vpop.f32.mrf.mxu0
        %v5211 = vadd.f32 0.0, %v5210
        %5212 = vmatmul.f32.gmra.mxu0 %v5098
        %v5213 = vpop.f32.mrf.mxu0
        %v5214 = vadd.f32 0.0, %v5213
        %5215 = vmatmul.f32.gmra.mxu0 %v5101
        %v5216 = vpop.f32.mrf.mxu0
        %v5217 = vadd.f32 0.0, %v5216
        %5218 = vmatmul.f32.gmra.mxu0 %v5104
        %v5219 = vpop.f32.mrf.mxu0
        %v5220 = vadd.f32 0.0, %v5219
        %5221 = vmatmul.f32.gmra.mxu0 %v5107
        %v5222 = vpop.f32.mrf.mxu0
        %v5223 = vadd.f32 0.0, %v5222
        %5224 = vmatmul.f32.gmra.mxu0 %v5110
        %v5225 = vpop.f32.mrf.mxu0
        %v5226 = vadd.f32 0.0, %v5225
        %5227 = vmatmul.f32.gmra.mxu0 %v5113
        %v5228 = vpop.f32.mrf.mxu0
        %v5229 = vadd.f32 0.0, %v5228
        %5230 = vmatmul.f32.gmra.mxu0 %v5116
        %v5231 = vpop.f32.mrf.mxu0
        %v5232 = vadd.f32 0.0, %v5231
        %5233 = vmatmul.f32.gmra.mxu0 %v5119
        %v5234 = vpop.f32.mrf.mxu0
        %v5235 = vadd.f32 0.0, %v5234
        %5236 = vmatmul.f32.gmra.mxu0 %v5122
        %v5237 = vpop.f32.mrf.mxu0
        %v5238 = vadd.f32 0.0, %v5237
        %5239 = vmatmul.f32.gmra.mxu0 %v5125
        %v5240 = vpop.f32.mrf.mxu0
        %v5241 = vadd.f32 0.0, %v5240
        %5242 = vmatmul.f32.gmra.mxu0 %v5128
        %v5243 = vpop.f32.mrf.mxu0
        %v5244 = vadd.f32 0.0, %v5243
        %5245 = vmatmul.f32.gmra.mxu0 %v5131
        %v5246 = vpop.f32.mrf.mxu0
        %v5247 = vadd.f32 0.0, %v5246
        %5248 = vmatmul.f32.gmra.mxu0 %v5134
        %v5249 = vpop.f32.mrf.mxu0
        %v5250 = vadd.f32 0.0, %v5249
        %5251 = vmatmul.f32.gmra.mxu0 %v5137
        %v5252 = vpop.f32.mrf.mxu0
        %v5253 = vadd.f32 0.0, %v5252
        %5254 = vmatmul.f32.gmra.mxu0 %v5140
        %v5255 = vpop.f32.mrf.mxu0
        %v5256 = vadd.f32 0.0, %v5255
        %5257 = vmatmul.f32.gmra.mxu0 %v5143
        %v5258 = vpop.f32.mrf.mxu0
        %v5259 = vadd.f32 0.0, %v5258
        %5260 = vmatmul.f32.gmra.mxu0 %v5146
        %v5261 = vpop.f32.mrf.mxu0
        %v5262 = vadd.f32 0.0, %v5261
        %5263 = vdwg.mxu0
        %v5264 = vadd.f32 %v4986, %v5169
        %v5265 = vadd.f32 %v4987, %v5172
        %v5266 = vadd.f32 %v4988, %v5175
        %v5267 = vadd.f32 %v4989, %v5178
        %v5268 = vadd.f32 %v4990, %v5181
        %v5269 = vadd.f32 %v4991, %v5184
        %v5270 = vadd.f32 %v4992, %v5187
        %v5271 = vadd.f32 %v4993, %v5190
        %v5272 = vadd.f32 %v4994, %v5193
        %v5273 = vadd.f32 %v4995, %v5196
        %v5274 = vadd.f32 %v4996, %v5199
        %v5275 = vadd.f32 %v4997, %v5202
        %v5276 = vadd.f32 %v4998, %v5205
        %v5277 = vadd.f32 %v4999, %v5208
        %v5278 = vadd.f32 %v5000, %v5211
        %v5279 = vadd.f32 %v5001, %v5214
        %v5280 = vadd.f32 %v5002, %v5217
        %v5281 = vadd.f32 %v5003, %v5220
        %v5282 = vadd.f32 %v5004, %v5223
        %v5283 = vadd.f32 %v5005, %v5226
        %v5284 = vadd.f32 %v5006, %v5229
        %v5285 = vadd.f32 %v5007, %v5232
        %v5286 = vadd.f32 %v5008, %v5235
        %v5287 = vadd.f32 %v5009, %v5238
        %v5288 = vadd.f32 %v5010, %v5241
        %v5289 = vadd.f32 %v5011, %v5244
        %v5290 = vadd.f32 %v5012, %v5247
        %v5291 = vadd.f32 %v5013, %v5250
        %v5292 = vadd.f32 %v5014, %v5253
        %v5293 = vadd.f32 %v5015, %v5256
        %v5294 = vadd.f32 %v5016, %v5259
        %v5295 = vadd.f32 %v5017, %v5262
        %v5296 = vld [vmem:[%s2552] sm:$0xff]
        %v5297 = vld [vmem:[%s2552 + $0x8] sm:$0xff]
        %v5298 = vld [vmem:[%s2552 + $0x18] sm:$0xff]
        %v5299 = vld [vmem:[%s2552 + $0x20] sm:$0xff]
        %v5300 = vld [vmem:[%s2552 + $0x30] sm:$0xff]
        %v5301 = vld [vmem:[%s2552 + $0x38] sm:$0xff]
        %v5302 = vld [vmem:[%s2552 + $0x48] sm:$0xff]
        %v5303 = vld [vmem:[%s2552 + $0x50] sm:$0xff]
        %v5304 = vld [vmem:[%s2552 + $0x60] sm:$0xff]
        %v5305 = vld [vmem:[%s2552 + $0x68] sm:$0xff]
        %v5306 = vld [vmem:[%s2552 + $0x78] sm:$0xff]
        %v5307 = vld [vmem:[%s2552 + $0x80] sm:$0xff]
        %v5308 = vld [vmem:[%s2552 + $0x90] sm:$0xff]
        %v5309 = vld [vmem:[%s2552 + $0x98] sm:$0xff]
        %v5310 = vld [vmem:[%s2552 + $0xa8] sm:$0xff]
        %v5311 = vld [vmem:[%s2552 + $0xb0] sm:$0xff]
        %v5312 = vld [vmem:[%s2552 + $0xc0] sm:$0xff]
        %v5313 = vld [vmem:[%s2552 + $0xc8] sm:$0xff]
        %v5314 = vld [vmem:[%s2552 + $0xd8] sm:$0xff]
        %v5315 = vld [vmem:[%s2552 + $0xe0] sm:$0xff]
        %v5316 = vld [vmem:[%s2552 + $0xf0] sm:$0xff]
        %v5317 = vld [vmem:[%s2552 + $0xf8] sm:$0xff]
        %v5318 = vld [vmem:[%s2552 + $0x108] sm:$0xff]
        %v5319 = vld [vmem:[%s2552 + $0x110] sm:$0xff]
        %v5320 = vld [vmem:[%s2552 + $0x120] sm:$0xff]
        %v5321 = vld [vmem:[%s2552 + $0x128] sm:$0xff]
        %v5322 = vld [vmem:[%s2552 + $0x138] sm:$0xff]
        %v5323 = vld [vmem:[%s2552 + $0x140] sm:$0xff]
        %v5324 = vld [vmem:[%s2552 + $0x150] sm:$0xff]
        %v5325 = vld [vmem:[%s2552 + $0x158] sm:$0xff]
        %v5326 = vld [vmem:[%s2552 + $0x168] sm:$0xff]
        %v5327 = vld [vmem:[%s2552 + $0x170] sm:$0xff]
        %s5328 = scalar_lea.vmem %s7, 24
        %v5329 = vld [vmem:[%s5328] sm:$0xf]
        %v5331 = vsel %vm553, %v5296, 0
        %v5334 = vsel %vm553, %v5297, 0
        %v5337 = vsel %vm553, %v5298, 0
        %v5340 = vsel %vm553, %v5299, 0
        %v5343 = vsel %vm553, %v5300, 0
        %v5346 = vsel %vm553, %v5301, 0
        %v5349 = vsel %vm553, %v5302, 0
        %v5352 = vsel %vm553, %v5303, 0
        %v5355 = vsel %vm553, %v5304, 0
        %v5358 = vsel %vm553, %v5305, 0
        %v5361 = vsel %vm553, %v5306, 0
        %v5364 = vsel %vm553, %v5307, 0
        %v5367 = vsel %vm553, %v5308, 0
        %v5370 = vsel %vm553, %v5309, 0
        %v5373 = vsel %vm553, %v5310, 0
        %v5376 = vsel %vm553, %v5311, 0
        %v5379 = vsel %vm553, %v5312, 0
        %v5382 = vsel %vm553, %v5313, 0
        %v5385 = vsel %vm553, %v5314, 0
        %v5388 = vsel %vm553, %v5315, 0
        %v5391 = vsel %vm553, %v5316, 0
        %v5394 = vsel %vm553, %v5317, 0
        %v5397 = vsel %vm553, %v5318, 0
        %v5400 = vsel %vm553, %v5319, 0
        %v5403 = vsel %vm553, %v5320, 0
        %v5406 = vsel %vm553, %v5321, 0
        %v5409 = vsel %vm553, %v5322, 0
        %v5412 = vsel %vm553, %v5323, 0
        %v5415 = vsel %vm553, %v5324, 0
        %v5418 = vsel %vm553, %v5325, 0
        %v5421 = vsel %vm553, %v5326, 0
        %v5424 = vsel %vm553, %v5327, 0
        %v5427 = vsel %vm650, %v5329, 0
        %5429 = vmatpush.msra.mxu0 0.0
        %5430 = vmatpush.msra.mxu0 0.0
        %5431 = vmatpush.msra.mxu0 0.0
        %5432 = vmatpush.msra.mxu0 0.0
        %5433 = vmatpush.msra.mxu0 0.0
        %5434 = vmatpush.msra.mxu0 0.0
        %5435 = vmatpush.msra.mxu0 0.0
        %5436 = vmatpush.msra.mxu0 0.0
        %5437 = vmatpush.msra.mxu0 0.0
        %5438 = vmatpush.msra.mxu0 0.0
        %5439 = vmatpush.msra.mxu0 0.0
        %5440 = vmatpush.msra.mxu0 0.0
        %5441 = vmatpush.msra.mxu0 0.0
        %5442 = vmatpush.msra.mxu0 0.0
        %5443 = vmatpush.msra.mxu0 0.0
        %5444 = vmatpush.msra.mxu0 %v5427
        %5445 = vmatmul.f32.gmra.mxu0 %v5331
        %v5446 = vpop.f32.mrf.mxu0
        %v5447 = vadd.f32 0.0, %v5446
        %5448 = vmatmul.f32.gmra.mxu0 %v5334
        %v5449 = vpop.f32.mrf.mxu0
        %v5450 = vadd.f32 0.0, %v5449
        %5451 = vmatmul.f32.gmra.mxu0 %v5337
        %v5452 = vpop.f32.mrf.mxu0
        %v5453 = vadd.f32 0.0, %v5452
        %5454 = vmatmul.f32.gmra.mxu0 %v5340
        %v5455 = vpop.f32.mrf.mxu0
        %v5456 = vadd.f32 0.0, %v5455
        %5457 = vmatmul.f32.gmra.mxu0 %v5343
        %v5458 = vpop.f32.mrf.mxu0
        %v5459 = vadd.f32 0.0, %v5458
        %5460 = vmatmul.f32.gmra.mxu0 %v5346
        %v5461 = vpop.f32.mrf.mxu0
        %v5462 = vadd.f32 0.0, %v5461
        %5463 = vmatmul.f32.gmra.mxu0 %v5349
        %v5464 = vpop.f32.mrf.mxu0
        %v5465 = vadd.f32 0.0, %v5464
        %5466 = vmatmul.f32.gmra.mxu0 %v5352
        %v5467 = vpop.f32.mrf.mxu0
        %v5468 = vadd.f32 0.0, %v5467
        %5469 = vmatmul.f32.gmra.mxu0 %v5355
        %v5470 = vpop.f32.mrf.mxu0
        %v5471 = vadd.f32 0.0, %v5470
        %5472 = vmatmul.f32.gmra.mxu0 %v5358
        %v5473 = vpop.f32.mrf.mxu0
        %v5474 = vadd.f32 0.0, %v5473
        %5475 = vmatmul.f32.gmra.mxu0 %v5361
        %v5476 = vpop.f32.mrf.mxu0
        %v5477 = vadd.f32 0.0, %v5476
        %5478 = vmatmul.f32.gmra.mxu0 %v5364
        %v5479 = vpop.f32.mrf.mxu0
        %v5480 = vadd.f32 0.0, %v5479
        %5481 = vmatmul.f32.gmra.mxu0 %v5367
        %v5482 = vpop.f32.mrf.mxu0
        %v5483 = vadd.f32 0.0, %v5482
        %5484 = vmatmul.f32.gmra.mxu0 %v5370
        %v5485 = vpop.f32.mrf.mxu0
        %v5486 = vadd.f32 0.0, %v5485
        %5487 = vmatmul.f32.gmra.mxu0 %v5373
        %v5488 = vpop.f32.mrf.mxu0
        %v5489 = vadd.f32 0.0, %v5488
        %5490 = vmatmul.f32.gmra.mxu0 %v5376
        %v5491 = vpop.f32.mrf.mxu0
        %v5492 = vadd.f32 0.0, %v5491
        %5493 = vmatmul.f32.gmra.mxu0 %v5379
        %v5494 = vpop.f32.mrf.mxu0
        %v5495 = vadd.f32 0.0, %v5494
        %5496 = vmatmul.f32.gmra.mxu0 %v5382
        %v5497 = vpop.f32.mrf.mxu0
        %v5498 = vadd.f32 0.0, %v5497
        %5499 = vmatmul.f32.gmra.mxu0 %v5385
        %v5500 = vpop.f32.mrf.mxu0
        %v5501 = vadd.f32 0.0, %v5500
        %5502 = vmatmul.f32.gmra.mxu0 %v5388
        %v5503 = vpop.f32.mrf.mxu0
        %v5504 = vadd.f32 0.0, %v5503
        %5505 = vmatmul.f32.gmra.mxu0 %v5391
        %v5506 = vpop.f32.mrf.mxu0
        %v5507 = vadd.f32 0.0, %v5506
        %5508 = vmatmul.f32.gmra.mxu0 %v5394
        %v5509 = vpop.f32.mrf.mxu0
        %v5510 = vadd.f32 0.0, %v5509
        %5511 = vmatmul.f32.gmra.mxu0 %v5397
        %v5512 = vpop.f32.mrf.mxu0
        %v5513 = vadd.f32 0.0, %v5512
        %5514 = vmatmul.f32.gmra.mxu0 %v5400
        %v5515 = vpop.f32.mrf.mxu0
        %v5516 = vadd.f32 0.0, %v5515
        %5517 = vmatmul.f32.gmra.mxu0 %v5403
        %v5518 = vpop.f32.mrf.mxu0
        %v5519 = vadd.f32 0.0, %v5518
        %5520 = vmatmul.f32.gmra.mxu0 %v5406
        %v5521 = vpop.f32.mrf.mxu0
        %v5522 = vadd.f32 0.0, %v5521
        %5523 = vmatmul.f32.gmra.mxu0 %v5409
        %v5524 = vpop.f32.mrf.mxu0
        %v5525 = vadd.f32 0.0, %v5524
        %5526 = vmatmul.f32.gmra.mxu0 %v5412
        %v5527 = vpop.f32.mrf.mxu0
        %v5528 = vadd.f32 0.0, %v5527
        %5529 = vmatmul.f32.gmra.mxu0 %v5415
        %v5530 = vpop.f32.mrf.mxu0
        %v5531 = vadd.f32 0.0, %v5530
        %5532 = vmatmul.f32.gmra.mxu0 %v5418
        %v5533 = vpop.f32.mrf.mxu0
        %v5534 = vadd.f32 0.0, %v5533
        %5535 = vmatmul.f32.gmra.mxu0 %v5421
        %v5536 = vpop.f32.mrf.mxu0
        %v5537 = vadd.f32 0.0, %v5536
        %5538 = vmatmul.f32.gmra.mxu0 %v5424
        %v5539 = vpop.f32.mrf.mxu0
        %v5540 = vadd.f32 0.0, %v5539
        %5541 = vdwg.mxu0
        %v5542 = vadd.f32 %v5264, %v5447
        %v5543 = vadd.f32 %v5265, %v5450
        %v5544 = vadd.f32 %v5266, %v5453
        %v5545 = vadd.f32 %v5267, %v5456
        %v5546 = vadd.f32 %v5268, %v5459
        %v5547 = vadd.f32 %v5269, %v5462
        %v5548 = vadd.f32 %v5270, %v5465
        %v5549 = vadd.f32 %v5271, %v5468
        %v5550 = vadd.f32 %v5272, %v5471
        %v5551 = vadd.f32 %v5273, %v5474
        %v5552 = vadd.f32 %v5274, %v5477
        %v5553 = vadd.f32 %v5275, %v5480
        %v5554 = vadd.f32 %v5276, %v5483
        %v5555 = vadd.f32 %v5277, %v5486
        %v5556 = vadd.f32 %v5278, %v5489
        %v5557 = vadd.f32 %v5279, %v5492
        %v5558 = vadd.f32 %v5280, %v5495
        %v5559 = vadd.f32 %v5281, %v5498
        %v5560 = vadd.f32 %v5282, %v5501
        %v5561 = vadd.f32 %v5283, %v5504
        %v5562 = vadd.f32 %v5284, %v5507
        %v5563 = vadd.f32 %v5285, %v5510
        %v5564 = vadd.f32 %v5286, %v5513
        %v5565 = vadd.f32 %v5287, %v5516
        %v5566 = vadd.f32 %v5288, %v5519
        %v5567 = vadd.f32 %v5289, %v5522
        %v5568 = vadd.f32 %v5290, %v5525
        %v5569 = vadd.f32 %v5291, %v5528
        %v5570 = vadd.f32 %v5292, %v5531
        %v5571 = vadd.f32 %v5293, %v5534
        %v5572 = vadd.f32 %v5294, %v5537
        %v5573 = vadd.f32 %v5295, %v5540
        %v5574 = vld [vmem:[%s2552 + $0x1] sm:$0xff]
        %v5575 = vld [vmem:[%s2552 + $0x9] sm:$0xff]
        %v5576 = vld [vmem:[%s2552 + $0x19] sm:$0xff]
        %v5577 = vld [vmem:[%s2552 + $0x21] sm:$0xff]
        %v5578 = vld [vmem:[%s2552 + $0x31] sm:$0xff]
        %v5579 = vld [vmem:[%s2552 + $0x39] sm:$0xff]
        %v5580 = vld [vmem:[%s2552 + $0x49] sm:$0xff]
        %v5581 = vld [vmem:[%s2552 + $0x51] sm:$0xff]
        %v5582 = vld [vmem:[%s2552 + $0x61] sm:$0xff]
        %v5583 = vld [vmem:[%s2552 + $0x69] sm:$0xff]
        %v5584 = vld [vmem:[%s2552 + $0x79] sm:$0xff]
        %v5585 = vld [vmem:[%s2552 + $0x81] sm:$0xff]
        %v5586 = vld [vmem:[%s2552 + $0x91] sm:$0xff]
        %v5587 = vld [vmem:[%s2552 + $0x99] sm:$0xff]
        %v5588 = vld [vmem:[%s2552 + $0xa9] sm:$0xff]
        %v5589 = vld [vmem:[%s2552 + $0xb1] sm:$0xff]
        %v5590 = vld [vmem:[%s2552 + $0xc1] sm:$0xff]
        %v5591 = vld [vmem:[%s2552 + $0xc9] sm:$0xff]
        %v5592 = vld [vmem:[%s2552 + $0xd9] sm:$0xff]
        %v5593 = vld [vmem:[%s2552 + $0xe1] sm:$0xff]
        %v5594 = vld [vmem:[%s2552 + $0xf1] sm:$0xff]
        %v5595 = vld [vmem:[%s2552 + $0xf9] sm:$0xff]
        %v5596 = vld [vmem:[%s2552 + $0x109] sm:$0xff]
        %v5597 = vld [vmem:[%s2552 + $0x111] sm:$0xff]
        %v5598 = vld [vmem:[%s2552 + $0x121] sm:$0xff]
        %v5599 = vld [vmem:[%s2552 + $0x129] sm:$0xff]
        %v5600 = vld [vmem:[%s2552 + $0x139] sm:$0xff]
        %v5601 = vld [vmem:[%s2552 + $0x141] sm:$0xff]
        %v5602 = vld [vmem:[%s2552 + $0x151] sm:$0xff]
        %v5603 = vld [vmem:[%s2552 + $0x159] sm:$0xff]
        %v5604 = vld [vmem:[%s2552 + $0x169] sm:$0xff]
        %v5605 = vld [vmem:[%s2552 + $0x171] sm:$0xff]
        %s5606 = scalar_lea.vmem %s7, 28
        %v5607 = vld [vmem:[%s5606] sm:$0xf]
        %v5609 = vsel %vm553, %v5574, 0
        %v5612 = vsel %vm553, %v5575, 0
        %v5615 = vsel %vm553, %v5576, 0
        %v5618 = vsel %vm553, %v5577, 0
        %v5621 = vsel %vm553, %v5578, 0
        %v5624 = vsel %vm553, %v5579, 0
        %v5627 = vsel %vm553, %v5580, 0
        %v5630 = vsel %vm553, %v5581, 0
        %v5633 = vsel %vm553, %v5582, 0
        %v5636 = vsel %vm553, %v5583, 0
        %v5639 = vsel %vm553, %v5584, 0
        %v5642 = vsel %vm553, %v5585, 0
        %v5645 = vsel %vm553, %v5586, 0
        %v5648 = vsel %vm553, %v5587, 0
        %v5651 = vsel %vm553, %v5588, 0
        %v5654 = vsel %vm553, %v5589, 0
        %v5657 = vsel %vm553, %v5590, 0
        %v5660 = vsel %vm553, %v5591, 0
        %v5663 = vsel %vm553, %v5592, 0
        %v5666 = vsel %vm553, %v5593, 0
        %v5669 = vsel %vm553, %v5594, 0
        %v5672 = vsel %vm553, %v5595, 0
        %v5675 = vsel %vm553, %v5596, 0
        %v5678 = vsel %vm553, %v5597, 0
        %v5681 = vsel %vm553, %v5598, 0
        %v5684 = vsel %vm553, %v5599, 0
        %v5687 = vsel %vm553, %v5600, 0
        %v5690 = vsel %vm553, %v5601, 0
        %v5693 = vsel %vm553, %v5602, 0
        %v5696 = vsel %vm553, %v5603, 0
        %v5699 = vsel %vm553, %v5604, 0
        %v5702 = vsel %vm553, %v5605, 0
        %v5705 = vsel %vm650, %v5607, 0
        %5707 = vmatpush.msra.mxu0 0.0
        %5708 = vmatpush.msra.mxu0 0.0
        %5709 = vmatpush.msra.mxu0 0.0
        %5710 = vmatpush.msra.mxu0 0.0
        %5711 = vmatpush.msra.mxu0 0.0
        %5712 = vmatpush.msra.mxu0 0.0
        %5713 = vmatpush.msra.mxu0 0.0
        %5714 = vmatpush.msra.mxu0 0.0
        %5715 = vmatpush.msra.mxu0 0.0
        %5716 = vmatpush.msra.mxu0 0.0
        %5717 = vmatpush.msra.mxu0 0.0
        %5718 = vmatpush.msra.mxu0 0.0
        %5719 = vmatpush.msra.mxu0 0.0
        %5720 = vmatpush.msra.mxu0 0.0
        %5721 = vmatpush.msra.mxu0 0.0
        %5722 = vmatpush.msra.mxu0 %v5705
        %5723 = vmatmul.f32.gmra.mxu0 %v5609
        %v5724 = vpop.f32.mrf.mxu0
        %v5725 = vadd.f32 0.0, %v5724
        %5726 = vmatmul.f32.gmra.mxu0 %v5612
        %v5727 = vpop.f32.mrf.mxu0
        %v5728 = vadd.f32 0.0, %v5727
        %5729 = vmatmul.f32.gmra.mxu0 %v5615
        %v5730 = vpop.f32.mrf.mxu0
        %v5731 = vadd.f32 0.0, %v5730
        %5732 = vmatmul.f32.gmra.mxu0 %v5618
        %v5733 = vpop.f32.mrf.mxu0
        %v5734 = vadd.f32 0.0, %v5733
        %5735 = vmatmul.f32.gmra.mxu0 %v5621
        %v5736 = vpop.f32.mrf.mxu0
        %v5737 = vadd.f32 0.0, %v5736
        %5738 = vmatmul.f32.gmra.mxu0 %v5624
        %v5739 = vpop.f32.mrf.mxu0
        %v5740 = vadd.f32 0.0, %v5739
        %5741 = vmatmul.f32.gmra.mxu0 %v5627
        %v5742 = vpop.f32.mrf.mxu0
        %v5743 = vadd.f32 0.0, %v5742
        %5744 = vmatmul.f32.gmra.mxu0 %v5630
        %v5745 = vpop.f32.mrf.mxu0
        %v5746 = vadd.f32 0.0, %v5745
        %5747 = vmatmul.f32.gmra.mxu0 %v5633
        %v5748 = vpop.f32.mrf.mxu0
        %v5749 = vadd.f32 0.0, %v5748
        %5750 = vmatmul.f32.gmra.mxu0 %v5636
        %v5751 = vpop.f32.mrf.mxu0
        %v5752 = vadd.f32 0.0, %v5751
        %5753 = vmatmul.f32.gmra.mxu0 %v5639
        %v5754 = vpop.f32.mrf.mxu0
        %v5755 = vadd.f32 0.0, %v5754
        %5756 = vmatmul.f32.gmra.mxu0 %v5642
        %v5757 = vpop.f32.mrf.mxu0
        %v5758 = vadd.f32 0.0, %v5757
        %5759 = vmatmul.f32.gmra.mxu0 %v5645
        %v5760 = vpop.f32.mrf.mxu0
        %v5761 = vadd.f32 0.0, %v5760
        %5762 = vmatmul.f32.gmra.mxu0 %v5648
        %v5763 = vpop.f32.mrf.mxu0
        %v5764 = vadd.f32 0.0, %v5763
        %5765 = vmatmul.f32.gmra.mxu0 %v5651
        %v5766 = vpop.f32.mrf.mxu0
        %v5767 = vadd.f32 0.0, %v5766
        %5768 = vmatmul.f32.gmra.mxu0 %v5654
        %v5769 = vpop.f32.mrf.mxu0
        %v5770 = vadd.f32 0.0, %v5769
        %5771 = vmatmul.f32.gmra.mxu0 %v5657
        %v5772 = vpop.f32.mrf.mxu0
        %v5773 = vadd.f32 0.0, %v5772
        %5774 = vmatmul.f32.gmra.mxu0 %v5660
        %v5775 = vpop.f32.mrf.mxu0
        %v5776 = vadd.f32 0.0, %v5775
        %5777 = vmatmul.f32.gmra.mxu0 %v5663
        %v5778 = vpop.f32.mrf.mxu0
        %v5779 = vadd.f32 0.0, %v5778
        %5780 = vmatmul.f32.gmra.mxu0 %v5666
        %v5781 = vpop.f32.mrf.mxu0
        %v5782 = vadd.f32 0.0, %v5781
        %5783 = vmatmul.f32.gmra.mxu0 %v5669
        %v5784 = vpop.f32.mrf.mxu0
        %v5785 = vadd.f32 0.0, %v5784
        %5786 = vmatmul.f32.gmra.mxu0 %v5672
        %v5787 = vpop.f32.mrf.mxu0
        %v5788 = vadd.f32 0.0, %v5787
        %5789 = vmatmul.f32.gmra.mxu0 %v5675
        %v5790 = vpop.f32.mrf.mxu0
        %v5791 = vadd.f32 0.0, %v5790
        %5792 = vmatmul.f32.gmra.mxu0 %v5678
        %v5793 = vpop.f32.mrf.mxu0
        %v5794 = vadd.f32 0.0, %v5793
        %5795 = vmatmul.f32.gmra.mxu0 %v5681
        %v5796 = vpop.f32.mrf.mxu0
        %v5797 = vadd.f32 0.0, %v5796
        %5798 = vmatmul.f32.gmra.mxu0 %v5684
        %v5799 = vpop.f32.mrf.mxu0
        %v5800 = vadd.f32 0.0, %v5799
        %5801 = vmatmul.f32.gmra.mxu0 %v5687
        %v5802 = vpop.f32.mrf.mxu0
        %v5803 = vadd.f32 0.0, %v5802
        %5804 = vmatmul.f32.gmra.mxu0 %v5690
        %v5805 = vpop.f32.mrf.mxu0
        %v5806 = vadd.f32 0.0, %v5805
        %5807 = vmatmul.f32.gmra.mxu0 %v5693
        %v5808 = vpop.f32.mrf.mxu0
        %v5809 = vadd.f32 0.0, %v5808
        %5810 = vmatmul.f32.gmra.mxu0 %v5696
        %v5811 = vpop.f32.mrf.mxu0
        %v5812 = vadd.f32 0.0, %v5811
        %5813 = vmatmul.f32.gmra.mxu0 %v5699
        %v5814 = vpop.f32.mrf.mxu0
        %v5815 = vadd.f32 0.0, %v5814
        %5816 = vmatmul.f32.gmra.mxu0 %v5702
        %v5817 = vpop.f32.mrf.mxu0
        %v5818 = vadd.f32 0.0, %v5817
        %5819 = vdwg.mxu0
        %v5820 = vadd.f32 %v5542, %v5725
        %v5821 = vadd.f32 %v5543, %v5728
        %v5822 = vadd.f32 %v5544, %v5731
        %v5823 = vadd.f32 %v5545, %v5734
        %v5824 = vadd.f32 %v5546, %v5737
        %v5825 = vadd.f32 %v5547, %v5740
        %v5826 = vadd.f32 %v5548, %v5743
        %v5827 = vadd.f32 %v5549, %v5746
        %v5828 = vadd.f32 %v5550, %v5749
        %v5829 = vadd.f32 %v5551, %v5752
        %v5830 = vadd.f32 %v5552, %v5755
        %v5831 = vadd.f32 %v5553, %v5758
        %v5832 = vadd.f32 %v5554, %v5761
        %v5833 = vadd.f32 %v5555, %v5764
        %v5834 = vadd.f32 %v5556, %v5767
        %v5835 = vadd.f32 %v5557, %v5770
        %v5836 = vadd.f32 %v5558, %v5773
        %v5837 = vadd.f32 %v5559, %v5776
        %v5838 = vadd.f32 %v5560, %v5779
        %v5839 = vadd.f32 %v5561, %v5782
        %v5840 = vadd.f32 %v5562, %v5785
        %v5841 = vadd.f32 %v5563, %v5788
        %v5842 = vadd.f32 %v5564, %v5791
        %v5843 = vadd.f32 %v5565, %v5794
        %v5844 = vadd.f32 %v5566, %v5797
        %v5845 = vadd.f32 %v5567, %v5800
        %v5846 = vadd.f32 %v5568, %v5803
        %v5847 = vadd.f32 %v5569, %v5806
        %v5848 = vadd.f32 %v5570, %v5809
        %v5849 = vadd.f32 %v5571, %v5812
        %v5850 = vadd.f32 %v5572, %v5815
        %v5851 = vadd.f32 %v5573, %v5818
        %v5852 = vld [vmem:[%s2552 + $0x2] sm:$0xff]
        %v5853 = vld [vmem:[%s2552 + $0xa] sm:$0xff]
        %v5854 = vld [vmem:[%s2552 + $0x1a] sm:$0xff]
        %v5855 = vld [vmem:[%s2552 + $0x22] sm:$0xff]
        %v5856 = vld [vmem:[%s2552 + $0x32] sm:$0xff]
        %v5857 = vld [vmem:[%s2552 + $0x3a] sm:$0xff]
        %v5858 = vld [vmem:[%s2552 + $0x4a] sm:$0xff]
        %v5859 = vld [vmem:[%s2552 + $0x52] sm:$0xff]
        %v5860 = vld [vmem:[%s2552 + $0x62] sm:$0xff]
        %v5861 = vld [vmem:[%s2552 + $0x6a] sm:$0xff]
        %v5862 = vld [vmem:[%s2552 + $0x7a] sm:$0xff]
        %v5863 = vld [vmem:[%s2552 + $0x82] sm:$0xff]
        %v5864 = vld [vmem:[%s2552 + $0x92] sm:$0xff]
        %v5865 = vld [vmem:[%s2552 + $0x9a] sm:$0xff]
        %v5866 = vld [vmem:[%s2552 + $0xaa] sm:$0xff]
        %v5867 = vld [vmem:[%s2552 + $0xb2] sm:$0xff]
        %v5868 = vld [vmem:[%s2552 + $0xc2] sm:$0xff]
        %v5869 = vld [vmem:[%s2552 + $0xca] sm:$0xff]
        %v5870 = vld [vmem:[%s2552 + $0xda] sm:$0xff]
        %v5871 = vld [vmem:[%s2552 + $0xe2] sm:$0xff]
        %v5872 = vld [vmem:[%s2552 + $0xf2] sm:$0xff]
        %v5873 = vld [vmem:[%s2552 + $0xfa] sm:$0xff]
        %v5874 = vld [vmem:[%s2552 + $0x10a] sm:$0xff]
        %v5875 = vld [vmem:[%s2552 + $0x112] sm:$0xff]
        %v5876 = vld [vmem:[%s2552 + $0x122] sm:$0xff]
        %v5877 = vld [vmem:[%s2552 + $0x12a] sm:$0xff]
        %v5878 = vld [vmem:[%s2552 + $0x13a] sm:$0xff]
        %v5879 = vld [vmem:[%s2552 + $0x142] sm:$0xff]
        %v5880 = vld [vmem:[%s2552 + $0x152] sm:$0xff]
        %v5881 = vld [vmem:[%s2552 + $0x15a] sm:$0xff]
        %v5882 = vld [vmem:[%s2552 + $0x16a] sm:$0xff]
        %v5883 = vld [vmem:[%s2552 + $0x172] sm:$0xff]
        %s5884 = scalar_lea.vmem %s7, 32
        %v5885 = vld [vmem:[%s5884] sm:$0xf]
        %v5887 = vsel %vm553, %v5852, 0
        %v5890 = vsel %vm553, %v5853, 0
        %v5893 = vsel %vm553, %v5854, 0
        %v5896 = vsel %vm553, %v5855, 0
        %v5899 = vsel %vm553, %v5856, 0
        %v5902 = vsel %vm553, %v5857, 0
        %v5905 = vsel %vm553, %v5858, 0
        %v5908 = vsel %vm553, %v5859, 0
        %v5911 = vsel %vm553, %v5860, 0
        %v5914 = vsel %vm553, %v5861, 0
        %v5917 = vsel %vm553, %v5862, 0
        %v5920 = vsel %vm553, %v5863, 0
        %v5923 = vsel %vm553, %v5864, 0
        %v5926 = vsel %vm553, %v5865, 0
        %v5929 = vsel %vm553, %v5866, 0
        %v5932 = vsel %vm553, %v5867, 0
        %v5935 = vsel %vm553, %v5868, 0
        %v5938 = vsel %vm553, %v5869, 0
        %v5941 = vsel %vm553, %v5870, 0
        %v5944 = vsel %vm553, %v5871, 0
        %v5947 = vsel %vm553, %v5872, 0
        %v5950 = vsel %vm553, %v5873, 0
        %v5953 = vsel %vm553, %v5874, 0
        %v5956 = vsel %vm553, %v5875, 0
        %v5959 = vsel %vm553, %v5876, 0
        %v5962 = vsel %vm553, %v5877, 0
        %v5965 = vsel %vm553, %v5878, 0
        %v5968 = vsel %vm553, %v5879, 0
        %v5971 = vsel %vm553, %v5880, 0
        %v5974 = vsel %vm553, %v5881, 0
        %v5977 = vsel %vm553, %v5882, 0
        %v5980 = vsel %vm553, %v5883, 0
        %v5983 = vsel %vm650, %v5885, 0
        %5985 = vmatpush.msra.mxu0 0.0
        %5986 = vmatpush.msra.mxu0 0.0
        %5987 = vmatpush.msra.mxu0 0.0
        %5988 = vmatpush.msra.mxu0 0.0
        %5989 = vmatpush.msra.mxu0 0.0
        %5990 = vmatpush.msra.mxu0 0.0
        %5991 = vmatpush.msra.mxu0 0.0
        %5992 = vmatpush.msra.mxu0 0.0
        %5993 = vmatpush.msra.mxu0 0.0
        %5994 = vmatpush.msra.mxu0 0.0
        %5995 = vmatpush.msra.mxu0 0.0
        %5996 = vmatpush.msra.mxu0 0.0
        %5997 = vmatpush.msra.mxu0 0.0
        %5998 = vmatpush.msra.mxu0 0.0
        %5999 = vmatpush.msra.mxu0 0.0
        %6000 = vmatpush.msra.mxu0 %v5983
        %6001 = vmatmul.f32.gmra.mxu0 %v5887
        %v6002 = vpop.f32.mrf.mxu0
        %v6003 = vadd.f32 0.0, %v6002
        %6004 = vmatmul.f32.gmra.mxu0 %v5890
        %v6005 = vpop.f32.mrf.mxu0
        %v6006 = vadd.f32 0.0, %v6005
        %6007 = vmatmul.f32.gmra.mxu0 %v5893
        %v6008 = vpop.f32.mrf.mxu0
        %v6009 = vadd.f32 0.0, %v6008
        %6010 = vmatmul.f32.gmra.mxu0 %v5896
        %v6011 = vpop.f32.mrf.mxu0
        %v6012 = vadd.f32 0.0, %v6011
        %6013 = vmatmul.f32.gmra.mxu0 %v5899
        %v6014 = vpop.f32.mrf.mxu0
        %v6015 = vadd.f32 0.0, %v6014
        %6016 = vmatmul.f32.gmra.mxu0 %v5902
        %v6017 = vpop.f32.mrf.mxu0
        %v6018 = vadd.f32 0.0, %v6017
        %6019 = vmatmul.f32.gmra.mxu0 %v5905
        %v6020 = vpop.f32.mrf.mxu0
        %v6021 = vadd.f32 0.0, %v6020
        %6022 = vmatmul.f32.gmra.mxu0 %v5908
        %v6023 = vpop.f32.mrf.mxu0
        %v6024 = vadd.f32 0.0, %v6023
        %6025 = vmatmul.f32.gmra.mxu0 %v5911
        %v6026 = vpop.f32.mrf.mxu0
        %v6027 = vadd.f32 0.0, %v6026
        %6028 = vmatmul.f32.gmra.mxu0 %v5914
        %v6029 = vpop.f32.mrf.mxu0
        %v6030 = vadd.f32 0.0, %v6029
        %6031 = vmatmul.f32.gmra.mxu0 %v5917
        %v6032 = vpop.f32.mrf.mxu0
        %v6033 = vadd.f32 0.0, %v6032
        %6034 = vmatmul.f32.gmra.mxu0 %v5920
        %v6035 = vpop.f32.mrf.mxu0
        %v6036 = vadd.f32 0.0, %v6035
        %6037 = vmatmul.f32.gmra.mxu0 %v5923
        %v6038 = vpop.f32.mrf.mxu0
        %v6039 = vadd.f32 0.0, %v6038
        %6040 = vmatmul.f32.gmra.mxu0 %v5926
        %v6041 = vpop.f32.mrf.mxu0
        %v6042 = vadd.f32 0.0, %v6041
        %6043 = vmatmul.f32.gmra.mxu0 %v5929
        %v6044 = vpop.f32.mrf.mxu0
        %v6045 = vadd.f32 0.0, %v6044
        %6046 = vmatmul.f32.gmra.mxu0 %v5932
        %v6047 = vpop.f32.mrf.mxu0
        %v6048 = vadd.f32 0.0, %v6047
        %6049 = vmatmul.f32.gmra.mxu0 %v5935
        %v6050 = vpop.f32.mrf.mxu0
        %v6051 = vadd.f32 0.0, %v6050
        %6052 = vmatmul.f32.gmra.mxu0 %v5938
        %v6053 = vpop.f32.mrf.mxu0
        %v6054 = vadd.f32 0.0, %v6053
        %6055 = vmatmul.f32.gmra.mxu0 %v5941
        %v6056 = vpop.f32.mrf.mxu0
        %v6057 = vadd.f32 0.0, %v6056
        %6058 = vmatmul.f32.gmra.mxu0 %v5944
        %v6059 = vpop.f32.mrf.mxu0
        %v6060 = vadd.f32 0.0, %v6059
        %6061 = vmatmul.f32.gmra.mxu0 %v5947
        %v6062 = vpop.f32.mrf.mxu0
        %v6063 = vadd.f32 0.0, %v6062
        %6064 = vmatmul.f32.gmra.mxu0 %v5950
        %v6065 = vpop.f32.mrf.mxu0
        %v6066 = vadd.f32 0.0, %v6065
        %6067 = vmatmul.f32.gmra.mxu0 %v5953
        %v6068 = vpop.f32.mrf.mxu0
        %v6069 = vadd.f32 0.0, %v6068
        %6070 = vmatmul.f32.gmra.mxu0 %v5956
        %v6071 = vpop.f32.mrf.mxu0
        %v6072 = vadd.f32 0.0, %v6071
        %6073 = vmatmul.f32.gmra.mxu0 %v5959
        %v6074 = vpop.f32.mrf.mxu0
        %v6075 = vadd.f32 0.0, %v6074
        %6076 = vmatmul.f32.gmra.mxu0 %v5962
        %v6077 = vpop.f32.mrf.mxu0
        %v6078 = vadd.f32 0.0, %v6077
        %6079 = vmatmul.f32.gmra.mxu0 %v5965
        %v6080 = vpop.f32.mrf.mxu0
        %v6081 = vadd.f32 0.0, %v6080
        %6082 = vmatmul.f32.gmra.mxu0 %v5968
        %v6083 = vpop.f32.mrf.mxu0
        %v6084 = vadd.f32 0.0, %v6083
        %6085 = vmatmul.f32.gmra.mxu0 %v5971
        %v6086 = vpop.f32.mrf.mxu0
        %v6087 = vadd.f32 0.0, %v6086
        %6088 = vmatmul.f32.gmra.mxu0 %v5974
        %v6089 = vpop.f32.mrf.mxu0
        %v6090 = vadd.f32 0.0, %v6089
        %6091 = vmatmul.f32.gmra.mxu0 %v5977
        %v6092 = vpop.f32.mrf.mxu0
        %v6093 = vadd.f32 0.0, %v6092
        %6094 = vmatmul.f32.gmra.mxu0 %v5980
        %v6095 = vpop.f32.mrf.mxu0
        %v6096 = vadd.f32 0.0, %v6095
        %6097 = vdwg.mxu0
        %v6098 = vadd.f32 %v5820, %v6003
        %v6099 = vadd.f32 %v5821, %v6006
        %v6100 = vadd.f32 %v5822, %v6009
        %v6101 = vadd.f32 %v5823, %v6012
        %v6102 = vadd.f32 %v5824, %v6015
        %v6103 = vadd.f32 %v5825, %v6018
        %v6104 = vadd.f32 %v5826, %v6021
        %v6105 = vadd.f32 %v5827, %v6024
        %v6106 = vadd.f32 %v5828, %v6027
        %v6107 = vadd.f32 %v5829, %v6030
        %v6108 = vadd.f32 %v5830, %v6033
        %v6109 = vadd.f32 %v5831, %v6036
        %v6110 = vadd.f32 %v5832, %v6039
        %v6111 = vadd.f32 %v5833, %v6042
        %v6112 = vadd.f32 %v5834, %v6045
        %v6113 = vadd.f32 %v5835, %v6048
        %v6114 = vadd.f32 %v5836, %v6051
        %v6115 = vadd.f32 %v5837, %v6054
        %v6116 = vadd.f32 %v5838, %v6057
        %v6117 = vadd.f32 %v5839, %v6060
        %v6118 = vadd.f32 %v5840, %v6063
        %v6119 = vadd.f32 %v5841, %v6066
        %v6120 = vadd.f32 %v5842, %v6069
        %v6121 = vadd.f32 %v5843, %v6072
        %v6122 = vadd.f32 %v5844, %v6075
        %v6123 = vadd.f32 %v5845, %v6078
        %v6124 = vadd.f32 %v5846, %v6081
        %v6125 = vadd.f32 %v5847, %v6084
        %v6126 = vadd.f32 %v5848, %v6087
        %v6127 = vadd.f32 %v5849, %v6090
        %v6128 = vadd.f32 %v5850, %v6093
        %v6129 = vadd.f32 %v5851, %v6096
        %v6130 = vld [vmem:[%s8] sm:$0x1]
        %v6132 = vperm.slane %v6130, 0
        %v6134 = vmul.f32 %v6098, %v6132
        %v6135 = vmul.f32 %v6099, %v6132
        %v6136 = vmul.f32 %v6100, %v6132
        %v6137 = vmul.f32 %v6101, %v6132
        %v6138 = vmul.f32 %v6102, %v6132
        %v6139 = vmul.f32 %v6103, %v6132
        %v6140 = vmul.f32 %v6104, %v6132
        %v6141 = vmul.f32 %v6105, %v6132
        %v6142 = vmul.f32 %v6106, %v6132
        %v6143 = vmul.f32 %v6107, %v6132
        %v6144 = vmul.f32 %v6108, %v6132
        %v6145 = vmul.f32 %v6109, %v6132
        %v6146 = vmul.f32 %v6110, %v6132
        %v6147 = vmul.f32 %v6111, %v6132
        %v6148 = vmul.f32 %v6112, %v6132
        %v6149 = vmul.f32 %v6113, %v6132
        %v6150 = vmul.f32 %v6114, %v6132
        %v6151 = vmul.f32 %v6115, %v6132
        %v6152 = vmul.f32 %v6116, %v6132
        %v6153 = vmul.f32 %v6117, %v6132
        %v6154 = vmul.f32 %v6118, %v6132
        %v6155 = vmul.f32 %v6119, %v6132
        %v6156 = vmul.f32 %v6120, %v6132
        %v6157 = vmul.f32 %v6121, %v6132
        %v6158 = vmul.f32 %v6122, %v6132
        %v6159 = vmul.f32 %v6123, %v6132
        %v6160 = vmul.f32 %v6124, %v6132
        %v6161 = vmul.f32 %v6125, %v6132
        %v6162 = vmul.f32 %v6126, %v6132
        %v6163 = vmul.f32 %v6127, %v6132
        %v6164 = vmul.f32 %v6128, %v6132
        %v6165 = vmul.f32 %v6129, %v6132
        %v6166 = vld [vmem:[%s9] sm:$0x1]
        %v6168 = vperm.slane %v6166, 0
        %v6170 = vadd.f32 %v6134, %v6168
        %v6171 = vadd.f32 %v6135, %v6168
        %v6172 = vadd.f32 %v6136, %v6168
        %v6173 = vadd.f32 %v6137, %v6168
        %v6174 = vadd.f32 %v6138, %v6168
        %v6175 = vadd.f32 %v6139, %v6168
        %v6176 = vadd.f32 %v6140, %v6168
        %v6177 = vadd.f32 %v6141, %v6168
        %v6178 = vadd.f32 %v6142, %v6168
        %v6179 = vadd.f32 %v6143, %v6168
        %v6180 = vadd.f32 %v6144, %v6168
        %v6181 = vadd.f32 %v6145, %v6168
        %v6182 = vadd.f32 %v6146, %v6168
        %v6183 = vadd.f32 %v6147, %v6168
        %v6184 = vadd.f32 %v6148, %v6168
        %v6185 = vadd.f32 %v6149, %v6168
        %v6186 = vadd.f32 %v6150, %v6168
        %v6187 = vadd.f32 %v6151, %v6168
        %v6188 = vadd.f32 %v6152, %v6168
        %v6189 = vadd.f32 %v6153, %v6168
        %v6190 = vadd.f32 %v6154, %v6168
        %v6191 = vadd.f32 %v6155, %v6168
        %v6192 = vadd.f32 %v6156, %v6168
        %v6193 = vadd.f32 %v6157, %v6168
        %v6194 = vadd.f32 %v6158, %v6168
        %v6195 = vadd.f32 %v6159, %v6168
        %v6196 = vadd.f32 %v6160, %v6168
        %v6197 = vadd.f32 %v6161, %v6168
        %v6198 = vadd.f32 %v6162, %v6168
        %v6199 = vadd.f32 %v6163, %v6168
        %v6200 = vadd.f32 %v6164, %v6168
        %v6201 = vadd.f32 %v6165, %v6168
        %v6202 = vmax.f32 %v6170, 0.0
        %v6203 = vmax.f32 %v6171, 0.0
        %v6204 = vmax.f32 %v6172, 0.0
        %v6205 = vmax.f32 %v6173, 0.0
        %v6206 = vmax.f32 %v6174, 0.0
        %v6207 = vmax.f32 %v6175, 0.0
        %v6208 = vmax.f32 %v6176, 0.0
        %v6209 = vmax.f32 %v6177, 0.0
        %v6210 = vmax.f32 %v6178, 0.0
        %v6211 = vmax.f32 %v6179, 0.0
        %v6212 = vmax.f32 %v6180, 0.0
        %v6213 = vmax.f32 %v6181, 0.0
        %v6214 = vmax.f32 %v6182, 0.0
        %v6215 = vmax.f32 %v6183, 0.0
        %v6216 = vmax.f32 %v6184, 0.0
        %v6217 = vmax.f32 %v6185, 0.0
        %v6218 = vmax.f32 %v6186, 0.0
        %v6219 = vmax.f32 %v6187, 0.0
        %v6220 = vmax.f32 %v6188, 0.0
        %v6221 = vmax.f32 %v6189, 0.0
        %v6222 = vmax.f32 %v6190, 0.0
        %v6223 = vmax.f32 %v6191, 0.0
        %v6224 = vmax.f32 %v6192, 0.0
        %v6225 = vmax.f32 %v6193, 0.0
        %v6226 = vmax.f32 %v6194, 0.0
        %v6227 = vmax.f32 %v6195, 0.0
        %v6228 = vmax.f32 %v6196, 0.0
        %v6229 = vmax.f32 %v6197, 0.0
        %v6230 = vmax.f32 %v6198, 0.0
        %v6231 = vmax.f32 %v6199, 0.0
        %v6232 = vmax.f32 %v6200, 0.0
        %v6233 = vmax.f32 %v6201, 0.0
        %vm6234 = vcmask 64512
        %6235 = vst.msk [vmem:[#allocation2] sm:$0xff] %vm6234, 0.0
        %6236 = vst.msk [vmem:[#allocation2 + $0x8] sm:$0xff] %vm6234, 0.0
        %vm6237 = vcmask 58368
        %6238 = vst.msk [vmem:[#allocation2 + $0x10] sm:$0x3] %vm6237, 0.0
        %6239 = vst.msk [vmem:[%s875] sm:$0xff] %vm6234, 0.0
        %6240 = vst.msk [vmem:[%s875 + $0x8] sm:$0xff] %vm6234, 0.0
        %6241 = vst.msk [vmem:[%s875 + $0x10] sm:$0x3] %vm6237, 0.0
        %vm6242 = vcmask 57344
        %6243 = vst.msk [vmem:[#allocation2] sm:$0x1] %vm6242, 0.0
        %6244 = vst.msk [vmem:[#allocation2 + $0x18] sm:$0x1] %vm6242, 0.0
        %6245 = vst.msk [vmem:[#allocation2 + $0x30] sm:$0x1] %vm6242, 0.0
        %6246 = vst.msk [vmem:[#allocation2 + $0x48] sm:$0x1] %vm6242, 0.0
        %6247 = vst.msk [vmem:[#allocation2 + $0x60] sm:$0x1] %vm6242, 0.0
        %6248 = vst.msk [vmem:[#allocation2 + $0x78] sm:$0x1] %vm6242, 0.0
        %6249 = vst.msk [vmem:[#allocation2 + $0x90] sm:$0x1] %vm6242, 0.0
        %6250 = vst.msk [vmem:[#allocation2 + $0xa8] sm:$0x1] %vm6242, 0.0
        %6251 = vst.msk [vmem:[#allocation2 + $0xc0] sm:$0x1] %vm6242, 0.0
        %6252 = vst.msk [vmem:[#allocation2 + $0xd8] sm:$0x1] %vm6242, 0.0
        %6253 = vst.msk [vmem:[#allocation2 + $0xf0] sm:$0x1] %vm6242, 0.0
        %6254 = vst.msk [vmem:[#allocation2 + $0x108] sm:$0x1] %vm6242, 0.0
        %6255 = vst.msk [vmem:[#allocation2 + $0x120] sm:$0x1] %vm6242, 0.0
        %6256 = vst.msk [vmem:[#allocation2 + $0x138] sm:$0x1] %vm6242, 0.0
        %6257 = vst.msk [vmem:[#allocation2 + $0x150] sm:$0x1] %vm6242, 0.0
        %6258 = vst.msk [vmem:[#allocation2 + $0x168] sm:$0x1] %vm6242, 0.0
        %6259 = vst.msk [vmem:[#allocation2 + $0x180] sm:$0x1] %vm6242, 0.0
        %6260 = vst.msk [vmem:[#allocation2 + $0x198] sm:$0x1] %vm6242, 0.0
        %6261 = vst.msk [vmem:[#allocation2 + $0x11] sm:$0x1] %vm6242, 0.0
        %6262 = vst.msk [vmem:[#allocation2 + $0x29] sm:$0x1] %vm6242, 0.0
        %6263 = vst.msk [vmem:[#allocation2 + $0x41] sm:$0x1] %vm6242, 0.0
        %6264 = vst.msk [vmem:[#allocation2 + $0x59] sm:$0x1] %vm6242, 0.0
        %6265 = vst.msk [vmem:[#allocation2 + $0x71] sm:$0x1] %vm6242, 0.0
        %6266 = vst.msk [vmem:[#allocation2 + $0x89] sm:$0x1] %vm6242, 0.0
        %6267 = vst.msk [vmem:[#allocation2 + $0xa1] sm:$0x1] %vm6242, 0.0
        %6268 = vst.msk [vmem:[#allocation2 + $0xb9] sm:$0x1] %vm6242, 0.0
        %6269 = vst.msk [vmem:[#allocation2 + $0xd1] sm:$0x1] %vm6242, 0.0
        %6270 = vst.msk [vmem:[#allocation2 + $0xe9] sm:$0x1] %vm6242, 0.0
        %6271 = vst.msk [vmem:[#allocation2 + $0x101] sm:$0x1] %vm6242, 0.0
        %6272 = vst.msk [vmem:[#allocation2 + $0x119] sm:$0x1] %vm6242, 0.0
        %6273 = vst.msk [vmem:[#allocation2 + $0x131] sm:$0x1] %vm6242, 0.0
        %6274 = vst.msk [vmem:[#allocation2 + $0x149] sm:$0x1] %vm6242, 0.0
        %6275 = vst.msk [vmem:[#allocation2 + $0x161] sm:$0x1] %vm6242, 0.0
        %6276 = vst.msk [vmem:[#allocation2 + $0x179] sm:$0x1] %vm6242, 0.0
        %6277 = vst.msk [vmem:[#allocation2 + $0x191] sm:$0x1] %vm6242, 0.0
        %6278 = vst.msk [vmem:[#allocation2 + $0x1a9] sm:$0x1] %vm6242, 0.0
        %6279 = vst.msk [vmem:[%s916 + $0x1] sm:$0xff] %vm6234, %v6202
        %6280 = vst.msk [vmem:[%s916 + $0x9] sm:$0xff] %vm6234, %v6203
        %6281 = vst.msk [vmem:[%s916 + $0x19] sm:$0xff] %vm6234, %v6204
        %6282 = vst.msk [vmem:[%s916 + $0x21] sm:$0xff] %vm6234, %v6205
        %6283 = vst.msk [vmem:[%s916 + $0x31] sm:$0xff] %vm6234, %v6206
        %6284 = vst.msk [vmem:[%s916 + $0x39] sm:$0xff] %vm6234, %v6207
        %6285 = vst.msk [vmem:[%s916 + $0x49] sm:$0xff] %vm6234, %v6208
        %6286 = vst.msk [vmem:[%s916 + $0x51] sm:$0xff] %vm6234, %v6209
        %6287 = vst.msk [vmem:[%s916 + $0x61] sm:$0xff] %vm6234, %v6210
        %6288 = vst.msk [vmem:[%s916 + $0x69] sm:$0xff] %vm6234, %v6211
        %6289 = vst.msk [vmem:[%s916 + $0x79] sm:$0xff] %vm6234, %v6212
        %6290 = vst.msk [vmem:[%s916 + $0x81] sm:$0xff] %vm6234, %v6213
        %6291 = vst.msk [vmem:[%s916 + $0x91] sm:$0xff] %vm6234, %v6214
        %6292 = vst.msk [vmem:[%s916 + $0x99] sm:$0xff] %vm6234, %v6215
        %6293 = vst.msk [vmem:[%s916 + $0xa9] sm:$0xff] %vm6234, %v6216
        %6294 = vst.msk [vmem:[%s916 + $0xb1] sm:$0xff] %vm6234, %v6217
        %6295 = vst.msk [vmem:[%s916 + $0xc1] sm:$0xff] %vm6234, %v6218
        %6296 = vst.msk [vmem:[%s916 + $0xc9] sm:$0xff] %vm6234, %v6219
        %6297 = vst.msk [vmem:[%s916 + $0xd9] sm:$0xff] %vm6234, %v6220
        %6298 = vst.msk [vmem:[%s916 + $0xe1] sm:$0xff] %vm6234, %v6221
        %6299 = vst.msk [vmem:[%s916 + $0xf1] sm:$0xff] %vm6234, %v6222
        %6300 = vst.msk [vmem:[%s916 + $0xf9] sm:$0xff] %vm6234, %v6223
        %6301 = vst.msk [vmem:[%s916 + $0x109] sm:$0xff] %vm6234, %v6224
        %6302 = vst.msk [vmem:[%s916 + $0x111] sm:$0xff] %vm6234, %v6225
        %6303 = vst.msk [vmem:[%s916 + $0x121] sm:$0xff] %vm6234, %v6226
        %6304 = vst.msk [vmem:[%s916 + $0x129] sm:$0xff] %vm6234, %v6227
        %6305 = vst.msk [vmem:[%s916 + $0x139] sm:$0xff] %vm6234, %v6228
        %6306 = vst.msk [vmem:[%s916 + $0x141] sm:$0xff] %vm6234, %v6229
        %6307 = vst.msk [vmem:[%s916 + $0x151] sm:$0xff] %vm6234, %v6230
        %6308 = vst.msk [vmem:[%s916 + $0x159] sm:$0xff] %vm6234, %v6231
        %6309 = vst.msk [vmem:[%s916 + $0x169] sm:$0xff] %vm6234, %v6232
        %6310 = vst.msk [vmem:[%s916 + $0x171] sm:$0xff] %vm6234, %v6233
        %v6311 = vld [vmem:[#allocation2] sm:$0xff]
        %v6312 = vld [vmem:[#allocation2 + $0x8] sm:$0xff]
        %v6313 = vld [vmem:[#allocation2 + $0x18] sm:$0xff]
        %v6314 = vld [vmem:[#allocation2 + $0x20] sm:$0xff]
        %v6315 = vld [vmem:[#allocation2 + $0x30] sm:$0xff]
        %v6316 = vld [vmem:[#allocation2 + $0x38] sm:$0xff]
        %v6317 = vld [vmem:[#allocation2 + $0x48] sm:$0xff]
        %v6318 = vld [vmem:[#allocation2 + $0x50] sm:$0xff]
        %v6319 = vld [vmem:[#allocation2 + $0x60] sm:$0xff]
        %v6320 = vld [vmem:[#allocation2 + $0x68] sm:$0xff]
        %v6321 = vld [vmem:[#allocation2 + $0x78] sm:$0xff]
        %v6322 = vld [vmem:[#allocation2 + $0x80] sm:$0xff]
        %v6323 = vld [vmem:[#allocation2 + $0x90] sm:$0xff]
        %v6324 = vld [vmem:[#allocation2 + $0x98] sm:$0xff]
        %v6325 = vld [vmem:[#allocation2 + $0xa8] sm:$0xff]
        %v6326 = vld [vmem:[#allocation2 + $0xb0] sm:$0xff]
        %v6327 = vld [vmem:[#allocation2 + $0xc0] sm:$0xff]
        %v6328 = vld [vmem:[#allocation2 + $0xc8] sm:$0xff]
        %v6329 = vld [vmem:[#allocation2 + $0xd8] sm:$0xff]
        %v6330 = vld [vmem:[#allocation2 + $0xe0] sm:$0xff]
        %v6331 = vld [vmem:[#allocation2 + $0xf0] sm:$0xff]
        %v6332 = vld [vmem:[#allocation2 + $0xf8] sm:$0xff]
        %v6333 = vld [vmem:[#allocation2 + $0x108] sm:$0xff]
        %v6334 = vld [vmem:[#allocation2 + $0x110] sm:$0xff]
        %v6335 = vld [vmem:[#allocation2 + $0x120] sm:$0xff]
        %v6336 = vld [vmem:[#allocation2 + $0x128] sm:$0xff]
        %v6337 = vld [vmem:[#allocation2 + $0x138] sm:$0xff]
        %v6338 = vld [vmem:[#allocation2 + $0x140] sm:$0xff]
        %v6339 = vld [vmem:[#allocation2 + $0x150] sm:$0xff]
        %v6340 = vld [vmem:[#allocation2 + $0x158] sm:$0xff]
        %v6341 = vld [vmem:[#allocation2 + $0x168] sm:$0xff]
        %v6342 = vld [vmem:[#allocation2 + $0x170] sm:$0xff]
        %v6343 = vld [vmem:[%s10] sm:$0xff]
        %v6344 = vld [vmem:[#allocation2 + $0x1] sm:$0xff]
        %v6345 = vld [vmem:[#allocation2 + $0x9] sm:$0xff]
        %v6346 = vld [vmem:[#allocation2 + $0x19] sm:$0xff]
        %v6347 = vld [vmem:[#allocation2 + $0x21] sm:$0xff]
        %v6348 = vld [vmem:[#allocation2 + $0x31] sm:$0xff]
        %v6349 = vld [vmem:[#allocation2 + $0x39] sm:$0xff]
        %v6350 = vld [vmem:[#allocation2 + $0x49] sm:$0xff]
        %v6351 = vld [vmem:[#allocation2 + $0x51] sm:$0xff]
        %v6352 = vld [vmem:[#allocation2 + $0x61] sm:$0xff]
        %v6353 = vld [vmem:[#allocation2 + $0x69] sm:$0xff]
        %v6354 = vld [vmem:[#allocation2 + $0x79] sm:$0xff]
        %v6355 = vld [vmem:[#allocation2 + $0x81] sm:$0xff]
        %v6356 = vld [vmem:[#allocation2 + $0x91] sm:$0xff]
        %v6357 = vld [vmem:[#allocation2 + $0x99] sm:$0xff]
        %v6358 = vld [vmem:[#allocation2 + $0xa9] sm:$0xff]
        %v6359 = vld [vmem:[#allocation2 + $0xb1] sm:$0xff]
        %v6360 = vld [vmem:[#allocation2 + $0xc1] sm:$0xff]
        %v6361 = vld [vmem:[#allocation2 + $0xc9] sm:$0xff]
        %v6362 = vld [vmem:[#allocation2 + $0xd9] sm:$0xff]
        %v6363 = vld [vmem:[#allocation2 + $0xe1] sm:$0xff]
        %v6364 = vld [vmem:[#allocation2 + $0xf1] sm:$0xff]
        %v6365 = vld [vmem:[#allocation2 + $0xf9] sm:$0xff]
        %v6366 = vld [vmem:[#allocation2 + $0x109] sm:$0xff]
        %v6367 = vld [vmem:[#allocation2 + $0x111] sm:$0xff]
        %v6368 = vld [vmem:[#allocation2 + $0x121] sm:$0xff]
        %v6369 = vld [vmem:[#allocation2 + $0x129] sm:$0xff]
        %v6370 = vld [vmem:[#allocation2 + $0x139] sm:$0xff]
        %v6371 = vld [vmem:[#allocation2 + $0x141] sm:$0xff]
        %v6372 = vld [vmem:[#allocation2 + $0x151] sm:$0xff]
        %v6373 = vld [vmem:[#allocation2 + $0x159] sm:$0xff]
        %v6374 = vld [vmem:[#allocation2 + $0x169] sm:$0xff]
        %v6375 = vld [vmem:[#allocation2 + $0x171] sm:$0xff]
        %s6376 = scalar_lea.vmem %s10, 8
        %v6377 = vld [vmem:[%s6376] sm:$0xff]
        %v6379 = vsel %vm6234, %v6344, 0
        %v6382 = vsel %vm6234, %v6345, 0
        %v6385 = vsel %vm6234, %v6346, 0
        %v6388 = vsel %vm6234, %v6347, 0
        %v6391 = vsel %vm6234, %v6348, 0
        %v6394 = vsel %vm6234, %v6349, 0
        %v6397 = vsel %vm6234, %v6350, 0
        %v6400 = vsel %vm6234, %v6351, 0
        %v6403 = vsel %vm6234, %v6352, 0
        %v6406 = vsel %vm6234, %v6353, 0
        %v6409 = vsel %vm6234, %v6354, 0
        %v6412 = vsel %vm6234, %v6355, 0
        %v6415 = vsel %vm6234, %v6356, 0
        %v6418 = vsel %vm6234, %v6357, 0
        %v6421 = vsel %vm6234, %v6358, 0
        %v6424 = vsel %vm6234, %v6359, 0
        %v6427 = vsel %vm6234, %v6360, 0
        %v6430 = vsel %vm6234, %v6361, 0
        %v6433 = vsel %vm6234, %v6362, 0
        %v6436 = vsel %vm6234, %v6363, 0
        %v6439 = vsel %vm6234, %v6364, 0
        %v6442 = vsel %vm6234, %v6365, 0
        %v6445 = vsel %vm6234, %v6366, 0
        %v6448 = vsel %vm6234, %v6367, 0
        %v6451 = vsel %vm6234, %v6368, 0
        %v6454 = vsel %vm6234, %v6369, 0
        %v6457 = vsel %vm6234, %v6370, 0
        %v6460 = vsel %vm6234, %v6371, 0
        %v6463 = vsel %vm6234, %v6372, 0
        %v6466 = vsel %vm6234, %v6373, 0
        %v6469 = vsel %vm6234, %v6374, 0
        %v6472 = vsel %vm6234, %v6375, 0
        %6474 = vmatpush.msra.mxu0 0.0
        %6475 = vmatpush.msra.mxu0 0.0
        %6476 = vmatpush.msra.mxu0 0.0
        %6477 = vmatpush.msra.mxu0 0.0
        %6478 = vmatpush.msra.mxu0 0.0
        %6479 = vmatpush.msra.mxu0 0.0
        %6480 = vmatpush.msra.mxu0 0.0
        %6481 = vmatpush.msra.mxu0 0.0
        %6482 = vmatpush.msra.mxu0 0.0
        %6483 = vmatpush.msra.mxu0 0.0
        %6484 = vmatpush.msra.mxu0 0.0
        %6485 = vmatpush.msra.mxu0 0.0
        %6486 = vmatpush.msra.mxu0 0.0
        %6487 = vmatpush.msra.mxu0 0.0
        %6488 = vmatpush.msra.mxu0 0.0
        %6489 = vmatpush.msra.mxu0 %v6377
        %6490 = vmatmul.f32.gmra.mxu0 %v6379
        %v6491 = vpop.f32.mrf.mxu0
        %v6492 = vadd.f32 0.0, %v6491
        %6493 = vmatmul.f32.gmra.mxu0 %v6382
        %v6494 = vpop.f32.mrf.mxu0
        %v6495 = vadd.f32 0.0, %v6494
        %6496 = vmatmul.f32.gmra.mxu0 %v6385
        %v6497 = vpop.f32.mrf.mxu0
        %v6498 = vadd.f32 0.0, %v6497
        %6499 = vmatmul.f32.gmra.mxu0 %v6388
        %v6500 = vpop.f32.mrf.mxu0
        %v6501 = vadd.f32 0.0, %v6500
        %6502 = vmatmul.f32.gmra.mxu0 %v6391
        %v6503 = vpop.f32.mrf.mxu0
        %v6504 = vadd.f32 0.0, %v6503
        %6505 = vmatmul.f32.gmra.mxu0 %v6394
        %v6506 = vpop.f32.mrf.mxu0
        %v6507 = vadd.f32 0.0, %v6506
        %6508 = vmatmul.f32.gmra.mxu0 %v6397
        %v6509 = vpop.f32.mrf.mxu0
        %v6510 = vadd.f32 0.0, %v6509
        %6511 = vmatmul.f32.gmra.mxu0 %v6400
        %v6512 = vpop.f32.mrf.mxu0
        %v6513 = vadd.f32 0.0, %v6512
        %6514 = vmatmul.f32.gmra.mxu0 %v6403
        %v6515 = vpop.f32.mrf.mxu0
        %v6516 = vadd.f32 0.0, %v6515
        %6517 = vmatmul.f32.gmra.mxu0 %v6406
        %v6518 = vpop.f32.mrf.mxu0
        %v6519 = vadd.f32 0.0, %v6518
        %6520 = vmatmul.f32.gmra.mxu0 %v6409
        %v6521 = vpop.f32.mrf.mxu0
        %v6522 = vadd.f32 0.0, %v6521
        %6523 = vmatmul.f32.gmra.mxu0 %v6412
        %v6524 = vpop.f32.mrf.mxu0
        %v6525 = vadd.f32 0.0, %v6524
        %6526 = vmatmul.f32.gmra.mxu0 %v6415
        %v6527 = vpop.f32.mrf.mxu0
        %v6528 = vadd.f32 0.0, %v6527
        %6529 = vmatmul.f32.gmra.mxu0 %v6418
        %v6530 = vpop.f32.mrf.mxu0
        %v6531 = vadd.f32 0.0, %v6530
        %6532 = vmatmul.f32.gmra.mxu0 %v6421
        %v6533 = vpop.f32.mrf.mxu0
        %v6534 = vadd.f32 0.0, %v6533
        %6535 = vmatmul.f32.gmra.mxu0 %v6424
        %v6536 = vpop.f32.mrf.mxu0
        %v6537 = vadd.f32 0.0, %v6536
        %6538 = vmatmul.f32.gmra.mxu0 %v6427
        %v6539 = vpop.f32.mrf.mxu0
        %v6540 = vadd.f32 0.0, %v6539
        %6541 = vmatmul.f32.gmra.mxu0 %v6430
        %v6542 = vpop.f32.mrf.mxu0
        %v6543 = vadd.f32 0.0, %v6542
        %6544 = vmatmul.f32.gmra.mxu0 %v6433
        %v6545 = vpop.f32.mrf.mxu0
        %v6546 = vadd.f32 0.0, %v6545
        %6547 = vmatmul.f32.gmra.mxu0 %v6436
        %v6548 = vpop.f32.mrf.mxu0
        %v6549 = vadd.f32 0.0, %v6548
        %6550 = vmatmul.f32.gmra.mxu0 %v6439
        %v6551 = vpop.f32.mrf.mxu0
        %v6552 = vadd.f32 0.0, %v6551
        %6553 = vmatmul.f32.gmra.mxu0 %v6442
        %v6554 = vpop.f32.mrf.mxu0
        %v6555 = vadd.f32 0.0, %v6554
        %6556 = vmatmul.f32.gmra.mxu0 %v6445
        %v6557 = vpop.f32.mrf.mxu0
        %v6558 = vadd.f32 0.0, %v6557
        %6559 = vmatmul.f32.gmra.mxu0 %v6448
        %v6560 = vpop.f32.mrf.mxu0
        %v6561 = vadd.f32 0.0, %v6560
        %6562 = vmatmul.f32.gmra.mxu0 %v6451
        %v6563 = vpop.f32.mrf.mxu0
        %v6564 = vadd.f32 0.0, %v6563
        %6565 = vmatmul.f32.gmra.mxu0 %v6454
        %v6566 = vpop.f32.mrf.mxu0
        %v6567 = vadd.f32 0.0, %v6566
        %6568 = vmatmul.f32.gmra.mxu0 %v6457
        %v6569 = vpop.f32.mrf.mxu0
        %v6570 = vadd.f32 0.0, %v6569
        %6571 = vmatmul.f32.gmra.mxu0 %v6460
        %v6572 = vpop.f32.mrf.mxu0
        %v6573 = vadd.f32 0.0, %v6572
        %6574 = vmatmul.f32.gmra.mxu0 %v6463
        %v6575 = vpop.f32.mrf.mxu0
        %v6576 = vadd.f32 0.0, %v6575
        %6577 = vmatmul.f32.gmra.mxu0 %v6466
        %v6578 = vpop.f32.mrf.mxu0
        %v6579 = vadd.f32 0.0, %v6578
        %6580 = vmatmul.f32.gmra.mxu0 %v6469
        %v6581 = vpop.f32.mrf.mxu0
        %v6582 = vadd.f32 0.0, %v6581
        %6583 = vmatmul.f32.gmra.mxu0 %v6472
        %v6584 = vpop.f32.mrf.mxu0
        %v6585 = vadd.f32 0.0, %v6584
        %6586 = vdwg.mxu0
        %v6588 = vsel %vm6234, %v6311, 0
        %v6591 = vsel %vm6234, %v6312, 0
        %v6594 = vsel %vm6234, %v6313, 0
        %v6597 = vsel %vm6234, %v6314, 0
        %v6600 = vsel %vm6234, %v6315, 0
        %v6603 = vsel %vm6234, %v6316, 0
        %v6606 = vsel %vm6234, %v6317, 0
        %v6609 = vsel %vm6234, %v6318, 0
        %v6612 = vsel %vm6234, %v6319, 0
        %v6615 = vsel %vm6234, %v6320, 0
        %v6618 = vsel %vm6234, %v6321, 0
        %v6621 = vsel %vm6234, %v6322, 0
        %v6624 = vsel %vm6234, %v6323, 0
        %v6627 = vsel %vm6234, %v6324, 0
        %v6630 = vsel %vm6234, %v6325, 0
        %v6633 = vsel %vm6234, %v6326, 0
        %v6636 = vsel %vm6234, %v6327, 0
        %v6639 = vsel %vm6234, %v6328, 0
        %v6642 = vsel %vm6234, %v6329, 0
        %v6645 = vsel %vm6234, %v6330, 0
        %v6648 = vsel %vm6234, %v6331, 0
        %v6651 = vsel %vm6234, %v6332, 0
        %v6654 = vsel %vm6234, %v6333, 0
        %v6657 = vsel %vm6234, %v6334, 0
        %v6660 = vsel %vm6234, %v6335, 0
        %v6663 = vsel %vm6234, %v6336, 0
        %v6666 = vsel %vm6234, %v6337, 0
        %v6669 = vsel %vm6234, %v6338, 0
        %v6672 = vsel %vm6234, %v6339, 0
        %v6675 = vsel %vm6234, %v6340, 0
        %v6678 = vsel %vm6234, %v6341, 0
        %v6681 = vsel %vm6234, %v6342, 0
        %6683 = vmatpush.msra.mxu0 0.0
        %6684 = vmatpush.msra.mxu0 0.0
        %6685 = vmatpush.msra.mxu0 0.0
        %6686 = vmatpush.msra.mxu0 0.0
        %6687 = vmatpush.msra.mxu0 0.0
        %6688 = vmatpush.msra.mxu0 0.0
        %6689 = vmatpush.msra.mxu0 0.0
        %6690 = vmatpush.msra.mxu0 0.0
        %6691 = vmatpush.msra.mxu0 0.0
        %6692 = vmatpush.msra.mxu0 0.0
        %6693 = vmatpush.msra.mxu0 0.0
        %6694 = vmatpush.msra.mxu0 0.0
        %6695 = vmatpush.msra.mxu0 0.0
        %6696 = vmatpush.msra.mxu0 0.0
        %6697 = vmatpush.msra.mxu0 0.0
        %6698 = vmatpush.msra.mxu0 %v6343
        %6699 = vmatmul.f32.gmra.mxu0 %v6588
        %v6700 = vpop.f32.mrf.mxu0
        %v6701 = vadd.f32 %v6492, %v6700
        %6702 = vmatmul.f32.gmra.mxu0 %v6591
        %v6703 = vpop.f32.mrf.mxu0
        %v6704 = vadd.f32 %v6495, %v6703
        %6705 = vmatmul.f32.gmra.mxu0 %v6594
        %v6706 = vpop.f32.mrf.mxu0
        %v6707 = vadd.f32 %v6498, %v6706
        %6708 = vmatmul.f32.gmra.mxu0 %v6597
        %v6709 = vpop.f32.mrf.mxu0
        %v6710 = vadd.f32 %v6501, %v6709
        %6711 = vmatmul.f32.gmra.mxu0 %v6600
        %v6712 = vpop.f32.mrf.mxu0
        %v6713 = vadd.f32 %v6504, %v6712
        %6714 = vmatmul.f32.gmra.mxu0 %v6603
        %v6715 = vpop.f32.mrf.mxu0
        %v6716 = vadd.f32 %v6507, %v6715
        %6717 = vmatmul.f32.gmra.mxu0 %v6606
        %v6718 = vpop.f32.mrf.mxu0
        %v6719 = vadd.f32 %v6510, %v6718
        %6720 = vmatmul.f32.gmra.mxu0 %v6609
        %v6721 = vpop.f32.mrf.mxu0
        %v6722 = vadd.f32 %v6513, %v6721
        %6723 = vmatmul.f32.gmra.mxu0 %v6612
        %v6724 = vpop.f32.mrf.mxu0
        %v6725 = vadd.f32 %v6516, %v6724
        %6726 = vmatmul.f32.gmra.mxu0 %v6615
        %v6727 = vpop.f32.mrf.mxu0
        %v6728 = vadd.f32 %v6519, %v6727
        %6729 = vmatmul.f32.gmra.mxu0 %v6618
        %v6730 = vpop.f32.mrf.mxu0
        %v6731 = vadd.f32 %v6522, %v6730
        %6732 = vmatmul.f32.gmra.mxu0 %v6621
        %v6733 = vpop.f32.mrf.mxu0
        %v6734 = vadd.f32 %v6525, %v6733
        %6735 = vmatmul.f32.gmra.mxu0 %v6624
        %v6736 = vpop.f32.mrf.mxu0
        %v6737 = vadd.f32 %v6528, %v6736
        %6738 = vmatmul.f32.gmra.mxu0 %v6627
        %v6739 = vpop.f32.mrf.mxu0
        %v6740 = vadd.f32 %v6531, %v6739
        %6741 = vmatmul.f32.gmra.mxu0 %v6630
        %v6742 = vpop.f32.mrf.mxu0
        %v6743 = vadd.f32 %v6534, %v6742
        %6744 = vmatmul.f32.gmra.mxu0 %v6633
        %v6745 = vpop.f32.mrf.mxu0
        %v6746 = vadd.f32 %v6537, %v6745
        %6747 = vmatmul.f32.gmra.mxu0 %v6636
        %v6748 = vpop.f32.mrf.mxu0
        %v6749 = vadd.f32 %v6540, %v6748
        %6750 = vmatmul.f32.gmra.mxu0 %v6639
        %v6751 = vpop.f32.mrf.mxu0
        %v6752 = vadd.f32 %v6543, %v6751
        %6753 = vmatmul.f32.gmra.mxu0 %v6642
        %v6754 = vpop.f32.mrf.mxu0
        %v6755 = vadd.f32 %v6546, %v6754
        %6756 = vmatmul.f32.gmra.mxu0 %v6645
        %v6757 = vpop.f32.mrf.mxu0
        %v6758 = vadd.f32 %v6549, %v6757
        %6759 = vmatmul.f32.gmra.mxu0 %v6648
        %v6760 = vpop.f32.mrf.mxu0
        %v6761 = vadd.f32 %v6552, %v6760
        %6762 = vmatmul.f32.gmra.mxu0 %v6651
        %v6763 = vpop.f32.mrf.mxu0
        %v6764 = vadd.f32 %v6555, %v6763
        %6765 = vmatmul.f32.gmra.mxu0 %v6654
        %v6766 = vpop.f32.mrf.mxu0
        %v6767 = vadd.f32 %v6558, %v6766
        %6768 = vmatmul.f32.gmra.mxu0 %v6657
        %v6769 = vpop.f32.mrf.mxu0
        %v6770 = vadd.f32 %v6561, %v6769
        %6771 = vmatmul.f32.gmra.mxu0 %v6660
        %v6772 = vpop.f32.mrf.mxu0
        %v6773 = vadd.f32 %v6564, %v6772
        %6774 = vmatmul.f32.gmra.mxu0 %v6663
        %v6775 = vpop.f32.mrf.mxu0
        %v6776 = vadd.f32 %v6567, %v6775
        %6777 = vmatmul.f32.gmra.mxu0 %v6666
        %v6778 = vpop.f32.mrf.mxu0
        %v6779 = vadd.f32 %v6570, %v6778
        %6780 = vmatmul.f32.gmra.mxu0 %v6669
        %v6781 = vpop.f32.mrf.mxu0
        %v6782 = vadd.f32 %v6573, %v6781
        %6783 = vmatmul.f32.gmra.mxu0 %v6672
        %v6784 = vpop.f32.mrf.mxu0
        %v6785 = vadd.f32 %v6576, %v6784
        %6786 = vmatmul.f32.gmra.mxu0 %v6675
        %v6787 = vpop.f32.mrf.mxu0
        %v6788 = vadd.f32 %v6579, %v6787
        %6789 = vmatmul.f32.gmra.mxu0 %v6678
        %v6790 = vpop.f32.mrf.mxu0
        %v6791 = vadd.f32 %v6582, %v6790
        %6792 = vmatmul.f32.gmra.mxu0 %v6681
        %v6793 = vpop.f32.mrf.mxu0
        %v6794 = vadd.f32 %v6585, %v6793
        %6795 = vdwg.mxu0
        %v6796 = vld [vmem:[#allocation2 + $0x2] sm:$0xff]
        %v6797 = vld [vmem:[#allocation2 + $0xa] sm:$0xff]
        %v6798 = vld [vmem:[#allocation2 + $0x1a] sm:$0xff]
        %v6799 = vld [vmem:[#allocation2 + $0x22] sm:$0xff]
        %v6800 = vld [vmem:[#allocation2 + $0x32] sm:$0xff]
        %v6801 = vld [vmem:[#allocation2 + $0x3a] sm:$0xff]
        %v6802 = vld [vmem:[#allocation2 + $0x4a] sm:$0xff]
        %v6803 = vld [vmem:[#allocation2 + $0x52] sm:$0xff]
        %v6804 = vld [vmem:[#allocation2 + $0x62] sm:$0xff]
        %v6805 = vld [vmem:[#allocation2 + $0x6a] sm:$0xff]
        %v6806 = vld [vmem:[#allocation2 + $0x7a] sm:$0xff]
        %v6807 = vld [vmem:[#allocation2 + $0x82] sm:$0xff]
        %v6808 = vld [vmem:[#allocation2 + $0x92] sm:$0xff]
        %v6809 = vld [vmem:[#allocation2 + $0x9a] sm:$0xff]
        %v6810 = vld [vmem:[#allocation2 + $0xaa] sm:$0xff]
        %v6811 = vld [vmem:[#allocation2 + $0xb2] sm:$0xff]
        %v6812 = vld [vmem:[#allocation2 + $0xc2] sm:$0xff]
        %v6813 = vld [vmem:[#allocation2 + $0xca] sm:$0xff]
        %v6814 = vld [vmem:[#allocation2 + $0xda] sm:$0xff]
        %v6815 = vld [vmem:[#allocation2 + $0xe2] sm:$0xff]
        %v6816 = vld [vmem:[#allocation2 + $0xf2] sm:$0xff]
        %v6817 = vld [vmem:[#allocation2 + $0xfa] sm:$0xff]
        %v6818 = vld [vmem:[#allocation2 + $0x10a] sm:$0xff]
        %v6819 = vld [vmem:[#allocation2 + $0x112] sm:$0xff]
        %v6820 = vld [vmem:[#allocation2 + $0x122] sm:$0xff]
        %v6821 = vld [vmem:[#allocation2 + $0x12a] sm:$0xff]
        %v6822 = vld [vmem:[#allocation2 + $0x13a] sm:$0xff]
        %v6823 = vld [vmem:[#allocation2 + $0x142] sm:$0xff]
        %v6824 = vld [vmem:[#allocation2 + $0x152] sm:$0xff]
        %v6825 = vld [vmem:[#allocation2 + $0x15a] sm:$0xff]
        %v6826 = vld [vmem:[#allocation2 + $0x16a] sm:$0xff]
        %v6827 = vld [vmem:[#allocation2 + $0x172] sm:$0xff]
        %s6828 = scalar_lea.vmem %s10, 16
        %v6829 = vld [vmem:[%s6828] sm:$0xff]
        %v6831 = vsel %vm6234, %v6796, 0
        %v6834 = vsel %vm6234, %v6797, 0
        %v6837 = vsel %vm6234, %v6798, 0
        %v6840 = vsel %vm6234, %v6799, 0
        %v6843 = vsel %vm6234, %v6800, 0
        %v6846 = vsel %vm6234, %v6801, 0
        %v6849 = vsel %vm6234, %v6802, 0
        %v6852 = vsel %vm6234, %v6803, 0
        %v6855 = vsel %vm6234, %v6804, 0
        %v6858 = vsel %vm6234, %v6805, 0
        %v6861 = vsel %vm6234, %v6806, 0
        %v6864 = vsel %vm6234, %v6807, 0
        %v6867 = vsel %vm6234, %v6808, 0
        %v6870 = vsel %vm6234, %v6809, 0
        %v6873 = vsel %vm6234, %v6810, 0
        %v6876 = vsel %vm6234, %v6811, 0
        %v6879 = vsel %vm6234, %v6812, 0
        %v6882 = vsel %vm6234, %v6813, 0
        %v6885 = vsel %vm6234, %v6814, 0
        %v6888 = vsel %vm6234, %v6815, 0
        %v6891 = vsel %vm6234, %v6816, 0
        %v6894 = vsel %vm6234, %v6817, 0
        %v6897 = vsel %vm6234, %v6818, 0
        %v6900 = vsel %vm6234, %v6819, 0
        %v6903 = vsel %vm6234, %v6820, 0
        %v6906 = vsel %vm6234, %v6821, 0
        %v6909 = vsel %vm6234, %v6822, 0
        %v6912 = vsel %vm6234, %v6823, 0
        %v6915 = vsel %vm6234, %v6824, 0
        %v6918 = vsel %vm6234, %v6825, 0
        %v6921 = vsel %vm6234, %v6826, 0
        %v6924 = vsel %vm6234, %v6827, 0
        %6926 = vmatpush.msra.mxu0 0.0
        %6927 = vmatpush.msra.mxu0 0.0
        %6928 = vmatpush.msra.mxu0 0.0
        %6929 = vmatpush.msra.mxu0 0.0
        %6930 = vmatpush.msra.mxu0 0.0
        %6931 = vmatpush.msra.mxu0 0.0
        %6932 = vmatpush.msra.mxu0 0.0
        %6933 = vmatpush.msra.mxu0 0.0
        %6934 = vmatpush.msra.mxu0 0.0
        %6935 = vmatpush.msra.mxu0 0.0
        %6936 = vmatpush.msra.mxu0 0.0
        %6937 = vmatpush.msra.mxu0 0.0
        %6938 = vmatpush.msra.mxu0 0.0
        %6939 = vmatpush.msra.mxu0 0.0
        %6940 = vmatpush.msra.mxu0 0.0
        %6941 = vmatpush.msra.mxu0 %v6829
        %6942 = vmatmul.f32.gmra.mxu0 %v6831
        %v6943 = vpop.f32.mrf.mxu0
        %v6944 = vadd.f32 0.0, %v6943
        %6945 = vmatmul.f32.gmra.mxu0 %v6834
        %v6946 = vpop.f32.mrf.mxu0
        %v6947 = vadd.f32 0.0, %v6946
        %6948 = vmatmul.f32.gmra.mxu0 %v6837
        %v6949 = vpop.f32.mrf.mxu0
        %v6950 = vadd.f32 0.0, %v6949
        %6951 = vmatmul.f32.gmra.mxu0 %v6840
        %v6952 = vpop.f32.mrf.mxu0
        %v6953 = vadd.f32 0.0, %v6952
        %6954 = vmatmul.f32.gmra.mxu0 %v6843
        %v6955 = vpop.f32.mrf.mxu0
        %v6956 = vadd.f32 0.0, %v6955
        %6957 = vmatmul.f32.gmra.mxu0 %v6846
        %v6958 = vpop.f32.mrf.mxu0
        %v6959 = vadd.f32 0.0, %v6958
        %6960 = vmatmul.f32.gmra.mxu0 %v6849
        %v6961 = vpop.f32.mrf.mxu0
        %v6962 = vadd.f32 0.0, %v6961
        %6963 = vmatmul.f32.gmra.mxu0 %v6852
        %v6964 = vpop.f32.mrf.mxu0
        %v6965 = vadd.f32 0.0, %v6964
        %6966 = vmatmul.f32.gmra.mxu0 %v6855
        %v6967 = vpop.f32.mrf.mxu0
        %v6968 = vadd.f32 0.0, %v6967
        %6969 = vmatmul.f32.gmra.mxu0 %v6858
        %v6970 = vpop.f32.mrf.mxu0
        %v6971 = vadd.f32 0.0, %v6970
        %6972 = vmatmul.f32.gmra.mxu0 %v6861
        %v6973 = vpop.f32.mrf.mxu0
        %v6974 = vadd.f32 0.0, %v6973
        %6975 = vmatmul.f32.gmra.mxu0 %v6864
        %v6976 = vpop.f32.mrf.mxu0
        %v6977 = vadd.f32 0.0, %v6976
        %6978 = vmatmul.f32.gmra.mxu0 %v6867
        %v6979 = vpop.f32.mrf.mxu0
        %v6980 = vadd.f32 0.0, %v6979
        %6981 = vmatmul.f32.gmra.mxu0 %v6870
        %v6982 = vpop.f32.mrf.mxu0
        %v6983 = vadd.f32 0.0, %v6982
        %6984 = vmatmul.f32.gmra.mxu0 %v6873
        %v6985 = vpop.f32.mrf.mxu0
        %v6986 = vadd.f32 0.0, %v6985
        %6987 = vmatmul.f32.gmra.mxu0 %v6876
        %v6988 = vpop.f32.mrf.mxu0
        %v6989 = vadd.f32 0.0, %v6988
        %6990 = vmatmul.f32.gmra.mxu0 %v6879
        %v6991 = vpop.f32.mrf.mxu0
        %v6992 = vadd.f32 0.0, %v6991
        %6993 = vmatmul.f32.gmra.mxu0 %v6882
        %v6994 = vpop.f32.mrf.mxu0
        %v6995 = vadd.f32 0.0, %v6994
        %6996 = vmatmul.f32.gmra.mxu0 %v6885
        %v6997 = vpop.f32.mrf.mxu0
        %v6998 = vadd.f32 0.0, %v6997
        %6999 = vmatmul.f32.gmra.mxu0 %v6888
        %v7000 = vpop.f32.mrf.mxu0
        %v7001 = vadd.f32 0.0, %v7000
        %7002 = vmatmul.f32.gmra.mxu0 %v6891
        %v7003 = vpop.f32.mrf.mxu0
        %v7004 = vadd.f32 0.0, %v7003
        %7005 = vmatmul.f32.gmra.mxu0 %v6894
        %v7006 = vpop.f32.mrf.mxu0
        %v7007 = vadd.f32 0.0, %v7006
        %7008 = vmatmul.f32.gmra.mxu0 %v6897
        %v7009 = vpop.f32.mrf.mxu0
        %v7010 = vadd.f32 0.0, %v7009
        %7011 = vmatmul.f32.gmra.mxu0 %v6900
        %v7012 = vpop.f32.mrf.mxu0
        %v7013 = vadd.f32 0.0, %v7012
        %7014 = vmatmul.f32.gmra.mxu0 %v6903
        %v7015 = vpop.f32.mrf.mxu0
        %v7016 = vadd.f32 0.0, %v7015
        %7017 = vmatmul.f32.gmra.mxu0 %v6906
        %v7018 = vpop.f32.mrf.mxu0
        %v7019 = vadd.f32 0.0, %v7018
        %7020 = vmatmul.f32.gmra.mxu0 %v6909
        %v7021 = vpop.f32.mrf.mxu0
        %v7022 = vadd.f32 0.0, %v7021
        %7023 = vmatmul.f32.gmra.mxu0 %v6912
        %v7024 = vpop.f32.mrf.mxu0
        %v7025 = vadd.f32 0.0, %v7024
        %7026 = vmatmul.f32.gmra.mxu0 %v6915
        %v7027 = vpop.f32.mrf.mxu0
        %v7028 = vadd.f32 0.0, %v7027
        %7029 = vmatmul.f32.gmra.mxu0 %v6918
        %v7030 = vpop.f32.mrf.mxu0
        %v7031 = vadd.f32 0.0, %v7030
        %7032 = vmatmul.f32.gmra.mxu0 %v6921
        %v7033 = vpop.f32.mrf.mxu0
        %v7034 = vadd.f32 0.0, %v7033
        %7035 = vmatmul.f32.gmra.mxu0 %v6924
        %v7036 = vpop.f32.mrf.mxu0
        %v7037 = vadd.f32 0.0, %v7036
        %7038 = vdwg.mxu0
        %v7039 = vadd.f32 %v6701, %v6944
        %v7040 = vadd.f32 %v6704, %v6947
        %v7041 = vadd.f32 %v6707, %v6950
        %v7042 = vadd.f32 %v6710, %v6953
        %v7043 = vadd.f32 %v6713, %v6956
        %v7044 = vadd.f32 %v6716, %v6959
        %v7045 = vadd.f32 %v6719, %v6962
        %v7046 = vadd.f32 %v6722, %v6965
        %v7047 = vadd.f32 %v6725, %v6968
        %v7048 = vadd.f32 %v6728, %v6971
        %v7049 = vadd.f32 %v6731, %v6974
        %v7050 = vadd.f32 %v6734, %v6977
        %v7051 = vadd.f32 %v6737, %v6980
        %v7052 = vadd.f32 %v6740, %v6983
        %v7053 = vadd.f32 %v6743, %v6986
        %v7054 = vadd.f32 %v6746, %v6989
        %v7055 = vadd.f32 %v6749, %v6992
        %v7056 = vadd.f32 %v6752, %v6995
        %v7057 = vadd.f32 %v6755, %v6998
        %v7058 = vadd.f32 %v6758, %v7001
        %v7059 = vadd.f32 %v6761, %v7004
        %v7060 = vadd.f32 %v6764, %v7007
        %v7061 = vadd.f32 %v6767, %v7010
        %v7062 = vadd.f32 %v6770, %v7013
        %v7063 = vadd.f32 %v6773, %v7016
        %v7064 = vadd.f32 %v6776, %v7019
        %v7065 = vadd.f32 %v6779, %v7022
        %v7066 = vadd.f32 %v6782, %v7025
        %v7067 = vadd.f32 %v6785, %v7028
        %v7068 = vadd.f32 %v6788, %v7031
        %v7069 = vadd.f32 %v6791, %v7034
        %v7070 = vadd.f32 %v6794, %v7037
        %v7071 = vld [vmem:[%s916] sm:$0xff]
        %v7072 = vld [vmem:[%s916 + $0x8] sm:$0xff]
        %v7073 = vld [vmem:[%s916 + $0x18] sm:$0xff]
        %v7074 = vld [vmem:[%s916 + $0x20] sm:$0xff]
        %v7075 = vld [vmem:[%s916 + $0x30] sm:$0xff]
        %v7076 = vld [vmem:[%s916 + $0x38] sm:$0xff]
        %v7077 = vld [vmem:[%s916 + $0x48] sm:$0xff]
        %v7078 = vld [vmem:[%s916 + $0x50] sm:$0xff]
        %v7079 = vld [vmem:[%s916 + $0x60] sm:$0xff]
        %v7080 = vld [vmem:[%s916 + $0x68] sm:$0xff]
        %v7081 = vld [vmem:[%s916 + $0x78] sm:$0xff]
        %v7082 = vld [vmem:[%s916 + $0x80] sm:$0xff]
        %v7083 = vld [vmem:[%s916 + $0x90] sm:$0xff]
        %v7084 = vld [vmem:[%s916 + $0x98] sm:$0xff]
        %v7085 = vld [vmem:[%s916 + $0xa8] sm:$0xff]
        %v7086 = vld [vmem:[%s916 + $0xb0] sm:$0xff]
        %v7087 = vld [vmem:[%s916 + $0xc0] sm:$0xff]
        %v7088 = vld [vmem:[%s916 + $0xc8] sm:$0xff]
        %v7089 = vld [vmem:[%s916 + $0xd8] sm:$0xff]
        %v7090 = vld [vmem:[%s916 + $0xe0] sm:$0xff]
        %v7091 = vld [vmem:[%s916 + $0xf0] sm:$0xff]
        %v7092 = vld [vmem:[%s916 + $0xf8] sm:$0xff]
        %v7093 = vld [vmem:[%s916 + $0x108] sm:$0xff]
        %v7094 = vld [vmem:[%s916 + $0x110] sm:$0xff]
        %v7095 = vld [vmem:[%s916 + $0x120] sm:$0xff]
        %v7096 = vld [vmem:[%s916 + $0x128] sm:$0xff]
        %v7097 = vld [vmem:[%s916 + $0x138] sm:$0xff]
        %v7098 = vld [vmem:[%s916 + $0x140] sm:$0xff]
        %v7099 = vld [vmem:[%s916 + $0x150] sm:$0xff]
        %v7100 = vld [vmem:[%s916 + $0x158] sm:$0xff]
        %v7101 = vld [vmem:[%s916 + $0x168] sm:$0xff]
        %v7102 = vld [vmem:[%s916 + $0x170] sm:$0xff]
        %s7103 = scalar_lea.vmem %s10, 24
        %v7104 = vld [vmem:[%s7103] sm:$0xff]
        %v7106 = vsel %vm6234, %v7071, 0
        %v7109 = vsel %vm6234, %v7072, 0
        %v7112 = vsel %vm6234, %v7073, 0
        %v7115 = vsel %vm6234, %v7074, 0
        %v7118 = vsel %vm6234, %v7075, 0
        %v7121 = vsel %vm6234, %v7076, 0
        %v7124 = vsel %vm6234, %v7077, 0
        %v7127 = vsel %vm6234, %v7078, 0
        %v7130 = vsel %vm6234, %v7079, 0
        %v7133 = vsel %vm6234, %v7080, 0
        %v7136 = vsel %vm6234, %v7081, 0
        %v7139 = vsel %vm6234, %v7082, 0
        %v7142 = vsel %vm6234, %v7083, 0
        %v7145 = vsel %vm6234, %v7084, 0
        %v7148 = vsel %vm6234, %v7085, 0
        %v7151 = vsel %vm6234, %v7086, 0
        %v7154 = vsel %vm6234, %v7087, 0
        %v7157 = vsel %vm6234, %v7088, 0
        %v7160 = vsel %vm6234, %v7089, 0
        %v7163 = vsel %vm6234, %v7090, 0
        %v7166 = vsel %vm6234, %v7091, 0
        %v7169 = vsel %vm6234, %v7092, 0
        %v7172 = vsel %vm6234, %v7093, 0
        %v7175 = vsel %vm6234, %v7094, 0
        %v7178 = vsel %vm6234, %v7095, 0
        %v7181 = vsel %vm6234, %v7096, 0
        %v7184 = vsel %vm6234, %v7097, 0
        %v7187 = vsel %vm6234, %v7098, 0
        %v7190 = vsel %vm6234, %v7099, 0
        %v7193 = vsel %vm6234, %v7100, 0
        %v7196 = vsel %vm6234, %v7101, 0
        %v7199 = vsel %vm6234, %v7102, 0
        %7201 = vmatpush.msra.mxu0 0.0
        %7202 = vmatpush.msra.mxu0 0.0
        %7203 = vmatpush.msra.mxu0 0.0
        %7204 = vmatpush.msra.mxu0 0.0
        %7205 = vmatpush.msra.mxu0 0.0
        %7206 = vmatpush.msra.mxu0 0.0
        %7207 = vmatpush.msra.mxu0 0.0
        %7208 = vmatpush.msra.mxu0 0.0
        %7209 = vmatpush.msra.mxu0 0.0
        %7210 = vmatpush.msra.mxu0 0.0
        %7211 = vmatpush.msra.mxu0 0.0
        %7212 = vmatpush.msra.mxu0 0.0
        %7213 = vmatpush.msra.mxu0 0.0
        %7214 = vmatpush.msra.mxu0 0.0
        %7215 = vmatpush.msra.mxu0 0.0
        %7216 = vmatpush.msra.mxu0 %v7104
        %7217 = vmatmul.f32.gmra.mxu0 %v7106
        %v7218 = vpop.f32.mrf.mxu0
        %v7219 = vadd.f32 0.0, %v7218
        %7220 = vmatmul.f32.gmra.mxu0 %v7109
        %v7221 = vpop.f32.mrf.mxu0
        %v7222 = vadd.f32 0.0, %v7221
        %7223 = vmatmul.f32.gmra.mxu0 %v7112
        %v7224 = vpop.f32.mrf.mxu0
        %v7225 = vadd.f32 0.0, %v7224
        %7226 = vmatmul.f32.gmra.mxu0 %v7115
        %v7227 = vpop.f32.mrf.mxu0
        %v7228 = vadd.f32 0.0, %v7227
        %7229 = vmatmul.f32.gmra.mxu0 %v7118
        %v7230 = vpop.f32.mrf.mxu0
        %v7231 = vadd.f32 0.0, %v7230
        %7232 = vmatmul.f32.gmra.mxu0 %v7121
        %v7233 = vpop.f32.mrf.mxu0
        %v7234 = vadd.f32 0.0, %v7233
        %7235 = vmatmul.f32.gmra.mxu0 %v7124
        %v7236 = vpop.f32.mrf.mxu0
        %v7237 = vadd.f32 0.0, %v7236
        %7238 = vmatmul.f32.gmra.mxu0 %v7127
        %v7239 = vpop.f32.mrf.mxu0
        %v7240 = vadd.f32 0.0, %v7239
        %7241 = vmatmul.f32.gmra.mxu0 %v7130
        %v7242 = vpop.f32.mrf.mxu0
        %v7243 = vadd.f32 0.0, %v7242
        %7244 = vmatmul.f32.gmra.mxu0 %v7133
        %v7245 = vpop.f32.mrf.mxu0
        %v7246 = vadd.f32 0.0, %v7245
        %7247 = vmatmul.f32.gmra.mxu0 %v7136
        %v7248 = vpop.f32.mrf.mxu0
        %v7249 = vadd.f32 0.0, %v7248
        %7250 = vmatmul.f32.gmra.mxu0 %v7139
        %v7251 = vpop.f32.mrf.mxu0
        %v7252 = vadd.f32 0.0, %v7251
        %7253 = vmatmul.f32.gmra.mxu0 %v7142
        %v7254 = vpop.f32.mrf.mxu0
        %v7255 = vadd.f32 0.0, %v7254
        %7256 = vmatmul.f32.gmra.mxu0 %v7145
        %v7257 = vpop.f32.mrf.mxu0
        %v7258 = vadd.f32 0.0, %v7257
        %7259 = vmatmul.f32.gmra.mxu0 %v7148
        %v7260 = vpop.f32.mrf.mxu0
        %v7261 = vadd.f32 0.0, %v7260
        %7262 = vmatmul.f32.gmra.mxu0 %v7151
        %v7263 = vpop.f32.mrf.mxu0
        %v7264 = vadd.f32 0.0, %v7263
        %7265 = vmatmul.f32.gmra.mxu0 %v7154
        %v7266 = vpop.f32.mrf.mxu0
        %v7267 = vadd.f32 0.0, %v7266
        %7268 = vmatmul.f32.gmra.mxu0 %v7157
        %v7269 = vpop.f32.mrf.mxu0
        %v7270 = vadd.f32 0.0, %v7269
        %7271 = vmatmul.f32.gmra.mxu0 %v7160
        %v7272 = vpop.f32.mrf.mxu0
        %v7273 = vadd.f32 0.0, %v7272
        %7274 = vmatmul.f32.gmra.mxu0 %v7163
        %v7275 = vpop.f32.mrf.mxu0
        %v7276 = vadd.f32 0.0, %v7275
        %7277 = vmatmul.f32.gmra.mxu0 %v7166
        %v7278 = vpop.f32.mrf.mxu0
        %v7279 = vadd.f32 0.0, %v7278
        %7280 = vmatmul.f32.gmra.mxu0 %v7169
        %v7281 = vpop.f32.mrf.mxu0
        %v7282 = vadd.f32 0.0, %v7281
        %7283 = vmatmul.f32.gmra.mxu0 %v7172
        %v7284 = vpop.f32.mrf.mxu0
        %v7285 = vadd.f32 0.0, %v7284
        %7286 = vmatmul.f32.gmra.mxu0 %v7175
        %v7287 = vpop.f32.mrf.mxu0
        %v7288 = vadd.f32 0.0, %v7287
        %7289 = vmatmul.f32.gmra.mxu0 %v7178
        %v7290 = vpop.f32.mrf.mxu0
        %v7291 = vadd.f32 0.0, %v7290
        %7292 = vmatmul.f32.gmra.mxu0 %v7181
        %v7293 = vpop.f32.mrf.mxu0
        %v7294 = vadd.f32 0.0, %v7293
        %7295 = vmatmul.f32.gmra.mxu0 %v7184
        %v7296 = vpop.f32.mrf.mxu0
        %v7297 = vadd.f32 0.0, %v7296
        %7298 = vmatmul.f32.gmra.mxu0 %v7187
        %v7299 = vpop.f32.mrf.mxu0
        %v7300 = vadd.f32 0.0, %v7299
        %7301 = vmatmul.f32.gmra.mxu0 %v7190
        %v7302 = vpop.f32.mrf.mxu0
        %v7303 = vadd.f32 0.0, %v7302
        %7304 = vmatmul.f32.gmra.mxu0 %v7193
        %v7305 = vpop.f32.mrf.mxu0
        %v7306 = vadd.f32 0.0, %v7305
        %7307 = vmatmul.f32.gmra.mxu0 %v7196
        %v7308 = vpop.f32.mrf.mxu0
        %v7309 = vadd.f32 0.0, %v7308
        %7310 = vmatmul.f32.gmra.mxu0 %v7199
        %v7311 = vpop.f32.mrf.mxu0
        %v7312 = vadd.f32 0.0, %v7311
        %7313 = vdwg.mxu0
        %v7314 = vadd.f32 %v7039, %v7219
        %v7315 = vadd.f32 %v7040, %v7222
        %v7316 = vadd.f32 %v7041, %v7225
        %v7317 = vadd.f32 %v7042, %v7228
        %v7318 = vadd.f32 %v7043, %v7231
        %v7319 = vadd.f32 %v7044, %v7234
        %v7320 = vadd.f32 %v7045, %v7237
        %v7321 = vadd.f32 %v7046, %v7240
        %v7322 = vadd.f32 %v7047, %v7243
        %v7323 = vadd.f32 %v7048, %v7246
        %v7324 = vadd.f32 %v7049, %v7249
        %v7325 = vadd.f32 %v7050, %v7252
        %v7326 = vadd.f32 %v7051, %v7255
        %v7327 = vadd.f32 %v7052, %v7258
        %v7328 = vadd.f32 %v7053, %v7261
        %v7329 = vadd.f32 %v7054, %v7264
        %v7330 = vadd.f32 %v7055, %v7267
        %v7331 = vadd.f32 %v7056, %v7270
        %v7332 = vadd.f32 %v7057, %v7273
        %v7333 = vadd.f32 %v7058, %v7276
        %v7334 = vadd.f32 %v7059, %v7279
        %v7335 = vadd.f32 %v7060, %v7282
        %v7336 = vadd.f32 %v7061, %v7285
        %v7337 = vadd.f32 %v7062, %v7288
        %v7338 = vadd.f32 %v7063, %v7291
        %v7339 = vadd.f32 %v7064, %v7294
        %v7340 = vadd.f32 %v7065, %v7297
        %v7341 = vadd.f32 %v7066, %v7300
        %v7342 = vadd.f32 %v7067, %v7303
        %v7343 = vadd.f32 %v7068, %v7306
        %v7344 = vadd.f32 %v7069, %v7309
        %v7345 = vadd.f32 %v7070, %v7312
        %v7346 = vld [vmem:[%s916 + $0x1] sm:$0xff]
        %v7347 = vld [vmem:[%s916 + $0x9] sm:$0xff]
        %v7348 = vld [vmem:[%s916 + $0x19] sm:$0xff]
        %v7349 = vld [vmem:[%s916 + $0x21] sm:$0xff]
        %v7350 = vld [vmem:[%s916 + $0x31] sm:$0xff]
        %v7351 = vld [vmem:[%s916 + $0x39] sm:$0xff]
        %v7352 = vld [vmem:[%s916 + $0x49] sm:$0xff]
        %v7353 = vld [vmem:[%s916 + $0x51] sm:$0xff]
        %v7354 = vld [vmem:[%s916 + $0x61] sm:$0xff]
        %v7355 = vld [vmem:[%s916 + $0x69] sm:$0xff]
        %v7356 = vld [vmem:[%s916 + $0x79] sm:$0xff]
        %v7357 = vld [vmem:[%s916 + $0x81] sm:$0xff]
        %v7358 = vld [vmem:[%s916 + $0x91] sm:$0xff]
        %v7359 = vld [vmem:[%s916 + $0x99] sm:$0xff]
        %v7360 = vld [vmem:[%s916 + $0xa9] sm:$0xff]
        %v7361 = vld [vmem:[%s916 + $0xb1] sm:$0xff]
        %v7362 = vld [vmem:[%s916 + $0xc1] sm:$0xff]
        %v7363 = vld [vmem:[%s916 + $0xc9] sm:$0xff]
        %v7364 = vld [vmem:[%s916 + $0xd9] sm:$0xff]
        %v7365 = vld [vmem:[%s916 + $0xe1] sm:$0xff]
        %v7366 = vld [vmem:[%s916 + $0xf1] sm:$0xff]
        %v7367 = vld [vmem:[%s916 + $0xf9] sm:$0xff]
        %v7368 = vld [vmem:[%s916 + $0x109] sm:$0xff]
        %v7369 = vld [vmem:[%s916 + $0x111] sm:$0xff]
        %v7370 = vld [vmem:[%s916 + $0x121] sm:$0xff]
        %v7371 = vld [vmem:[%s916 + $0x129] sm:$0xff]
        %v7372 = vld [vmem:[%s916 + $0x139] sm:$0xff]
        %v7373 = vld [vmem:[%s916 + $0x141] sm:$0xff]
        %v7374 = vld [vmem:[%s916 + $0x151] sm:$0xff]
        %v7375 = vld [vmem:[%s916 + $0x159] sm:$0xff]
        %v7376 = vld [vmem:[%s916 + $0x169] sm:$0xff]
        %v7377 = vld [vmem:[%s916 + $0x171] sm:$0xff]
        %s7378 = scalar_lea.vmem %s10, 32
        %v7379 = vld [vmem:[%s7378] sm:$0xff]
        %v7381 = vsel %vm6234, %v7346, 0
        %v7384 = vsel %vm6234, %v7347, 0
        %v7387 = vsel %vm6234, %v7348, 0
        %v7390 = vsel %vm6234, %v7349, 0
        %v7393 = vsel %vm6234, %v7350, 0
        %v7396 = vsel %vm6234, %v7351, 0
        %v7399 = vsel %vm6234, %v7352, 0
        %v7402 = vsel %vm6234, %v7353, 0
        %v7405 = vsel %vm6234, %v7354, 0
        %v7408 = vsel %vm6234, %v7355, 0
        %v7411 = vsel %vm6234, %v7356, 0
        %v7414 = vsel %vm6234, %v7357, 0
        %v7417 = vsel %vm6234, %v7358, 0
        %v7420 = vsel %vm6234, %v7359, 0
        %v7423 = vsel %vm6234, %v7360, 0
        %v7426 = vsel %vm6234, %v7361, 0
        %v7429 = vsel %vm6234, %v7362, 0
        %v7432 = vsel %vm6234, %v7363, 0
        %v7435 = vsel %vm6234, %v7364, 0
        %v7438 = vsel %vm6234, %v7365, 0
        %v7441 = vsel %vm6234, %v7366, 0
        %v7444 = vsel %vm6234, %v7367, 0
        %v7447 = vsel %vm6234, %v7368, 0
        %v7450 = vsel %vm6234, %v7369, 0
        %v7453 = vsel %vm6234, %v7370, 0
        %v7456 = vsel %vm6234, %v7371, 0
        %v7459 = vsel %vm6234, %v7372, 0
        %v7462 = vsel %vm6234, %v7373, 0
        %v7465 = vsel %vm6234, %v7374, 0
        %v7468 = vsel %vm6234, %v7375, 0
        %v7471 = vsel %vm6234, %v7376, 0
        %v7474 = vsel %vm6234, %v7377, 0
        %7476 = vmatpush.msra.mxu0 0.0
        %7477 = vmatpush.msra.mxu0 0.0
        %7478 = vmatpush.msra.mxu0 0.0
        %7479 = vmatpush.msra.mxu0 0.0
        %7480 = vmatpush.msra.mxu0 0.0
        %7481 = vmatpush.msra.mxu0 0.0
        %7482 = vmatpush.msra.mxu0 0.0
        %7483 = vmatpush.msra.mxu0 0.0
        %7484 = vmatpush.msra.mxu0 0.0
        %7485 = vmatpush.msra.mxu0 0.0
        %7486 = vmatpush.msra.mxu0 0.0
        %7487 = vmatpush.msra.mxu0 0.0
        %7488 = vmatpush.msra.mxu0 0.0
        %7489 = vmatpush.msra.mxu0 0.0
        %7490 = vmatpush.msra.mxu0 0.0
        %7491 = vmatpush.msra.mxu0 %v7379
        %7492 = vmatmul.f32.gmra.mxu0 %v7381
        %v7493 = vpop.f32.mrf.mxu0
        %v7494 = vadd.f32 0.0, %v7493
        %7495 = vmatmul.f32.gmra.mxu0 %v7384
        %v7496 = vpop.f32.mrf.mxu0
        %v7497 = vadd.f32 0.0, %v7496
        %7498 = vmatmul.f32.gmra.mxu0 %v7387
        %v7499 = vpop.f32.mrf.mxu0
        %v7500 = vadd.f32 0.0, %v7499
        %7501 = vmatmul.f32.gmra.mxu0 %v7390
        %v7502 = vpop.f32.mrf.mxu0
        %v7503 = vadd.f32 0.0, %v7502
        %7504 = vmatmul.f32.gmra.mxu0 %v7393
        %v7505 = vpop.f32.mrf.mxu0
        %v7506 = vadd.f32 0.0, %v7505
        %7507 = vmatmul.f32.gmra.mxu0 %v7396
        %v7508 = vpop.f32.mrf.mxu0
        %v7509 = vadd.f32 0.0, %v7508
        %7510 = vmatmul.f32.gmra.mxu0 %v7399
        %v7511 = vpop.f32.mrf.mxu0
        %v7512 = vadd.f32 0.0, %v7511
        %7513 = vmatmul.f32.gmra.mxu0 %v7402
        %v7514 = vpop.f32.mrf.mxu0
        %v7515 = vadd.f32 0.0, %v7514
        %7516 = vmatmul.f32.gmra.mxu0 %v7405
        %v7517 = vpop.f32.mrf.mxu0
        %v7518 = vadd.f32 0.0, %v7517
        %7519 = vmatmul.f32.gmra.mxu0 %v7408
        %v7520 = vpop.f32.mrf.mxu0
        %v7521 = vadd.f32 0.0, %v7520
        %7522 = vmatmul.f32.gmra.mxu0 %v7411
        %v7523 = vpop.f32.mrf.mxu0
        %v7524 = vadd.f32 0.0, %v7523
        %7525 = vmatmul.f32.gmra.mxu0 %v7414
        %v7526 = vpop.f32.mrf.mxu0
        %v7527 = vadd.f32 0.0, %v7526
        %7528 = vmatmul.f32.gmra.mxu0 %v7417
        %v7529 = vpop.f32.mrf.mxu0
        %v7530 = vadd.f32 0.0, %v7529
        %7531 = vmatmul.f32.gmra.mxu0 %v7420
        %v7532 = vpop.f32.mrf.mxu0
        %v7533 = vadd.f32 0.0, %v7532
        %7534 = vmatmul.f32.gmra.mxu0 %v7423
        %v7535 = vpop.f32.mrf.mxu0
        %v7536 = vadd.f32 0.0, %v7535
        %7537 = vmatmul.f32.gmra.mxu0 %v7426
        %v7538 = vpop.f32.mrf.mxu0
        %v7539 = vadd.f32 0.0, %v7538
        %7540 = vmatmul.f32.gmra.mxu0 %v7429
        %v7541 = vpop.f32.mrf.mxu0
        %v7542 = vadd.f32 0.0, %v7541
        %7543 = vmatmul.f32.gmra.mxu0 %v7432
        %v7544 = vpop.f32.mrf.mxu0
        %v7545 = vadd.f32 0.0, %v7544
        %7546 = vmatmul.f32.gmra.mxu0 %v7435
        %v7547 = vpop.f32.mrf.mxu0
        %v7548 = vadd.f32 0.0, %v7547
        %7549 = vmatmul.f32.gmra.mxu0 %v7438
        %v7550 = vpop.f32.mrf.mxu0
        %v7551 = vadd.f32 0.0, %v7550
        %7552 = vmatmul.f32.gmra.mxu0 %v7441
        %v7553 = vpop.f32.mrf.mxu0
        %v7554 = vadd.f32 0.0, %v7553
        %7555 = vmatmul.f32.gmra.mxu0 %v7444
        %v7556 = vpop.f32.mrf.mxu0
        %v7557 = vadd.f32 0.0, %v7556
        %7558 = vmatmul.f32.gmra.mxu0 %v7447
        %v7559 = vpop.f32.mrf.mxu0
        %v7560 = vadd.f32 0.0, %v7559
        %7561 = vmatmul.f32.gmra.mxu0 %v7450
        %v7562 = vpop.f32.mrf.mxu0
        %v7563 = vadd.f32 0.0, %v7562
        %7564 = vmatmul.f32.gmra.mxu0 %v7453
        %v7565 = vpop.f32.mrf.mxu0
        %v7566 = vadd.f32 0.0, %v7565
        %7567 = vmatmul.f32.gmra.mxu0 %v7456
        %v7568 = vpop.f32.mrf.mxu0
        %v7569 = vadd.f32 0.0, %v7568
        %7570 = vmatmul.f32.gmra.mxu0 %v7459
        %v7571 = vpop.f32.mrf.mxu0
        %v7572 = vadd.f32 0.0, %v7571
        %7573 = vmatmul.f32.gmra.mxu0 %v7462
        %v7574 = vpop.f32.mrf.mxu0
        %v7575 = vadd.f32 0.0, %v7574
        %7576 = vmatmul.f32.gmra.mxu0 %v7465
        %v7577 = vpop.f32.mrf.mxu0
        %v7578 = vadd.f32 0.0, %v7577
        %7579 = vmatmul.f32.gmra.mxu0 %v7468
        %v7580 = vpop.f32.mrf.mxu0
        %v7581 = vadd.f32 0.0, %v7580
        %7582 = vmatmul.f32.gmra.mxu0 %v7471
        %v7583 = vpop.f32.mrf.mxu0
        %v7584 = vadd.f32 0.0, %v7583
        %7585 = vmatmul.f32.gmra.mxu0 %v7474
        %v7586 = vpop.f32.mrf.mxu0
        %v7587 = vadd.f32 0.0, %v7586
        %7588 = vdwg.mxu0
        %v7589 = vadd.f32 %v7314, %v7494
        %v7590 = vadd.f32 %v7315, %v7497
        %v7591 = vadd.f32 %v7316, %v7500
        %v7592 = vadd.f32 %v7317, %v7503
        %v7593 = vadd.f32 %v7318, %v7506
        %v7594 = vadd.f32 %v7319, %v7509
        %v7595 = vadd.f32 %v7320, %v7512
        %v7596 = vadd.f32 %v7321, %v7515
        %v7597 = vadd.f32 %v7322, %v7518
        %v7598 = vadd.f32 %v7323, %v7521
        %v7599 = vadd.f32 %v7324, %v7524
        %v7600 = vadd.f32 %v7325, %v7527
        %v7601 = vadd.f32 %v7326, %v7530
        %v7602 = vadd.f32 %v7327, %v7533
        %v7603 = vadd.f32 %v7328, %v7536
        %v7604 = vadd.f32 %v7329, %v7539
        %v7605 = vadd.f32 %v7330, %v7542
        %v7606 = vadd.f32 %v7331, %v7545
        %v7607 = vadd.f32 %v7332, %v7548
        %v7608 = vadd.f32 %v7333, %v7551
        %v7609 = vadd.f32 %v7334, %v7554
        %v7610 = vadd.f32 %v7335, %v7557
        %v7611 = vadd.f32 %v7336, %v7560
        %v7612 = vadd.f32 %v7337, %v7563
        %v7613 = vadd.f32 %v7338, %v7566
        %v7614 = vadd.f32 %v7339, %v7569
        %v7615 = vadd.f32 %v7340, %v7572
        %v7616 = vadd.f32 %v7341, %v7575
        %v7617 = vadd.f32 %v7342, %v7578
        %v7618 = vadd.f32 %v7343, %v7581
        %v7619 = vadd.f32 %v7344, %v7584
        %v7620 = vadd.f32 %v7345, %v7587
        %v7621 = vld [vmem:[%s916 + $0x2] sm:$0xff]
        %v7622 = vld [vmem:[%s916 + $0xa] sm:$0xff]
        %v7623 = vld [vmem:[%s916 + $0x1a] sm:$0xff]
        %v7624 = vld [vmem:[%s916 + $0x22] sm:$0xff]
        %v7625 = vld [vmem:[%s916 + $0x32] sm:$0xff]
        %v7626 = vld [vmem:[%s916 + $0x3a] sm:$0xff]
        %v7627 = vld [vmem:[%s916 + $0x4a] sm:$0xff]
        %v7628 = vld [vmem:[%s916 + $0x52] sm:$0xff]
        %v7629 = vld [vmem:[%s916 + $0x62] sm:$0xff]
        %v7630 = vld [vmem:[%s916 + $0x6a] sm:$0xff]
        %v7631 = vld [vmem:[%s916 + $0x7a] sm:$0xff]
        %v7632 = vld [vmem:[%s916 + $0x82] sm:$0xff]
        %v7633 = vld [vmem:[%s916 + $0x92] sm:$0xff]
        %v7634 = vld [vmem:[%s916 + $0x9a] sm:$0xff]
        %v7635 = vld [vmem:[%s916 + $0xaa] sm:$0xff]
        %v7636 = vld [vmem:[%s916 + $0xb2] sm:$0xff]
        %v7637 = vld [vmem:[%s916 + $0xc2] sm:$0xff]
        %v7638 = vld [vmem:[%s916 + $0xca] sm:$0xff]
        %v7639 = vld [vmem:[%s916 + $0xda] sm:$0xff]
        %v7640 = vld [vmem:[%s916 + $0xe2] sm:$0xff]
        %v7641 = vld [vmem:[%s916 + $0xf2] sm:$0xff]
        %v7642 = vld [vmem:[%s916 + $0xfa] sm:$0xff]
        %v7643 = vld [vmem:[%s916 + $0x10a] sm:$0xff]
        %v7644 = vld [vmem:[%s916 + $0x112] sm:$0xff]
        %v7645 = vld [vmem:[%s916 + $0x122] sm:$0xff]
        %v7646 = vld [vmem:[%s916 + $0x12a] sm:$0xff]
        %v7647 = vld [vmem:[%s916 + $0x13a] sm:$0xff]
        %v7648 = vld [vmem:[%s916 + $0x142] sm:$0xff]
        %v7649 = vld [vmem:[%s916 + $0x152] sm:$0xff]
        %v7650 = vld [vmem:[%s916 + $0x15a] sm:$0xff]
        %v7651 = vld [vmem:[%s916 + $0x16a] sm:$0xff]
        %v7652 = vld [vmem:[%s916 + $0x172] sm:$0xff]
        %s7653 = scalar_lea.vmem %s10, 40
        %v7654 = vld [vmem:[%s7653] sm:$0xff]
        %v7656 = vsel %vm6234, %v7621, 0
        %v7659 = vsel %vm6234, %v7622, 0
        %v7662 = vsel %vm6234, %v7623, 0
        %v7665 = vsel %vm6234, %v7624, 0
        %v7668 = vsel %vm6234, %v7625, 0
        %v7671 = vsel %vm6234, %v7626, 0
        %v7674 = vsel %vm6234, %v7627, 0
        %v7677 = vsel %vm6234, %v7628, 0
        %v7680 = vsel %vm6234, %v7629, 0
        %v7683 = vsel %vm6234, %v7630, 0
        %v7686 = vsel %vm6234, %v7631, 0
        %v7689 = vsel %vm6234, %v7632, 0
        %v7692 = vsel %vm6234, %v7633, 0
        %v7695 = vsel %vm6234, %v7634, 0
        %v7698 = vsel %vm6234, %v7635, 0
        %v7701 = vsel %vm6234, %v7636, 0
        %v7704 = vsel %vm6234, %v7637, 0
        %v7707 = vsel %vm6234, %v7638, 0
        %v7710 = vsel %vm6234, %v7639, 0
        %v7713 = vsel %vm6234, %v7640, 0
        %v7716 = vsel %vm6234, %v7641, 0
        %v7719 = vsel %vm6234, %v7642, 0
        %v7722 = vsel %vm6234, %v7643, 0
        %v7725 = vsel %vm6234, %v7644, 0
        %v7728 = vsel %vm6234, %v7645, 0
        %v7731 = vsel %vm6234, %v7646, 0
        %v7734 = vsel %vm6234, %v7647, 0
        %v7737 = vsel %vm6234, %v7648, 0
        %v7740 = vsel %vm6234, %v7649, 0
        %v7743 = vsel %vm6234, %v7650, 0
        %v7746 = vsel %vm6234, %v7651, 0
        %v7749 = vsel %vm6234, %v7652, 0
        %7751 = vmatpush.msra.mxu0 0.0
        %7752 = vmatpush.msra.mxu0 0.0
        %7753 = vmatpush.msra.mxu0 0.0
        %7754 = vmatpush.msra.mxu0 0.0
        %7755 = vmatpush.msra.mxu0 0.0
        %7756 = vmatpush.msra.mxu0 0.0
        %7757 = vmatpush.msra.mxu0 0.0
        %7758 = vmatpush.msra.mxu0 0.0
        %7759 = vmatpush.msra.mxu0 0.0
        %7760 = vmatpush.msra.mxu0 0.0
        %7761 = vmatpush.msra.mxu0 0.0
        %7762 = vmatpush.msra.mxu0 0.0
        %7763 = vmatpush.msra.mxu0 0.0
        %7764 = vmatpush.msra.mxu0 0.0
        %7765 = vmatpush.msra.mxu0 0.0
        %7766 = vmatpush.msra.mxu0 %v7654
        %7767 = vmatmul.f32.gmra.mxu0 %v7656
        %v7768 = vpop.f32.mrf.mxu0
        %v7769 = vadd.f32 0.0, %v7768
        %7770 = vmatmul.f32.gmra.mxu0 %v7659
        %v7771 = vpop.f32.mrf.mxu0
        %v7772 = vadd.f32 0.0, %v7771
        %7773 = vmatmul.f32.gmra.mxu0 %v7662
        %v7774 = vpop.f32.mrf.mxu0
        %v7775 = vadd.f32 0.0, %v7774
        %7776 = vmatmul.f32.gmra.mxu0 %v7665
        %v7777 = vpop.f32.mrf.mxu0
        %v7778 = vadd.f32 0.0, %v7777
        %7779 = vmatmul.f32.gmra.mxu0 %v7668
        %v7780 = vpop.f32.mrf.mxu0
        %v7781 = vadd.f32 0.0, %v7780
        %7782 = vmatmul.f32.gmra.mxu0 %v7671
        %v7783 = vpop.f32.mrf.mxu0
        %v7784 = vadd.f32 0.0, %v7783
        %7785 = vmatmul.f32.gmra.mxu0 %v7674
        %v7786 = vpop.f32.mrf.mxu0
        %v7787 = vadd.f32 0.0, %v7786
        %7788 = vmatmul.f32.gmra.mxu0 %v7677
        %v7789 = vpop.f32.mrf.mxu0
        %v7790 = vadd.f32 0.0, %v7789
        %7791 = vmatmul.f32.gmra.mxu0 %v7680
        %v7792 = vpop.f32.mrf.mxu0
        %v7793 = vadd.f32 0.0, %v7792
        %7794 = vmatmul.f32.gmra.mxu0 %v7683
        %v7795 = vpop.f32.mrf.mxu0
        %v7796 = vadd.f32 0.0, %v7795
        %7797 = vmatmul.f32.gmra.mxu0 %v7686
        %v7798 = vpop.f32.mrf.mxu0
        %v7799 = vadd.f32 0.0, %v7798
        %7800 = vmatmul.f32.gmra.mxu0 %v7689
        %v7801 = vpop.f32.mrf.mxu0
        %v7802 = vadd.f32 0.0, %v7801
        %7803 = vmatmul.f32.gmra.mxu0 %v7692
        %v7804 = vpop.f32.mrf.mxu0
        %v7805 = vadd.f32 0.0, %v7804
        %7806 = vmatmul.f32.gmra.mxu0 %v7695
        %v7807 = vpop.f32.mrf.mxu0
        %v7808 = vadd.f32 0.0, %v7807
        %7809 = vmatmul.f32.gmra.mxu0 %v7698
        %v7810 = vpop.f32.mrf.mxu0
        %v7811 = vadd.f32 0.0, %v7810
        %7812 = vmatmul.f32.gmra.mxu0 %v7701
        %v7813 = vpop.f32.mrf.mxu0
        %v7814 = vadd.f32 0.0, %v7813
        %7815 = vmatmul.f32.gmra.mxu0 %v7704
        %v7816 = vpop.f32.mrf.mxu0
        %v7817 = vadd.f32 0.0, %v7816
        %7818 = vmatmul.f32.gmra.mxu0 %v7707
        %v7819 = vpop.f32.mrf.mxu0
        %v7820 = vadd.f32 0.0, %v7819
        %7821 = vmatmul.f32.gmra.mxu0 %v7710
        %v7822 = vpop.f32.mrf.mxu0
        %v7823 = vadd.f32 0.0, %v7822
        %7824 = vmatmul.f32.gmra.mxu0 %v7713
        %v7825 = vpop.f32.mrf.mxu0
        %v7826 = vadd.f32 0.0, %v7825
        %7827 = vmatmul.f32.gmra.mxu0 %v7716
        %v7828 = vpop.f32.mrf.mxu0
        %v7829 = vadd.f32 0.0, %v7828
        %7830 = vmatmul.f32.gmra.mxu0 %v7719
        %v7831 = vpop.f32.mrf.mxu0
        %v7832 = vadd.f32 0.0, %v7831
        %7833 = vmatmul.f32.gmra.mxu0 %v7722
        %v7834 = vpop.f32.mrf.mxu0
        %v7835 = vadd.f32 0.0, %v7834
        %7836 = vmatmul.f32.gmra.mxu0 %v7725
        %v7837 = vpop.f32.mrf.mxu0
        %v7838 = vadd.f32 0.0, %v7837
        %7839 = vmatmul.f32.gmra.mxu0 %v7728
        %v7840 = vpop.f32.mrf.mxu0
        %v7841 = vadd.f32 0.0, %v7840
        %7842 = vmatmul.f32.gmra.mxu0 %v7731
        %v7843 = vpop.f32.mrf.mxu0
        %v7844 = vadd.f32 0.0, %v7843
        %7845 = vmatmul.f32.gmra.mxu0 %v7734
        %v7846 = vpop.f32.mrf.mxu0
        %v7847 = vadd.f32 0.0, %v7846
        %7848 = vmatmul.f32.gmra.mxu0 %v7737
        %v7849 = vpop.f32.mrf.mxu0
        %v7850 = vadd.f32 0.0, %v7849
        %7851 = vmatmul.f32.gmra.mxu0 %v7740
        %v7852 = vpop.f32.mrf.mxu0
        %v7853 = vadd.f32 0.0, %v7852
        %7854 = vmatmul.f32.gmra.mxu0 %v7743
        %v7855 = vpop.f32.mrf.mxu0
        %v7856 = vadd.f32 0.0, %v7855
        %7857 = vmatmul.f32.gmra.mxu0 %v7746
        %v7858 = vpop.f32.mrf.mxu0
        %v7859 = vadd.f32 0.0, %v7858
        %7860 = vmatmul.f32.gmra.mxu0 %v7749
        %v7861 = vpop.f32.mrf.mxu0
        %v7862 = vadd.f32 0.0, %v7861
        %7863 = vdwg.mxu0
        %v7864 = vadd.f32 %v7589, %v7769
        %v7865 = vadd.f32 %v7590, %v7772
        %v7866 = vadd.f32 %v7591, %v7775
        %v7867 = vadd.f32 %v7592, %v7778
        %v7868 = vadd.f32 %v7593, %v7781
        %v7869 = vadd.f32 %v7594, %v7784
        %v7870 = vadd.f32 %v7595, %v7787
        %v7871 = vadd.f32 %v7596, %v7790
        %v7872 = vadd.f32 %v7597, %v7793
        %v7873 = vadd.f32 %v7598, %v7796
        %v7874 = vadd.f32 %v7599, %v7799
        %v7875 = vadd.f32 %v7600, %v7802
        %v7876 = vadd.f32 %v7601, %v7805
        %v7877 = vadd.f32 %v7602, %v7808
        %v7878 = vadd.f32 %v7603, %v7811
        %v7879 = vadd.f32 %v7604, %v7814
        %v7880 = vadd.f32 %v7605, %v7817
        %v7881 = vadd.f32 %v7606, %v7820
        %v7882 = vadd.f32 %v7607, %v7823
        %v7883 = vadd.f32 %v7608, %v7826
        %v7884 = vadd.f32 %v7609, %v7829
        %v7885 = vadd.f32 %v7610, %v7832
        %v7886 = vadd.f32 %v7611, %v7835
        %v7887 = vadd.f32 %v7612, %v7838
        %v7888 = vadd.f32 %v7613, %v7841
        %v7889 = vadd.f32 %v7614, %v7844
        %v7890 = vadd.f32 %v7615, %v7847
        %v7891 = vadd.f32 %v7616, %v7850
        %v7892 = vadd.f32 %v7617, %v7853
        %v7893 = vadd.f32 %v7618, %v7856
        %v7894 = vadd.f32 %v7619, %v7859
        %v7895 = vadd.f32 %v7620, %v7862
        %v7896 = vld [vmem:[%s2552] sm:$0xff]
        %v7897 = vld [vmem:[%s2552 + $0x8] sm:$0xff]
        %v7898 = vld [vmem:[%s2552 + $0x18] sm:$0xff]
        %v7899 = vld [vmem:[%s2552 + $0x20] sm:$0xff]
        %v7900 = vld [vmem:[%s2552 + $0x30] sm:$0xff]
        %v7901 = vld [vmem:[%s2552 + $0x38] sm:$0xff]
        %v7902 = vld [vmem:[%s2552 + $0x48] sm:$0xff]
        %v7903 = vld [vmem:[%s2552 + $0x50] sm:$0xff]
        %v7904 = vld [vmem:[%s2552 + $0x60] sm:$0xff]
        %v7905 = vld [vmem:[%s2552 + $0x68] sm:$0xff]
        %v7906 = vld [vmem:[%s2552 + $0x78] sm:$0xff]
        %v7907 = vld [vmem:[%s2552 + $0x80] sm:$0xff]
        %v7908 = vld [vmem:[%s2552 + $0x90] sm:$0xff]
        %v7909 = vld [vmem:[%s2552 + $0x98] sm:$0xff]
        %v7910 = vld [vmem:[%s2552 + $0xa8] sm:$0xff]
        %v7911 = vld [vmem:[%s2552 + $0xb0] sm:$0xff]
        %v7912 = vld [vmem:[%s2552 + $0xc0] sm:$0xff]
        %v7913 = vld [vmem:[%s2552 + $0xc8] sm:$0xff]
        %v7914 = vld [vmem:[%s2552 + $0xd8] sm:$0xff]
        %v7915 = vld [vmem:[%s2552 + $0xe0] sm:$0xff]
        %v7916 = vld [vmem:[%s2552 + $0xf0] sm:$0xff]
        %v7917 = vld [vmem:[%s2552 + $0xf8] sm:$0xff]
        %v7918 = vld [vmem:[%s2552 + $0x108] sm:$0xff]
        %v7919 = vld [vmem:[%s2552 + $0x110] sm:$0xff]
        %v7920 = vld [vmem:[%s2552 + $0x120] sm:$0xff]
        %v7921 = vld [vmem:[%s2552 + $0x128] sm:$0xff]
        %v7922 = vld [vmem:[%s2552 + $0x138] sm:$0xff]
        %v7923 = vld [vmem:[%s2552 + $0x140] sm:$0xff]
        %v7924 = vld [vmem:[%s2552 + $0x150] sm:$0xff]
        %v7925 = vld [vmem:[%s2552 + $0x158] sm:$0xff]
        %v7926 = vld [vmem:[%s2552 + $0x168] sm:$0xff]
        %v7927 = vld [vmem:[%s2552 + $0x170] sm:$0xff]
        %s7928 = scalar_lea.vmem %s10, 48
        %v7929 = vld [vmem:[%s7928] sm:$0xff]
        %v7931 = vsel %vm6234, %v7896, 0
        %v7934 = vsel %vm6234, %v7897, 0
        %v7937 = vsel %vm6234, %v7898, 0
        %v7940 = vsel %vm6234, %v7899, 0
        %v7943 = vsel %vm6234, %v7900, 0
        %v7946 = vsel %vm6234, %v7901, 0
        %v7949 = vsel %vm6234, %v7902, 0
        %v7952 = vsel %vm6234, %v7903, 0
        %v7955 = vsel %vm6234, %v7904, 0
        %v7958 = vsel %vm6234, %v7905, 0
        %v7961 = vsel %vm6234, %v7906, 0
        %v7964 = vsel %vm6234, %v7907, 0
        %v7967 = vsel %vm6234, %v7908, 0
        %v7970 = vsel %vm6234, %v7909, 0
        %v7973 = vsel %vm6234, %v7910, 0
        %v7976 = vsel %vm6234, %v7911, 0
        %v7979 = vsel %vm6234, %v7912, 0
        %v7982 = vsel %vm6234, %v7913, 0
        %v7985 = vsel %vm6234, %v7914, 0
        %v7988 = vsel %vm6234, %v7915, 0
        %v7991 = vsel %vm6234, %v7916, 0
        %v7994 = vsel %vm6234, %v7917, 0
        %v7997 = vsel %vm6234, %v7918, 0
        %v8000 = vsel %vm6234, %v7919, 0
        %v8003 = vsel %vm6234, %v7920, 0
        %v8006 = vsel %vm6234, %v7921, 0
        %v8009 = vsel %vm6234, %v7922, 0
        %v8012 = vsel %vm6234, %v7923, 0
        %v8015 = vsel %vm6234, %v7924, 0
        %v8018 = vsel %vm6234, %v7925, 0
        %v8021 = vsel %vm6234, %v7926, 0
        %v8024 = vsel %vm6234, %v7927, 0
        %8026 = vmatpush.msra.mxu0 0.0
        %8027 = vmatpush.msra.mxu0 0.0
        %8028 = vmatpush.msra.mxu0 0.0
        %8029 = vmatpush.msra.mxu0 0.0
        %8030 = vmatpush.msra.mxu0 0.0
        %8031 = vmatpush.msra.mxu0 0.0
        %8032 = vmatpush.msra.mxu0 0.0
        %8033 = vmatpush.msra.mxu0 0.0
        %8034 = vmatpush.msra.mxu0 0.0
        %8035 = vmatpush.msra.mxu0 0.0
        %8036 = vmatpush.msra.mxu0 0.0
        %8037 = vmatpush.msra.mxu0 0.0
        %8038 = vmatpush.msra.mxu0 0.0
        %8039 = vmatpush.msra.mxu0 0.0
        %8040 = vmatpush.msra.mxu0 0.0
        %8041 = vmatpush.msra.mxu0 %v7929
        %8042 = vmatmul.f32.gmra.mxu0 %v7931
        %v8043 = vpop.f32.mrf.mxu0
        %v8044 = vadd.f32 0.0, %v8043
        %8045 = vmatmul.f32.gmra.mxu0 %v7934
        %v8046 = vpop.f32.mrf.mxu0
        %v8047 = vadd.f32 0.0, %v8046
        %8048 = vmatmul.f32.gmra.mxu0 %v7937
        %v8049 = vpop.f32.mrf.mxu0
        %v8050 = vadd.f32 0.0, %v8049
        %8051 = vmatmul.f32.gmra.mxu0 %v7940
        %v8052 = vpop.f32.mrf.mxu0
        %v8053 = vadd.f32 0.0, %v8052
        %8054 = vmatmul.f32.gmra.mxu0 %v7943
        %v8055 = vpop.f32.mrf.mxu0
        %v8056 = vadd.f32 0.0, %v8055
        %8057 = vmatmul.f32.gmra.mxu0 %v7946
        %v8058 = vpop.f32.mrf.mxu0
        %v8059 = vadd.f32 0.0, %v8058
        %8060 = vmatmul.f32.gmra.mxu0 %v7949
        %v8061 = vpop.f32.mrf.mxu0
        %v8062 = vadd.f32 0.0, %v8061
        %8063 = vmatmul.f32.gmra.mxu0 %v7952
        %v8064 = vpop.f32.mrf.mxu0
        %v8065 = vadd.f32 0.0, %v8064
        %8066 = vmatmul.f32.gmra.mxu0 %v7955
        %v8067 = vpop.f32.mrf.mxu0
        %v8068 = vadd.f32 0.0, %v8067
        %8069 = vmatmul.f32.gmra.mxu0 %v7958
        %v8070 = vpop.f32.mrf.mxu0
        %v8071 = vadd.f32 0.0, %v8070
        %8072 = vmatmul.f32.gmra.mxu0 %v7961
        %v8073 = vpop.f32.mrf.mxu0
        %v8074 = vadd.f32 0.0, %v8073
        %8075 = vmatmul.f32.gmra.mxu0 %v7964
        %v8076 = vpop.f32.mrf.mxu0
        %v8077 = vadd.f32 0.0, %v8076
        %8078 = vmatmul.f32.gmra.mxu0 %v7967
        %v8079 = vpop.f32.mrf.mxu0
        %v8080 = vadd.f32 0.0, %v8079
        %8081 = vmatmul.f32.gmra.mxu0 %v7970
        %v8082 = vpop.f32.mrf.mxu0
        %v8083 = vadd.f32 0.0, %v8082
        %8084 = vmatmul.f32.gmra.mxu0 %v7973
        %v8085 = vpop.f32.mrf.mxu0
        %v8086 = vadd.f32 0.0, %v8085
        %8087 = vmatmul.f32.gmra.mxu0 %v7976
        %v8088 = vpop.f32.mrf.mxu0
        %v8089 = vadd.f32 0.0, %v8088
        %8090 = vmatmul.f32.gmra.mxu0 %v7979
        %v8091 = vpop.f32.mrf.mxu0
        %v8092 = vadd.f32 0.0, %v8091
        %8093 = vmatmul.f32.gmra.mxu0 %v7982
        %v8094 = vpop.f32.mrf.mxu0
        %v8095 = vadd.f32 0.0, %v8094
        %8096 = vmatmul.f32.gmra.mxu0 %v7985
        %v8097 = vpop.f32.mrf.mxu0
        %v8098 = vadd.f32 0.0, %v8097
        %8099 = vmatmul.f32.gmra.mxu0 %v7988
        %v8100 = vpop.f32.mrf.mxu0
        %v8101 = vadd.f32 0.0, %v8100
        %8102 = vmatmul.f32.gmra.mxu0 %v7991
        %v8103 = vpop.f32.mrf.mxu0
        %v8104 = vadd.f32 0.0, %v8103
        %8105 = vmatmul.f32.gmra.mxu0 %v7994
        %v8106 = vpop.f32.mrf.mxu0
        %v8107 = vadd.f32 0.0, %v8106
        %8108 = vmatmul.f32.gmra.mxu0 %v7997
        %v8109 = vpop.f32.mrf.mxu0
        %v8110 = vadd.f32 0.0, %v8109
        %8111 = vmatmul.f32.gmra.mxu0 %v8000
        %v8112 = vpop.f32.mrf.mxu0
        %v8113 = vadd.f32 0.0, %v8112
        %8114 = vmatmul.f32.gmra.mxu0 %v8003
        %v8115 = vpop.f32.mrf.mxu0
        %v8116 = vadd.f32 0.0, %v8115
        %8117 = vmatmul.f32.gmra.mxu0 %v8006
        %v8118 = vpop.f32.mrf.mxu0
        %v8119 = vadd.f32 0.0, %v8118
        %8120 = vmatmul.f32.gmra.mxu0 %v8009
        %v8121 = vpop.f32.mrf.mxu0
        %v8122 = vadd.f32 0.0, %v8121
        %8123 = vmatmul.f32.gmra.mxu0 %v8012
        %v8124 = vpop.f32.mrf.mxu0
        %v8125 = vadd.f32 0.0, %v8124
        %8126 = vmatmul.f32.gmra.mxu0 %v8015
        %v8127 = vpop.f32.mrf.mxu0
        %v8128 = vadd.f32 0.0, %v8127
        %8129 = vmatmul.f32.gmra.mxu0 %v8018
        %v8130 = vpop.f32.mrf.mxu0
        %v8131 = vadd.f32 0.0, %v8130
        %8132 = vmatmul.f32.gmra.mxu0 %v8021
        %v8133 = vpop.f32.mrf.mxu0
        %v8134 = vadd.f32 0.0, %v8133
        %8135 = vmatmul.f32.gmra.mxu0 %v8024
        %v8136 = vpop.f32.mrf.mxu0
        %v8137 = vadd.f32 0.0, %v8136
        %8138 = vdwg.mxu0
        %v8139 = vadd.f32 %v7864, %v8044
        %v8140 = vadd.f32 %v7865, %v8047
        %v8141 = vadd.f32 %v7866, %v8050
        %v8142 = vadd.f32 %v7867, %v8053
        %v8143 = vadd.f32 %v7868, %v8056
        %v8144 = vadd.f32 %v7869, %v8059
        %v8145 = vadd.f32 %v7870, %v8062
        %v8146 = vadd.f32 %v7871, %v8065
        %v8147 = vadd.f32 %v7872, %v8068
        %v8148 = vadd.f32 %v7873, %v8071
        %v8149 = vadd.f32 %v7874, %v8074
        %v8150 = vadd.f32 %v7875, %v8077
        %v8151 = vadd.f32 %v7876, %v8080
        %v8152 = vadd.f32 %v7877, %v8083
        %v8153 = vadd.f32 %v7878, %v8086
        %v8154 = vadd.f32 %v7879, %v8089
        %v8155 = vadd.f32 %v7880, %v8092
        %v8156 = vadd.f32 %v7881, %v8095
        %v8157 = vadd.f32 %v7882, %v8098
        %v8158 = vadd.f32 %v7883, %v8101
        %v8159 = vadd.f32 %v7884, %v8104
        %v8160 = vadd.f32 %v7885, %v8107
        %v8161 = vadd.f32 %v7886, %v8110
        %v8162 = vadd.f32 %v7887, %v8113
        %v8163 = vadd.f32 %v7888, %v8116
        %v8164 = vadd.f32 %v7889, %v8119
        %v8165 = vadd.f32 %v7890, %v8122
        %v8166 = vadd.f32 %v7891, %v8125
        %v8167 = vadd.f32 %v7892, %v8128
        %v8168 = vadd.f32 %v7893, %v8131
        %v8169 = vadd.f32 %v7894, %v8134
        %v8170 = vadd.f32 %v7895, %v8137
        %v8171 = vld [vmem:[%s2552 + $0x1] sm:$0xff]
        %v8172 = vld [vmem:[%s2552 + $0x9] sm:$0xff]
        %v8173 = vld [vmem:[%s2552 + $0x19] sm:$0xff]
        %v8174 = vld [vmem:[%s2552 + $0x21] sm:$0xff]
        %v8175 = vld [vmem:[%s2552 + $0x31] sm:$0xff]
        %v8176 = vld [vmem:[%s2552 + $0x39] sm:$0xff]
        %v8177 = vld [vmem:[%s2552 + $0x49] sm:$0xff]
        %v8178 = vld [vmem:[%s2552 + $0x51] sm:$0xff]
        %v8179 = vld [vmem:[%s2552 + $0x61] sm:$0xff]
        %v8180 = vld [vmem:[%s2552 + $0x69] sm:$0xff]
        %v8181 = vld [vmem:[%s2552 + $0x79] sm:$0xff]
        %v8182 = vld [vmem:[%s2552 + $0x81] sm:$0xff]
        %v8183 = vld [vmem:[%s2552 + $0x91] sm:$0xff]
        %v8184 = vld [vmem:[%s2552 + $0x99] sm:$0xff]
        %v8185 = vld [vmem:[%s2552 + $0xa9] sm:$0xff]
        %v8186 = vld [vmem:[%s2552 + $0xb1] sm:$0xff]
        %v8187 = vld [vmem:[%s2552 + $0xc1] sm:$0xff]
        %v8188 = vld [vmem:[%s2552 + $0xc9] sm:$0xff]
        %v8189 = vld [vmem:[%s2552 + $0xd9] sm:$0xff]
        %v8190 = vld [vmem:[%s2552 + $0xe1] sm:$0xff]
        %v8191 = vld [vmem:[%s2552 + $0xf1] sm:$0xff]
        %v8192 = vld [vmem:[%s2552 + $0xf9] sm:$0xff]
        %v8193 = vld [vmem:[%s2552 + $0x109] sm:$0xff]
        %v8194 = vld [vmem:[%s2552 + $0x111] sm:$0xff]
        %v8195 = vld [vmem:[%s2552 + $0x121] sm:$0xff]
        %v8196 = vld [vmem:[%s2552 + $0x129] sm:$0xff]
        %v8197 = vld [vmem:[%s2552 + $0x139] sm:$0xff]
        %v8198 = vld [vmem:[%s2552 + $0x141] sm:$0xff]
        %v8199 = vld [vmem:[%s2552 + $0x151] sm:$0xff]
        %v8200 = vld [vmem:[%s2552 + $0x159] sm:$0xff]
        %v8201 = vld [vmem:[%s2552 + $0x169] sm:$0xff]
        %v8202 = vld [vmem:[%s2552 + $0x171] sm:$0xff]
        %s8203 = scalar_lea.vmem %s10, 56
        %v8204 = vld [vmem:[%s8203] sm:$0xff]
        %v8206 = vsel %vm6234, %v8171, 0
        %v8209 = vsel %vm6234, %v8172, 0
        %v8212 = vsel %vm6234, %v8173, 0
        %v8215 = vsel %vm6234, %v8174, 0
        %v8218 = vsel %vm6234, %v8175, 0
        %v8221 = vsel %vm6234, %v8176, 0
        %v8224 = vsel %vm6234, %v8177, 0
        %v8227 = vsel %vm6234, %v8178, 0
        %v8230 = vsel %vm6234, %v8179, 0
        %v8233 = vsel %vm6234, %v8180, 0
        %v8236 = vsel %vm6234, %v8181, 0
        %v8239 = vsel %vm6234, %v8182, 0
        %v8242 = vsel %vm6234, %v8183, 0
        %v8245 = vsel %vm6234, %v8184, 0
        %v8248 = vsel %vm6234, %v8185, 0
        %v8251 = vsel %vm6234, %v8186, 0
        %v8254 = vsel %vm6234, %v8187, 0
        %v8257 = vsel %vm6234, %v8188, 0
        %v8260 = vsel %vm6234, %v8189, 0
        %v8263 = vsel %vm6234, %v8190, 0
        %v8266 = vsel %vm6234, %v8191, 0
        %v8269 = vsel %vm6234, %v8192, 0
        %v8272 = vsel %vm6234, %v8193, 0
        %v8275 = vsel %vm6234, %v8194, 0
        %v8278 = vsel %vm6234, %v8195, 0
        %v8281 = vsel %vm6234, %v8196, 0
        %v8284 = vsel %vm6234, %v8197, 0
        %v8287 = vsel %vm6234, %v8198, 0
        %v8290 = vsel %vm6234, %v8199, 0
        %v8293 = vsel %vm6234, %v8200, 0
        %v8296 = vsel %vm6234, %v8201, 0
        %v8299 = vsel %vm6234, %v8202, 0
        %8301 = vmatpush.msra.mxu0 0.0
        %8302 = vmatpush.msra.mxu0 0.0
        %8303 = vmatpush.msra.mxu0 0.0
        %8304 = vmatpush.msra.mxu0 0.0
        %8305 = vmatpush.msra.mxu0 0.0
        %8306 = vmatpush.msra.mxu0 0.0
        %8307 = vmatpush.msra.mxu0 0.0
        %8308 = vmatpush.msra.mxu0 0.0
        %8309 = vmatpush.msra.mxu0 0.0
        %8310 = vmatpush.msra.mxu0 0.0
        %8311 = vmatpush.msra.mxu0 0.0
        %8312 = vmatpush.msra.mxu0 0.0
        %8313 = vmatpush.msra.mxu0 0.0
        %8314 = vmatpush.msra.mxu0 0.0
        %8315 = vmatpush.msra.mxu0 0.0
        %8316 = vmatpush.msra.mxu0 %v8204
        %8317 = vmatmul.f32.gmra.mxu0 %v8206
        %v8318 = vpop.f32.mrf.mxu0
        %v8319 = vadd.f32 0.0, %v8318
        %8320 = vmatmul.f32.gmra.mxu0 %v8209
        %v8321 = vpop.f32.mrf.mxu0
        %v8322 = vadd.f32 0.0, %v8321
        %8323 = vmatmul.f32.gmra.mxu0 %v8212
        %v8324 = vpop.f32.mrf.mxu0
        %v8325 = vadd.f32 0.0, %v8324
        %8326 = vmatmul.f32.gmra.mxu0 %v8215
        %v8327 = vpop.f32.mrf.mxu0
        %v8328 = vadd.f32 0.0, %v8327
        %8329 = vmatmul.f32.gmra.mxu0 %v8218
        %v8330 = vpop.f32.mrf.mxu0
        %v8331 = vadd.f32 0.0, %v8330
        %8332 = vmatmul.f32.gmra.mxu0 %v8221
        %v8333 = vpop.f32.mrf.mxu0
        %v8334 = vadd.f32 0.0, %v8333
        %8335 = vmatmul.f32.gmra.mxu0 %v8224
        %v8336 = vpop.f32.mrf.mxu0
        %v8337 = vadd.f32 0.0, %v8336
        %8338 = vmatmul.f32.gmra.mxu0 %v8227
        %v8339 = vpop.f32.mrf.mxu0
        %v8340 = vadd.f32 0.0, %v8339
        %8341 = vmatmul.f32.gmra.mxu0 %v8230
        %v8342 = vpop.f32.mrf.mxu0
        %v8343 = vadd.f32 0.0, %v8342
        %8344 = vmatmul.f32.gmra.mxu0 %v8233
        %v8345 = vpop.f32.mrf.mxu0
        %v8346 = vadd.f32 0.0, %v8345
        %8347 = vmatmul.f32.gmra.mxu0 %v8236
        %v8348 = vpop.f32.mrf.mxu0
        %v8349 = vadd.f32 0.0, %v8348
        %8350 = vmatmul.f32.gmra.mxu0 %v8239
        %v8351 = vpop.f32.mrf.mxu0
        %v8352 = vadd.f32 0.0, %v8351
        %8353 = vmatmul.f32.gmra.mxu0 %v8242
        %v8354 = vpop.f32.mrf.mxu0
        %v8355 = vadd.f32 0.0, %v8354
        %8356 = vmatmul.f32.gmra.mxu0 %v8245
        %v8357 = vpop.f32.mrf.mxu0
        %v8358 = vadd.f32 0.0, %v8357
        %8359 = vmatmul.f32.gmra.mxu0 %v8248
        %v8360 = vpop.f32.mrf.mxu0
        %v8361 = vadd.f32 0.0, %v8360
        %8362 = vmatmul.f32.gmra.mxu0 %v8251
        %v8363 = vpop.f32.mrf.mxu0
        %v8364 = vadd.f32 0.0, %v8363
        %8365 = vmatmul.f32.gmra.mxu0 %v8254
        %v8366 = vpop.f32.mrf.mxu0
        %v8367 = vadd.f32 0.0, %v8366
        %8368 = vmatmul.f32.gmra.mxu0 %v8257
        %v8369 = vpop.f32.mrf.mxu0
        %v8370 = vadd.f32 0.0, %v8369
        %8371 = vmatmul.f32.gmra.mxu0 %v8260
        %v8372 = vpop.f32.mrf.mxu0
        %v8373 = vadd.f32 0.0, %v8372
        %8374 = vmatmul.f32.gmra.mxu0 %v8263
        %v8375 = vpop.f32.mrf.mxu0
        %v8376 = vadd.f32 0.0, %v8375
        %8377 = vmatmul.f32.gmra.mxu0 %v8266
        %v8378 = vpop.f32.mrf.mxu0
        %v8379 = vadd.f32 0.0, %v8378
        %8380 = vmatmul.f32.gmra.mxu0 %v8269
        %v8381 = vpop.f32.mrf.mxu0
        %v8382 = vadd.f32 0.0, %v8381
        %8383 = vmatmul.f32.gmra.mxu0 %v8272
        %v8384 = vpop.f32.mrf.mxu0
        %v8385 = vadd.f32 0.0, %v8384
        %8386 = vmatmul.f32.gmra.mxu0 %v8275
        %v8387 = vpop.f32.mrf.mxu0
        %v8388 = vadd.f32 0.0, %v8387
        %8389 = vmatmul.f32.gmra.mxu0 %v8278
        %v8390 = vpop.f32.mrf.mxu0
        %v8391 = vadd.f32 0.0, %v8390
        %8392 = vmatmul.f32.gmra.mxu0 %v8281
        %v8393 = vpop.f32.mrf.mxu0
        %v8394 = vadd.f32 0.0, %v8393
        %8395 = vmatmul.f32.gmra.mxu0 %v8284
        %v8396 = vpop.f32.mrf.mxu0
        %v8397 = vadd.f32 0.0, %v8396
        %8398 = vmatmul.f32.gmra.mxu0 %v8287
        %v8399 = vpop.f32.mrf.mxu0
        %v8400 = vadd.f32 0.0, %v8399
        %8401 = vmatmul.f32.gmra.mxu0 %v8290
        %v8402 = vpop.f32.mrf.mxu0
        %v8403 = vadd.f32 0.0, %v8402
        %8404 = vmatmul.f32.gmra.mxu0 %v8293
        %v8405 = vpop.f32.mrf.mxu0
        %v8406 = vadd.f32 0.0, %v8405
        %8407 = vmatmul.f32.gmra.mxu0 %v8296
        %v8408 = vpop.f32.mrf.mxu0
        %v8409 = vadd.f32 0.0, %v8408
        %8410 = vmatmul.f32.gmra.mxu0 %v8299
        %v8411 = vpop.f32.mrf.mxu0
        %v8412 = vadd.f32 0.0, %v8411
        %8413 = vdwg.mxu0
        %v8414 = vadd.f32 %v8139, %v8319
        %v8415 = vadd.f32 %v8140, %v8322
        %v8416 = vadd.f32 %v8141, %v8325
        %v8417 = vadd.f32 %v8142, %v8328
        %v8418 = vadd.f32 %v8143, %v8331
        %v8419 = vadd.f32 %v8144, %v8334
        %v8420 = vadd.f32 %v8145, %v8337
        %v8421 = vadd.f32 %v8146, %v8340
        %v8422 = vadd.f32 %v8147, %v8343
        %v8423 = vadd.f32 %v8148, %v8346
        %v8424 = vadd.f32 %v8149, %v8349
        %v8425 = vadd.f32 %v8150, %v8352
        %v8426 = vadd.f32 %v8151, %v8355
        %v8427 = vadd.f32 %v8152, %v8358
        %v8428 = vadd.f32 %v8153, %v8361
        %v8429 = vadd.f32 %v8154, %v8364
        %v8430 = vadd.f32 %v8155, %v8367
        %v8431 = vadd.f32 %v8156, %v8370
        %v8432 = vadd.f32 %v8157, %v8373
        %v8433 = vadd.f32 %v8158, %v8376
        %v8434 = vadd.f32 %v8159, %v8379
        %v8435 = vadd.f32 %v8160, %v8382
        %v8436 = vadd.f32 %v8161, %v8385
        %v8437 = vadd.f32 %v8162, %v8388
        %v8438 = vadd.f32 %v8163, %v8391
        %v8439 = vadd.f32 %v8164, %v8394
        %v8440 = vadd.f32 %v8165, %v8397
        %v8441 = vadd.f32 %v8166, %v8400
        %v8442 = vadd.f32 %v8167, %v8403
        %v8443 = vadd.f32 %v8168, %v8406
        %v8444 = vadd.f32 %v8169, %v8409
        %v8445 = vadd.f32 %v8170, %v8412
        %v8446 = vld [vmem:[%s2552 + $0x2] sm:$0xff]
        %v8447 = vld [vmem:[%s2552 + $0xa] sm:$0xff]
        %v8448 = vld [vmem:[%s2552 + $0x1a] sm:$0xff]
        %v8449 = vld [vmem:[%s2552 + $0x22] sm:$0xff]
        %v8450 = vld [vmem:[%s2552 + $0x32] sm:$0xff]
        %v8451 = vld [vmem:[%s2552 + $0x3a] sm:$0xff]
        %v8452 = vld [vmem:[%s2552 + $0x4a] sm:$0xff]
        %v8453 = vld [vmem:[%s2552 + $0x52] sm:$0xff]
        %v8454 = vld [vmem:[%s2552 + $0x62] sm:$0xff]
        %v8455 = vld [vmem:[%s2552 + $0x6a] sm:$0xff]
        %v8456 = vld [vmem:[%s2552 + $0x7a] sm:$0xff]
        %v8457 = vld [vmem:[%s2552 + $0x82] sm:$0xff]
        %v8458 = vld [vmem:[%s2552 + $0x92] sm:$0xff]
        %v8459 = vld [vmem:[%s2552 + $0x9a] sm:$0xff]
        %v8460 = vld [vmem:[%s2552 + $0xaa] sm:$0xff]
        %v8461 = vld [vmem:[%s2552 + $0xb2] sm:$0xff]
        %v8462 = vld [vmem:[%s2552 + $0xc2] sm:$0xff]
        %v8463 = vld [vmem:[%s2552 + $0xca] sm:$0xff]
        %v8464 = vld [vmem:[%s2552 + $0xda] sm:$0xff]
        %v8465 = vld [vmem:[%s2552 + $0xe2] sm:$0xff]
        %v8466 = vld [vmem:[%s2552 + $0xf2] sm:$0xff]
        %v8467 = vld [vmem:[%s2552 + $0xfa] sm:$0xff]
        %v8468 = vld [vmem:[%s2552 + $0x10a] sm:$0xff]
        %v8469 = vld [vmem:[%s2552 + $0x112] sm:$0xff]
        %v8470 = vld [vmem:[%s2552 + $0x122] sm:$0xff]
        %v8471 = vld [vmem:[%s2552 + $0x12a] sm:$0xff]
        %v8472 = vld [vmem:[%s2552 + $0x13a] sm:$0xff]
        %v8473 = vld [vmem:[%s2552 + $0x142] sm:$0xff]
        %v8474 = vld [vmem:[%s2552 + $0x152] sm:$0xff]
        %v8475 = vld [vmem:[%s2552 + $0x15a] sm:$0xff]
        %v8476 = vld [vmem:[%s2552 + $0x16a] sm:$0xff]
        %v8477 = vld [vmem:[%s2552 + $0x172] sm:$0xff]
        %s8478 = scalar_lea.vmem %s10, 64
        %v8479 = vld [vmem:[%s8478] sm:$0xff]
        %v8481 = vsel %vm6234, %v8446, 0
        %v8484 = vsel %vm6234, %v8447, 0
        %v8487 = vsel %vm6234, %v8448, 0
        %v8490 = vsel %vm6234, %v8449, 0
        %v8493 = vsel %vm6234, %v8450, 0
        %v8496 = vsel %vm6234, %v8451, 0
        %v8499 = vsel %vm6234, %v8452, 0
        %v8502 = vsel %vm6234, %v8453, 0
        %v8505 = vsel %vm6234, %v8454, 0
        %v8508 = vsel %vm6234, %v8455, 0
        %v8511 = vsel %vm6234, %v8456, 0
        %v8514 = vsel %vm6234, %v8457, 0
        %v8517 = vsel %vm6234, %v8458, 0
        %v8520 = vsel %vm6234, %v8459, 0
        %v8523 = vsel %vm6234, %v8460, 0
        %v8526 = vsel %vm6234, %v8461, 0
        %v8529 = vsel %vm6234, %v8462, 0
        %v8532 = vsel %vm6234, %v8463, 0
        %v8535 = vsel %vm6234, %v8464, 0
        %v8538 = vsel %vm6234, %v8465, 0
        %v8541 = vsel %vm6234, %v8466, 0
        %v8544 = vsel %vm6234, %v8467, 0
        %v8547 = vsel %vm6234, %v8468, 0
        %v8550 = vsel %vm6234, %v8469, 0
        %v8553 = vsel %vm6234, %v8470, 0
        %v8556 = vsel %vm6234, %v8471, 0
        %v8559 = vsel %vm6234, %v8472, 0
        %v8562 = vsel %vm6234, %v8473, 0
        %v8565 = vsel %vm6234, %v8474, 0
        %v8568 = vsel %vm6234, %v8475, 0
        %v8571 = vsel %vm6234, %v8476, 0
        %v8574 = vsel %vm6234, %v8477, 0
        %8576 = vmatpush.msra.mxu0 0.0
        %8577 = vmatpush.msra.mxu0 0.0
        %8578 = vmatpush.msra.mxu0 0.0
        %8579 = vmatpush.msra.mxu0 0.0
        %8580 = vmatpush.msra.mxu0 0.0
        %8581 = vmatpush.msra.mxu0 0.0
        %8582 = vmatpush.msra.mxu0 0.0
        %8583 = vmatpush.msra.mxu0 0.0
        %8584 = vmatpush.msra.mxu0 0.0
        %8585 = vmatpush.msra.mxu0 0.0
        %8586 = vmatpush.msra.mxu0 0.0
        %8587 = vmatpush.msra.mxu0 0.0
        %8588 = vmatpush.msra.mxu0 0.0
        %8589 = vmatpush.msra.mxu0 0.0
        %8590 = vmatpush.msra.mxu0 0.0
        %8591 = vmatpush.msra.mxu0 %v8479
        %8592 = vmatmul.f32.gmra.mxu0 %v8481
        %v8593 = vpop.f32.mrf.mxu0
        %v8594 = vadd.f32 0.0, %v8593
        %8595 = vmatmul.f32.gmra.mxu0 %v8484
        %v8596 = vpop.f32.mrf.mxu0
        %v8597 = vadd.f32 0.0, %v8596
        %8598 = vmatmul.f32.gmra.mxu0 %v8487
        %v8599 = vpop.f32.mrf.mxu0
        %v8600 = vadd.f32 0.0, %v8599
        %8601 = vmatmul.f32.gmra.mxu0 %v8490
        %v8602 = vpop.f32.mrf.mxu0
        %v8603 = vadd.f32 0.0, %v8602
        %8604 = vmatmul.f32.gmra.mxu0 %v8493
        %v8605 = vpop.f32.mrf.mxu0
        %v8606 = vadd.f32 0.0, %v8605
        %8607 = vmatmul.f32.gmra.mxu0 %v8496
        %v8608 = vpop.f32.mrf.mxu0
        %v8609 = vadd.f32 0.0, %v8608
        %8610 = vmatmul.f32.gmra.mxu0 %v8499
        %v8611 = vpop.f32.mrf.mxu0
        %v8612 = vadd.f32 0.0, %v8611
        %8613 = vmatmul.f32.gmra.mxu0 %v8502
        %v8614 = vpop.f32.mrf.mxu0
        %v8615 = vadd.f32 0.0, %v8614
        %8616 = vmatmul.f32.gmra.mxu0 %v8505
        %v8617 = vpop.f32.mrf.mxu0
        %v8618 = vadd.f32 0.0, %v8617
        %8619 = vmatmul.f32.gmra.mxu0 %v8508
        %v8620 = vpop.f32.mrf.mxu0
        %v8621 = vadd.f32 0.0, %v8620
        %8622 = vmatmul.f32.gmra.mxu0 %v8511
        %v8623 = vpop.f32.mrf.mxu0
        %v8624 = vadd.f32 0.0, %v8623
        %8625 = vmatmul.f32.gmra.mxu0 %v8514
        %v8626 = vpop.f32.mrf.mxu0
        %v8627 = vadd.f32 0.0, %v8626
        %8628 = vmatmul.f32.gmra.mxu0 %v8517
        %v8629 = vpop.f32.mrf.mxu0
        %v8630 = vadd.f32 0.0, %v8629
        %8631 = vmatmul.f32.gmra.mxu0 %v8520
        %v8632 = vpop.f32.mrf.mxu0
        %v8633 = vadd.f32 0.0, %v8632
        %8634 = vmatmul.f32.gmra.mxu0 %v8523
        %v8635 = vpop.f32.mrf.mxu0
        %v8636 = vadd.f32 0.0, %v8635
        %8637 = vmatmul.f32.gmra.mxu0 %v8526
        %v8638 = vpop.f32.mrf.mxu0
        %v8639 = vadd.f32 0.0, %v8638
        %8640 = vmatmul.f32.gmra.mxu0 %v8529
        %v8641 = vpop.f32.mrf.mxu0
        %v8642 = vadd.f32 0.0, %v8641
        %8643 = vmatmul.f32.gmra.mxu0 %v8532
        %v8644 = vpop.f32.mrf.mxu0
        %v8645 = vadd.f32 0.0, %v8644
        %8646 = vmatmul.f32.gmra.mxu0 %v8535
        %v8647 = vpop.f32.mrf.mxu0
        %v8648 = vadd.f32 0.0, %v8647
        %8649 = vmatmul.f32.gmra.mxu0 %v8538
        %v8650 = vpop.f32.mrf.mxu0
        %v8651 = vadd.f32 0.0, %v8650
        %8652 = vmatmul.f32.gmra.mxu0 %v8541
        %v8653 = vpop.f32.mrf.mxu0
        %v8654 = vadd.f32 0.0, %v8653
        %8655 = vmatmul.f32.gmra.mxu0 %v8544
        %v8656 = vpop.f32.mrf.mxu0
        %v8657 = vadd.f32 0.0, %v8656
        %8658 = vmatmul.f32.gmra.mxu0 %v8547
        %v8659 = vpop.f32.mrf.mxu0
        %v8660 = vadd.f32 0.0, %v8659
        %8661 = vmatmul.f32.gmra.mxu0 %v8550
        %v8662 = vpop.f32.mrf.mxu0
        %v8663 = vadd.f32 0.0, %v8662
        %8664 = vmatmul.f32.gmra.mxu0 %v8553
        %v8665 = vpop.f32.mrf.mxu0
        %v8666 = vadd.f32 0.0, %v8665
        %8667 = vmatmul.f32.gmra.mxu0 %v8556
        %v8668 = vpop.f32.mrf.mxu0
        %v8669 = vadd.f32 0.0, %v8668
        %8670 = vmatmul.f32.gmra.mxu0 %v8559
        %v8671 = vpop.f32.mrf.mxu0
        %v8672 = vadd.f32 0.0, %v8671
        %8673 = vmatmul.f32.gmra.mxu0 %v8562
        %v8674 = vpop.f32.mrf.mxu0
        %v8675 = vadd.f32 0.0, %v8674
        %8676 = vmatmul.f32.gmra.mxu0 %v8565
        %v8677 = vpop.f32.mrf.mxu0
        %v8678 = vadd.f32 0.0, %v8677
        %8679 = vmatmul.f32.gmra.mxu0 %v8568
        %v8680 = vpop.f32.mrf.mxu0
        %v8681 = vadd.f32 0.0, %v8680
        %8682 = vmatmul.f32.gmra.mxu0 %v8571
        %v8683 = vpop.f32.mrf.mxu0
        %v8684 = vadd.f32 0.0, %v8683
        %8685 = vmatmul.f32.gmra.mxu0 %v8574
        %v8686 = vpop.f32.mrf.mxu0
        %v8687 = vadd.f32 0.0, %v8686
        %8688 = vdwg.mxu0
        %v8689 = vadd.f32 %v8414, %v8594
        %v8690 = vadd.f32 %v8415, %v8597
        %v8691 = vadd.f32 %v8416, %v8600
        %v8692 = vadd.f32 %v8417, %v8603
        %v8693 = vadd.f32 %v8418, %v8606
        %v8694 = vadd.f32 %v8419, %v8609
        %v8695 = vadd.f32 %v8420, %v8612
        %v8696 = vadd.f32 %v8421, %v8615
        %v8697 = vadd.f32 %v8422, %v8618
        %v8698 = vadd.f32 %v8423, %v8621
        %v8699 = vadd.f32 %v8424, %v8624
        %v8700 = vadd.f32 %v8425, %v8627
        %v8701 = vadd.f32 %v8426, %v8630
        %v8702 = vadd.f32 %v8427, %v8633
        %v8703 = vadd.f32 %v8428, %v8636
        %v8704 = vadd.f32 %v8429, %v8639
        %v8705 = vadd.f32 %v8430, %v8642
        %v8706 = vadd.f32 %v8431, %v8645
        %v8707 = vadd.f32 %v8432, %v8648
        %v8708 = vadd.f32 %v8433, %v8651
        %v8709 = vadd.f32 %v8434, %v8654
        %v8710 = vadd.f32 %v8435, %v8657
        %v8711 = vadd.f32 %v8436, %v8660
        %v8712 = vadd.f32 %v8437, %v8663
        %v8713 = vadd.f32 %v8438, %v8666
        %v8714 = vadd.f32 %v8439, %v8669
        %v8715 = vadd.f32 %v8440, %v8672
        %v8716 = vadd.f32 %v8441, %v8675
        %v8717 = vadd.f32 %v8442, %v8678
        %v8718 = vadd.f32 %v8443, %v8681
        %v8719 = vadd.f32 %v8444, %v8684
        %v8720 = vadd.f32 %v8445, %v8687
        %v8721 = vld [vmem:[%s11] sm:$0x1]
        %v8723 = vperm.slane %v8721, 0
        %v8725 = vmul.f32 %v8689, %v8723
        %v8726 = vmul.f32 %v8690, %v8723
        %v8727 = vmul.f32 %v8691, %v8723
        %v8728 = vmul.f32 %v8692, %v8723
        %v8729 = vmul.f32 %v8693, %v8723
        %v8730 = vmul.f32 %v8694, %v8723
        %v8731 = vmul.f32 %v8695, %v8723
        %v8732 = vmul.f32 %v8696, %v8723
        %v8733 = vmul.f32 %v8697, %v8723
        %v8734 = vmul.f32 %v8698, %v8723
        %v8735 = vmul.f32 %v8699, %v8723
        %v8736 = vmul.f32 %v8700, %v8723
        %v8737 = vmul.f32 %v8701, %v8723
        %v8738 = vmul.f32 %v8702, %v8723
        %v8739 = vmul.f32 %v8703, %v8723
        %v8740 = vmul.f32 %v8704, %v8723
        %v8741 = vmul.f32 %v8705, %v8723
        %v8742 = vmul.f32 %v8706, %v8723
        %v8743 = vmul.f32 %v8707, %v8723
        %v8744 = vmul.f32 %v8708, %v8723
        %v8745 = vmul.f32 %v8709, %v8723
        %v8746 = vmul.f32 %v8710, %v8723
        %v8747 = vmul.f32 %v8711, %v8723
        %v8748 = vmul.f32 %v8712, %v8723
        %v8749 = vmul.f32 %v8713, %v8723
        %v8750 = vmul.f32 %v8714, %v8723
        %v8751 = vmul.f32 %v8715, %v8723
        %v8752 = vmul.f32 %v8716, %v8723
        %v8753 = vmul.f32 %v8717, %v8723
        %v8754 = vmul.f32 %v8718, %v8723
        %v8755 = vmul.f32 %v8719, %v8723
        %v8756 = vmul.f32 %v8720, %v8723
        %v8757 = vld [vmem:[%s12] sm:$0x1]
        %v8759 = vperm.slane %v8757, 0
        %v8761 = vadd.f32 %v8725, %v8759
        %v8762 = vadd.f32 %v8726, %v8759
        %v8763 = vadd.f32 %v8727, %v8759
        %v8764 = vadd.f32 %v8728, %v8759
        %v8765 = vadd.f32 %v8729, %v8759
        %v8766 = vadd.f32 %v8730, %v8759
        %v8767 = vadd.f32 %v8731, %v8759
        %v8768 = vadd.f32 %v8732, %v8759
        %v8769 = vadd.f32 %v8733, %v8759
        %v8770 = vadd.f32 %v8734, %v8759
        %v8771 = vadd.f32 %v8735, %v8759
        %v8772 = vadd.f32 %v8736, %v8759
        %v8773 = vadd.f32 %v8737, %v8759
        %v8774 = vadd.f32 %v8738, %v8759
        %v8775 = vadd.f32 %v8739, %v8759
        %v8776 = vadd.f32 %v8740, %v8759
        %v8777 = vadd.f32 %v8741, %v8759
        %v8778 = vadd.f32 %v8742, %v8759
        %v8779 = vadd.f32 %v8743, %v8759
        %v8780 = vadd.f32 %v8744, %v8759
        %v8781 = vadd.f32 %v8745, %v8759
        %v8782 = vadd.f32 %v8746, %v8759
        %v8783 = vadd.f32 %v8747, %v8759
        %v8784 = vadd.f32 %v8748, %v8759
        %v8785 = vadd.f32 %v8749, %v8759
        %v8786 = vadd.f32 %v8750, %v8759
        %v8787 = vadd.f32 %v8751, %v8759
        %v8788 = vadd.f32 %v8752, %v8759
        %v8789 = vadd.f32 %v8753, %v8759
        %v8790 = vadd.f32 %v8754, %v8759
        %v8791 = vadd.f32 %v8755, %v8759
        %v8792 = vadd.f32 %v8756, %v8759
        %v8793 = vmax.f32 %v8761, 0.0
        %v8794 = vmax.f32 %v8762, 0.0
        %v8795 = vmax.f32 %v8763, 0.0
        %v8796 = vmax.f32 %v8764, 0.0
        %v8797 = vmax.f32 %v8765, 0.0
        %v8798 = vmax.f32 %v8766, 0.0
        %v8799 = vmax.f32 %v8767, 0.0
        %v8800 = vmax.f32 %v8768, 0.0
        %v8801 = vmax.f32 %v8769, 0.0
        %v8802 = vmax.f32 %v8770, 0.0
        %v8803 = vmax.f32 %v8771, 0.0
        %v8804 = vmax.f32 %v8772, 0.0
        %v8805 = vmax.f32 %v8773, 0.0
        %v8806 = vmax.f32 %v8774, 0.0
        %v8807 = vmax.f32 %v8775, 0.0
        %v8808 = vmax.f32 %v8776, 0.0
        %v8809 = vmax.f32 %v8777, 0.0
        %v8810 = vmax.f32 %v8778, 0.0
        %v8811 = vmax.f32 %v8779, 0.0
        %v8812 = vmax.f32 %v8780, 0.0
        %v8813 = vmax.f32 %v8781, 0.0
        %v8814 = vmax.f32 %v8782, 0.0
        %v8815 = vmax.f32 %v8783, 0.0
        %v8816 = vmax.f32 %v8784, 0.0
        %v8817 = vmax.f32 %v8785, 0.0
        %v8818 = vmax.f32 %v8786, 0.0
        %v8819 = vmax.f32 %v8787, 0.0
        %v8820 = vmax.f32 %v8788, 0.0
        %v8821 = vmax.f32 %v8789, 0.0
        %v8822 = vmax.f32 %v8790, 0.0
        %v8823 = vmax.f32 %v8791, 0.0
        %v8824 = vmax.f32 %v8792, 0.0
        %8825 = vst.msk [vmem:[#allocation2] sm:$0xff] %vm553, -inf
        %8826 = vst.msk [vmem:[#allocation2 + $0x8] sm:$0xff] %vm553, -inf
        %8827 = vst.msk [vmem:[#allocation2 + $0x10] sm:$0x3] %vm873, -inf
        %8828 = vst.msk [vmem:[%s875] sm:$0xff] %vm553, -inf
        %8829 = vst.msk [vmem:[%s875 + $0x8] sm:$0xff] %vm553, -inf
        %8830 = vst.msk [vmem:[%s875 + $0x10] sm:$0x3] %vm873, -inf
        %8831 = vst.msk [vmem:[#allocation2] sm:$0x1] %vm879, -inf
        %8832 = vst.msk [vmem:[#allocation2 + $0x18] sm:$0x1] %vm879, -inf
        %8833 = vst.msk [vmem:[#allocation2 + $0x30] sm:$0x1] %vm879, -inf
        %8834 = vst.msk [vmem:[#allocation2 + $0x48] sm:$0x1] %vm879, -inf
        %8835 = vst.msk [vmem:[#allocation2 + $0x60] sm:$0x1] %vm879, -inf
        %8836 = vst.msk [vmem:[#allocation2 + $0x78] sm:$0x1] %vm879, -inf
        %8837 = vst.msk [vmem:[#allocation2 + $0x90] sm:$0x1] %vm879, -inf
        %8838 = vst.msk [vmem:[#allocation2 + $0xa8] sm:$0x1] %vm879, -inf
        %8839 = vst.msk [vmem:[#allocation2 + $0xc0] sm:$0x1] %vm879, -inf
        %8840 = vst.msk [vmem:[#allocation2 + $0xd8] sm:$0x1] %vm879, -inf
        %8841 = vst.msk [vmem:[#allocation2 + $0xf0] sm:$0x1] %vm879, -inf
        %8842 = vst.msk [vmem:[#allocation2 + $0x108] sm:$0x1] %vm879, -inf
        %8843 = vst.msk [vmem:[#allocation2 + $0x120] sm:$0x1] %vm879, -inf
        %8844 = vst.msk [vmem:[#allocation2 + $0x138] sm:$0x1] %vm879, -inf
        %8845 = vst.msk [vmem:[#allocation2 + $0x150] sm:$0x1] %vm879, -inf
        %8846 = vst.msk [vmem:[#allocation2 + $0x168] sm:$0x1] %vm879, -inf
        %8847 = vst.msk [vmem:[#allocation2 + $0x180] sm:$0x1] %vm879, -inf
        %8848 = vst.msk [vmem:[#allocation2 + $0x198] sm:$0x1] %vm879, -inf
        %8849 = vst.msk [vmem:[#allocation2 + $0x11] sm:$0x1] %vm879, -inf
        %8850 = vst.msk [vmem:[#allocation2 + $0x29] sm:$0x1] %vm879, -inf
        %8851 = vst.msk [vmem:[#allocation2 + $0x41] sm:$0x1] %vm879, -inf
        %8852 = vst.msk [vmem:[#allocation2 + $0x59] sm:$0x1] %vm879, -inf
        %8853 = vst.msk [vmem:[#allocation2 + $0x71] sm:$0x1] %vm879, -inf
        %8854 = vst.msk [vmem:[#allocation2 + $0x89] sm:$0x1] %vm879, -inf
        %8855 = vst.msk [vmem:[#allocation2 + $0xa1] sm:$0x1] %vm879, -inf
        %8856 = vst.msk [vmem:[#allocation2 + $0xb9] sm:$0x1] %vm879, -inf
        %8857 = vst.msk [vmem:[#allocation2 + $0xd1] sm:$0x1] %vm879, -inf
        %8858 = vst.msk [vmem:[#allocation2 + $0xe9] sm:$0x1] %vm879, -inf
        %8859 = vst.msk [vmem:[#allocation2 + $0x101] sm:$0x1] %vm879, -inf
        %8860 = vst.msk [vmem:[#allocation2 + $0x119] sm:$0x1] %vm879, -inf
        %8861 = vst.msk [vmem:[#allocation2 + $0x131] sm:$0x1] %vm879, -inf
        %8862 = vst.msk [vmem:[#allocation2 + $0x149] sm:$0x1] %vm879, -inf
        %8863 = vst.msk [vmem:[#allocation2 + $0x161] sm:$0x1] %vm879, -inf
        %8864 = vst.msk [vmem:[#allocation2 + $0x179] sm:$0x1] %vm879, -inf
        %8865 = vst.msk [vmem:[#allocation2 + $0x191] sm:$0x1] %vm879, -inf
        %8866 = vst.msk [vmem:[#allocation2 + $0x1a9] sm:$0x1] %vm879, -inf
        %8867 = vst.msk [vmem:[%s916 + $0x1] sm:$0xff] %vm553, %v520
        %8868 = vst.msk [vmem:[%s916 + $0x9] sm:$0xff] %vm553, %v521
        %8869 = vst.msk [vmem:[%s916 + $0x19] sm:$0xff] %vm553, %v522
        %8870 = vst.msk [vmem:[%s916 + $0x21] sm:$0xff] %vm553, %v523
        %8871 = vst.msk [vmem:[%s916 + $0x31] sm:$0xff] %vm553, %v524
        %8872 = vst.msk [vmem:[%s916 + $0x39] sm:$0xff] %vm553, %v525
        %8873 = vst.msk [vmem:[%s916 + $0x49] sm:$0xff] %vm553, %v526
        %8874 = vst.msk [vmem:[%s916 + $0x51] sm:$0xff] %vm553, %v527
        %8875 = vst.msk [vmem:[%s916 + $0x61] sm:$0xff] %vm553, %v528
        %8876 = vst.msk [vmem:[%s916 + $0x69] sm:$0xff] %vm553, %v529
        %8877 = vst.msk [vmem:[%s916 + $0x79] sm:$0xff] %vm553, %v530
        %8878 = vst.msk [vmem:[%s916 + $0x81] sm:$0xff] %vm553, %v531
        %8879 = vst.msk [vmem:[%s916 + $0x91] sm:$0xff] %vm553, %v532
        %8880 = vst.msk [vmem:[%s916 + $0x99] sm:$0xff] %vm553, %v533
        %8881 = vst.msk [vmem:[%s916 + $0xa9] sm:$0xff] %vm553, %v534
        %8882 = vst.msk [vmem:[%s916 + $0xb1] sm:$0xff] %vm553, %v535
        %8883 = vst.msk [vmem:[%s916 + $0xc1] sm:$0xff] %vm553, %v536
        %8884 = vst.msk [vmem:[%s916 + $0xc9] sm:$0xff] %vm553, %v537
        %8885 = vst.msk [vmem:[%s916 + $0xd9] sm:$0xff] %vm553, %v538
        %8886 = vst.msk [vmem:[%s916 + $0xe1] sm:$0xff] %vm553, %v539
        %8887 = vst.msk [vmem:[%s916 + $0xf1] sm:$0xff] %vm553, %v540
        %8888 = vst.msk [vmem:[%s916 + $0xf9] sm:$0xff] %vm553, %v541
        %8889 = vst.msk [vmem:[%s916 + $0x109] sm:$0xff] %vm553, %v542
        %8890 = vst.msk [vmem:[%s916 + $0x111] sm:$0xff] %vm553, %v543
        %8891 = vst.msk [vmem:[%s916 + $0x121] sm:$0xff] %vm553, %v544
        %8892 = vst.msk [vmem:[%s916 + $0x129] sm:$0xff] %vm553, %v545
        %8893 = vst.msk [vmem:[%s916 + $0x139] sm:$0xff] %vm553, %v546
        %8894 = vst.msk [vmem:[%s916 + $0x141] sm:$0xff] %vm553, %v547
        %8895 = vst.msk [vmem:[%s916 + $0x151] sm:$0xff] %vm553, %v548
        %8896 = vst.msk [vmem:[%s916 + $0x159] sm:$0xff] %vm553, %v549
        %8897 = vst.msk [vmem:[%s916 + $0x169] sm:$0xff] %vm553, %v550
        %8898 = vst.msk [vmem:[%s916 + $0x171] sm:$0xff] %vm553, %v551
        %v8899 = vld [vmem:[#allocation2] sm:$0xff]
        %v8900 = vld [vmem:[#allocation2 + $0x8] sm:$0xff]
        %v8901 = vld [vmem:[#allocation2 + $0x10] sm:$0x3]
        %v8902 = vld [vmem:[#allocation2 + $0x18] sm:$0xff]
        %v8903 = vld [vmem:[#allocation2 + $0x20] sm:$0xff]
        %v8904 = vld [vmem:[#allocation2 + $0x28] sm:$0x3]
        %v8905 = vld [vmem:[#allocation2 + $0x30] sm:$0xff]
        %v8906 = vld [vmem:[#allocation2 + $0x38] sm:$0xff]
        %v8907 = vld [vmem:[#allocation2 + $0x40] sm:$0x3]
        %v8908 = vld [vmem:[#allocation2 + $0x48] sm:$0xff]
        %v8909 = vld [vmem:[#allocation2 + $0x50] sm:$0xff]
        %v8910 = vld [vmem:[#allocation2 + $0x58] sm:$0x3]
        %v8911 = vld [vmem:[#allocation2 + $0x60] sm:$0xff]
        %v8912 = vld [vmem:[#allocation2 + $0x68] sm:$0xff]
        %v8913 = vld [vmem:[#allocation2 + $0x70] sm:$0x3]
        %v8914 = vld [vmem:[#allocation2 + $0x78] sm:$0xff]
        %v8915 = vld [vmem:[#allocation2 + $0x80] sm:$0xff]
        %v8916 = vld [vmem:[#allocation2 + $0x88] sm:$0x3]
        %v8917 = vld [vmem:[#allocation2 + $0x90] sm:$0xff]
        %v8918 = vld [vmem:[#allocation2 + $0x98] sm:$0xff]
        %v8919 = vld [vmem:[#allocation2 + $0xa0] sm:$0x3]
        %v8920 = vld [vmem:[#allocation2 + $0xa8] sm:$0xff]
        %v8921 = vld [vmem:[#allocation2 + $0xb0] sm:$0xff]
        %v8922 = vld [vmem:[#allocation2 + $0xb8] sm:$0x3]
        %v8923 = vld [vmem:[#allocation2 + $0xc0] sm:$0xff]
        %v8924 = vld [vmem:[#allocation2 + $0xc8] sm:$0xff]
        %v8925 = vld [vmem:[#allocation2 + $0xd0] sm:$0x3]
        %v8926 = vld [vmem:[#allocation2 + $0xd8] sm:$0xff]
        %v8927 = vld [vmem:[#allocation2 + $0xe0] sm:$0xff]
        %v8928 = vld [vmem:[#allocation2 + $0xe8] sm:$0x3]
        %v8929 = vld [vmem:[#allocation2 + $0xf0] sm:$0xff]
        %v8930 = vld [vmem:[#allocation2 + $0xf8] sm:$0xff]
        %v8931 = vld [vmem:[#allocation2 + $0x100] sm:$0x3]
        %v8932 = vld [vmem:[#allocation2 + $0x108] sm:$0xff]
        %v8933 = vld [vmem:[#allocation2 + $0x110] sm:$0xff]
        %v8934 = vld [vmem:[#allocation2 + $0x118] sm:$0x3]
        %v8935 = vld [vmem:[#allocation2 + $0x120] sm:$0xff]
        %v8936 = vld [vmem:[#allocation2 + $0x128] sm:$0xff]
        %v8937 = vld [vmem:[#allocation2 + $0x130] sm:$0x3]
        %v8938 = vld [vmem:[#allocation2 + $0x138] sm:$0xff]
        %v8939 = vld [vmem:[#allocation2 + $0x140] sm:$0xff]
        %v8940 = vld [vmem:[#allocation2 + $0x148] sm:$0x3]
        %v8941 = vld [vmem:[#allocation2 + $0x150] sm:$0xff]
        %v8942 = vld [vmem:[#allocation2 + $0x158] sm:$0xff]
        %v8943 = vld [vmem:[#allocation2 + $0x160] sm:$0x3]
        %v8944 = vld [vmem:[#allocation2 + $0x168] sm:$0xff]
        %v8945 = vld [vmem:[#allocation2 + $0x170] sm:$0xff]
        %v8946 = vld [vmem:[#allocation2 + $0x178] sm:$0x3]
        %v8947 = vld [vmem:[%s916] sm:$0xff]
        %v8948 = vld [vmem:[%s916 + $0x8] sm:$0xff]
        %v8949 = vld [vmem:[%s916 + $0x10] sm:$0x3]
        %v8950 = vld [vmem:[%s916 + $0x18] sm:$0xff]
        %v8951 = vld [vmem:[%s916 + $0x20] sm:$0xff]
        %v8952 = vld [vmem:[%s916 + $0x28] sm:$0x3]
        %v8953 = vld [vmem:[%s916 + $0x30] sm:$0xff]
        %v8954 = vld [vmem:[%s916 + $0x38] sm:$0xff]
        %v8955 = vld [vmem:[%s916 + $0x40] sm:$0x3]
        %v8956 = vld [vmem:[%s916 + $0x48] sm:$0xff]
        %v8957 = vld [vmem:[%s916 + $0x50] sm:$0xff]
        %v8958 = vld [vmem:[%s916 + $0x58] sm:$0x3]
        %v8959 = vld [vmem:[%s916 + $0x60] sm:$0xff]
        %v8960 = vld [vmem:[%s916 + $0x68] sm:$0xff]
        %v8961 = vld [vmem:[%s916 + $0x70] sm:$0x3]
        %v8962 = vld [vmem:[%s916 + $0x78] sm:$0xff]
        %v8963 = vld [vmem:[%s916 + $0x80] sm:$0xff]
        %v8964 = vld [vmem:[%s916 + $0x88] sm:$0x3]
        %v8965 = vld [vmem:[%s916 + $0x90] sm:$0xff]
        %v8966 = vld [vmem:[%s916 + $0x98] sm:$0xff]
        %v8967 = vld [vmem:[%s916 + $0xa0] sm:$0x3]
        %v8968 = vld [vmem:[%s916 + $0xa8] sm:$0xff]
        %v8969 = vld [vmem:[%s916 + $0xb0] sm:$0xff]
        %v8970 = vld [vmem:[%s916 + $0xb8] sm:$0x3]
        %v8971 = vld [vmem:[%s916 + $0xc0] sm:$0xff]
        %v8972 = vld [vmem:[%s916 + $0xc8] sm:$0xff]
        %v8973 = vld [vmem:[%s916 + $0xd0] sm:$0x3]
        %v8974 = vld [vmem:[%s916 + $0xd8] sm:$0xff]
        %v8975 = vld [vmem:[%s916 + $0xe0] sm:$0xff]
        %v8976 = vld [vmem:[%s916 + $0xe8] sm:$0x3]
        %v8977 = vld [vmem:[%s916 + $0xf0] sm:$0xff]
        %v8978 = vld [vmem:[%s916 + $0xf8] sm:$0xff]
        %v8979 = vld [vmem:[%s916 + $0x100] sm:$0x3]
        %v8980 = vld [vmem:[%s916 + $0x108] sm:$0xff]
        %v8981 = vld [vmem:[%s916 + $0x110] sm:$0xff]
        %v8982 = vld [vmem:[%s916 + $0x118] sm:$0x3]
        %v8983 = vld [vmem:[%s916 + $0x120] sm:$0xff]
        %v8984 = vld [vmem:[%s916 + $0x128] sm:$0xff]
        %v8985 = vld [vmem:[%s916 + $0x130] sm:$0x3]
        %v8986 = vld [vmem:[%s916 + $0x138] sm:$0xff]
        %v8987 = vld [vmem:[%s916 + $0x140] sm:$0xff]
        %v8988 = vld [vmem:[%s916 + $0x148] sm:$0x3]
        %v8989 = vld [vmem:[%s916 + $0x150] sm:$0xff]
        %v8990 = vld [vmem:[%s916 + $0x158] sm:$0xff]
        %v8991 = vld [vmem:[%s916 + $0x160] sm:$0x3]
        %v8992 = vld [vmem:[%s916 + $0x168] sm:$0xff]
        %v8993 = vld [vmem:[%s916 + $0x170] sm:$0xff]
        %v8994 = vld [vmem:[%s916 + $0x178] sm:$0x3]
        %v8995 = vmax.f32 %v8899, %v8947
        %v8996 = vmax.f32 %v8900, %v8948
        %v8997 = vmax.f32 %v8901, %v8949
        %v8998 = vmax.f32 %v8902, %v8950
        %v8999 = vmax.f32 %v8903, %v8951
        %v9000 = vmax.f32 %v8904, %v8952
        %v9001 = vmax.f32 %v8905, %v8953
        %v9002 = vmax.f32 %v8906, %v8954
        %v9003 = vmax.f32 %v8907, %v8955
        %v9004 = vmax.f32 %v8908, %v8956
        %v9005 = vmax.f32 %v8909, %v8957
        %v9006 = vmax.f32 %v8910, %v8958
        %v9007 = vmax.f32 %v8911, %v8959
        %v9008 = vmax.f32 %v8912, %v8960
        %v9009 = vmax.f32 %v8913, %v8961
        %v9010 = vmax.f32 %v8914, %v8962
        %v9011 = vmax.f32 %v8915, %v8963
        %v9012 = vmax.f32 %v8916, %v8964
        %v9013 = vmax.f32 %v8917, %v8965
        %v9014 = vmax.f32 %v8918, %v8966
        %v9015 = vmax.f32 %v8919, %v8967
        %v9016 = vmax.f32 %v8920, %v8968
        %v9017 = vmax.f32 %v8921, %v8969
        %v9018 = vmax.f32 %v8922, %v8970
        %v9019 = vmax.f32 %v8923, %v8971
        %v9020 = vmax.f32 %v8924, %v8972
        %v9021 = vmax.f32 %v8925, %v8973
        %v9022 = vmax.f32 %v8926, %v8974
        %v9023 = vmax.f32 %v8927, %v8975
        %v9024 = vmax.f32 %v8928, %v8976
        %v9025 = vmax.f32 %v8929, %v8977
        %v9026 = vmax.f32 %v8930, %v8978
        %v9027 = vmax.f32 %v8931, %v8979
        %v9028 = vmax.f32 %v8932, %v8980
        %v9029 = vmax.f32 %v8933, %v8981
        %v9030 = vmax.f32 %v8934, %v8982
        %v9031 = vmax.f32 %v8935, %v8983
        %v9032 = vmax.f32 %v8936, %v8984
        %v9033 = vmax.f32 %v8937, %v8985
        %v9034 = vmax.f32 %v8938, %v8986
        %v9035 = vmax.f32 %v8939, %v8987
        %v9036 = vmax.f32 %v8940, %v8988
        %v9037 = vmax.f32 %v8941, %v8989
        %v9038 = vmax.f32 %v8942, %v8990
        %v9039 = vmax.f32 %v8943, %v8991
        %v9040 = vmax.f32 %v8944, %v8992
        %v9041 = vmax.f32 %v8945, %v8993
        %v9042 = vmax.f32 %v8946, %v8994
        %v9043 = vld [vmem:[%s2552] sm:$0xff]
        %v9044 = vld [vmem:[%s2552 + $0x8] sm:$0xff]
        %v9045 = vld [vmem:[%s2552 + $0x10] sm:$0x3]
        %v9046 = vld [vmem:[%s2552 + $0x18] sm:$0xff]
        %v9047 = vld [vmem:[%s2552 + $0x20] sm:$0xff]
        %v9048 = vld [vmem:[%s2552 + $0x28] sm:$0x3]
        %v9049 = vld [vmem:[%s2552 + $0x30] sm:$0xff]
        %v9050 = vld [vmem:[%s2552 + $0x38] sm:$0xff]
        %v9051 = vld [vmem:[%s2552 + $0x40] sm:$0x3]
        %v9052 = vld [vmem:[%s2552 + $0x48] sm:$0xff]
        %v9053 = vld [vmem:[%s2552 + $0x50] sm:$0xff]
        %v9054 = vld [vmem:[%s2552 + $0x58] sm:$0x3]
        %v9055 = vld [vmem:[%s2552 + $0x60] sm:$0xff]
        %v9056 = vld [vmem:[%s2552 + $0x68] sm:$0xff]
        %v9057 = vld [vmem:[%s2552 + $0x70] sm:$0x3]
        %v9058 = vld [vmem:[%s2552 + $0x78] sm:$0xff]
        %v9059 = vld [vmem:[%s2552 + $0x80] sm:$0xff]
        %v9060 = vld [vmem:[%s2552 + $0x88] sm:$0x3]
        %v9061 = vld [vmem:[%s2552 + $0x90] sm:$0xff]
        %v9062 = vld [vmem:[%s2552 + $0x98] sm:$0xff]
        %v9063 = vld [vmem:[%s2552 + $0xa0] sm:$0x3]
        %v9064 = vld [vmem:[%s2552 + $0xa8] sm:$0xff]
        %v9065 = vld [vmem:[%s2552 + $0xb0] sm:$0xff]
        %v9066 = vld [vmem:[%s2552 + $0xb8] sm:$0x3]
        %v9067 = vld [vmem:[%s2552 + $0xc0] sm:$0xff]
        %v9068 = vld [vmem:[%s2552 + $0xc8] sm:$0xff]
        %v9069 = vld [vmem:[%s2552 + $0xd0] sm:$0x3]
        %v9070 = vld [vmem:[%s2552 + $0xd8] sm:$0xff]
        %v9071 = vld [vmem:[%s2552 + $0xe0] sm:$0xff]
        %v9072 = vld [vmem:[%s2552 + $0xe8] sm:$0x3]
        %v9073 = vld [vmem:[%s2552 + $0xf0] sm:$0xff]
        %v9074 = vld [vmem:[%s2552 + $0xf8] sm:$0xff]
        %v9075 = vld [vmem:[%s2552 + $0x100] sm:$0x3]
        %v9076 = vld [vmem:[%s2552 + $0x108] sm:$0xff]
        %v9077 = vld [vmem:[%s2552 + $0x110] sm:$0xff]
        %v9078 = vld [vmem:[%s2552 + $0x118] sm:$0x3]
        %v9079 = vld [vmem:[%s2552 + $0x120] sm:$0xff]
        %v9080 = vld [vmem:[%s2552 + $0x128] sm:$0xff]
        %v9081 = vld [vmem:[%s2552 + $0x130] sm:$0x3]
        %v9082 = vld [vmem:[%s2552 + $0x138] sm:$0xff]
        %v9083 = vld [vmem:[%s2552 + $0x140] sm:$0xff]
        %v9084 = vld [vmem:[%s2552 + $0x148] sm:$0x3]
        %v9085 = vld [vmem:[%s2552 + $0x150] sm:$0xff]
        %v9086 = vld [vmem:[%s2552 + $0x158] sm:$0xff]
        %v9087 = vld [vmem:[%s2552 + $0x160] sm:$0x3]
        %v9088 = vld [vmem:[%s2552 + $0x168] sm:$0xff]
        %v9089 = vld [vmem:[%s2552 + $0x170] sm:$0xff]
        %v9090 = vld [vmem:[%s2552 + $0x178] sm:$0x3]
        %v9091 = vmax.f32 %v8995, %v9043
        %v9092 = vmax.f32 %v8996, %v9044
        %v9093 = vmax.f32 %v8997, %v9045
        %v9094 = vmax.f32 %v8998, %v9046
        %v9095 = vmax.f32 %v8999, %v9047
        %v9096 = vmax.f32 %v9000, %v9048
        %v9097 = vmax.f32 %v9001, %v9049
        %v9098 = vmax.f32 %v9002, %v9050
        %v9099 = vmax.f32 %v9003, %v9051
        %v9100 = vmax.f32 %v9004, %v9052
        %v9101 = vmax.f32 %v9005, %v9053
        %v9102 = vmax.f32 %v9006, %v9054
        %v9103 = vmax.f32 %v9007, %v9055
        %v9104 = vmax.f32 %v9008, %v9056
        %v9105 = vmax.f32 %v9009, %v9057
        %v9106 = vmax.f32 %v9010, %v9058
        %v9107 = vmax.f32 %v9011, %v9059
        %v9108 = vmax.f32 %v9012, %v9060
        %v9109 = vmax.f32 %v9013, %v9061
        %v9110 = vmax.f32 %v9014, %v9062
        %v9111 = vmax.f32 %v9015, %v9063
        %v9112 = vmax.f32 %v9016, %v9064
        %v9113 = vmax.f32 %v9017, %v9065
        %v9114 = vmax.f32 %v9018, %v9066
        %v9115 = vmax.f32 %v9019, %v9067
        %v9116 = vmax.f32 %v9020, %v9068
        %v9117 = vmax.f32 %v9021, %v9069
        %v9118 = vmax.f32 %v9022, %v9070
        %v9119 = vmax.f32 %v9023, %v9071
        %v9120 = vmax.f32 %v9024, %v9072
        %v9121 = vmax.f32 %v9025, %v9073
        %v9122 = vmax.f32 %v9026, %v9074
        %v9123 = vmax.f32 %v9027, %v9075
        %v9124 = vmax.f32 %v9028, %v9076
        %v9125 = vmax.f32 %v9029, %v9077
        %v9126 = vmax.f32 %v9030, %v9078
        %v9127 = vmax.f32 %v9031, %v9079
        %v9128 = vmax.f32 %v9032, %v9080
        %v9129 = vmax.f32 %v9033, %v9081
        %v9130 = vmax.f32 %v9034, %v9082
        %v9131 = vmax.f32 %v9035, %v9083
        %v9132 = vmax.f32 %v9036, %v9084
        %v9133 = vmax.f32 %v9037, %v9085
        %v9134 = vmax.f32 %v9038, %v9086
        %v9135 = vmax.f32 %v9039, %v9087
        %v9136 = vmax.f32 %v9040, %v9088
        %v9137 = vmax.f32 %v9041, %v9089
        %v9138 = vmax.f32 %v9042, %v9090
        %vm9187 = vcmask 1046528
        %v9188 = vrot.slane %v9091, 1
        %v9189 = vrot.slane %v9092, 1
        %v9190 = vsel %vm9187, %v9188, %v9189
        %v9191 = vrot.slane %v9093, 1
        %v9192 = vsel %vm9187, %v9189, %v9191
        %v9193 = vrot.slane %v9094, 1
        %v9194 = vrot.slane %v9095, 1
        %v9195 = vsel %vm9187, %v9193, %v9194
        %v9196 = vrot.slane %v9096, 1
        %v9197 = vsel %vm9187, %v9194, %v9196
        %v9198 = vrot.slane %v9097, 1
        %v9199 = vrot.slane %v9098, 1
        %v9200 = vsel %vm9187, %v9198, %v9199
        %v9201 = vrot.slane %v9099, 1
        %v9202 = vsel %vm9187, %v9199, %v9201
        %v9203 = vrot.slane %v9100, 1
        %v9204 = vrot.slane %v9101, 1
        %v9205 = vsel %vm9187, %v9203, %v9204
        %v9206 = vrot.slane %v9102, 1
        %v9207 = vsel %vm9187, %v9204, %v9206
        %v9208 = vrot.slane %v9103, 1
        %v9209 = vrot.slane %v9104, 1
        %v9210 = vsel %vm9187, %v9208, %v9209
        %v9211 = vrot.slane %v9105, 1
        %v9212 = vsel %vm9187, %v9209, %v9211
        %v9213 = vrot.slane %v9106, 1
        %v9214 = vrot.slane %v9107, 1
        %v9215 = vsel %vm9187, %v9213, %v9214
        %v9216 = vrot.slane %v9108, 1
        %v9217 = vsel %vm9187, %v9214, %v9216
        %v9218 = vrot.slane %v9109, 1
        %v9219 = vrot.slane %v9110, 1
        %v9220 = vsel %vm9187, %v9218, %v9219
        %v9221 = vrot.slane %v9111, 1
        %v9222 = vsel %vm9187, %v9219, %v9221
        %v9223 = vrot.slane %v9112, 1
        %v9224 = vrot.slane %v9113, 1
        %v9225 = vsel %vm9187, %v9223, %v9224
        %v9226 = vrot.slane %v9114, 1
        %v9227 = vsel %vm9187, %v9224, %v9226
        %v9228 = vrot.slane %v9115, 1
        %v9229 = vrot.slane %v9116, 1
        %v9230 = vsel %vm9187, %v9228, %v9229
        %v9231 = vrot.slane %v9117, 1
        %v9232 = vsel %vm9187, %v9229, %v9231
        %v9233 = vrot.slane %v9118, 1
        %v9234 = vrot.slane %v9119, 1
        %v9235 = vsel %vm9187, %v9233, %v9234
        %v9236 = vrot.slane %v9120, 1
        %v9237 = vsel %vm9187, %v9234, %v9236
        %v9238 = vrot.slane %v9121, 1
        %v9239 = vrot.slane %v9122, 1
        %v9240 = vsel %vm9187, %v9238, %v9239
        %v9241 = vrot.slane %v9123, 1
        %v9242 = vsel %vm9187, %v9239, %v9241
        %v9243 = vrot.slane %v9124, 1
        %v9244 = vrot.slane %v9125, 1
        %v9245 = vsel %vm9187, %v9243, %v9244
        %v9246 = vrot.slane %v9126, 1
        %v9247 = vsel %vm9187, %v9244, %v9246
        %v9248 = vrot.slane %v9127, 1
        %v9249 = vrot.slane %v9128, 1
        %v9250 = vsel %vm9187, %v9248, %v9249
        %v9251 = vrot.slane %v9129, 1
        %v9252 = vsel %vm9187, %v9249, %v9251
        %v9253 = vrot.slane %v9130, 1
        %v9254 = vrot.slane %v9131, 1
        %v9255 = vsel %vm9187, %v9253, %v9254
        %v9256 = vrot.slane %v9132, 1
        %v9257 = vsel %vm9187, %v9254, %v9256
        %v9258 = vrot.slane %v9133, 1
        %v9259 = vrot.slane %v9134, 1
        %v9260 = vsel %vm9187, %v9258, %v9259
        %v9261 = vrot.slane %v9135, 1
        %v9262 = vsel %vm9187, %v9259, %v9261
        %v9263 = vrot.slane %v9136, 1
        %v9264 = vrot.slane %v9137, 1
        %v9265 = vsel %vm9187, %v9263, %v9264
        %v9266 = vrot.slane %v9138, 1
        %v9267 = vsel %vm9187, %v9264, %v9266
        %v9300 = vmax.f32 %v9091, %v9190
        %v9301 = vmax.f32 %v9092, %v9192
        %v9302 = vmax.f32 %v9094, %v9195
        %v9303 = vmax.f32 %v9095, %v9197
        %v9304 = vmax.f32 %v9097, %v9200
        %v9305 = vmax.f32 %v9098, %v9202
        %v9306 = vmax.f32 %v9100, %v9205
        %v9307 = vmax.f32 %v9101, %v9207
        %v9308 = vmax.f32 %v9103, %v9210
        %v9309 = vmax.f32 %v9104, %v9212
        %v9310 = vmax.f32 %v9106, %v9215
        %v9311 = vmax.f32 %v9107, %v9217
        %v9312 = vmax.f32 %v9109, %v9220
        %v9313 = vmax.f32 %v9110, %v9222
        %v9314 = vmax.f32 %v9112, %v9225
        %v9315 = vmax.f32 %v9113, %v9227
        %v9316 = vmax.f32 %v9115, %v9230
        %v9317 = vmax.f32 %v9116, %v9232
        %v9318 = vmax.f32 %v9118, %v9235
        %v9319 = vmax.f32 %v9119, %v9237
        %v9320 = vmax.f32 %v9121, %v9240
        %v9321 = vmax.f32 %v9122, %v9242
        %v9322 = vmax.f32 %v9124, %v9245
        %v9323 = vmax.f32 %v9125, %v9247
        %v9324 = vmax.f32 %v9127, %v9250
        %v9325 = vmax.f32 %v9128, %v9252
        %v9326 = vmax.f32 %v9130, %v9255
        %v9327 = vmax.f32 %v9131, %v9257
        %v9328 = vmax.f32 %v9133, %v9260
        %v9329 = vmax.f32 %v9134, %v9262
        %v9330 = vmax.f32 %v9136, %v9265
        %v9331 = vmax.f32 %v9137, %v9267
        %vm9332 = vcmask 1045504
        %v9333 = vrot.slane %v9091, 2
        %v9334 = vrot.slane %v9092, 2
        %v9335 = vsel %vm9332, %v9333, %v9334
        %v9336 = vrot.slane %v9093, 2
        %v9337 = vsel %vm9332, %v9334, %v9336
        %v9338 = vrot.slane %v9094, 2
        %v9339 = vrot.slane %v9095, 2
        %v9340 = vsel %vm9332, %v9338, %v9339
        %v9341 = vrot.slane %v9096, 2
        %v9342 = vsel %vm9332, %v9339, %v9341
        %v9343 = vrot.slane %v9097, 2
        %v9344 = vrot.slane %v9098, 2
        %v9345 = vsel %vm9332, %v9343, %v9344
        %v9346 = vrot.slane %v9099, 2
        %v9347 = vsel %vm9332, %v9344, %v9346
        %v9348 = vrot.slane %v9100, 2
        %v9349 = vrot.slane %v9101, 2
        %v9350 = vsel %vm9332, %v9348, %v9349
        %v9351 = vrot.slane %v9102, 2
        %v9352 = vsel %vm9332, %v9349, %v9351
        %v9353 = vrot.slane %v9103, 2
        %v9354 = vrot.slane %v9104, 2
        %v9355 = vsel %vm9332, %v9353, %v9354
        %v9356 = vrot.slane %v9105, 2
        %v9357 = vsel %vm9332, %v9354, %v9356
        %v9358 = vrot.slane %v9106, 2
        %v9359 = vrot.slane %v9107, 2
        %v9360 = vsel %vm9332, %v9358, %v9359
        %v9361 = vrot.slane %v9108, 2
        %v9362 = vsel %vm9332, %v9359, %v9361
        %v9363 = vrot.slane %v9109, 2
        %v9364 = vrot.slane %v9110, 2
        %v9365 = vsel %vm9332, %v9363, %v9364
        %v9366 = vrot.slane %v9111, 2
        %v9367 = vsel %vm9332, %v9364, %v9366
        %v9368 = vrot.slane %v9112, 2
        %v9369 = vrot.slane %v9113, 2
        %v9370 = vsel %vm9332, %v9368, %v9369
        %v9371 = vrot.slane %v9114, 2
        %v9372 = vsel %vm9332, %v9369, %v9371
        %v9373 = vrot.slane %v9115, 2
        %v9374 = vrot.slane %v9116, 2
        %v9375 = vsel %vm9332, %v9373, %v9374
        %v9376 = vrot.slane %v9117, 2
        %v9377 = vsel %vm9332, %v9374, %v9376
        %v9378 = vrot.slane %v9118, 2
        %v9379 = vrot.slane %v9119, 2
        %v9380 = vsel %vm9332, %v9378, %v9379
        %v9381 = vrot.slane %v9120, 2
        %v9382 = vsel %vm9332, %v9379, %v9381
        %v9383 = vrot.slane %v9121, 2
        %v9384 = vrot.slane %v9122, 2
        %v9385 = vsel %vm9332, %v9383, %v9384
        %v9386 = vrot.slane %v9123, 2
        %v9387 = vsel %vm9332, %v9384, %v9386
        %v9388 = vrot.slane %v9124, 2
        %v9389 = vrot.slane %v9125, 2
        %v9390 = vsel %vm9332, %v9388, %v9389
        %v9391 = vrot.slane %v9126, 2
        %v9392 = vsel %vm9332, %v9389, %v9391
        %v9393 = vrot.slane %v9127, 2
        %v9394 = vrot.slane %v9128, 2
        %v9395 = vsel %vm9332, %v9393, %v9394
        %v9396 = vrot.slane %v9129, 2
        %v9397 = vsel %vm9332, %v9394, %v9396
        %v9398 = vrot.slane %v9130, 2
        %v9399 = vrot.slane %v9131, 2
        %v9400 = vsel %vm9332, %v9398, %v9399
        %v9401 = vrot.slane %v9132, 2
        %v9402 = vsel %vm9332, %v9399, %v9401
        %v9403 = vrot.slane %v9133, 2
        %v9404 = vrot.slane %v9134, 2
        %v9405 = vsel %vm9332, %v9403, %v9404
        %v9406 = vrot.slane %v9135, 2
        %v9407 = vsel %vm9332, %v9404, %v9406
        %v9408 = vrot.slane %v9136, 2
        %v9409 = vrot.slane %v9137, 2
        %v9410 = vsel %vm9332, %v9408, %v9409
        %v9411 = vrot.slane %v9138, 2
        %v9412 = vsel %vm9332, %v9409, %v9411
        %v9445 = vmax.f32 %v9300, %v9335
        %v9446 = vmax.f32 %v9301, %v9337
        %v9447 = vmax.f32 %v9302, %v9340
        %v9448 = vmax.f32 %v9303, %v9342
        %v9449 = vmax.f32 %v9304, %v9345
        %v9450 = vmax.f32 %v9305, %v9347
        %v9451 = vmax.f32 %v9306, %v9350
        %v9452 = vmax.f32 %v9307, %v9352
        %v9453 = vmax.f32 %v9308, %v9355
        %v9454 = vmax.f32 %v9309, %v9357
        %v9455 = vmax.f32 %v9310, %v9360
        %v9456 = vmax.f32 %v9311, %v9362
        %v9457 = vmax.f32 %v9312, %v9365
        %v9458 = vmax.f32 %v9313, %v9367
        %v9459 = vmax.f32 %v9314, %v9370
        %v9460 = vmax.f32 %v9315, %v9372
        %v9461 = vmax.f32 %v9316, %v9375
        %v9462 = vmax.f32 %v9317, %v9377
        %v9463 = vmax.f32 %v9318, %v9380
        %v9464 = vmax.f32 %v9319, %v9382
        %v9465 = vmax.f32 %v9320, %v9385
        %v9466 = vmax.f32 %v9321, %v9387
        %v9467 = vmax.f32 %v9322, %v9390
        %v9468 = vmax.f32 %v9323, %v9392
        %v9469 = vmax.f32 %v9324, %v9395
        %v9470 = vmax.f32 %v9325, %v9397
        %v9471 = vmax.f32 %v9326, %v9400
        %v9472 = vmax.f32 %v9327, %v9402
        %v9473 = vmax.f32 %v9328, %v9405
        %v9474 = vmax.f32 %v9329, %v9407
        %v9475 = vmax.f32 %v9330, %v9410
        %v9476 = vmax.f32 %v9331, %v9412
        %v9477 = vld [vmem:[%s13] sm:$0xf]
        %v9479 = vsel %vm553, %v9445, 0
        %v9482 = vsel %vm553, %v9446, 0
        %v9485 = vsel %vm553, %v9447, 0
        %v9488 = vsel %vm553, %v9448, 0
        %v9491 = vsel %vm553, %v9449, 0
        %v9494 = vsel %vm553, %v9450, 0
        %v9497 = vsel %vm553, %v9451, 0
        %v9500 = vsel %vm553, %v9452, 0
        %v9503 = vsel %vm553, %v9453, 0
        %v9506 = vsel %vm553, %v9454, 0
        %v9509 = vsel %vm553, %v9455, 0
        %v9512 = vsel %vm553, %v9456, 0
        %v9515 = vsel %vm553, %v9457, 0
        %v9518 = vsel %vm553, %v9458, 0
        %v9521 = vsel %vm553, %v9459, 0
        %v9524 = vsel %vm553, %v9460, 0
        %v9527 = vsel %vm553, %v9461, 0
        %v9530 = vsel %vm553, %v9462, 0
        %v9533 = vsel %vm553, %v9463, 0
        %v9536 = vsel %vm553, %v9464, 0
        %v9539 = vsel %vm553, %v9465, 0
        %v9542 = vsel %vm553, %v9466, 0
        %v9545 = vsel %vm553, %v9467, 0
        %v9548 = vsel %vm553, %v9468, 0
        %v9551 = vsel %vm553, %v9469, 0
        %v9554 = vsel %vm553, %v9470, 0
        %v9557 = vsel %vm553, %v9471, 0
        %v9560 = vsel %vm553, %v9472, 0
        %v9563 = vsel %vm553, %v9473, 0
        %v9566 = vsel %vm553, %v9474, 0
        %v9569 = vsel %vm553, %v9475, 0
        %v9572 = vsel %vm553, %v9476, 0
        %v9575 = vsel %vm650, %v9477, 0
        %9577 = vmatpush.msra.mxu0 0.0
        %9578 = vmatpush.msra.mxu0 0.0
        %9579 = vmatpush.msra.mxu0 0.0
        %9580 = vmatpush.msra.mxu0 0.0
        %9581 = vmatpush.msra.mxu0 0.0
        %9582 = vmatpush.msra.mxu0 0.0
        %9583 = vmatpush.msra.mxu0 0.0
        %9584 = vmatpush.msra.mxu0 0.0
        %9585 = vmatpush.msra.mxu0 0.0
        %9586 = vmatpush.msra.mxu0 0.0
        %9587 = vmatpush.msra.mxu0 0.0
        %9588 = vmatpush.msra.mxu0 0.0
        %9589 = vmatpush.msra.mxu0 0.0
        %9590 = vmatpush.msra.mxu0 0.0
        %9591 = vmatpush.msra.mxu0 0.0
        %9592 = vmatpush.msra.mxu0 %v9575
        %9593 = vmatmul.f32.gmra.mxu0 %v9479
        %v9594 = vpop.f32.mrf.mxu0
        %v9595 = vadd.f32 0.0, %v9594
        %9596 = vmatmul.f32.gmra.mxu0 %v9482
        %v9597 = vpop.f32.mrf.mxu0
        %v9598 = vadd.f32 0.0, %v9597
        %9599 = vmatmul.f32.gmra.mxu0 %v9485
        %v9600 = vpop.f32.mrf.mxu0
        %v9601 = vadd.f32 0.0, %v9600
        %9602 = vmatmul.f32.gmra.mxu0 %v9488
        %v9603 = vpop.f32.mrf.mxu0
        %v9604 = vadd.f32 0.0, %v9603
        %9605 = vmatmul.f32.gmra.mxu0 %v9491
        %v9606 = vpop.f32.mrf.mxu0
        %v9607 = vadd.f32 0.0, %v9606
        %9608 = vmatmul.f32.gmra.mxu0 %v9494
        %v9609 = vpop.f32.mrf.mxu0
        %v9610 = vadd.f32 0.0, %v9609
        %9611 = vmatmul.f32.gmra.mxu0 %v9497
        %v9612 = vpop.f32.mrf.mxu0
        %v9613 = vadd.f32 0.0, %v9612
        %9614 = vmatmul.f32.gmra.mxu0 %v9500
        %v9615 = vpop.f32.mrf.mxu0
        %v9616 = vadd.f32 0.0, %v9615
        %9617 = vmatmul.f32.gmra.mxu0 %v9503
        %v9618 = vpop.f32.mrf.mxu0
        %v9619 = vadd.f32 0.0, %v9618
        %9620 = vmatmul.f32.gmra.mxu0 %v9506
        %v9621 = vpop.f32.mrf.mxu0
        %v9622 = vadd.f32 0.0, %v9621
        %9623 = vmatmul.f32.gmra.mxu0 %v9509
        %v9624 = vpop.f32.mrf.mxu0
        %v9625 = vadd.f32 0.0, %v9624
        %9626 = vmatmul.f32.gmra.mxu0 %v9512
        %v9627 = vpop.f32.mrf.mxu0
        %v9628 = vadd.f32 0.0, %v9627
        %9629 = vmatmul.f32.gmra.mxu0 %v9515
        %v9630 = vpop.f32.mrf.mxu0
        %v9631 = vadd.f32 0.0, %v9630
        %9632 = vmatmul.f32.gmra.mxu0 %v9518
        %v9633 = vpop.f32.mrf.mxu0
        %v9634 = vadd.f32 0.0, %v9633
        %9635 = vmatmul.f32.gmra.mxu0 %v9521
        %v9636 = vpop.f32.mrf.mxu0
        %v9637 = vadd.f32 0.0, %v9636
        %9638 = vmatmul.f32.gmra.mxu0 %v9524
        %v9639 = vpop.f32.mrf.mxu0
        %v9640 = vadd.f32 0.0, %v9639
        %9641 = vmatmul.f32.gmra.mxu0 %v9527
        %v9642 = vpop.f32.mrf.mxu0
        %v9643 = vadd.f32 0.0, %v9642
        %9644 = vmatmul.f32.gmra.mxu0 %v9530
        %v9645 = vpop.f32.mrf.mxu0
        %v9646 = vadd.f32 0.0, %v9645
        %9647 = vmatmul.f32.gmra.mxu0 %v9533
        %v9648 = vpop.f32.mrf.mxu0
        %v9649 = vadd.f32 0.0, %v9648
        %9650 = vmatmul.f32.gmra.mxu0 %v9536
        %v9651 = vpop.f32.mrf.mxu0
        %v9652 = vadd.f32 0.0, %v9651
        %9653 = vmatmul.f32.gmra.mxu0 %v9539
        %v9654 = vpop.f32.mrf.mxu0
        %v9655 = vadd.f32 0.0, %v9654
        %9656 = vmatmul.f32.gmra.mxu0 %v9542
        %v9657 = vpop.f32.mrf.mxu0
        %v9658 = vadd.f32 0.0, %v9657
        %9659 = vmatmul.f32.gmra.mxu0 %v9545
        %v9660 = vpop.f32.mrf.mxu0
        %v9661 = vadd.f32 0.0, %v9660
        %9662 = vmatmul.f32.gmra.mxu0 %v9548
        %v9663 = vpop.f32.mrf.mxu0
        %v9664 = vadd.f32 0.0, %v9663
        %9665 = vmatmul.f32.gmra.mxu0 %v9551
        %v9666 = vpop.f32.mrf.mxu0
        %v9667 = vadd.f32 0.0, %v9666
        %9668 = vmatmul.f32.gmra.mxu0 %v9554
        %v9669 = vpop.f32.mrf.mxu0
        %v9670 = vadd.f32 0.0, %v9669
        %9671 = vmatmul.f32.gmra.mxu0 %v9557
        %v9672 = vpop.f32.mrf.mxu0
        %v9673 = vadd.f32 0.0, %v9672
        %9674 = vmatmul.f32.gmra.mxu0 %v9560
        %v9675 = vpop.f32.mrf.mxu0
        %v9676 = vadd.f32 0.0, %v9675
        %9677 = vmatmul.f32.gmra.mxu0 %v9563
        %v9678 = vpop.f32.mrf.mxu0
        %v9679 = vadd.f32 0.0, %v9678
        %9680 = vmatmul.f32.gmra.mxu0 %v9566
        %v9681 = vpop.f32.mrf.mxu0
        %v9682 = vadd.f32 0.0, %v9681
        %9683 = vmatmul.f32.gmra.mxu0 %v9569
        %v9684 = vpop.f32.mrf.mxu0
        %v9685 = vadd.f32 0.0, %v9684
        %9686 = vmatmul.f32.gmra.mxu0 %v9572
        %v9687 = vpop.f32.mrf.mxu0
        %v9688 = vadd.f32 0.0, %v9687
        %9689 = vdwg.mxu0
        %v9690 = vld [vmem:[%s14] sm:$0x1]
        %v9692 = vperm.slane %v9690, 0
        %v9694 = vmul.f32 %v9595, %v9692
        %v9695 = vmul.f32 %v9598, %v9692
        %v9696 = vmul.f32 %v9601, %v9692
        %v9697 = vmul.f32 %v9604, %v9692
        %v9698 = vmul.f32 %v9607, %v9692
        %v9699 = vmul.f32 %v9610, %v9692
        %v9700 = vmul.f32 %v9613, %v9692
        %v9701 = vmul.f32 %v9616, %v9692
        %v9702 = vmul.f32 %v9619, %v9692
        %v9703 = vmul.f32 %v9622, %v9692
        %v9704 = vmul.f32 %v9625, %v9692
        %v9705 = vmul.f32 %v9628, %v9692
        %v9706 = vmul.f32 %v9631, %v9692
        %v9707 = vmul.f32 %v9634, %v9692
        %v9708 = vmul.f32 %v9637, %v9692
        %v9709 = vmul.f32 %v9640, %v9692
        %v9710 = vmul.f32 %v9643, %v9692
        %v9711 = vmul.f32 %v9646, %v9692
        %v9712 = vmul.f32 %v9649, %v9692
        %v9713 = vmul.f32 %v9652, %v9692
        %v9714 = vmul.f32 %v9655, %v9692
        %v9715 = vmul.f32 %v9658, %v9692
        %v9716 = vmul.f32 %v9661, %v9692
        %v9717 = vmul.f32 %v9664, %v9692
        %v9718 = vmul.f32 %v9667, %v9692
        %v9719 = vmul.f32 %v9670, %v9692
        %v9720 = vmul.f32 %v9673, %v9692
        %v9721 = vmul.f32 %v9676, %v9692
        %v9722 = vmul.f32 %v9679, %v9692
        %v9723 = vmul.f32 %v9682, %v9692
        %v9724 = vmul.f32 %v9685, %v9692
        %v9725 = vmul.f32 %v9688, %v9692
        %v9726 = vld [vmem:[%s15] sm:$0x1]
        %v9728 = vperm.slane %v9726, 0
        %v9730 = vadd.f32 %v9694, %v9728
        %v9731 = vadd.f32 %v9695, %v9728
        %v9732 = vadd.f32 %v9696, %v9728
        %v9733 = vadd.f32 %v9697, %v9728
        %v9734 = vadd.f32 %v9698, %v9728
        %v9735 = vadd.f32 %v9699, %v9728
        %v9736 = vadd.f32 %v9700, %v9728
        %v9737 = vadd.f32 %v9701, %v9728
        %v9738 = vadd.f32 %v9702, %v9728
        %v9739 = vadd.f32 %v9703, %v9728
        %v9740 = vadd.f32 %v9704, %v9728
        %v9741 = vadd.f32 %v9705, %v9728
        %v9742 = vadd.f32 %v9706, %v9728
        %v9743 = vadd.f32 %v9707, %v9728
        %v9744 = vadd.f32 %v9708, %v9728
        %v9745 = vadd.f32 %v9709, %v9728
        %v9746 = vadd.f32 %v9710, %v9728
        %v9747 = vadd.f32 %v9711, %v9728
        %v9748 = vadd.f32 %v9712, %v9728
        %v9749 = vadd.f32 %v9713, %v9728
        %v9750 = vadd.f32 %v9714, %v9728
        %v9751 = vadd.f32 %v9715, %v9728
        %v9752 = vadd.f32 %v9716, %v9728
        %v9753 = vadd.f32 %v9717, %v9728
        %v9754 = vadd.f32 %v9718, %v9728
        %v9755 = vadd.f32 %v9719, %v9728
        %v9756 = vadd.f32 %v9720, %v9728
        %v9757 = vadd.f32 %v9721, %v9728
        %v9758 = vadd.f32 %v9722, %v9728
        %v9759 = vadd.f32 %v9723, %v9728
        %v9760 = vadd.f32 %v9724, %v9728
        %v9761 = vadd.f32 %v9725, %v9728
        %v9762 = vmax.f32 %v9730, 0.0
        %v9763 = vmax.f32 %v9731, 0.0
        %v9764 = vmax.f32 %v9732, 0.0
        %v9765 = vmax.f32 %v9733, 0.0
        %v9766 = vmax.f32 %v9734, 0.0
        %v9767 = vmax.f32 %v9735, 0.0
        %v9768 = vmax.f32 %v9736, 0.0
        %v9769 = vmax.f32 %v9737, 0.0
        %v9770 = vmax.f32 %v9738, 0.0
        %v9771 = vmax.f32 %v9739, 0.0
        %v9772 = vmax.f32 %v9740, 0.0
        %v9773 = vmax.f32 %v9741, 0.0
        %v9774 = vmax.f32 %v9742, 0.0
        %v9775 = vmax.f32 %v9743, 0.0
        %v9776 = vmax.f32 %v9744, 0.0
        %v9777 = vmax.f32 %v9745, 0.0
        %v9778 = vmax.f32 %v9746, 0.0
        %v9779 = vmax.f32 %v9747, 0.0
        %v9780 = vmax.f32 %v9748, 0.0
        %v9781 = vmax.f32 %v9749, 0.0
        %v9782 = vmax.f32 %v9750, 0.0
        %v9783 = vmax.f32 %v9751, 0.0
        %v9784 = vmax.f32 %v9752, 0.0
        %v9785 = vmax.f32 %v9753, 0.0
        %v9786 = vmax.f32 %v9754, 0.0
        %v9787 = vmax.f32 %v9755, 0.0
        %v9788 = vmax.f32 %v9756, 0.0
        %v9789 = vmax.f32 %v9757, 0.0
        %v9790 = vmax.f32 %v9758, 0.0
        %v9791 = vmax.f32 %v9759, 0.0
        %v9792 = vmax.f32 %v9760, 0.0
        %v9793 = vmax.f32 %v9761, 0.0
        %9794 = vrot.lane.b32.xlu0 %v839, 120
        %v9795 = vpop.permute.xlu0 %9794
        %9796 = vrot.lane.b32.xlu0 %v840, 120
        %v9797 = vpop.permute.xlu0 %9796
        %9798 = vrot.lane.b32.xlu0 %v841, 120
        %v9799 = vpop.permute.xlu0 %9798
        %9800 = vrot.lane.b32.xlu0 %v842, 120
        %v9801 = vpop.permute.xlu0 %9800
        %9802 = vrot.lane.b32.xlu0 %v843, 120
        %v9803 = vpop.permute.xlu0 %9802
        %9804 = vrot.lane.b32.xlu0 %v844, 120
        %v9805 = vpop.permute.xlu0 %9804
        %9806 = vrot.lane.b32.xlu0 %v845, 120
        %v9807 = vpop.permute.xlu0 %9806
        %9808 = vrot.lane.b32.xlu0 %v846, 120
        %v9809 = vpop.permute.xlu0 %9808
        %9810 = vrot.lane.b32.xlu0 %v847, 120
        %v9811 = vpop.permute.xlu0 %9810
        %9812 = vrot.lane.b32.xlu0 %v848, 120
        %v9813 = vpop.permute.xlu0 %9812
        %9814 = vrot.lane.b32.xlu0 %v849, 120
        %v9815 = vpop.permute.xlu0 %9814
        %9816 = vrot.lane.b32.xlu0 %v850, 120
        %v9817 = vpop.permute.xlu0 %9816
        %9818 = vrot.lane.b32.xlu0 %v851, 120
        %v9819 = vpop.permute.xlu0 %9818
        %9820 = vrot.lane.b32.xlu0 %v852, 120
        %v9821 = vpop.permute.xlu0 %9820
        %9822 = vrot.lane.b32.xlu0 %v853, 120
        %v9823 = vpop.permute.xlu0 %9822
        %9824 = vrot.lane.b32.xlu0 %v854, 120
        %v9825 = vpop.permute.xlu0 %9824
        %9826 = vrot.lane.b32.xlu0 %v855, 120
        %v9827 = vpop.permute.xlu0 %9826
        %9828 = vrot.lane.b32.xlu0 %v856, 120
        %v9829 = vpop.permute.xlu0 %9828
        %9830 = vrot.lane.b32.xlu0 %v857, 120
        %v9831 = vpop.permute.xlu0 %9830
        %9832 = vrot.lane.b32.xlu0 %v858, 120
        %v9833 = vpop.permute.xlu0 %9832
        %9834 = vrot.lane.b32.xlu0 %v859, 120
        %v9835 = vpop.permute.xlu0 %9834
        %9836 = vrot.lane.b32.xlu0 %v860, 120
        %v9837 = vpop.permute.xlu0 %9836
        %9838 = vrot.lane.b32.xlu0 %v861, 120
        %v9839 = vpop.permute.xlu0 %9838
        %9840 = vrot.lane.b32.xlu0 %v862, 120
        %v9841 = vpop.permute.xlu0 %9840
        %9842 = vrot.lane.b32.xlu0 %v863, 120
        %v9843 = vpop.permute.xlu0 %9842
        %9844 = vrot.lane.b32.xlu0 %v864, 120
        %v9845 = vpop.permute.xlu0 %9844
        %9846 = vrot.lane.b32.xlu0 %v865, 120
        %v9847 = vpop.permute.xlu0 %9846
        %9848 = vrot.lane.b32.xlu0 %v866, 120
        %v9849 = vpop.permute.xlu0 %9848
        %9850 = vrot.lane.b32.xlu0 %v867, 120
        %v9851 = vpop.permute.xlu0 %9850
        %9852 = vrot.lane.b32.xlu0 %v868, 120
        %v9853 = vpop.permute.xlu0 %9852
        %9854 = vrot.lane.b32.xlu0 %v869, 120
        %v9855 = vpop.permute.xlu0 %9854
        %9856 = vrot.lane.b32.xlu0 %v870, 120
        %v9857 = vpop.permute.xlu0 %9856
        %9922 = vrot.lane.b32.xlu0 %v3459, 8
        %v9923 = vpop.permute.xlu0 %9922
        %9924 = vrot.lane.b32.xlu0 %v3460, 8
        %v9925 = vpop.permute.xlu0 %9924
        %9926 = vrot.lane.b32.xlu0 %v3461, 8
        %v9927 = vpop.permute.xlu0 %9926
        %9928 = vrot.lane.b32.xlu0 %v3462, 8
        %v9929 = vpop.permute.xlu0 %9928
        %9930 = vrot.lane.b32.xlu0 %v3463, 8
        %v9931 = vpop.permute.xlu0 %9930
        %9932 = vrot.lane.b32.xlu0 %v3464, 8
        %v9933 = vpop.permute.xlu0 %9932
        %9934 = vrot.lane.b32.xlu0 %v3465, 8
        %v9935 = vpop.permute.xlu0 %9934
        %9936 = vrot.lane.b32.xlu0 %v3466, 8
        %v9937 = vpop.permute.xlu0 %9936
        %9938 = vrot.lane.b32.xlu0 %v3467, 8
        %v9939 = vpop.permute.xlu0 %9938
        %9940 = vrot.lane.b32.xlu0 %v3468, 8
        %v9941 = vpop.permute.xlu0 %9940
        %9942 = vrot.lane.b32.xlu0 %v3469, 8
        %v9943 = vpop.permute.xlu0 %9942
        %9944 = vrot.lane.b32.xlu0 %v3470, 8
        %v9945 = vpop.permute.xlu0 %9944
        %9946 = vrot.lane.b32.xlu0 %v3471, 8
        %v9947 = vpop.permute.xlu0 %9946
        %9948 = vrot.lane.b32.xlu0 %v3472, 8
        %v9949 = vpop.permute.xlu0 %9948
        %9950 = vrot.lane.b32.xlu0 %v3473, 8
        %v9951 = vpop.permute.xlu0 %9950
        %9952 = vrot.lane.b32.xlu0 %v3474, 8
        %v9953 = vpop.permute.xlu0 %9952
        %9954 = vrot.lane.b32.xlu0 %v3475, 8
        %v9955 = vpop.permute.xlu0 %9954
        %9956 = vrot.lane.b32.xlu0 %v3476, 8
        %v9957 = vpop.permute.xlu0 %9956
        %9958 = vrot.lane.b32.xlu0 %v3477, 8
        %v9959 = vpop.permute.xlu0 %9958
        %9960 = vrot.lane.b32.xlu0 %v3478, 8
        %v9961 = vpop.permute.xlu0 %9960
        %9962 = vrot.lane.b32.xlu0 %v3479, 8
        %v9963 = vpop.permute.xlu0 %9962
        %9964 = vrot.lane.b32.xlu0 %v3480, 8
        %v9965 = vpop.permute.xlu0 %9964
        %9966 = vrot.lane.b32.xlu0 %v3481, 8
        %v9967 = vpop.permute.xlu0 %9966
        %9968 = vrot.lane.b32.xlu0 %v3482, 8
        %v9969 = vpop.permute.xlu0 %9968
        %9970 = vrot.lane.b32.xlu0 %v3483, 8
        %v9971 = vpop.permute.xlu0 %9970
        %9972 = vrot.lane.b32.xlu0 %v3484, 8
        %v9973 = vpop.permute.xlu0 %9972
        %9974 = vrot.lane.b32.xlu0 %v3485, 8
        %v9975 = vpop.permute.xlu0 %9974
        %9976 = vrot.lane.b32.xlu0 %v3486, 8
        %v9977 = vpop.permute.xlu0 %9976
        %9978 = vrot.lane.b32.xlu0 %v3487, 8
        %v9979 = vpop.permute.xlu0 %9978
        %9980 = vrot.lane.b32.xlu0 %v3488, 8
        %v9981 = vpop.permute.xlu0 %9980
        %9982 = vrot.lane.b32.xlu0 %v3489, 8
        %v9983 = vpop.permute.xlu0 %9982
        %9984 = vrot.lane.b32.xlu0 %v3490, 8
        %v9985 = vpop.permute.xlu0 %9984
        %10050 = vrot.lane.b32.xlu0 %v8793, 16
        %v10051 = vpop.permute.xlu0 %10050
        %10052 = vrot.lane.b32.xlu0 %v8794, 16
        %v10053 = vpop.permute.xlu0 %10052
        %10054 = vrot.lane.b32.xlu0 %v8795, 16
        %v10055 = vpop.permute.xlu0 %10054
        %10056 = vrot.lane.b32.xlu0 %v8796, 16
        %v10057 = vpop.permute.xlu0 %10056
        %10058 = vrot.lane.b32.xlu0 %v8797, 16
        %v10059 = vpop.permute.xlu0 %10058
        %10060 = vrot.lane.b32.xlu0 %v8798, 16
        %v10061 = vpop.permute.xlu0 %10060
        %10062 = vrot.lane.b32.xlu0 %v8799, 16
        %v10063 = vpop.permute.xlu0 %10062
        %10064 = vrot.lane.b32.xlu0 %v8800, 16
        %v10065 = vpop.permute.xlu0 %10064
        %10066 = vrot.lane.b32.xlu0 %v8801, 16
        %v10067 = vpop.permute.xlu0 %10066
        %10068 = vrot.lane.b32.xlu0 %v8802, 16
        %v10069 = vpop.permute.xlu0 %10068
        %10070 = vrot.lane.b32.xlu0 %v8803, 16
        %v10071 = vpop.permute.xlu0 %10070
        %10072 = vrot.lane.b32.xlu0 %v8804, 16
        %v10073 = vpop.permute.xlu0 %10072
        %10074 = vrot.lane.b32.xlu0 %v8805, 16
        %v10075 = vpop.permute.xlu0 %10074
        %10076 = vrot.lane.b32.xlu0 %v8806, 16
        %v10077 = vpop.permute.xlu0 %10076
        %10078 = vrot.lane.b32.xlu0 %v8807, 16
        %v10079 = vpop.permute.xlu0 %10078
        %10080 = vrot.lane.b32.xlu0 %v8808, 16
        %v10081 = vpop.permute.xlu0 %10080
        %10082 = vrot.lane.b32.xlu0 %v8809, 16
        %v10083 = vpop.permute.xlu0 %10082
        %10084 = vrot.lane.b32.xlu0 %v8810, 16
        %v10085 = vpop.permute.xlu0 %10084
        %10086 = vrot.lane.b32.xlu0 %v8811, 16
        %v10087 = vpop.permute.xlu0 %10086
        %10088 = vrot.lane.b32.xlu0 %v8812, 16
        %v10089 = vpop.permute.xlu0 %10088
        %10090 = vrot.lane.b32.xlu0 %v8813, 16
        %v10091 = vpop.permute.xlu0 %10090
        %10092 = vrot.lane.b32.xlu0 %v8814, 16
        %v10093 = vpop.permute.xlu0 %10092
        %10094 = vrot.lane.b32.xlu0 %v8815, 16
        %v10095 = vpop.permute.xlu0 %10094
        %10096 = vrot.lane.b32.xlu0 %v8816, 16
        %v10097 = vpop.permute.xlu0 %10096
        %10098 = vrot.lane.b32.xlu0 %v8817, 16
        %v10099 = vpop.permute.xlu0 %10098
        %10100 = vrot.lane.b32.xlu0 %v8818, 16
        %v10101 = vpop.permute.xlu0 %10100
        %10102 = vrot.lane.b32.xlu0 %v8819, 16
        %v10103 = vpop.permute.xlu0 %10102
        %10104 = vrot.lane.b32.xlu0 %v8820, 16
        %v10105 = vpop.permute.xlu0 %10104
        %10106 = vrot.lane.b32.xlu0 %v8821, 16
        %v10107 = vpop.permute.xlu0 %10106
        %10108 = vrot.lane.b32.xlu0 %v8822, 16
        %v10109 = vpop.permute.xlu0 %10108
        %10110 = vrot.lane.b32.xlu0 %v8823, 16
        %v10111 = vpop.permute.xlu0 %10110
        %10112 = vrot.lane.b32.xlu0 %v8824, 16
        %v10113 = vpop.permute.xlu0 %10112
        %10178 = vrot.lane.b32.xlu0 %v9762, 24
        %v10179 = vpop.permute.xlu0 %10178
        %10180 = vrot.lane.b32.xlu0 %v9763, 24
        %v10181 = vpop.permute.xlu0 %10180
        %10182 = vrot.lane.b32.xlu0 %v9764, 24
        %v10183 = vpop.permute.xlu0 %10182
        %10184 = vrot.lane.b32.xlu0 %v9765, 24
        %v10185 = vpop.permute.xlu0 %10184
        %10186 = vrot.lane.b32.xlu0 %v9766, 24
        %v10187 = vpop.permute.xlu0 %10186
        %10188 = vrot.lane.b32.xlu0 %v9767, 24
        %v10189 = vpop.permute.xlu0 %10188
        %10190 = vrot.lane.b32.xlu0 %v9768, 24
        %v10191 = vpop.permute.xlu0 %10190
        %10192 = vrot.lane.b32.xlu0 %v9769, 24
        %v10193 = vpop.permute.xlu0 %10192
        %10194 = vrot.lane.b32.xlu0 %v9770, 24
        %v10195 = vpop.permute.xlu0 %10194
        %10196 = vrot.lane.b32.xlu0 %v9771, 24
        %v10197 = vpop.permute.xlu0 %10196
        %10198 = vrot.lane.b32.xlu0 %v9772, 24
        %v10199 = vpop.permute.xlu0 %10198
        %10200 = vrot.lane.b32.xlu0 %v9773, 24
        %v10201 = vpop.permute.xlu0 %10200
        %10202 = vrot.lane.b32.xlu0 %v9774, 24
        %v10203 = vpop.permute.xlu0 %10202
        %10204 = vrot.lane.b32.xlu0 %v9775, 24
        %v10205 = vpop.permute.xlu0 %10204
        %10206 = vrot.lane.b32.xlu0 %v9776, 24
        %v10207 = vpop.permute.xlu0 %10206
        %10208 = vrot.lane.b32.xlu0 %v9777, 24
        %v10209 = vpop.permute.xlu0 %10208
        %10210 = vrot.lane.b32.xlu0 %v9778, 24
        %v10211 = vpop.permute.xlu0 %10210
        %10212 = vrot.lane.b32.xlu0 %v9779, 24
        %v10213 = vpop.permute.xlu0 %10212
        %10214 = vrot.lane.b32.xlu0 %v9780, 24
        %v10215 = vpop.permute.xlu0 %10214
        %10216 = vrot.lane.b32.xlu0 %v9781, 24
        %v10217 = vpop.permute.xlu0 %10216
        %10218 = vrot.lane.b32.xlu0 %v9782, 24
        %v10219 = vpop.permute.xlu0 %10218
        %10220 = vrot.lane.b32.xlu0 %v9783, 24
        %v10221 = vpop.permute.xlu0 %10220
        %10222 = vrot.lane.b32.xlu0 %v9784, 24
        %v10223 = vpop.permute.xlu0 %10222
        %10224 = vrot.lane.b32.xlu0 %v9785, 24
        %v10225 = vpop.permute.xlu0 %10224
        %10226 = vrot.lane.b32.xlu0 %v9786, 24
        %v10227 = vpop.permute.xlu0 %10226
        %10228 = vrot.lane.b32.xlu0 %v9787, 24
        %v10229 = vpop.permute.xlu0 %10228
        %10230 = vrot.lane.b32.xlu0 %v9788, 24
        %v10231 = vpop.permute.xlu0 %10230
        %10232 = vrot.lane.b32.xlu0 %v9789, 24
        %v10233 = vpop.permute.xlu0 %10232
        %10234 = vrot.lane.b32.xlu0 %v9790, 24
        %v10235 = vpop.permute.xlu0 %10234
        %10236 = vrot.lane.b32.xlu0 %v9791, 24
        %v10237 = vpop.permute.xlu0 %10236
        %10238 = vrot.lane.b32.xlu0 %v9792, 24
        %v10239 = vpop.permute.xlu0 %10238
        %10240 = vrot.lane.b32.xlu0 %v9793, 24
        %v10241 = vpop.permute.xlu0 %10240
        %v10274 = vsel %vm6234, %v9795, %v9923
        %v10275 = vsel %vm6234, %v9797, %v9925
        %v10276 = vsel %vm6234, %v9799, %v9927
        %v10277 = vsel %vm6234, %v9801, %v9929
        %v10278 = vsel %vm6234, %v9803, %v9931
        %v10279 = vsel %vm6234, %v9805, %v9933
        %v10280 = vsel %vm6234, %v9807, %v9935
        %v10281 = vsel %vm6234, %v9809, %v9937
        %v10282 = vsel %vm6234, %v9811, %v9939
        %v10283 = vsel %vm6234, %v9813, %v9941
        %v10284 = vsel %vm6234, %v9815, %v9943
        %v10285 = vsel %vm6234, %v9817, %v9945
        %v10286 = vsel %vm6234, %v9819, %v9947
        %v10287 = vsel %vm6234, %v9821, %v9949
        %v10288 = vsel %vm6234, %v9823, %v9951
        %v10289 = vsel %vm6234, %v9825, %v9953
        %v10290 = vsel %vm6234, %v9827, %v9955
        %v10291 = vsel %vm6234, %v9829, %v9957
        %v10292 = vsel %vm6234, %v9831, %v9959
        %v10293 = vsel %vm6234, %v9833, %v9961
        %v10294 = vsel %vm6234, %v9835, %v9963
        %v10295 = vsel %vm6234, %v9837, %v9965
        %v10296 = vsel %vm6234, %v9839, %v9967
        %v10297 = vsel %vm6234, %v9841, %v9969
        %v10298 = vsel %vm6234, %v9843, %v9971
        %v10299 = vsel %vm6234, %v9845, %v9973
        %v10300 = vsel %vm6234, %v9847, %v9975
        %v10301 = vsel %vm6234, %v9849, %v9977
        %v10302 = vsel %vm6234, %v9851, %v9979
        %v10303 = vsel %vm6234, %v9853, %v9981
        %v10304 = vsel %vm6234, %v9855, %v9983
        %v10305 = vsel %vm6234, %v9857, %v9985
        %vm10306 = vcmask 130048
        %v10307 = vsel %vm10306, %v10274, %v10051
        %v10308 = vsel %vm10306, %v10275, %v10053
        %v10309 = vsel %vm10306, %v10276, %v10055
        %v10310 = vsel %vm10306, %v10277, %v10057
        %v10311 = vsel %vm10306, %v10278, %v10059
        %v10312 = vsel %vm10306, %v10279, %v10061
        %v10313 = vsel %vm10306, %v10280, %v10063
        %v10314 = vsel %vm10306, %v10281, %v10065
        %v10315 = vsel %vm10306, %v10282, %v10067
        %v10316 = vsel %vm10306, %v10283, %v10069
        %v10317 = vsel %vm10306, %v10284, %v10071
        %v10318 = vsel %vm10306, %v10285, %v10073
        %v10319 = vsel %vm10306, %v10286, %v10075
        %v10320 = vsel %vm10306, %v10287, %v10077
        %v10321 = vsel %vm10306, %v10288, %v10079
        %v10322 = vsel %vm10306, %v10289, %v10081
        %v10323 = vsel %vm10306, %v10290, %v10083
        %v10324 = vsel %vm10306, %v10291, %v10085
        %v10325 = vsel %vm10306, %v10292, %v10087
        %v10326 = vsel %vm10306, %v10293, %v10089
        %v10327 = vsel %vm10306, %v10294, %v10091
        %v10328 = vsel %vm10306, %v10295, %v10093
        %v10329 = vsel %vm10306, %v10296, %v10095
        %v10330 = vsel %vm10306, %v10297, %v10097
        %v10331 = vsel %vm10306, %v10298, %v10099
        %v10332 = vsel %vm10306, %v10299, %v10101
        %v10333 = vsel %vm10306, %v10300, %v10103
        %v10334 = vsel %vm10306, %v10301, %v10105
        %v10335 = vsel %vm10306, %v10302, %v10107
        %v10336 = vsel %vm10306, %v10303, %v10109
        %v10337 = vsel %vm10306, %v10304, %v10111
        %v10338 = vsel %vm10306, %v10305, %v10113
        %vm10339 = vcmask 195584
        %v10340 = vsel %vm10339, %v10307, %v10179
        %v10341 = vsel %vm10339, %v10308, %v10181
        %v10342 = vsel %vm10339, %v10309, %v10183
        %v10343 = vsel %vm10339, %v10310, %v10185
        %v10344 = vsel %vm10339, %v10311, %v10187
        %v10345 = vsel %vm10339, %v10312, %v10189
        %v10346 = vsel %vm10339, %v10313, %v10191
        %v10347 = vsel %vm10339, %v10314, %v10193
        %v10348 = vsel %vm10339, %v10315, %v10195
        %v10349 = vsel %vm10339, %v10316, %v10197
        %v10350 = vsel %vm10339, %v10317, %v10199
        %v10351 = vsel %vm10339, %v10318, %v10201
        %v10352 = vsel %vm10339, %v10319, %v10203
        %v10353 = vsel %vm10339, %v10320, %v10205
        %v10354 = vsel %vm10339, %v10321, %v10207
        %v10355 = vsel %vm10339, %v10322, %v10209
        %v10356 = vsel %vm10339, %v10323, %v10211
        %v10357 = vsel %vm10339, %v10324, %v10213
        %v10358 = vsel %vm10339, %v10325, %v10215
        %v10359 = vsel %vm10339, %v10326, %v10217
        %v10360 = vsel %vm10339, %v10327, %v10219
        %v10361 = vsel %vm10339, %v10328, %v10221
        %v10362 = vsel %vm10339, %v10329, %v10223
        %v10363 = vsel %vm10339, %v10330, %v10225
        %v10364 = vsel %vm10339, %v10331, %v10227
        %v10365 = vsel %vm10339, %v10332, %v10229
        %v10366 = vsel %vm10339, %v10333, %v10231
        %v10367 = vsel %vm10339, %v10334, %v10233
        %v10368 = vsel %vm10339, %v10335, %v10235
        %v10369 = vsel %vm10339, %v10336, %v10237
        %v10370 = vsel %vm10339, %v10337, %v10239
        %v10371 = vsel %vm10339, %v10338, %v10241
        %vm10372 = vcmask 261120
        %10373 = vst.msk [vmem:[%s514] sm:$0xff] %vm10372, %v10340
        %10374 = vst.msk [vmem:[%s514 + $0x8] sm:$0xff] %vm10372, %v10341
        %10375 = vst.msk [vmem:[%s514 + $0x10] sm:$0xff] %vm10372, %v10342
        %10376 = vst.msk [vmem:[%s514 + $0x18] sm:$0xff] %vm10372, %v10343
        %10377 = vst.msk [vmem:[%s514 + $0x20] sm:$0xff] %vm10372, %v10344
        %10378 = vst.msk [vmem:[%s514 + $0x28] sm:$0xff] %vm10372, %v10345
        %10379 = vst.msk [vmem:[%s514 + $0x30] sm:$0xff] %vm10372, %v10346
        %10380 = vst.msk [vmem:[%s514 + $0x38] sm:$0xff] %vm10372, %v10347
        %10381 = vst.msk [vmem:[%s514 + $0x40] sm:$0xff] %vm10372, %v10348
        %10382 = vst.msk [vmem:[%s514 + $0x48] sm:$0xff] %vm10372, %v10349
        %10383 = vst.msk [vmem:[%s514 + $0x50] sm:$0xff] %vm10372, %v10350
        %10384 = vst.msk [vmem:[%s514 + $0x58] sm:$0xff] %vm10372, %v10351
        %10385 = vst.msk [vmem:[%s514 + $0x60] sm:$0xff] %vm10372, %v10352
        %10386 = vst.msk [vmem:[%s514 + $0x68] sm:$0xff] %vm10372, %v10353
        %10387 = vst.msk [vmem:[%s514 + $0x70] sm:$0xff] %vm10372, %v10354
        %10388 = vst.msk [vmem:[%s514 + $0x78] sm:$0xff] %vm10372, %v10355
        %10389 = vst.msk [vmem:[%s514 + $0x80] sm:$0xff] %vm10372, %v10356
        %10390 = vst.msk [vmem:[%s514 + $0x88] sm:$0xff] %vm10372, %v10357
        %10391 = vst.msk [vmem:[%s514 + $0x90] sm:$0xff] %vm10372, %v10358
        %10392 = vst.msk [vmem:[%s514 + $0x98] sm:$0xff] %vm10372, %v10359
        %10393 = vst.msk [vmem:[%s514 + $0xa0] sm:$0xff] %vm10372, %v10360
        %10394 = vst.msk [vmem:[%s514 + $0xa8] sm:$0xff] %vm10372, %v10361
        %10395 = vst.msk [vmem:[%s514 + $0xb0] sm:$0xff] %vm10372, %v10362
        %10396 = vst.msk [vmem:[%s514 + $0xb8] sm:$0xff] %vm10372, %v10363
        %10397 = vst.msk [vmem:[%s514 + $0xc0] sm:$0xff] %vm10372, %v10364
        %10398 = vst.msk [vmem:[%s514 + $0xc8] sm:$0xff] %vm10372, %v10365
        %10399 = vst.msk [vmem:[%s514 + $0xd0] sm:$0xff] %vm10372, %v10366
        %10400 = vst.msk [vmem:[%s514 + $0xd8] sm:$0xff] %vm10372, %v10367
        %10401 = vst.msk [vmem:[%s514 + $0xe0] sm:$0xff] %vm10372, %v10368
        %10402 = vst.msk [vmem:[%s514 + $0xe8] sm:$0xff] %vm10372, %v10369
        %10403 = vst.msk [vmem:[%s514 + $0xf0] sm:$0xff] %vm10372, %v10370
        %10404 = vst.msk [vmem:[%s514 + $0xf8] sm:$0xff] %vm10372, %v10371
        %s10405 = sand.u32 %s379, 1
        %s10406 = scalar_lea.sflag [#allocation4], %s10405
        %s10407 = sand.u32 %s379, 1
        %s10408 = smul.addr %s10407, 256
        %s10409 = scalar_lea.vmem [#allocation3], %s10408
        // Predicated region
        $region85: #{inception_forward.1} parent=83 // pred_check
          %p10410 = pneg %p389
        $region86: #{inception_forward.1} parent=83 // pred_check_branch
          %10412 = sbr.rel (%p10410) target = $region88
        $region87: #{inception_forward.1} parent=83 // pred_region
          %10414 = vsyncadd %s10406, 0
          %s10415 = smul.addr %s30, 32
          %s10416 = smul.addr %s10415, 8
          %s10417 = scalar_lea.hbm %s16, %s10416
          %s10418 = sshll.u32 %s10409, 4
          %s10419 = int_to_ptr.vmem [resolvable:$true] %s10418
          %s10420 = sshll.u32 %s10417, 4
          %s10421 = int_to_ptr.hbm [resolvable:$true] %s10420
          %10426 = dma.vmem_to_hbm [thread:$0]  %s10419, 4096, %s10421, %s10406, 128, 128, 8
        $region88: #{inception_forward.1} parent=83 // pred_fallthru
          _
      $region84: #{inception_forward.1} parent=5 // pred_fallthru
        _
      %p10427 = scmp.le.s32.totalorder 2, %s25
      // Predicated region
      $region89: #{inception_forward.1} parent=5 // pred_check
        %p10428 = pneg %p10427
      $region90: #{inception_forward.1} parent=5 // pred_check_branch
        %10430 = sbr.rel (%p10428) target = $region92
      $region91: #{inception_forward.1} parent=5 // pred_region
        %s10431 = ssub.s32 %s25, 2
        // Predicated region
        $region93: #{inception_forward.1} parent=91 // pred_check
          %p10432 = pneg %p395
        $region94: #{inception_forward.1} parent=91 // pred_check_branch
          %10434 = sbr.rel (%p10432) target = $region96
        $region95: #{inception_forward.1} parent=91 // pred_region
          %s10435 = sand.u32 %s380, 1
          %s10436 = scalar_lea.sflag [#allocation4], %s10435
          %s10437 = sand.u32 %s380, 1
          %s10438 = smul.addr %s10437, 256
          %s10439 = scalar_lea.vmem [#allocation3], %s10438
          %10441 = dma.done %s10436, 4096
        $region96: #{inception_forward.1} parent=91 // pred_fallthru
          _
      $region92: #{inception_forward.1} parent=5 // pred_fallthru
        _
    $region6: #{inception_forward.1} parent=1 // loop_footer
      %s29 = sadd.s32 1, %s25
    $region7: #{inception_forward.1} parent=1 // loop_footer_branch
      %24 = sbr.rel target = $region3
    $region8: #{inception_forward.1} parent=1 // loop_exit
      _
    %10442 = vsyncpa [#allocation4], 1
    %s10443 = scalar_lea.sflag [#allocation4], 1
    %10444 = vsyncpa %s10443, 1

</llo_original>
